<compile_context>
chip_gen: v6e
topology: v6e:2x2x1
jax: 0.10.0
libtpu: 0.0.40
codegen_flags: <defaults>
</compile_context>

<pallas_src>
import math
from functools import partial

import jax
import jax.numpy as jnp
from jax.experimental import pallas as pl
from jax.experimental.pallas import tpu as pltpu

_LANES = 128


# ---------------------------------------------------------------------------
# One-time parameter layout plumbing: pack everything into ONE (rows, 128)
# f32 slab.  Each entry starts on an 8-sublane boundary; lanes beyond the
# logical column count are zero.
# ---------------------------------------------------------------------------
def prepare_params(p, hidden_dim, batch_size, seq_len):
    H, B, T = hidden_dim, batch_size, seq_len
    assert H <= _LANES and 2 * H <= _LANES

    entries = []

    def add(name, arr):
        arr = jnp.asarray(arr, jnp.float32)
        if arr.ndim == 1:
            arr = arr.reshape(1, -1)
        assert arr.ndim == 2 and arr.shape[1] <= _LANES, (name, arr.shape)
        entries.append((name, arr))

    def add_gru(prefix, gru_params, in_splits):
        # PyTorch GRU layout: rows [0:H]=r, [H:2H]=z, [2H:3H]=n.
        w_ih, w_hh, b_ih, b_hh = gru_params
        for g, gname in enumerate('rzn'):
            rs = slice(g * H, (g + 1) * H)
            for tag, start, size in in_splits:      # concat inputs -> split matmuls
                add(f'{prefix}_wih_{tag}_{gname}', w_ih[rs, start:start + size].T)
            add(f'{prefix}_whh_{gname}', w_hh[rs, :].T)
            if gname == 'n':
                add(f'{prefix}_bi_{gname}', b_ih[rs])      # b_hn stays inside r*( )
                add(f'{prefix}_bhn', b_hh[rs])
            else:
                add(f'{prefix}_bi_{gname}', b_ih[rs] + b_hh[rs])   # fold b_ih+b_hh

    I = p['enc1'][0].shape[1]
    add_gru('e1', p['enc1'], [('x', 0, I)])
    add_gru('e2', p['enc2'], [('h', 0, H)])
    add_gru('d1', p['dec1'], [('a', 0, H), ('b', H, H)])   # cat(attended, enc1)
    add_gru('d2', p['dec2'], [('a', 0, H), ('b', H, I)])   # cat(dec1, x)

    # FiLM: linear1/linear2 weights shared from meta_layer1 (PyTorch rebinding
    # semantics); biases + linear3 per layer.  Biases pre-stacked for the
    # batched (4*T*B rows) generator prologue.
    add('film_w1', p['meta1_l1_w'].T)
    add('film_w2', p['meta1_l2_w'].T)
    n1 = p['meta1_l1_b'].shape[0]
    n2 = p['meta1_l2_b'].shape[0]
    add('film_b1', jnp.concatenate(
        [jnp.broadcast_to(p[f'meta{k}_l1_b'], (T * B, n1)) for k in range(1, 5)], 0))
    add('film_b2', jnp.concatenate(
        [jnp.broadcast_to(p[f'meta{k}_l2_b'], (T * B, n2)) for k in range(1, 5)], 0))
    for k in range(1, 5):
        add(f'film_w3_{k}', p[f'meta{k}_l3_w'].T)
        add(f'film_b3_{k}', p[f'meta{k}_l3_b'])

    add('attn_w1', p['attn_c1_w'][:, :, 0].T)   # (H, A)
    add('attn_b1', p['attn_c1_b'])
    add('attn_w2', p['attn_c2_w'][0, :, 0])     # (1, A) row vector
    add('attn_b2', p['attn_c2_b'].reshape(1, 1))

    add('out_w', p['out_w'].T)                  # (H, O) -> lane-dense padded output
    add('out_b', p['out_b'])

    blocks, offsets, row = [], {}, 0
    for name, arr in entries:
        r, c = arr.shape
        r_pad = ((r + 7) // 8) * 8
        buf = jnp.zeros((r_pad, _LANES), jnp.float32).at[:r, :c].set(arr)
        offsets[name] = (row, r, c)
        blocks.append(buf)
        row += r_pad
    slab = jnp.concatenate(blocks, axis=0)
    return slab, offsets


# ---------------------------------------------------------------------------
# Fused kernel factory (offsets / dims baked in as Python constants).
# Time-major flattened layout: x (T*B, I), sequence tensors (T*B, H/128).
# ---------------------------------------------------------------------------
def make_kernel(offsets, *, seq_len, batch, hidden):
    T, B, H = seq_len, batch, hidden
    TB = T * B

    def kernel(x_ref, ctx_ref, slab_ref, out_ref, seq_ref):
        f32 = jnp.float32

        def full(name):                       # full 128-lane, zero-padded view
            r0, r, _ = offsets[name]
            return slab_ref[r0:r0 + r, :]

        def compact(name):                    # original column count
            r0, r, c = offsets[name]
            return slab_ref[r0:r0 + r, :][:, :c]

        def dot(a, b):
            return jnp.dot(a, b, preferred_element_type=f32)

        x = x_ref[...]                        # (T*B, I)

        # ---- FiLM generator prologue: all 4 layers batched on 4*T*B rows.
        ctx_t = ctx_ref[...]                  # (4*T*B, M)
        h1 = jax.nn.sigmoid(dot(ctx_t, compact('film_w1')) + compact('film_b1'))
        h2 = jax.nn.sigmoid(dot(h1, compact('film_w2')) + compact('film_b2'))

        def film(seq, k):
            gb = jax.nn.sigmoid(
                dot(h2[k * TB:(k + 1) * TB], compact(f'film_w3_{k + 1}'))
                + compact(f'film_b3_{k + 1}'))            # (T*B, 2H)
            return gb[:, :H] * seq + gb[:, H:2 * H]

        def in_proj(prefix, pieces):
            # Precompute gi = sum_j inp_j @ W_ih_j^T + folded biases for ALL
            # timesteps at once; one (T*B, 128) array per gate (gate padded
            # to its own 128-lane tile, padding lanes are exactly 0).
            gis = []
            for g in 'rzn':
                gi = full(f'{prefix}_bi_{g}')
                for _, act in pieces:
                    gi = gi + dot(act, full(f'{prefix}_wih_{_}_{g}'))
                gis.append(gi)
            return gis

        def gru(prefix, gi_r, gi_z, gi_n):
            # r|z|n gate columns live at lane offsets 0 / 128 / 256 -> every
            # slice inside the serial recurrence is 128-aligned (free).
            # NOTE: weight-resident MXU (pltpu.matmul_push_rhs) intentionally
            # not used; jnp.dot per step for lowering robustness.
            whh = jnp.concatenate(
                [full(f'{prefix}_whh_{g}') for g in 'rzn'], axis=-1)   # (H, 384)
            bhn = full(f'{prefix}_bhn')                                # (1, 128)
            h = jnp.zeros((B, _LANES), f32)   # padded lanes provably stay 0
            for t in range(T):                # fully unrolled, h carried in vregs
                lo, hi = t * B, (t + 1) * B
                gh = dot(h[:, :H], whh)                               # (B, 384)
                r = jax.nn.sigmoid(gi_r[lo:hi] + gh[:, :_LANES])
                z = jax.nn.sigmoid(gi_z[lo:hi] + gh[:, _LANES:2 * _LANES])
                n = jnp.tanh(gi_n[lo:hi] + r * (gh[:, 2 * _LANES:] + bhn))
                h = (1.0 - z) * n + z * h
                seq_ref[lo:hi, :] = h
            # Value is read before the scratch is recycled by the next layer.
            return seq_ref[...][:, :H]                                # (T*B, H)

        # ---- encoder path
        enc1 = film(gru('e1', *in_proj('e1', [('x', x)])), 0)
        enc2 = film(gru('e2', *in_proj('e2', [('h', enc1)])), 1)

        # ---- attention: 1x1 conv -> ReLU -> (VPU mul + lane reduce) -> sigmoid
        a_h = jnp.maximum(dot(enc2, compact('attn_w1')) + compact('attn_b1'), 0.0)
        a_w = jax.nn.sigmoid(
            jnp.sum(a_h * compact('attn_w2'), axis=-1, keepdims=True)
            + compact('attn_b2'))
        attended = enc2 * a_w

        # ---- decoder path (concat inputs via split matmuls)
        dec1 = film(gru('d1', *in_proj('d1', [('a', attended), ('b', enc1)])), 2)
        dec2 = film(gru('d2', *in_proj('d2', [('a', dec1), ('b', x)])), 3)

        # ---- output linear, lane-dense (O padded to 128 lanes)
        out_ref[...] = dot(dec2, full('out_w')) + full('out_b')

    return kernel


# ---------------------------------------------------------------------------
# Forward wrapper: one fused pallas_call, 3 inputs, everything in VMEM.
# ---------------------------------------------------------------------------
def unet_gru_forward(x, context, slab, offsets, *, hidden_dim, output_dim):
    B, T, _ = x.shape
    TB = T * B

    x_flat = jnp.transpose(x, (1, 0, 2)).reshape(TB, -1)      # (T*B, I), time-major
    ctx_t = jnp.tile(context, (4 * T, 1))                     # (4*T*B, M)

    kernel = make_kernel(offsets, seq_len=T, batch=B, hidden=hidden_dim)
    out = pl.pallas_call(
        kernel,
        out_shape=jax.ShapeDtypeStruct((TB, _LANES), jnp.float32),
        in_specs=[pl.BlockSpec(memory_space=pltpu.MemorySpace.VMEM)] * 3,
        out_specs=pl.BlockSpec(memory_space=pltpu.MemorySpace.VMEM),
        scratch_shapes=[pltpu.VMEM((TB, _LANES), jnp.float32)],
    )(x_flat, ctx_t, slab)

    out = out.reshape(T, B, _LANES)[:, :, :output_dim]        # drop lane padding
    return jnp.transpose(out, (1, 0, 2))                      # (B, T, O)


# ---------------------------------------------------------------------------
# Pure-JAX reference (for correctness check).
# ---------------------------------------------------------------------------
def _gru_ref(x, w_ih, w_hh, b_ih, b_hh):
    B, T, _ = x.shape
    H = w_hh.shape[1]

    def step(h, x_t):
        gi = x_t @ w_ih.T + b_ih
        gh = h @ w_hh.T + b_hh
        r = jax.nn.sigmoid(gi[:, :H] + gh[:, :H])
        z = jax.nn.sigmoid(gi[:, H:2 * H] + gh[:, H:2 * H])
        n = jnp.tanh(gi[:, 2 * H:] + r * gh[:, 2 * H:])
        h_new = (1.0 - z) * n + z * h
        return h_new, h_new

    _, ys = jax.lax.scan(step, jnp.zeros((B, H), jnp.float32),
                         jnp.transpose(x, (1, 0, 2)))
    return jnp.transpose(ys, (1, 0, 2))


def _film_ref(fmap, ctx, l1_w, l1_b, l2_w, l2_b, l3_w, l3_b):
    h1 = jax.nn.sigmoid(ctx @ l1_w.T + l1_b)
    h2 = jax.nn.sigmoid(h1 @ l2_w.T + l2_b)
    gb = jax.nn.sigmoid(h2 @ l3_w.T + l3_b)
    H = fmap.shape[-1]
    return gb[:, None, :H] * fmap + gb[:, None, H:]


def _attn_ref(x, c1_w, c1_b, c2_w, c2_b):
    h = jnp.maximum(jnp.einsum('bth,ah->bta', x, c1_w[:, :, 0]) + c1_b, 0.0)
    a = jax.nn.sigmoid(jnp.einsum('bta,oa->bto', h, c2_w[:, :, 0]) + c2_b)
    return x * a


def unet_gru_ref(x, context, p):
    sw1, sw2 = p['meta1_l1_w'], p['meta1_l2_w']   # shared across meta-layers

    def film(fmap, k):
        return _film_ref(fmap, context,
                         sw1, p[f'meta{k}_l1_b'],
                         sw2, p[f'meta{k}_l2_b'],
                         p[f'meta{k}_l3_w'], p[f'meta{k}_l3_b'])

    enc1 = _gru_ref(x, *p['enc1'])
    enc1 = film(enc1, 1)
    enc2 = _gru_ref(enc1, *p['enc2'])
    enc2 = film(enc2, 2)
    attended = _attn_ref(enc2, p['attn_c1_w'], p['attn_c1_b'],
                         p['attn_c2_w'], p['attn_c2_b'])
    dec1 = _gru_ref(jnp.concatenate([attended, enc1], axis=2), *p['dec1'])
    dec1 = film(dec1, 3)
    dec2 = _gru_ref(jnp.concatenate([dec1, x], axis=2), *p['dec2'])
    dec2 = film(dec2, 4)
    return jnp.einsum('bth,oh->bto', dec2, p['out_w']) + p['out_b']


# ---------------------------------------------------------------------------
# Deterministic parameter init (shapes follow the PyTorch __init__).
# ---------------------------------------------------------------------------
def init_params(key, meta_dim, input_dim, hidden_dim, output_dim, attn_ch):
    H = hidden_dim
    keys = iter(jax.random.split(key, 64))

    def u(shape, scale):
        return jax.random.uniform(next(keys), shape, jnp.float32, -scale, scale)

    def gru_p(in_dim):
        s = 1.0 / math.sqrt(H)
        return (u((3 * H, in_dim), s), u((3 * H, H), s),
                u((3 * H,), s), u((3 * H,), s))

    p = {
        'enc1': gru_p(input_dim),
        'enc2': gru_p(H),
        'dec1': gru_p(2 * H),
        'dec2': gru_p(H + input_dim),
        'attn_c1_w': u((attn_ch, H, 1), 1.0 / math.sqrt(H)),
        'attn_c1_b': u((attn_ch,), 1.0 / math.sqrt(H)),
        'attn_c2_w': u((1, attn_ch, 1), 1.0 / math.sqrt(attn_ch)),
        'attn_c2_b': u((1,), 1.0 / math.sqrt(attn_ch)),
        'out_w': u((output_dim, H), 1.0 / math.sqrt(H)),
        'out_b': u((output_dim,), 1.0 / math.sqrt(H)),
    }
    n_hid = 64
    for k in range(1, 5):
        p[f'meta{k}_l1_w'] = u((n_hid, meta_dim), 1.0 / math.sqrt(meta_dim))
        p[f'meta{k}_l1_b'] = u((n_hid,), 1.0 / math.sqrt(meta_dim))
        p[f'meta{k}_l2_w'] = u((n_hid // 4, n_hid), 1.0 / math.sqrt(n_hid))
        p[f'meta{k}_l2_b'] = u((n_hid // 4,), 1.0 / math.sqrt(n_hid))
        p[f'meta{k}_l3_w'] = u((2 * H, n_hid // 4), 1.0 / math.sqrt(n_hid // 4))
        p[f'meta{k}_l3_b'] = u((2 * H,), 1.0 / math.sqrt(n_hid // 4))
    return p


if __name__ == "__main__":
    B, T = 2, 8
    meta_dim, input_dim, hidden_dim, output_dim, attn_ch = 6, 4, 32, 3, 8

    key = jax.random.PRNGKey(0)
    k_x, k_ctx, k_p = jax.random.split(key, 3)
    x = jax.random.normal(k_x, (B, T, input_dim), jnp.float32)
    context = jax.random.normal(k_ctx, (B, meta_dim), jnp.float32)
    params = init_params(k_p, meta_dim, input_dim, hidden_dim, output_dim, attn_ch)

    slab, offsets = prepare_params(params, hidden_dim, B, T)   # one-time packing
    fwd = jax.jit(partial(unet_gru_forward, slab=slab, offsets=offsets,
                          hidden_dim=hidden_dim, output_dim=output_dim))
    out = jax.block_until_ready(fwd(x, context))

    with jax.default_matmul_precision("highest"):
        ref = jax.block_until_ready(unet_gru_ref(x, context, params))

    assert out.shape == (B, T, output_dim)
    assert bool(jnp.all(jnp.isfinite(out)))
    max_err = float(jnp.max(jnp.abs(out - ref)))
    assert max_err < 5e-3, f"mismatch vs reference: {max_err}"

    print("KERNEL_OK")
</pallas_src>

<mosaic_0001>
module attributes {stable_mosaic.version = 11 : i64} {
  func.func @kernel(%arg0: memref<16x4xf32, #tpu.memory_space<vmem>>, %arg1: memref<64x6xf32, #tpu.memory_space<vmem>>, %arg2: memref<1336x128xf32, #tpu.memory_space<vmem>>, %arg3: memref<16x128xf32, #tpu.memory_space<vmem>>, %arg4: memref<16x128xf32, #tpu.memory_space<vmem>>) attributes {dimension_semantics = [], scalar_prefetch = 0 : i64, scratch_operands = 1 : i64, tpu.core_type = #tpu.core_type<tc>} {
    %c0 = arith.constant 0 : index
    %c0_0 = arith.constant 0 : index
    %0 = vector.load %arg0[%c0, %c0_0] : memref<16x4xf32, #tpu.memory_space<vmem>>, vector<16x4xf32>
    %c0_1 = arith.constant 0 : index
    %c0_2 = arith.constant 0 : index
    %1 = vector.load %arg1[%c0_1, %c0_2] : memref<64x6xf32, #tpu.memory_space<vmem>>, vector<64x6xf32>
    %c944 = arith.constant 944 : index
    %c0_3 = arith.constant 0 : index
    %2 = vector.load %arg2[%c944, %c0_3] : memref<1336x128xf32, #tpu.memory_space<vmem>>, vector<6x128xf32>
    %3 = vector.extract_strided_slice %2 {offsets = [0, 0], sizes = [6, 64], strides = [1, 1]} : vector<6x128xf32> to vector<6x64xf32>
    %cst = arith.constant dense<0.000000e+00> : vector<64x64xf32>
    %4 = tpu.matmul %1, %3, %cst {dimension_numbers = #tpu.dot_dimension_numbers<[1], [0], [0], [1], [0, 0, 1, 1], [], []>} : vector<64x6xf32>, vector<6x64xf32>, vector<64x64xf32> -> vector<64x64xf32>
    %c1016 = arith.constant 1016 : index
    %c0_4 = arith.constant 0 : index
    %5 = vector.load %arg2[%c1016, %c0_4] : memref<1336x128xf32, #tpu.memory_space<vmem>>, vector<64x128xf32>
    %6 = vector.extract_strided_slice %5 {offsets = [0, 0], sizes = [64, 64], strides = [1, 1]} : vector<64x128xf32> to vector<64x64xf32>
    %7 = arith.addf %4, %6 : vector<64x64xf32>
    %8 = arith.negf %7 : vector<64x64xf32>
    %9 = math.exp %8 : vector<64x64xf32>
    %cst_5 = arith.constant 1.000000e+00 : f32
    %10 = vector.broadcast %cst_5 : f32 to vector<64x64xf32>
    %11 = arith.addf %10, %9 : vector<64x64xf32>
    %12 = arith.divf %10, %11 : vector<64x64xf32>
    %c952 = arith.constant 952 : index
    %c0_6 = arith.constant 0 : index
    %13 = vector.load %arg2[%c952, %c0_6] : memref<1336x128xf32, #tpu.memory_space<vmem>>, vector<64x128xf32>
    %14 = vector.extract_strided_slice %13 {offsets = [0, 0], sizes = [64, 16], strides = [1, 1]} : vector<64x128xf32> to vector<64x16xf32>
    %cst_7 = arith.constant dense<0.000000e+00> : vector<64x16xf32>
    %15 = tpu.matmul %12, %14, %cst_7 {dimension_numbers = #tpu.dot_dimension_numbers<[1], [0], [0], [1], [0, 0, 1, 1], [], []>} : vector<64x64xf32>, vector<64x16xf32>, vector<64x16xf32> -> vector<64x16xf32>
    %c1080 = arith.constant 1080 : index
    %c0_8 = arith.constant 0 : index
    %16 = vector.load %arg2[%c1080, %c0_8] : memref<1336x128xf32, #tpu.memory_space<vmem>>, vector<64x128xf32>
    %17 = vector.extract_strided_slice %16 {offsets = [0, 0], sizes = [64, 16], strides = [1, 1]} : vector<64x128xf32> to vector<64x16xf32>
    %18 = arith.addf %15, %17 : vector<64x16xf32>
    %19 = arith.negf %18 : vector<64x16xf32>
    %20 = math.exp %19 : vector<64x16xf32>
    %cst_9 = arith.constant 1.000000e+00 : f32
    %21 = vector.broadcast %cst_9 : f32 to vector<64x16xf32>
    %22 = arith.addf %21, %20 : vector<64x16xf32>
    %23 = arith.divf %21, %22 : vector<64x16xf32>
    %c40 = arith.constant 40 : index
    %c0_10 = arith.constant 0 : index
    %24 = vector.load %arg2[%c40, %c0_10] : memref<1336x128xf32, #tpu.memory_space<vmem>>, vector<1x128xf32>
    %c0_11 = arith.constant 0 : index
    %c0_12 = arith.constant 0 : index
    %25 = vector.load %arg2[%c0_11, %c0_12] : memref<1336x128xf32, #tpu.memory_space<vmem>>, vector<4x128xf32>
    %cst_13 = arith.constant dense<0.000000e+00> : vector<16x128xf32>
    %26 = tpu.matmul %0, %25, %cst_13 {dimension_numbers = #tpu.dot_dimension_numbers<[1], [0], [0], [1], [0, 0, 1, 1], [], []>} : vector<16x4xf32>, vector<4x128xf32>, vector<16x128xf32> -> vector<16x128xf32>
    %27 = vector.broadcast %24 : vector<1x128xf32> to vector<16x128xf32>
    %28 = arith.addf %27, %26 : vector<16x128xf32>
    %c88 = arith.constant 88 : index
    %c0_14 = arith.constant 0 : index
    %29 = vector.load %arg2[%c88, %c0_14] : memref<1336x128xf32, #tpu.memory_space<vmem>>, vector<1x128xf32>
    %c48 = arith.constant 48 : index
    %c0_15 = arith.constant 0 : index
    %30 = vector.load %arg2[%c48, %c0_15] : memref<1336x128xf32, #tpu.memory_space<vmem>>, vector<4x128xf32>
    %cst_16 = arith.constant dense<0.000000e+00> : vector<16x128xf32>
    %31 = tpu.matmul %0, %30, %cst_16 {dimension_numbers = #tpu.dot_dimension_numbers<[1], [0], [0], [1], [0, 0, 1, 1], [], []>} : vector<16x4xf32>, vector<4x128xf32>, vector<16x128xf32> -> vector<16x128xf32>
    %32 = vector.broadcast %29 : vector<1x128xf32> to vector<16x128xf32>
    %33 = arith.addf %32, %31 : vector<16x128xf32>
    %c136 = arith.constant 136 : index
    %c0_17 = arith.constant 0 : index
    %34 = vector.load %arg2[%c136, %c0_17] : memref<1336x128xf32, #tpu.memory_space<vmem>>, vector<1x128xf32>
    %c96 = arith.constant 96 : index
    %c0_18 = arith.constant 0 : index
    %35 = vector.load %arg2[%c96, %c0_18] : memref<1336x128xf32, #tpu.memory_space<vmem>>, vector<4x128xf32>
    %cst_19 = arith.constant dense<0.000000e+00> : vector<16x128xf32>
    %36 = tpu.matmul %0, %35, %cst_19 {dimension_numbers = #tpu.dot_dimension_numbers<[1], [0], [0], [1], [0, 0, 1, 1], [], []>} : vector<16x4xf32>, vector<4x128xf32>, vector<16x128xf32> -> vector<16x128xf32>
    %37 = vector.broadcast %34 : vector<1x128xf32> to vector<16x128xf32>
    %38 = arith.addf %37, %36 : vector<16x128xf32>
    %c8 = arith.constant 8 : index
    %c0_20 = arith.constant 0 : index
    %39 = vector.load %arg2[%c8, %c0_20] : memref<1336x128xf32, #tpu.memory_space<vmem>>, vector<32x128xf32>
    %c56 = arith.constant 56 : index
    %c0_21 = arith.constant 0 : index
    %40 = vector.load %arg2[%c56, %c0_21] : memref<1336x128xf32, #tpu.memory_space<vmem>>, vector<32x128xf32>
    %c104 = arith.constant 104 : index
    %c0_22 = arith.constant 0 : index
    %41 = vector.load %arg2[%c104, %c0_22] : memref<1336x128xf32, #tpu.memory_space<vmem>>, vector<32x128xf32>
    %42 = tpu.concatenate %39, %40, %41 in 1 : vector<32x128xf32>, vector<32x128xf32>, vector<32x128xf32> -> vector<32x384xf32>
    %c144 = arith.constant 144 : index
    %c0_23 = arith.constant 0 : index
    %43 = vector.load %arg2[%c144, %c0_23] : memref<1336x128xf32, #tpu.memory_space<vmem>>, vector<1x128xf32>
    %cst_24 = arith.constant 0.000000e+00 : f32
    %44 = vector.broadcast %cst_24 : f32 to vector<2x128xf32>
    %45 = vector.extract_strided_slice %44 {offsets = [0, 0], sizes = [2, 32], strides = [1, 1]} : vector<2x128xf32> to vector<2x32xf32>
    %cst_25 = arith.constant dense<0.000000e+00> : vector<2x384xf32>
    %46 = tpu.matmul %45, %42, %cst_25 {dimension_numbers = #tpu.dot_dimension_numbers<[1], [0], [0], [1], [0, 0, 1, 1], [], []>} : vector<2x32xf32>, vector<32x384xf32>, vector<2x384xf32> -> vector<2x384xf32>
    %47 = vector.extract_strided_slice %28 {offsets = [0, 0], sizes = [2, 128], strides = [1, 1]} : vector<16x128xf32> to vector<2x128xf32>
    %48 = vector.extract_strided_slice %46 {offsets = [0, 0], sizes = [2, 128], strides = [1, 1]} : vector<2x384xf32> to vector<2x128xf32>
    %49 = arith.addf %47, %48 : vector<2x128xf32>
    %50 = arith.negf %49 : vector<2x128xf32>
    %51 = math.exp %50 : vector<2x128xf32>
    %cst_26 = arith.constant 1.000000e+00 : f32
    %52 = vector.broadcast %cst_26 : f32 to vector<2x128xf32>
    %53 = arith.addf %52, %51 : vector<2x128xf32>
    %54 = arith.divf %52, %53 : vector<2x128xf32>
    %55 = vector.extract_strided_slice %33 {offsets = [0, 0], sizes = [2, 128], strides = [1, 1]} : vector<16x128xf32> to vector<2x128xf32>
    %56 = vector.extract_strided_slice %46 {offsets = [0, 128], sizes = [2, 128], strides = [1, 1]} : vector<2x384xf32> to vector<2x128xf32>
    %57 = arith.addf %55, %56 : vector<2x128xf32>
    %58 = arith.negf %57 : vector<2x128xf32>
    %59 = math.exp %58 : vector<2x128xf32>
    %cst_27 = arith.constant 1.000000e+00 : f32
    %60 = vector.broadcast %cst_27 : f32 to vector<2x128xf32>
    %61 = arith.addf %60, %59 : vector<2x128xf32>
    %62 = arith.divf %60, %61 : vector<2x128xf32>
    %63 = vector.extract_strided_slice %38 {offsets = [0, 0], sizes = [2, 128], strides = [1, 1]} : vector<16x128xf32> to vector<2x128xf32>
    %64 = vector.extract_strided_slice %46 {offsets = [0, 256], sizes = [2, 128], strides = [1, 1]} : vector<2x384xf32> to vector<2x128xf32>
    %65 = vector.broadcast %43 : vector<1x128xf32> to vector<2x128xf32>
    %66 = arith.addf %64, %65 : vector<2x128xf32>
    %67 = arith.mulf %54, %66 : vector<2x128xf32>
    %68 = arith.addf %63, %67 : vector<2x128xf32>
    %69 = math.tanh %68 : vector<2x128xf32>
    %cst_28 = arith.constant 1.000000e+00 : f32
    %70 = vector.broadcast %cst_28 : f32 to vector<2x128xf32>
    %71 = arith.subf %70, %62 : vector<2x128xf32>
    %72 = arith.mulf %71, %69 : vector<2x128xf32>
    %73 = arith.mulf %62, %44 : vector<2x128xf32>
    %74 = arith.addf %72, %73 : vector<2x128xf32>
    %c0_29 = arith.constant 0 : index
    %c0_30 = arith.constant 0 : index
    %75 = vector.load %arg4[%c0_29, %c0_30] : memref<16x128xf32, #tpu.memory_space<vmem>>, vector<2x128xf32>
    tpu.vector_store %arg4[%c0_29, %c0_30], %74 {strides = array<i32>} : memref<16x128xf32, #tpu.memory_space<vmem>>, vector<2x128xf32>,
    %76 = vector.extract_strided_slice %74 {offsets = [0, 0], sizes = [2, 32], strides = [1, 1]} : vector<2x128xf32> to vector<2x32xf32>
    %cst_31 = arith.constant dense<0.000000e+00> : vector<2x384xf32>
    %77 = tpu.matmul %76, %42, %cst_31 {dimension_numbers = #tpu.dot_dimension_numbers<[1], [0], [0], [1], [0, 0, 1, 1], [], []>} : vector<2x32xf32>, vector<32x384xf32>, vector<2x384xf32> -> vector<2x384xf32>
    %78 = vector.extract_strided_slice %28 {offsets = [2, 0], sizes = [2, 128], strides = [1, 1]} : vector<16x128xf32> to vector<2x128xf32>
    %79 = vector.extract_strided_slice %77 {offsets = [0, 0], sizes = [2, 128], strides = [1, 1]} : vector<2x384xf32> to vector<2x128xf32>
    %80 = arith.addf %78, %79 : vector<2x128xf32>
    %81 = arith.negf %80 : vector<2x128xf32>
    %82 = math.exp %81 : vector<2x128xf32>
    %cst_32 = arith.constant 1.000000e+00 : f32
    %83 = vector.broadcast %cst_32 : f32 to vector<2x128xf32>
    %84 = arith.addf %83, %82 : vector<2x128xf32>
    %85 = arith.divf %83, %84 : vector<2x128xf32>
    %86 = vector.extract_strided_slice %33 {offsets = [2, 0], sizes = [2, 128], strides = [1, 1]} : vector<16x128xf32> to vector<2x128xf32>
    %87 = vector.extract_strided_slice %77 {offsets = [0, 128], sizes = [2, 128], strides = [1, 1]} : vector<2x384xf32> to vector<2x128xf32>
    %88 = arith.addf %86, %87 : vector<2x128xf32>
    %89 = arith.negf %88 : vector<2x128xf32>
    %90 = math.exp %89 : vector<2x128xf32>
    %cst_33 = arith.constant 1.000000e+00 : f32
    %91 = vector.broadcast %cst_33 : f32 to vector<2x128xf32>
    %92 = arith.addf %91, %90 : vector<2x128xf32>
    %93 = arith.divf %91, %92 : vector<2x128xf32>
    %94 = vector.extract_strided_slice %38 {offsets = [2, 0], sizes = [2, 128], strides = [1, 1]} : vector<16x128xf32> to vector<2x128xf32>
    %95 = vector.extract_strided_slice %77 {offsets = [0, 256], sizes = [2, 128], strides = [1, 1]} : vector<2x384xf32> to vector<2x128xf32>
    %96 = vector.broadcast %43 : vector<1x128xf32> to vector<2x128xf32>
    %97 = arith.addf %95, %96 : vector<2x128xf32>
    %98 = arith.mulf %85, %97 : vector<2x128xf32>
    %99 = arith.addf %94, %98 : vector<2x128xf32>
    %100 = math.tanh %99 : vector<2x128xf32>
    %cst_34 = arith.constant 1.000000e+00 : f32
    %101 = vector.broadcast %cst_34 : f32 to vector<2x128xf32>
    %102 = arith.subf %101, %93 : vector<2x128xf32>
    %103 = arith.mulf %102, %100 : vector<2x128xf32>
    %104 = arith.mulf %93, %74 : vector<2x128xf32>
    %105 = arith.addf %103, %104 : vector<2x128xf32>
    %c2 = arith.constant 2 : index
    %c0_35 = arith.constant 0 : index
    %106 = vector.load %arg4[%c2, %c0_35] : memref<16x128xf32, #tpu.memory_space<vmem>>, vector<2x128xf32>
    tpu.vector_store %arg4[%c2, %c0_35], %105 {strides = array<i32>} : memref<16x128xf32, #tpu.memory_space<vmem>>, vector<2x128xf32>,
    %107 = vector.extract_strided_slice %105 {offsets = [0, 0], sizes = [2, 32], strides = [1, 1]} : vector<2x128xf32> to vector<2x32xf32>
    %cst_36 = arith.constant dense<0.000000e+00> : vector<2x384xf32>
    %108 = tpu.matmul %107, %42, %cst_36 {dimension_numbers = #tpu.dot_dimension_numbers<[1], [0], [0], [1], [0, 0, 1, 1], [], []>} : vector<2x32xf32>, vector<32x384xf32>, vector<2x384xf32> -> vector<2x384xf32>
    %109 = vector.extract_strided_slice %28 {offsets = [4, 0], sizes = [2, 128], strides = [1, 1]} : vector<16x128xf32> to vector<2x128xf32>
    %110 = vector.extract_strided_slice %108 {offsets = [0, 0], sizes = [2, 128], strides = [1, 1]} : vector<2x384xf32> to vector<2x128xf32>
    %111 = arith.addf %109, %110 : vector<2x128xf32>
    %112 = arith.negf %111 : vector<2x128xf32>
    %113 = math.exp %112 : vector<2x128xf32>
    %cst_37 = arith.constant 1.000000e+00 : f32
    %114 = vector.broadcast %cst_37 : f32 to vector<2x128xf32>
    %115 = arith.addf %114, %113 : vector<2x128xf32>
    %116 = arith.divf %114, %115 : vector<2x128xf32>
    %117 = vector.extract_strided_slice %33 {offsets = [4, 0], sizes = [2, 128], strides = [1, 1]} : vector<16x128xf32> to vector<2x128xf32>
    %118 = vector.extract_strided_slice %108 {offsets = [0, 128], sizes = [2, 128], strides = [1, 1]} : vector<2x384xf32> to vector<2x128xf32>
    %119 = arith.addf %117, %118 : vector<2x128xf32>
    %120 = arith.negf %119 : vector<2x128xf32>
    %121 = math.exp %120 : vector<2x128xf32>
    %cst_38 = arith.constant 1.000000e+00 : f32
    %122 = vector.broadcast %cst_38 : f32 to vector<2x128xf32>
    %123 = arith.addf %122, %121 : vector<2x128xf32>
    %124 = arith.divf %122, %123 : vector<2x128xf32>
    %125 = vector.extract_strided_slice %38 {offsets = [4, 0], sizes = [2, 128], strides = [1, 1]} : vector<16x128xf32> to vector<2x128xf32>
    %126 = vector.extract_strided_slice %108 {offsets = [0, 256], sizes = [2, 128], strides = [1, 1]} : vector<2x384xf32> to vector<2x128xf32>
    %127 = vector.broadcast %43 : vector<1x128xf32> to vector<2x128xf32>
    %128 = arith.addf %126, %127 : vector<2x128xf32>
    %129 = arith.mulf %116, %128 : vector<2x128xf32>
    %130 = arith.addf %125, %129 : vector<2x128xf32>
    %131 = math.tanh %130 : vector<2x128xf32>
    %cst_39 = arith.constant 1.000000e+00 : f32
    %132 = vector.broadcast %cst_39 : f32 to vector<2x128xf32>
    %133 = arith.subf %132, %124 : vector<2x128xf32>
    %134 = arith.mulf %133, %131 : vector<2x128xf32>
    %135 = arith.mulf %124, %105 : vector<2x128xf32>
    %136 = arith.addf %134, %135 : vector<2x128xf32>
    %c4 = arith.constant 4 : index
    %c0_40 = arith.constant 0 : index
    %137 = vector.load %arg4[%c4, %c0_40] : memref<16x128xf32, #tpu.memory_space<vmem>>, vector<2x128xf32>
    tpu.vector_store %arg4[%c4, %c0_40], %136 {strides = array<i32>} : memref<16x128xf32, #tpu.memory_space<vmem>>, vector<2x128xf32>,
    %138 = vector.extract_strided_slice %136 {offsets = [0, 0], sizes = [2, 32], strides = [1, 1]} : vector<2x128xf32> to vector<2x32xf32>
    %cst_41 = arith.constant dense<0.000000e+00> : vector<2x384xf32>
    %139 = tpu.matmul %138, %42, %cst_41 {dimension_numbers = #tpu.dot_dimension_numbers<[1], [0], [0], [1], [0, 0, 1, 1], [], []>} : vector<2x32xf32>, vector<32x384xf32>, vector<2x384xf32> -> vector<2x384xf32>
    %140 = vector.extract_strided_slice %28 {offsets = [6, 0], sizes = [2, 128], strides = [1, 1]} : vector<16x128xf32> to vector<2x128xf32>
    %141 = vector.extract_strided_slice %139 {offsets = [0, 0], sizes = [2, 128], strides = [1, 1]} : vector<2x384xf32> to vector<2x128xf32>
    %142 = arith.addf %140, %141 : vector<2x128xf32>
    %143 = arith.negf %142 : vector<2x128xf32>
    %144 = math.exp %143 : vector<2x128xf32>
    %cst_42 = arith.constant 1.000000e+00 : f32
    %145 = vector.broadcast %cst_42 : f32 to vector<2x128xf32>
    %146 = arith.addf %145, %144 : vector<2x128xf32>
    %147 = arith.divf %145, %146 : vector<2x128xf32>
    %148 = vector.extract_strided_slice %33 {offsets = [6, 0], sizes = [2, 128], strides = [1, 1]} : vector<16x128xf32> to vector<2x128xf32>
    %149 = vector.extract_strided_slice %139 {offsets = [0, 128], sizes = [2, 128], strides = [1, 1]} : vector<2x384xf32> to vector<2x128xf32>
    %150 = arith.addf %148, %149 : vector<2x128xf32>
    %151 = arith.negf %150 : vector<2x128xf32>
    %152 = math.exp %151 : vector<2x128xf32>
    %cst_43 = arith.constant 1.000000e+00 : f32
    %153 = vector.broadcast %cst_43 : f32 to vector<2x128xf32>
    %154 = arith.addf %153, %152 : vector<2x128xf32>
    %155 = arith.divf %153, %154 : vector<2x128xf32>
    %156 = vector.extract_strided_slice %38 {offsets = [6, 0], sizes = [2, 128], strides = [1, 1]} : vector<16x128xf32> to vector<2x128xf32>
    %157 = vector.extract_strided_slice %139 {offsets = [0, 256], sizes = [2, 128], strides = [1, 1]} : vector<2x384xf32> to vector<2x128xf32>
    %158 = vector.broadcast %43 : vector<1x128xf32> to vector<2x128xf32>
    %159 = arith.addf %157, %158 : vector<2x128xf32>
    %160 = arith.mulf %147, %159 : vector<2x128xf32>
    %161 = arith.addf %156, %160 : vector<2x128xf32>
    %162 = math.tanh %161 : vector<2x128xf32>
    %cst_44 = arith.constant 1.000000e+00 : f32
    %163 = vector.broadcast %cst_44 : f32 to vector<2x128xf32>
    %164 = arith.subf %163, %155 : vector<2x128xf32>
    %165 = arith.mulf %164, %162 : vector<2x128xf32>
    %166 = arith.mulf %155, %136 : vector<2x128xf32>
    %167 = arith.addf %165, %166 : vector<2x128xf32>
    %c6 = arith.constant 6 : index
    %c0_45 = arith.constant 0 : index
    %168 = vector.load %arg4[%c6, %c0_45] : memref<16x128xf32, #tpu.memory_space<vmem>>, vector<2x128xf32>
    tpu.vector_store %arg4[%c6, %c0_45], %167 {strides = array<i32>} : memref<16x128xf32, #tpu.memory_space<vmem>>, vector<2x128xf32>,
    %169 = vector.extract_strided_slice %167 {offsets = [0, 0], sizes = [2, 32], strides = [1, 1]} : vector<2x128xf32> to vector<2x32xf32>
    %cst_46 = arith.constant dense<0.000000e+00> : vector<2x384xf32>
    %170 = tpu.matmul %169, %42, %cst_46 {dimension_numbers = #tpu.dot_dimension_numbers<[1], [0], [0], [1], [0, 0, 1, 1], [], []>} : vector<2x32xf32>, vector<32x384xf32>, vector<2x384xf32> -> vector<2x384xf32>
    %171 = vector.extract_strided_slice %28 {offsets = [8, 0], sizes = [2, 128], strides = [1, 1]} : vector<16x128xf32> to vector<2x128xf32>
    %172 = vector.extract_strided_slice %170 {offsets = [0, 0], sizes = [2, 128], strides = [1, 1]} : vector<2x384xf32> to vector<2x128xf32>
    %173 = arith.addf %171, %172 : vector<2x128xf32>
    %174 = arith.negf %173 : vector<2x128xf32>
    %175 = math.exp %174 : vector<2x128xf32>
    %cst_47 = arith.constant 1.000000e+00 : f32
    %176 = vector.broadcast %cst_47 : f32 to vector<2x128xf32>
    %177 = arith.addf %176, %175 : vector<2x128xf32>
    %178 = arith.divf %176, %177 : vector<2x128xf32>
    %179 = vector.extract_strided_slice %33 {offsets = [8, 0], sizes = [2, 128], strides = [1, 1]} : vector<16x128xf32> to vector<2x128xf32>
    %180 = vector.extract_strided_slice %170 {offsets = [0, 128], sizes = [2, 128], strides = [1, 1]} : vector<2x384xf32> to vector<2x128xf32>
    %181 = arith.addf %179, %180 : vector<2x128xf32>
    %182 = arith.negf %181 : vector<2x128xf32>
    %183 = math.exp %182 : vector<2x128xf32>
    %cst_48 = arith.constant 1.000000e+00 : f32
    %184 = vector.broadcast %cst_48 : f32 to vector<2x128xf32>
    %185 = arith.addf %184, %183 : vector<2x128xf32>
    %186 = arith.divf %184, %185 : vector<2x128xf32>
    %187 = vector.extract_strided_slice %38 {offsets = [8, 0], sizes = [2, 128], strides = [1, 1]} : vector<16x128xf32> to vector<2x128xf32>
    %188 = vector.extract_strided_slice %170 {offsets = [0, 256], sizes = [2, 128], strides = [1, 1]} : vector<2x384xf32> to vector<2x128xf32>
    %189 = vector.broadcast %43 : vector<1x128xf32> to vector<2x128xf32>
    %190 = arith.addf %188, %189 : vector<2x128xf32>
    %191 = arith.mulf %178, %190 : vector<2x128xf32>
    %192 = arith.addf %187, %191 : vector<2x128xf32>
    %193 = math.tanh %192 : vector<2x128xf32>
    %cst_49 = arith.constant 1.000000e+00 : f32
    %194 = vector.broadcast %cst_49 : f32 to vector<2x128xf32>
    %195 = arith.subf %194, %186 : vector<2x128xf32>
    %196 = arith.mulf %195, %193 : vector<2x128xf32>
    %197 = arith.mulf %186, %167 : vector<2x128xf32>
    %198 = arith.addf %196, %197 : vector<2x128xf32>
    %c8_50 = arith.constant 8 : index
    %c0_51 = arith.constant 0 : index
    %199 = vector.load %arg4[%c8_50, %c0_51] : memref<16x128xf32, #tpu.memory_space<vmem>>, vector<2x128xf32>
    tpu.vector_store %arg4[%c8_50, %c0_51], %198 {strides = array<i32>} : memref<16x128xf32, #tpu.memory_space<vmem>>, vector<2x128xf32>,
    %200 = vector.extract_strided_slice %198 {offsets = [0, 0], sizes = [2, 32], strides = [1, 1]} : vector<2x128xf32> to vector<2x32xf32>
    %cst_52 = arith.constant dense<0.000000e+00> : vector<2x384xf32>
    %201 = tpu.matmul %200, %42, %cst_52 {dimension_numbers = #tpu.dot_dimension_numbers<[1], [0], [0], [1], [0, 0, 1, 1], [], []>} : vector<2x32xf32>, vector<32x384xf32>, vector<2x384xf32> -> vector<2x384xf32>
    %202 = vector.extract_strided_slice %28 {offsets = [10, 0], sizes = [2, 128], strides = [1, 1]} : vector<16x128xf32> to vector<2x128xf32>
    %203 = vector.extract_strided_slice %201 {offsets = [0, 0], sizes = [2, 128], strides = [1, 1]} : vector<2x384xf32> to vector<2x128xf32>
    %204 = arith.addf %202, %203 : vector<2x128xf32>
    %205 = arith.negf %204 : vector<2x128xf32>
    %206 = math.exp %205 : vector<2x128xf32>
    %cst_53 = arith.constant 1.000000e+00 : f32
    %207 = vector.broadcast %cst_53 : f32 to vector<2x128xf32>
    %208 = arith.addf %207, %206 : vector<2x128xf32>
    %209 = arith.divf %207, %208 : vector<2x128xf32>
    %210 = vector.extract_strided_slice %33 {offsets = [10, 0], sizes = [2, 128], strides = [1, 1]} : vector<16x128xf32> to vector<2x128xf32>
    %211 = vector.extract_strided_slice %201 {offsets = [0, 128], sizes = [2, 128], strides = [1, 1]} : vector<2x384xf32> to vector<2x128xf32>
    %212 = arith.addf %210, %211 : vector<2x128xf32>
    %213 = arith.negf %212 : vector<2x128xf32>
    %214 = math.exp %213 : vector<2x128xf32>
    %cst_54 = arith.constant 1.000000e+00 : f32
    %215 = vector.broadcast %cst_54 : f32 to vector<2x128xf32>
    %216 = arith.addf %215, %214 : vector<2x128xf32>
    %217 = arith.divf %215, %216 : vector<2x128xf32>
    %218 = vector.extract_strided_slice %38 {offsets = [10, 0], sizes = [2, 128], strides = [1, 1]} : vector<16x128xf32> to vector<2x128xf32>
    %219 = vector.extract_strided_slice %201 {offsets = [0, 256], sizes = [2, 128], strides = [1, 1]} : vector<2x384xf32> to vector<2x128xf32>
    %220 = vector.broadcast %43 : vector<1x128xf32> to vector<2x128xf32>
    %221 = arith.addf %219, %220 : vector<2x128xf32>
    %222 = arith.mulf %209, %221 : vector<2x128xf32>
    %223 = arith.addf %218, %222 : vector<2x128xf32>
    %224 = math.tanh %223 : vector<2x128xf32>
    %cst_55 = arith.constant 1.000000e+00 : f32
    %225 = vector.broadcast %cst_55 : f32 to vector<2x128xf32>
    %226 = arith.subf %225, %217 : vector<2x128xf32>
    %227 = arith.mulf %226, %224 : vector<2x128xf32>
    %228 = arith.mulf %217, %198 : vector<2x128xf32>
    %229 = arith.addf %227, %228 : vector<2x128xf32>
    %c10 = arith.constant 10 : index
    %c0_56 = arith.constant 0 : index
    %230 = vector.load %arg4[%c10, %c0_56] : memref<16x128xf32, #tpu.memory_space<vmem>>, vector<2x128xf32>
    tpu.vector_store %arg4[%c10, %c0_56], %229 {strides = array<i32>} : memref<16x128xf32, #tpu.memory_space<vmem>>, vector<2x128xf32>,
    %231 = vector.extract_strided_slice %229 {offsets = [0, 0], sizes = [2, 32], strides = [1, 1]} : vector<2x128xf32> to vector<2x32xf32>
    %cst_57 = arith.constant dense<0.000000e+00> : vector<2x384xf32>
    %232 = tpu.matmul %231, %42, %cst_57 {dimension_numbers = #tpu.dot_dimension_numbers<[1], [0], [0], [1], [0, 0, 1, 1], [], []>} : vector<2x32xf32>, vector<32x384xf32>, vector<2x384xf32> -> vector<2x384xf32>
    %233 = vector.extract_strided_slice %28 {offsets = [12, 0], sizes = [2, 128], strides = [1, 1]} : vector<16x128xf32> to vector<2x128xf32>
    %234 = vector.extract_strided_slice %232 {offsets = [0, 0], sizes = [2, 128], strides = [1, 1]} : vector<2x384xf32> to vector<2x128xf32>
    %235 = arith.addf %233, %234 : vector<2x128xf32>
    %236 = arith.negf %235 : vector<2x128xf32>
    %237 = math.exp %236 : vector<2x128xf32>
    %cst_58 = arith.constant 1.000000e+00 : f32
    %238 = vector.broadcast %cst_58 : f32 to vector<2x128xf32>
    %239 = arith.addf %238, %237 : vector<2x128xf32>
    %240 = arith.divf %238, %239 : vector<2x128xf32>
    %241 = vector.extract_strided_slice %33 {offsets = [12, 0], sizes = [2, 128], strides = [1, 1]} : vector<16x128xf32> to vector<2x128xf32>
    %242 = vector.extract_strided_slice %232 {offsets = [0, 128], sizes = [2, 128], strides = [1, 1]} : vector<2x384xf32> to vector<2x128xf32>
    %243 = arith.addf %241, %242 : vector<2x128xf32>
    %244 = arith.negf %243 : vector<2x128xf32>
    %245 = math.exp %244 : vector<2x128xf32>
    %cst_59 = arith.constant 1.000000e+00 : f32
    %246 = vector.broadcast %cst_59 : f32 to vector<2x128xf32>
    %247 = arith.addf %246, %245 : vector<2x128xf32>
    %248 = arith.divf %246, %247 : vector<2x128xf32>
    %249 = vector.extract_strided_slice %38 {offsets = [12, 0], sizes = [2, 128], strides = [1, 1]} : vector<16x128xf32> to vector<2x128xf32>
    %250 = vector.extract_strided_slice %232 {offsets = [0, 256], sizes = [2, 128], strides = [1, 1]} : vector<2x384xf32> to vector<2x128xf32>
    %251 = vector.broadcast %43 : vector<1x128xf32> to vector<2x128xf32>
    %252 = arith.addf %250, %251 : vector<2x128xf32>
    %253 = arith.mulf %240, %252 : vector<2x128xf32>
    %254 = arith.addf %249, %253 : vector<2x128xf32>
    %255 = math.tanh %254 : vector<2x128xf32>
    %cst_60 = arith.constant 1.000000e+00 : f32
    %256 = vector.broadcast %cst_60 : f32 to vector<2x128xf32>
    %257 = arith.subf %256, %248 : vector<2x128xf32>
    %258 = arith.mulf %257, %255 : vector<2x128xf32>
    %259 = arith.mulf %248, %229 : vector<2x128xf32>
    %260 = arith.addf %258, %259 : vector<2x128xf32>
    %c12 = arith.constant 12 : index
    %c0_61 = arith.constant 0 : index
    %261 = vector.load %arg4[%c12, %c0_61] : memref<16x128xf32, #tpu.memory_space<vmem>>, vector<2x128xf32>
    tpu.vector_store %arg4[%c12, %c0_61], %260 {strides = array<i32>} : memref<16x128xf32, #tpu.memory_space<vmem>>, vector<2x128xf32>,
    %262 = vector.extract_strided_slice %260 {offsets = [0, 0], sizes = [2, 32], strides = [1, 1]} : vector<2x128xf32> to vector<2x32xf32>
    %cst_62 = arith.constant dense<0.000000e+00> : vector<2x384xf32>
    %263 = tpu.matmul %262, %42, %cst_62 {dimension_numbers = #tpu.dot_dimension_numbers<[1], [0], [0], [1], [0, 0, 1, 1], [], []>} : vector<2x32xf32>, vector<32x384xf32>, vector<2x384xf32> -> vector<2x384xf32>
    %264 = vector.extract_strided_slice %28 {offsets = [14, 0], sizes = [2, 128], strides = [1, 1]} : vector<16x128xf32> to vector<2x128xf32>
    %265 = vector.extract_strided_slice %263 {offsets = [0, 0], sizes = [2, 128], strides = [1, 1]} : vector<2x384xf32> to vector<2x128xf32>
    %266 = arith.addf %264, %265 : vector<2x128xf32>
    %267 = arith.negf %266 : vector<2x128xf32>
    %268 = math.exp %267 : vector<2x128xf32>
    %cst_63 = arith.constant 1.000000e+00 : f32
    %269 = vector.broadcast %cst_63 : f32 to vector<2x128xf32>
    %270 = arith.addf %269, %268 : vector<2x128xf32>
    %271 = arith.divf %269, %270 : vector<2x128xf32>
    %272 = vector.extract_strided_slice %33 {offsets = [14, 0], sizes = [2, 128], strides = [1, 1]} : vector<16x128xf32> to vector<2x128xf32>
    %273 = vector.extract_strided_slice %263 {offsets = [0, 128], sizes = [2, 128], strides = [1, 1]} : vector<2x384xf32> to vector<2x128xf32>
    %274 = arith.addf %272, %273 : vector<2x128xf32>
    %275 = arith.negf %274 : vector<2x128xf32>
    %276 = math.exp %275 : vector<2x128xf32>
    %cst_64 = arith.constant 1.000000e+00 : f32
    %277 = vector.broadcast %cst_64 : f32 to vector<2x128xf32>
    %278 = arith.addf %277, %276 : vector<2x128xf32>
    %279 = arith.divf %277, %278 : vector<2x128xf32>
    %280 = vector.extract_strided_slice %38 {offsets = [14, 0], sizes = [2, 128], strides = [1, 1]} : vector<16x128xf32> to vector<2x128xf32>
    %281 = vector.extract_strided_slice %263 {offsets = [0, 256], sizes = [2, 128], strides = [1, 1]} : vector<2x384xf32> to vector<2x128xf32>
    %282 = vector.broadcast %43 : vector<1x128xf32> to vector<2x128xf32>
    %283 = arith.addf %281, %282 : vector<2x128xf32>
    %284 = arith.mulf %271, %283 : vector<2x128xf32>
    %285 = arith.addf %280, %284 : vector<2x128xf32>
    %286 = math.tanh %285 : vector<2x128xf32>
    %cst_65 = arith.constant 1.000000e+00 : f32
    %287 = vector.broadcast %cst_65 : f32 to vector<2x128xf32>
    %288 = arith.subf %287, %279 : vector<2x128xf32>
    %289 = arith.mulf %288, %286 : vector<2x128xf32>
    %290 = arith.mulf %279, %260 : vector<2x128xf32>
    %291 = arith.addf %289, %290 : vector<2x128xf32>
    %c14 = arith.constant 14 : index
    %c0_66 = arith.constant 0 : index
    %292 = vector.load %arg4[%c14, %c0_66] : memref<16x128xf32, #tpu.memory_space<vmem>>, vector<2x128xf32>
    tpu.vector_store %arg4[%c14, %c0_66], %291 {strides = array<i32>} : memref<16x128xf32, #tpu.memory_space<vmem>>, vector<2x128xf32>,
    %c0_67 = arith.constant 0 : index
    %c0_68 = arith.constant 0 : index
    %293 = vector.load %arg4[%c0_67, %c0_68] : memref<16x128xf32, #tpu.memory_space<vmem>>, vector<16x128xf32>
    %294 = vector.extract_strided_slice %293 {offsets = [0, 0], sizes = [16, 32], strides = [1, 1]} : vector<16x128xf32> to vector<16x32xf32>
    %295 = vector.extract_strided_slice %23 {offsets = [0, 0], sizes = [16, 16], strides = [1, 1]} : vector<64x16xf32> to vector<16x16xf32>
    %c1144 = arith.constant 1144 : index
    %c0_69 = arith.constant 0 : index
    %296 = vector.load %arg2[%c1144, %c0_69] : memref<1336x128xf32, #tpu.memory_space<vmem>>, vector<16x128xf32>
    %297 = vector.extract_strided_slice %296 {offsets = [0, 0], sizes = [16, 64], strides = [1, 1]} : vector<16x128xf32> to vector<16x64xf32>
    %cst_70 = arith.constant dense<0.000000e+00> : vector<16x64xf32>
    %298 = tpu.matmul %295, %297, %cst_70 {dimension_numbers = #tpu.dot_dimension_numbers<[1], [0], [0], [1], [0, 0, 1, 1], [], []>} : vector<16x16xf32>, vector<16x64xf32>, vector<16x64xf32> -> vector<16x64xf32>
    %c1160 = arith.constant 1160 : index
    %c0_71 = arith.constant 0 : index
    %299 = vector.load %arg2[%c1160, %c0_71] : memref<1336x128xf32, #tpu.memory_space<vmem>>, vector<1x128xf32>
    %300 = vector.extract_strided_slice %299 {offsets = [0, 0], sizes = [1, 64], strides = [1, 1]} : vector<1x128xf32> to vector<1x64xf32>
    %301 = vector.broadcast %300 : vector<1x64xf32> to vector<16x64xf32>
    %302 = arith.addf %298, %301 : vector<16x64xf32>
    %303 = arith.negf %302 : vector<16x64xf32>
    %304 = math.exp %303 : vector<16x64xf32>
    %cst_72 = arith.constant 1.000000e+00 : f32
    %305 = vector.broadcast %cst_72 : f32 to vector<16x64xf32>
    %306 = arith.addf %305, %304 : vector<16x64xf32>
    %307 = arith.divf %305, %306 : vector<16x64xf32>
    %308 = vector.extract_strided_slice %307 {offsets = [0, 0], sizes = [16, 32], strides = [1, 1]} : vector<16x64xf32> to vector<16x32xf32>
    %309 = arith.mulf %308, %294 : vector<16x32xf32>
    %310 = vector.extract_strided_slice %307 {offsets = [0, 32], sizes = [16, 32], strides = [1, 1]} : vector<16x64xf32> to vector<16x32xf32>
    %311 = arith.addf %309, %310 : vector<16x32xf32>
    %c216 = arith.constant 216 : index
    %c0_73 = arith.constant 0 : index
    %312 = vector.load %arg2[%c216, %c0_73] : memref<1336x128xf32, #tpu.memory_space<vmem>>, vector<1x128xf32>
    %c152 = arith.constant 152 : index
    %c0_74 = arith.constant 0 : index
    %313 = vector.load %arg2[%c152, %c0_74] : memref<1336x128xf32, #tpu.memory_space<vmem>>, vector<32x128xf32>
    %cst_75 = arith.constant dense<0.000000e+00> : vector<16x128xf32>
    %314 = tpu.matmul %311, %313, %cst_75 {dimension_numbers = #tpu.dot_dimension_numbers<[1], [0], [0], [1], [0, 0, 1, 1], [], []>} : vector<16x32xf32>, vector<32x128xf32>, vector<16x128xf32> -> vector<16x128xf32>
    %315 = vector.broadcast %312 : vector<1x128xf32> to vector<16x128xf32>
    %316 = arith.addf %315, %314 : vector<16x128xf32>
    %c288 = arith.constant 288 : index
    %c0_76 = arith.constant 0 : index
    %317 = vector.load %arg2[%c288, %c0_76] : memref<1336x128xf32, #tpu.memory_space<vmem>>, vector<1x128xf32>
    %c224 = arith.constant 224 : index
    %c0_77 = arith.constant 0 : index
    %318 = vector.load %arg2[%c224, %c0_77] : memref<1336x128xf32, #tpu.memory_space<vmem>>, vector<32x128xf32>
    %cst_78 = arith.constant dense<0.000000e+00> : vector<16x128xf32>
    %319 = tpu.matmul %311, %318, %cst_78 {dimension_numbers = #tpu.dot_dimension_numbers<[1], [0], [0], [1], [0, 0, 1, 1], [], []>} : vector<16x32xf32>, vector<32x128xf32>, vector<16x128xf32> -> vector<16x128xf32>
    %320 = vector.broadcast %317 : vector<1x128xf32> to vector<16x128xf32>
    %321 = arith.addf %320, %319 : vector<16x128xf32>
    %c360 = arith.constant 360 : index
    %c0_79 = arith.constant 0 : index
    %322 = vector.load %arg2[%c360, %c0_79] : memref<1336x128xf32, #tpu.memory_space<vmem>>, vector<1x128xf32>
    %c296 = arith.constant 296 : index
    %c0_80 = arith.constant 0 : index
    %323 = vector.load %arg2[%c296, %c0_80] : memref<1336x128xf32, #tpu.memory_space<vmem>>, vector<32x128xf32>
    %cst_81 = arith.constant dense<0.000000e+00> : vector<16x128xf32>
    %324 = tpu.matmul %311, %323, %cst_81 {dimension_numbers = #tpu.dot_dimension_numbers<[1], [0], [0], [1], [0, 0, 1, 1], [], []>} : vector<16x32xf32>, vector<32x128xf32>, vector<16x128xf32> -> vector<16x128xf32>
    %325 = vector.broadcast %322 : vector<1x128xf32> to vector<16x128xf32>
    %326 = arith.addf %325, %324 : vector<16x128xf32>
    %c184 = arith.constant 184 : index
    %c0_82 = arith.constant 0 : index
    %327 = vector.load %arg2[%c184, %c0_82] : memref<1336x128xf32, #tpu.memory_space<vmem>>, vector<32x128xf32>
    %c256 = arith.constant 256 : index
    %c0_83 = arith.constant 0 : index
    %328 = vector.load %arg2[%c256, %c0_83] : memref<1336x128xf32, #tpu.memory_space<vmem>>, vector<32x128xf32>
    %c328 = arith.constant 328 : index
    %c0_84 = arith.constant 0 : index
    %329 = vector.load %arg2[%c328, %c0_84] : memref<1336x128xf32, #tpu.memory_space<vmem>>, vector<32x128xf32>
    %330 = tpu.concatenate %327, %328, %329 in 1 : vector<32x128xf32>, vector<32x128xf32>, vector<32x128xf32> -> vector<32x384xf32>
    %c368 = arith.constant 368 : index
    %c0_85 = arith.constant 0 : index
    %331 = vector.load %arg2[%c368, %c0_85] : memref<1336x128xf32, #tpu.memory_space<vmem>>, vector<1x128xf32>
    %cst_86 = arith.constant 0.000000e+00 : f32
    %332 = vector.broadcast %cst_86 : f32 to vector<2x128xf32>
    %333 = vector.extract_strided_slice %332 {offsets = [0, 0], sizes = [2, 32], strides = [1, 1]} : vector<2x128xf32> to vector<2x32xf32>
    %cst_87 = arith.constant dense<0.000000e+00> : vector<2x384xf32>
    %334 = tpu.matmul %333, %330, %cst_87 {dimension_numbers = #tpu.dot_dimension_numbers<[1], [0], [0], [1], [0, 0, 1, 1], [], []>} : vector<2x32xf32>, vector<32x384xf32>, vector<2x384xf32> -> vector<2x384xf32>
    %335 = vector.extract_strided_slice %316 {offsets = [0, 0], sizes = [2, 128], strides = [1, 1]} : vector<16x128xf32> to vector<2x128xf32>
    %336 = vector.extract_strided_slice %334 {offsets = [0, 0], sizes = [2, 128], strides = [1, 1]} : vector<2x384xf32> to vector<2x128xf32>
    %337 = arith.addf %335, %336 : vector<2x128xf32>
    %338 = arith.negf %337 : vector<2x128xf32>
    %339 = math.exp %338 : vector<2x128xf32>
    %cst_88 = arith.constant 1.000000e+00 : f32
    %340 = vector.broadcast %cst_88 : f32 to vector<2x128xf32>
    %341 = arith.addf %340, %339 : vector<2x128xf32>
    %342 = arith.divf %340, %341 : vector<2x128xf32>
    %343 = vector.extract_strided_slice %321 {offsets = [0, 0], sizes = [2, 128], strides = [1, 1]} : vector<16x128xf32> to vector<2x128xf32>
    %344 = vector.extract_strided_slice %334 {offsets = [0, 128], sizes = [2, 128], strides = [1, 1]} : vector<2x384xf32> to vector<2x128xf32>
    %345 = arith.addf %343, %344 : vector<2x128xf32>
    %346 = arith.negf %345 : vector<2x128xf32>
    %347 = math.exp %346 : vector<2x128xf32>
    %cst_89 = arith.constant 1.000000e+00 : f32
    %348 = vector.broadcast %cst_89 : f32 to vector<2x128xf32>
    %349 = arith.addf %348, %347 : vector<2x128xf32>
    %350 = arith.divf %348, %349 : vector<2x128xf32>
    %351 = vector.extract_strided_slice %326 {offsets = [0, 0], sizes = [2, 128], strides = [1, 1]} : vector<16x128xf32> to vector<2x128xf32>
    %352 = vector.extract_strided_slice %334 {offsets = [0, 256], sizes = [2, 128], strides = [1, 1]} : vector<2x384xf32> to vector<2x128xf32>
    %353 = vector.broadcast %331 : vector<1x128xf32> to vector<2x128xf32>
    %354 = arith.addf %352, %353 : vector<2x128xf32>
    %355 = arith.mulf %342, %354 : vector<2x128xf32>
    %356 = arith.addf %351, %355 : vector<2x128xf32>
    %357 = math.tanh %356 : vector<2x128xf32>
    %cst_90 = arith.constant 1.000000e+00 : f32
    %358 = vector.broadcast %cst_90 : f32 to vector<2x128xf32>
    %359 = arith.subf %358, %350 : vector<2x128xf32>
    %360 = arith.mulf %359, %357 : vector<2x128xf32>
    %361 = arith.mulf %350, %332 : vector<2x128xf32>
    %362 = arith.addf %360, %361 : vector<2x128xf32>
    %c0_91 = arith.constant 0 : index
    %c0_92 = arith.constant 0 : index
    %363 = vector.load %arg4[%c0_91, %c0_92] : memref<16x128xf32, #tpu.memory_space<vmem>>, vector<2x128xf32>
    tpu.vector_store %arg4[%c0_91, %c0_92], %362 {strides = array<i32>} : memref<16x128xf32, #tpu.memory_space<vmem>>, vector<2x128xf32>,
    %364 = vector.extract_strided_slice %362 {offsets = [0, 0], sizes = [2, 32], strides = [1, 1]} : vector<2x128xf32> to vector<2x32xf32>
    %cst_93 = arith.constant dense<0.000000e+00> : vector<2x384xf32>
    %365 = tpu.matmul %364, %330, %cst_93 {dimension_numbers = #tpu.dot_dimension_numbers<[1], [0], [0], [1], [0, 0, 1, 1], [], []>} : vector<2x32xf32>, vector<32x384xf32>, vector<2x384xf32> -> vector<2x384xf32>
    %366 = vector.extract_strided_slice %316 {offsets = [2, 0], sizes = [2, 128], strides = [1, 1]} : vector<16x128xf32> to vector<2x128xf32>
    %367 = vector.extract_strided_slice %365 {offsets = [0, 0], sizes = [2, 128], strides = [1, 1]} : vector<2x384xf32> to vector<2x128xf32>
    %368 = arith.addf %366, %367 : vector<2x128xf32>
    %369 = arith.negf %368 : vector<2x128xf32>
    %370 = math.exp %369 : vector<2x128xf32>
    %cst_94 = arith.constant 1.000000e+00 : f32
    %371 = vector.broadcast %cst_94 : f32 to vector<2x128xf32>
    %372 = arith.addf %371, %370 : vector<2x128xf32>
    %373 = arith.divf %371, %372 : vector<2x128xf32>
    %374 = vector.extract_strided_slice %321 {offsets = [2, 0], sizes = [2, 128], strides = [1, 1]} : vector<16x128xf32> to vector<2x128xf32>
    %375 = vector.extract_strided_slice %365 {offsets = [0, 128], sizes = [2, 128], strides = [1, 1]} : vector<2x384xf32> to vector<2x128xf32>
    %376 = arith.addf %374, %375 : vector<2x128xf32>
    %377 = arith.negf %376 : vector<2x128xf32>
    %378 = math.exp %377 : vector<2x128xf32>
    %cst_95 = arith.constant 1.000000e+00 : f32
    %379 = vector.broadcast %cst_95 : f32 to vector<2x128xf32>
    %380 = arith.addf %379, %378 : vector<2x128xf32>
    %381 = arith.divf %379, %380 : vector<2x128xf32>
    %382 = vector.extract_strided_slice %326 {offsets = [2, 0], sizes = [2, 128], strides = [1, 1]} : vector<16x128xf32> to vector<2x128xf32>
    %383 = vector.extract_strided_slice %365 {offsets = [0, 256], sizes = [2, 128], strides = [1, 1]} : vector<2x384xf32> to vector<2x128xf32>
    %384 = vector.broadcast %331 : vector<1x128xf32> to vector<2x128xf32>
    %385 = arith.addf %383, %384 : vector<2x128xf32>
    %386 = arith.mulf %373, %385 : vector<2x128xf32>
    %387 = arith.addf %382, %386 : vector<2x128xf32>
    %388 = math.tanh %387 : vector<2x128xf32>
    %cst_96 = arith.constant 1.000000e+00 : f32
    %389 = vector.broadcast %cst_96 : f32 to vector<2x128xf32>
    %390 = arith.subf %389, %381 : vector<2x128xf32>
    %391 = arith.mulf %390, %388 : vector<2x128xf32>
    %392 = arith.mulf %381, %362 : vector<2x128xf32>
    %393 = arith.addf %391, %392 : vector<2x128xf32>
    %c2_97 = arith.constant 2 : index
    %c0_98 = arith.constant 0 : index
    %394 = vector.load %arg4[%c2_97, %c0_98] : memref<16x128xf32, #tpu.memory_space<vmem>>, vector<2x128xf32>
    tpu.vector_store %arg4[%c2_97, %c0_98], %393 {strides = array<i32>} : memref<16x128xf32, #tpu.memory_space<vmem>>, vector<2x128xf32>,
    %395 = vector.extract_strided_slice %393 {offsets = [0, 0], sizes = [2, 32], strides = [1, 1]} : vector<2x128xf32> to vector<2x32xf32>
    %cst_99 = arith.constant dense<0.000000e+00> : vector<2x384xf32>
    %396 = tpu.matmul %395, %330, %cst_99 {dimension_numbers = #tpu.dot_dimension_numbers<[1], [0], [0], [1], [0, 0, 1, 1], [], []>} : vector<2x32xf32>, vector<32x384xf32>, vector<2x384xf32> -> vector<2x384xf32>
    %397 = vector.extract_strided_slice %316 {offsets = [4, 0], sizes = [2, 128], strides = [1, 1]} : vector<16x128xf32> to vector<2x128xf32>
    %398 = vector.extract_strided_slice %396 {offsets = [0, 0], sizes = [2, 128], strides = [1, 1]} : vector<2x384xf32> to vector<2x128xf32>
    %399 = arith.addf %397, %398 : vector<2x128xf32>
    %400 = arith.negf %399 : vector<2x128xf32>
    %401 = math.exp %400 : vector<2x128xf32>
    %cst_100 = arith.constant 1.000000e+00 : f32
    %402 = vector.broadcast %cst_100 : f32 to vector<2x128xf32>
    %403 = arith.addf %402, %401 : vector<2x128xf32>
    %404 = arith.divf %402, %403 : vector<2x128xf32>
    %405 = vector.extract_strided_slice %321 {offsets = [4, 0], sizes = [2, 128], strides = [1, 1]} : vector<16x128xf32> to vector<2x128xf32>
    %406 = vector.extract_strided_slice %396 {offsets = [0, 128], sizes = [2, 128], strides = [1, 1]} : vector<2x384xf32> to vector<2x128xf32>
    %407 = arith.addf %405, %406 : vector<2x128xf32>
    %408 = arith.negf %407 : vector<2x128xf32>
    %409 = math.exp %408 : vector<2x128xf32>
    %cst_101 = arith.constant 1.000000e+00 : f32
    %410 = vector.broadcast %cst_101 : f32 to vector<2x128xf32>
    %411 = arith.addf %410, %409 : vector<2x128xf32>
    %412 = arith.divf %410, %411 : vector<2x128xf32>
    %413 = vector.extract_strided_slice %326 {offsets = [4, 0], sizes = [2, 128], strides = [1, 1]} : vector<16x128xf32> to vector<2x128xf32>
    %414 = vector.extract_strided_slice %396 {offsets = [0, 256], sizes = [2, 128], strides = [1, 1]} : vector<2x384xf32> to vector<2x128xf32>
    %415 = vector.broadcast %331 : vector<1x128xf32> to vector<2x128xf32>
    %416 = arith.addf %414, %415 : vector<2x128xf32>
    %417 = arith.mulf %404, %416 : vector<2x128xf32>
    %418 = arith.addf %413, %417 : vector<2x128xf32>
    %419 = math.tanh %418 : vector<2x128xf32>
    %cst_102 = arith.constant 1.000000e+00 : f32
    %420 = vector.broadcast %cst_102 : f32 to vector<2x128xf32>
    %421 = arith.subf %420, %412 : vector<2x128xf32>
    %422 = arith.mulf %421, %419 : vector<2x128xf32>
    %423 = arith.mulf %412, %393 : vector<2x128xf32>
    %424 = arith.addf %422, %423 : vector<2x128xf32>
    %c4_103 = arith.constant 4 : index
    %c0_104 = arith.constant 0 : index
    %425 = vector.load %arg4[%c4_103, %c0_104] : memref<16x128xf32, #tpu.memory_space<vmem>>, vector<2x128xf32>
    tpu.vector_store %arg4[%c4_103, %c0_104], %424 {strides = array<i32>} : memref<16x128xf32, #tpu.memory_space<vmem>>, vector<2x128xf32>,
    %426 = vector.extract_strided_slice %424 {offsets = [0, 0], sizes = [2, 32], strides = [1, 1]} : vector<2x128xf32> to vector<2x32xf32>
    %cst_105 = arith.constant dense<0.000000e+00> : vector<2x384xf32>
    %427 = tpu.matmul %426, %330, %cst_105 {dimension_numbers = #tpu.dot_dimension_numbers<[1], [0], [0], [1], [0, 0, 1, 1], [], []>} : vector<2x32xf32>, vector<32x384xf32>, vector<2x384xf32> -> vector<2x384xf32>
    %428 = vector.extract_strided_slice %316 {offsets = [6, 0], sizes = [2, 128], strides = [1, 1]} : vector<16x128xf32> to vector<2x128xf32>
    %429 = vector.extract_strided_slice %427 {offsets = [0, 0], sizes = [2, 128], strides = [1, 1]} : vector<2x384xf32> to vector<2x128xf32>
    %430 = arith.addf %428, %429 : vector<2x128xf32>
    %431 = arith.negf %430 : vector<2x128xf32>
    %432 = math.exp %431 : vector<2x128xf32>
    %cst_106 = arith.constant 1.000000e+00 : f32
    %433 = vector.broadcast %cst_106 : f32 to vector<2x128xf32>
    %434 = arith.addf %433, %432 : vector<2x128xf32>
    %435 = arith.divf %433, %434 : vector<2x128xf32>
    %436 = vector.extract_strided_slice %321 {offsets = [6, 0], sizes = [2, 128], strides = [1, 1]} : vector<16x128xf32> to vector<2x128xf32>
    %437 = vector.extract_strided_slice %427 {offsets = [0, 128], sizes = [2, 128], strides = [1, 1]} : vector<2x384xf32> to vector<2x128xf32>
    %438 = arith.addf %436, %437 : vector<2x128xf32>
    %439 = arith.negf %438 : vector<2x128xf32>
    %440 = math.exp %439 : vector<2x128xf32>
    %cst_107 = arith.constant 1.000000e+00 : f32
    %441 = vector.broadcast %cst_107 : f32 to vector<2x128xf32>
    %442 = arith.addf %441, %440 : vector<2x128xf32>
    %443 = arith.divf %441, %442 : vector<2x128xf32>
    %444 = vector.extract_strided_slice %326 {offsets = [6, 0], sizes = [2, 128], strides = [1, 1]} : vector<16x128xf32> to vector<2x128xf32>
    %445 = vector.extract_strided_slice %427 {offsets = [0, 256], sizes = [2, 128], strides = [1, 1]} : vector<2x384xf32> to vector<2x128xf32>
    %446 = vector.broadcast %331 : vector<1x128xf32> to vector<2x128xf32>
    %447 = arith.addf %445, %446 : vector<2x128xf32>
    %448 = arith.mulf %435, %447 : vector<2x128xf32>
    %449 = arith.addf %444, %448 : vector<2x128xf32>
    %450 = math.tanh %449 : vector<2x128xf32>
    %cst_108 = arith.constant 1.000000e+00 : f32
    %451 = vector.broadcast %cst_108 : f32 to vector<2x128xf32>
    %452 = arith.subf %451, %443 : vector<2x128xf32>
    %453 = arith.mulf %452, %450 : vector<2x128xf32>
    %454 = arith.mulf %443, %424 : vector<2x128xf32>
    %455 = arith.addf %453, %454 : vector<2x128xf32>
    %c6_109 = arith.constant 6 : index
    %c0_110 = arith.constant 0 : index
    %456 = vector.load %arg4[%c6_109, %c0_110] : memref<16x128xf32, #tpu.memory_space<vmem>>, vector<2x128xf32>
    tpu.vector_store %arg4[%c6_109, %c0_110], %455 {strides = array<i32>} : memref<16x128xf32, #tpu.memory_space<vmem>>, vector<2x128xf32>,
    %457 = vector.extract_strided_slice %455 {offsets = [0, 0], sizes = [2, 32], strides = [1, 1]} : vector<2x128xf32> to vector<2x32xf32>
    %cst_111 = arith.constant dense<0.000000e+00> : vector<2x384xf32>
    %458 = tpu.matmul %457, %330, %cst_111 {dimension_numbers = #tpu.dot_dimension_numbers<[1], [0], [0], [1], [0, 0, 1, 1], [], []>} : vector<2x32xf32>, vector<32x384xf32>, vector<2x384xf32> -> vector<2x384xf32>
    %459 = vector.extract_strided_slice %316 {offsets = [8, 0], sizes = [2, 128], strides = [1, 1]} : vector<16x128xf32> to vector<2x128xf32>
    %460 = vector.extract_strided_slice %458 {offsets = [0, 0], sizes = [2, 128], strides = [1, 1]} : vector<2x384xf32> to vector<2x128xf32>
    %461 = arith.addf %459, %460 : vector<2x128xf32>
    %462 = arith.negf %461 : vector<2x128xf32>
    %463 = math.exp %462 : vector<2x128xf32>
    %cst_112 = arith.constant 1.000000e+00 : f32
    %464 = vector.broadcast %cst_112 : f32 to vector<2x128xf32>
    %465 = arith.addf %464, %463 : vector<2x128xf32>
    %466 = arith.divf %464, %465 : vector<2x128xf32>
    %467 = vector.extract_strided_slice %321 {offsets = [8, 0], sizes = [2, 128], strides = [1, 1]} : vector<16x128xf32> to vector<2x128xf32>
    %468 = vector.extract_strided_slice %458 {offsets = [0, 128], sizes = [2, 128], strides = [1, 1]} : vector<2x384xf32> to vector<2x128xf32>
    %469 = arith.addf %467, %468 : vector<2x128xf32>
    %470 = arith.negf %469 : vector<2x128xf32>
    %471 = math.exp %470 : vector<2x128xf32>
    %cst_113 = arith.constant 1.000000e+00 : f32
    %472 = vector.broadcast %cst_113 : f32 to vector<2x128xf32>
    %473 = arith.addf %472, %471 : vector<2x128xf32>
    %474 = arith.divf %472, %473 : vector<2x128xf32>
    %475 = vector.extract_strided_slice %326 {offsets = [8, 0], sizes = [2, 128], strides = [1, 1]} : vector<16x128xf32> to vector<2x128xf32>
    %476 = vector.extract_strided_slice %458 {offsets = [0, 256], sizes = [2, 128], strides = [1, 1]} : vector<2x384xf32> to vector<2x128xf32>
    %477 = vector.broadcast %331 : vector<1x128xf32> to vector<2x128xf32>
    %478 = arith.addf %476, %477 : vector<2x128xf32>
    %479 = arith.mulf %466, %478 : vector<2x128xf32>
    %480 = arith.addf %475, %479 : vector<2x128xf32>
    %481 = math.tanh %480 : vector<2x128xf32>
    %cst_114 = arith.constant 1.000000e+00 : f32
    %482 = vector.broadcast %cst_114 : f32 to vector<2x128xf32>
    %483 = arith.subf %482, %474 : vector<2x128xf32>
    %484 = arith.mulf %483, %481 : vector<2x128xf32>
    %485 = arith.mulf %474, %455 : vector<2x128xf32>
    %486 = arith.addf %484, %485 : vector<2x128xf32>
    %c8_115 = arith.constant 8 : index
    %c0_116 = arith.constant 0 : index
    %487 = vector.load %arg4[%c8_115, %c0_116] : memref<16x128xf32, #tpu.memory_space<vmem>>, vector<2x128xf32>
    tpu.vector_store %arg4[%c8_115, %c0_116], %486 {strides = array<i32>} : memref<16x128xf32, #tpu.memory_space<vmem>>, vector<2x128xf32>,
    %488 = vector.extract_strided_slice %486 {offsets = [0, 0], sizes = [2, 32], strides = [1, 1]} : vector<2x128xf32> to vector<2x32xf32>
    %cst_117 = arith.constant dense<0.000000e+00> : vector<2x384xf32>
    %489 = tpu.matmul %488, %330, %cst_117 {dimension_numbers = #tpu.dot_dimension_numbers<[1], [0], [0], [1], [0, 0, 1, 1], [], []>} : vector<2x32xf32>, vector<32x384xf32>, vector<2x384xf32> -> vector<2x384xf32>
    %490 = vector.extract_strided_slice %316 {offsets = [10, 0], sizes = [2, 128], strides = [1, 1]} : vector<16x128xf32> to vector<2x128xf32>
    %491 = vector.extract_strided_slice %489 {offsets = [0, 0], sizes = [2, 128], strides = [1, 1]} : vector<2x384xf32> to vector<2x128xf32>
    %492 = arith.addf %490, %491 : vector<2x128xf32>
    %493 = arith.negf %492 : vector<2x128xf32>
    %494 = math.exp %493 : vector<2x128xf32>
    %cst_118 = arith.constant 1.000000e+00 : f32
    %495 = vector.broadcast %cst_118 : f32 to vector<2x128xf32>
    %496 = arith.addf %495, %494 : vector<2x128xf32>
    %497 = arith.divf %495, %496 : vector<2x128xf32>
    %498 = vector.extract_strided_slice %321 {offsets = [10, 0], sizes = [2, 128], strides = [1, 1]} : vector<16x128xf32> to vector<2x128xf32>
    %499 = vector.extract_strided_slice %489 {offsets = [0, 128], sizes = [2, 128], strides = [1, 1]} : vector<2x384xf32> to vector<2x128xf32>
    %500 = arith.addf %498, %499 : vector<2x128xf32>
    %501 = arith.negf %500 : vector<2x128xf32>
    %502 = math.exp %501 : vector<2x128xf32>
    %cst_119 = arith.constant 1.000000e+00 : f32
    %503 = vector.broadcast %cst_119 : f32 to vector<2x128xf32>
    %504 = arith.addf %503, %502 : vector<2x128xf32>
    %505 = arith.divf %503, %504 : vector<2x128xf32>
    %506 = vector.extract_strided_slice %326 {offsets = [10, 0], sizes = [2, 128], strides = [1, 1]} : vector<16x128xf32> to vector<2x128xf32>
    %507 = vector.extract_strided_slice %489 {offsets = [0, 256], sizes = [2, 128], strides = [1, 1]} : vector<2x384xf32> to vector<2x128xf32>
    %508 = vector.broadcast %331 : vector<1x128xf32> to vector<2x128xf32>
    %509 = arith.addf %507, %508 : vector<2x128xf32>
    %510 = arith.mulf %497, %509 : vector<2x128xf32>
    %511 = arith.addf %506, %510 : vector<2x128xf32>
    %512 = math.tanh %511 : vector<2x128xf32>
    %cst_120 = arith.constant 1.000000e+00 : f32
    %513 = vector.broadcast %cst_120 : f32 to vector<2x128xf32>
    %514 = arith.subf %513, %505 : vector<2x128xf32>
    %515 = arith.mulf %514, %512 : vector<2x128xf32>
    %516 = arith.mulf %505, %486 : vector<2x128xf32>
    %517 = arith.addf %515, %516 : vector<2x128xf32>
    %c10_121 = arith.constant 10 : index
    %c0_122 = arith.constant 0 : index
    %518 = vector.load %arg4[%c10_121, %c0_122] : memref<16x128xf32, #tpu.memory_space<vmem>>, vector<2x128xf32>
    tpu.vector_store %arg4[%c10_121, %c0_122], %517 {strides = array<i32>} : memref<16x128xf32, #tpu.memory_space<vmem>>, vector<2x128xf32>,
    %519 = vector.extract_strided_slice %517 {offsets = [0, 0], sizes = [2, 32], strides = [1, 1]} : vector<2x128xf32> to vector<2x32xf32>
    %cst_123 = arith.constant dense<0.000000e+00> : vector<2x384xf32>
    %520 = tpu.matmul %519, %330, %cst_123 {dimension_numbers = #tpu.dot_dimension_numbers<[1], [0], [0], [1], [0, 0, 1, 1], [], []>} : vector<2x32xf32>, vector<32x384xf32>, vector<2x384xf32> -> vector<2x384xf32>
    %521 = vector.extract_strided_slice %316 {offsets = [12, 0], sizes = [2, 128], strides = [1, 1]} : vector<16x128xf32> to vector<2x128xf32>
    %522 = vector.extract_strided_slice %520 {offsets = [0, 0], sizes = [2, 128], strides = [1, 1]} : vector<2x384xf32> to vector<2x128xf32>
    %523 = arith.addf %521, %522 : vector<2x128xf32>
    %524 = arith.negf %523 : vector<2x128xf32>
    %525 = math.exp %524 : vector<2x128xf32>
    %cst_124 = arith.constant 1.000000e+00 : f32
    %526 = vector.broadcast %cst_124 : f32 to vector<2x128xf32>
    %527 = arith.addf %526, %525 : vector<2x128xf32>
    %528 = arith.divf %526, %527 : vector<2x128xf32>
    %529 = vector.extract_strided_slice %321 {offsets = [12, 0], sizes = [2, 128], strides = [1, 1]} : vector<16x128xf32> to vector<2x128xf32>
    %530 = vector.extract_strided_slice %520 {offsets = [0, 128], sizes = [2, 128], strides = [1, 1]} : vector<2x384xf32> to vector<2x128xf32>
    %531 = arith.addf %529, %530 : vector<2x128xf32>
    %532 = arith.negf %531 : vector<2x128xf32>
    %533 = math.exp %532 : vector<2x128xf32>
    %cst_125 = arith.constant 1.000000e+00 : f32
    %534 = vector.broadcast %cst_125 : f32 to vector<2x128xf32>
    %535 = arith.addf %534, %533 : vector<2x128xf32>
    %536 = arith.divf %534, %535 : vector<2x128xf32>
    %537 = vector.extract_strided_slice %326 {offsets = [12, 0], sizes = [2, 128], strides = [1, 1]} : vector<16x128xf32> to vector<2x128xf32>
    %538 = vector.extract_strided_slice %520 {offsets = [0, 256], sizes = [2, 128], strides = [1, 1]} : vector<2x384xf32> to vector<2x128xf32>
    %539 = vector.broadcast %331 : vector<1x128xf32> to vector<2x128xf32>
    %540 = arith.addf %538, %539 : vector<2x128xf32>
    %541 = arith.mulf %528, %540 : vector<2x128xf32>
    %542 = arith.addf %537, %541 : vector<2x128xf32>
    %543 = math.tanh %542 : vector<2x128xf32>
    %cst_126 = arith.constant 1.000000e+00 : f32
    %544 = vector.broadcast %cst_126 : f32 to vector<2x128xf32>
    %545 = arith.subf %544, %536 : vector<2x128xf32>
    %546 = arith.mulf %545, %543 : vector<2x128xf32>
    %547 = arith.mulf %536, %517 : vector<2x128xf32>
    %548 = arith.addf %546, %547 : vector<2x128xf32>
    %c12_127 = arith.constant 12 : index
    %c0_128 = arith.constant 0 : index
    %549 = vector.load %arg4[%c12_127, %c0_128] : memref<16x128xf32, #tpu.memory_space<vmem>>, vector<2x128xf32>
    tpu.vector_store %arg4[%c12_127, %c0_128], %548 {strides = array<i32>} : memref<16x128xf32, #tpu.memory_space<vmem>>, vector<2x128xf32>,
    %550 = vector.extract_strided_slice %548 {offsets = [0, 0], sizes = [2, 32], strides = [1, 1]} : vector<2x128xf32> to vector<2x32xf32>
    %cst_129 = arith.constant dense<0.000000e+00> : vector<2x384xf32>
    %551 = tpu.matmul %550, %330, %cst_129 {dimension_numbers = #tpu.dot_dimension_numbers<[1], [0], [0], [1], [0, 0, 1, 1], [], []>} : vector<2x32xf32>, vector<32x384xf32>, vector<2x384xf32> -> vector<2x384xf32>
    %552 = vector.extract_strided_slice %316 {offsets = [14, 0], sizes = [2, 128], strides = [1, 1]} : vector<16x128xf32> to vector<2x128xf32>
    %553 = vector.extract_strided_slice %551 {offsets = [0, 0], sizes = [2, 128], strides = [1, 1]} : vector<2x384xf32> to vector<2x128xf32>
    %554 = arith.addf %552, %553 : vector<2x128xf32>
    %555 = arith.negf %554 : vector<2x128xf32>
    %556 = math.exp %555 : vector<2x128xf32>
    %cst_130 = arith.constant 1.000000e+00 : f32
    %557 = vector.broadcast %cst_130 : f32 to vector<2x128xf32>
    %558 = arith.addf %557, %556 : vector<2x128xf32>
    %559 = arith.divf %557, %558 : vector<2x128xf32>
    %560 = vector.extract_strided_slice %321 {offsets = [14, 0], sizes = [2, 128], strides = [1, 1]} : vector<16x128xf32> to vector<2x128xf32>
    %561 = vector.extract_strided_slice %551 {offsets = [0, 128], sizes = [2, 128], strides = [1, 1]} : vector<2x384xf32> to vector<2x128xf32>
    %562 = arith.addf %560, %561 : vector<2x128xf32>
    %563 = arith.negf %562 : vector<2x128xf32>
    %564 = math.exp %563 : vector<2x128xf32>
    %cst_131 = arith.constant 1.000000e+00 : f32
    %565 = vector.broadcast %cst_131 : f32 to vector<2x128xf32>
    %566 = arith.addf %565, %564 : vector<2x128xf32>
    %567 = arith.divf %565, %566 : vector<2x128xf32>
    %568 = vector.extract_strided_slice %326 {offsets = [14, 0], sizes = [2, 128], strides = [1, 1]} : vector<16x128xf32> to vector<2x128xf32>
    %569 = vector.extract_strided_slice %551 {offsets = [0, 256], sizes = [2, 128], strides = [1, 1]} : vector<2x384xf32> to vector<2x128xf32>
    %570 = vector.broadcast %331 : vector<1x128xf32> to vector<2x128xf32>
    %571 = arith.addf %569, %570 : vector<2x128xf32>
    %572 = arith.mulf %559, %571 : vector<2x128xf32>
    %573 = arith.addf %568, %572 : vector<2x128xf32>
    %574 = math.tanh %573 : vector<2x128xf32>
    %cst_132 = arith.constant 1.000000e+00 : f32
    %575 = vector.broadcast %cst_132 : f32 to vector<2x128xf32>
    %576 = arith.subf %575, %567 : vector<2x128xf32>
    %577 = arith.mulf %576, %574 : vector<2x128xf32>
    %578 = arith.mulf %567, %548 : vector<2x128xf32>
    %579 = arith.addf %577, %578 : vector<2x128xf32>
    %c14_133 = arith.constant 14 : index
    %c0_134 = arith.constant 0 : index
    %580 = vector.load %arg4[%c14_133, %c0_134] : memref<16x128xf32, #tpu.memory_space<vmem>>, vector<2x128xf32>
    tpu.vector_store %arg4[%c14_133, %c0_134], %579 {strides = array<i32>} : memref<16x128xf32, #tpu.memory_space<vmem>>, vector<2x128xf32>,
    %c0_135 = arith.constant 0 : index
    %c0_136 = arith.constant 0 : index
    %581 = vector.load %arg4[%c0_135, %c0_136] : memref<16x128xf32, #tpu.memory_space<vmem>>, vector<16x128xf32>
    %582 = vector.extract_strided_slice %581 {offsets = [0, 0], sizes = [16, 32], strides = [1, 1]} : vector<16x128xf32> to vector<16x32xf32>
    %583 = vector.extract_strided_slice %23 {offsets = [16, 0], sizes = [16, 16], strides = [1, 1]} : vector<64x16xf32> to vector<16x16xf32>
    %c1168 = arith.constant 1168 : index
    %c0_137 = arith.constant 0 : index
    %584 = vector.load %arg2[%c1168, %c0_137] : memref<1336x128xf32, #tpu.memory_space<vmem>>, vector<16x128xf32>
    %585 = vector.extract_strided_slice %584 {offsets = [0, 0], sizes = [16, 64], strides = [1, 1]} : vector<16x128xf32> to vector<16x64xf32>
    %cst_138 = arith.constant dense<0.000000e+00> : vector<16x64xf32>
    %586 = tpu.matmul %583, %585, %cst_138 {dimension_numbers = #tpu.dot_dimension_numbers<[1], [0], [0], [1], [0, 0, 1, 1], [], []>} : vector<16x16xf32>, vector<16x64xf32>, vector<16x64xf32> -> vector<16x64xf32>
    %c1184 = arith.constant 1184 : index
    %c0_139 = arith.constant 0 : index
    %587 = vector.load %arg2[%c1184, %c0_139] : memref<1336x128xf32, #tpu.memory_space<vmem>>, vector<1x128xf32>
    %588 = vector.extract_strided_slice %587 {offsets = [0, 0], sizes = [1, 64], strides = [1, 1]} : vector<1x128xf32> to vector<1x64xf32>
    %589 = vector.broadcast %588 : vector<1x64xf32> to vector<16x64xf32>
    %590 = arith.addf %586, %589 : vector<16x64xf32>
    %591 = arith.negf %590 : vector<16x64xf32>
    %592 = math.exp %591 : vector<16x64xf32>
    %cst_140 = arith.constant 1.000000e+00 : f32
    %593 = vector.broadcast %cst_140 : f32 to vector<16x64xf32>
    %594 = arith.addf %593, %592 : vector<16x64xf32>
    %595 = arith.divf %593, %594 : vector<16x64xf32>
    %596 = vector.extract_strided_slice %595 {offsets = [0, 0], sizes = [16, 32], strides = [1, 1]} : vector<16x64xf32> to vector<16x32xf32>
    %597 = arith.mulf %596, %582 : vector<16x32xf32>
    %598 = vector.extract_strided_slice %595 {offsets = [0, 32], sizes = [16, 32], strides = [1, 1]} : vector<16x64xf32> to vector<16x32xf32>
    %599 = arith.addf %597, %598 : vector<16x32xf32>
    %c1240 = arith.constant 1240 : index
    %c0_141 = arith.constant 0 : index
    %600 = vector.load %arg2[%c1240, %c0_141] : memref<1336x128xf32, #tpu.memory_space<vmem>>, vector<32x128xf32>
    %601 = vector.extract_strided_slice %600 {offsets = [0, 0], sizes = [32, 8], strides = [1, 1]} : vector<32x128xf32> to vector<32x8xf32>
    %cst_142 = arith.constant dense<0.000000e+00> : vector<16x8xf32>
    %602 = tpu.matmul %599, %601, %cst_142 {dimension_numbers = #tpu.dot_dimension_numbers<[1], [0], [0], [1], [0, 0, 1, 1], [], []>} : vector<16x32xf32>, vector<32x8xf32>, vector<16x8xf32> -> vector<16x8xf32>
    %c1272 = arith.constant 1272 : index
    %c0_143 = arith.constant 0 : index
    %603 = vector.load %arg2[%c1272, %c0_143] : memref<1336x128xf32, #tpu.memory_space<vmem>>, vector<1x128xf32>
    %604 = vector.extract_strided_slice %603 {offsets = [0, 0], sizes = [1, 8], strides = [1, 1]} : vector<1x128xf32> to vector<1x8xf32>
    %605 = vector.broadcast %604 : vector<1x8xf32> to vector<16x8xf32>
    %606 = arith.addf %602, %605 : vector<16x8xf32>
    %cst_144 = arith.constant 0.000000e+00 : f32
    %607 = vector.broadcast %cst_144 : f32 to vector<16x8xf32>
    %608 = arith.maximumf %606, %607 : vector<16x8xf32>
    %c1280 = arith.constant 1280 : index
    %c0_145 = arith.constant 0 : index
    %609 = vector.load %arg2[%c1280, %c0_145] : memref<1336x128xf32, #tpu.memory_space<vmem>>, vector<1x128xf32>
    %610 = vector.extract_strided_slice %609 {offsets = [0, 0], sizes = [1, 8], strides = [1, 1]} : vector<1x128xf32> to vector<1x8xf32>
    %611 = vector.broadcast %610 : vector<1x8xf32> to vector<16x8xf32>
    %612 = arith.mulf %608, %611 : vector<16x8xf32>
    %cst_146 = arith.constant dense<0.000000e+00> : vector<16xf32>
    %613 = vector.multi_reduction <add>, %612, %cst_146 [1] : vector<16x8xf32> to vector<16xf32>
    %614 = vector.shape_cast %613 : vector<16xf32> to vector<16x1xf32>
    %c1288 = arith.constant 1288 : index
    %c0_147 = arith.constant 0 : index
    %615 = vector.load %arg2[%c1288, %c0_147] : memref<1336x128xf32, #tpu.memory_space<vmem>>, vector<1x128xf32>
    %616 = vector.extract_strided_slice %615 {offsets = [0, 0], sizes = [1, 1], strides = [1, 1]} : vector<1x128xf32> to vector<1x1xf32>
    %617 = vector.broadcast %616 : vector<1x1xf32> to vector<16x1xf32>
    %618 = arith.addf %614, %617 : vector<16x1xf32>
    %619 = arith.negf %618 : vector<16x1xf32>
    %620 = math.exp %619 : vector<16x1xf32>
    %cst_148 = arith.constant 1.000000e+00 : f32
    %621 = vector.broadcast %cst_148 : f32 to vector<16x1xf32>
    %622 = arith.addf %621, %620 : vector<16x1xf32>
    %623 = arith.divf %621, %622 : vector<16x1xf32>
    %624 = vector.broadcast %623 : vector<16x1xf32> to vector<16x32xf32>
    %625 = arith.mulf %599, %624 : vector<16x32xf32>
    %c472 = arith.constant 472 : index
    %c0_149 = arith.constant 0 : index
    %626 = vector.load %arg2[%c472, %c0_149] : memref<1336x128xf32, #tpu.memory_space<vmem>>, vector<1x128xf32>
    %c376 = arith.constant 376 : index
    %c0_150 = arith.constant 0 : index
    %627 = vector.load %arg2[%c376, %c0_150] : memref<1336x128xf32, #tpu.memory_space<vmem>>, vector<32x128xf32>
    %cst_151 = arith.constant dense<0.000000e+00> : vector<16x128xf32>
    %628 = tpu.matmul %625, %627, %cst_151 {dimension_numbers = #tpu.dot_dimension_numbers<[1], [0], [0], [1], [0, 0, 1, 1], [], []>} : vector<16x32xf32>, vector<32x128xf32>, vector<16x128xf32> -> vector<16x128xf32>
    %629 = vector.broadcast %626 : vector<1x128xf32> to vector<16x128xf32>
    %630 = arith.addf %629, %628 : vector<16x128xf32>
    %c408 = arith.constant 408 : index
    %c0_152 = arith.constant 0 : index
    %631 = vector.load %arg2[%c408, %c0_152] : memref<1336x128xf32, #tpu.memory_space<vmem>>, vector<32x128xf32>
    %cst_153 = arith.constant dense<0.000000e+00> : vector<16x128xf32>
    %632 = tpu.matmul %311, %631, %cst_153 {dimension_numbers = #tpu.dot_dimension_numbers<[1], [0], [0], [1], [0, 0, 1, 1], [], []>} : vector<16x32xf32>, vector<32x128xf32>, vector<16x128xf32> -> vector<16x128xf32>
    %633 = arith.addf %630, %632 : vector<16x128xf32>
    %c576 = arith.constant 576 : index
    %c0_154 = arith.constant 0 : index
    %634 = vector.load %arg2[%c576, %c0_154] : memref<1336x128xf32, #tpu.memory_space<vmem>>, vector<1x128xf32>
    %c480 = arith.constant 480 : index
    %c0_155 = arith.constant 0 : index
    %635 = vector.load %arg2[%c480, %c0_155] : memref<1336x128xf32, #tpu.memory_space<vmem>>, vector<32x128xf32>
    %cst_156 = arith.constant dense<0.000000e+00> : vector<16x128xf32>
    %636 = tpu.matmul %625, %635, %cst_156 {dimension_numbers = #tpu.dot_dimension_numbers<[1], [0], [0], [1], [0, 0, 1, 1], [], []>} : vector<16x32xf32>, vector<32x128xf32>, vector<16x128xf32> -> vector<16x128xf32>
    %637 = vector.broadcast %634 : vector<1x128xf32> to vector<16x128xf32>
    %638 = arith.addf %637, %636 : vector<16x128xf32>
    %c512 = arith.constant 512 : index
    %c0_157 = arith.constant 0 : index
    %639 = vector.load %arg2[%c512, %c0_157] : memref<1336x128xf32, #tpu.memory_space<vmem>>, vector<32x128xf32>
    %cst_158 = arith.constant dense<0.000000e+00> : vector<16x128xf32>
    %640 = tpu.matmul %311, %639, %cst_158 {dimension_numbers = #tpu.dot_dimension_numbers<[1], [0], [0], [1], [0, 0, 1, 1], [], []>} : vector<16x32xf32>, vector<32x128xf32>, vector<16x128xf32> -> vector<16x128xf32>
    %641 = arith.addf %638, %640 : vector<16x128xf32>
    %c680 = arith.constant 680 : index
    %c0_159 = arith.constant 0 : index
    %642 = vector.load %arg2[%c680, %c0_159] : memref<1336x128xf32, #tpu.memory_space<vmem>>, vector<1x128xf32>
    %c584 = arith.constant 584 : index
    %c0_160 = arith.constant 0 : index
    %643 = vector.load %arg2[%c584, %c0_160] : memref<1336x128xf32, #tpu.memory_space<vmem>>, vector<32x128xf32>
    %cst_161 = arith.constant dense<0.000000e+00> : vector<16x128xf32>
    %644 = tpu.matmul %625, %643, %cst_161 {dimension_numbers = #tpu.dot_dimension_numbers<[1], [0], [0], [1], [0, 0, 1, 1], [], []>} : vector<16x32xf32>, vector<32x128xf32>, vector<16x128xf32> -> vector<16x128xf32>
    %645 = vector.broadcast %642 : vector<1x128xf32> to vector<16x128xf32>
    %646 = arith.addf %645, %644 : vector<16x128xf32>
    %c616 = arith.constant 616 : index
    %c0_162 = arith.constant 0 : index
    %647 = vector.load %arg2[%c616, %c0_162] : memref<1336x128xf32, #tpu.memory_space<vmem>>, vector<32x128xf32>
    %cst_163 = arith.constant dense<0.000000e+00> : vector<16x128xf32>
    %648 = tpu.matmul %311, %647, %cst_163 {dimension_numbers = #tpu.dot_dimension_numbers<[1], [0], [0], [1], [0, 0, 1, 1], [], []>} : vector<16x32xf32>, vector<32x128xf32>, vector<16x128xf32> -> vector<16x128xf32>
    %649 = arith.addf %646, %648 : vector<16x128xf32>
    %c440 = arith.constant 440 : index
    %c0_164 = arith.constant 0 : index
    %650 = vector.load %arg2[%c440, %c0_164] : memref<1336x128xf32, #tpu.memory_space<vmem>>, vector<32x128xf32>
    %c544 = arith.constant 544 : index
    %c0_165 = arith.constant 0 : index
    %651 = vector.load %arg2[%c544, %c0_165] : memref<1336x128xf32, #tpu.memory_space<vmem>>, vector<32x128xf32>
    %c648 = arith.constant 648 : index
    %c0_166 = arith.constant 0 : index
    %652 = vector.load %arg2[%c648, %c0_166] : memref<1336x128xf32, #tpu.memory_space<vmem>>, vector<32x128xf32>
    %653 = tpu.concatenate %650, %651, %652 in 1 : vector<32x128xf32>, vector<32x128xf32>, vector<32x128xf32> -> vector<32x384xf32>
    %c688 = arith.constant 688 : index
    %c0_167 = arith.constant 0 : index
    %654 = vector.load %arg2[%c688, %c0_167] : memref<1336x128xf32, #tpu.memory_space<vmem>>, vector<1x128xf32>
    %cst_168 = arith.constant 0.000000e+00 : f32
    %655 = vector.broadcast %cst_168 : f32 to vector<2x128xf32>
    %656 = vector.extract_strided_slice %655 {offsets = [0, 0], sizes = [2, 32], strides = [1, 1]} : vector<2x128xf32> to vector<2x32xf32>
    %cst_169 = arith.constant dense<0.000000e+00> : vector<2x384xf32>
    %657 = tpu.matmul %656, %653, %cst_169 {dimension_numbers = #tpu.dot_dimension_numbers<[1], [0], [0], [1], [0, 0, 1, 1], [], []>} : vector<2x32xf32>, vector<32x384xf32>, vector<2x384xf32> -> vector<2x384xf32>
    %658 = vector.extract_strided_slice %633 {offsets = [0, 0], sizes = [2, 128], strides = [1, 1]} : vector<16x128xf32> to vector<2x128xf32>
    %659 = vector.extract_strided_slice %657 {offsets = [0, 0], sizes = [2, 128], strides = [1, 1]} : vector<2x384xf32> to vector<2x128xf32>
    %660 = arith.addf %658, %659 : vector<2x128xf32>
    %661 = arith.negf %660 : vector<2x128xf32>
    %662 = math.exp %661 : vector<2x128xf32>
    %cst_170 = arith.constant 1.000000e+00 : f32
    %663 = vector.broadcast %cst_170 : f32 to vector<2x128xf32>
    %664 = arith.addf %663, %662 : vector<2x128xf32>
    %665 = arith.divf %663, %664 : vector<2x128xf32>
    %666 = vector.extract_strided_slice %641 {offsets = [0, 0], sizes = [2, 128], strides = [1, 1]} : vector<16x128xf32> to vector<2x128xf32>
    %667 = vector.extract_strided_slice %657 {offsets = [0, 128], sizes = [2, 128], strides = [1, 1]} : vector<2x384xf32> to vector<2x128xf32>
    %668 = arith.addf %666, %667 : vector<2x128xf32>
    %669 = arith.negf %668 : vector<2x128xf32>
    %670 = math.exp %669 : vector<2x128xf32>
    %cst_171 = arith.constant 1.000000e+00 : f32
    %671 = vector.broadcast %cst_171 : f32 to vector<2x128xf32>
    %672 = arith.addf %671, %670 : vector<2x128xf32>
    %673 = arith.divf %671, %672 : vector<2x128xf32>
    %674 = vector.extract_strided_slice %649 {offsets = [0, 0], sizes = [2, 128], strides = [1, 1]} : vector<16x128xf32> to vector<2x128xf32>
    %675 = vector.extract_strided_slice %657 {offsets = [0, 256], sizes = [2, 128], strides = [1, 1]} : vector<2x384xf32> to vector<2x128xf32>
    %676 = vector.broadcast %654 : vector<1x128xf32> to vector<2x128xf32>
    %677 = arith.addf %675, %676 : vector<2x128xf32>
    %678 = arith.mulf %665, %677 : vector<2x128xf32>
    %679 = arith.addf %674, %678 : vector<2x128xf32>
    %680 = math.tanh %679 : vector<2x128xf32>
    %cst_172 = arith.constant 1.000000e+00 : f32
    %681 = vector.broadcast %cst_172 : f32 to vector<2x128xf32>
    %682 = arith.subf %681, %673 : vector<2x128xf32>
    %683 = arith.mulf %682, %680 : vector<2x128xf32>
    %684 = arith.mulf %673, %655 : vector<2x128xf32>
    %685 = arith.addf %683, %684 : vector<2x128xf32>
    %c0_173 = arith.constant 0 : index
    %c0_174 = arith.constant 0 : index
    %686 = vector.load %arg4[%c0_173, %c0_174] : memref<16x128xf32, #tpu.memory_space<vmem>>, vector<2x128xf32>
    tpu.vector_store %arg4[%c0_173, %c0_174], %685 {strides = array<i32>} : memref<16x128xf32, #tpu.memory_space<vmem>>, vector<2x128xf32>,
    %687 = vector.extract_strided_slice %685 {offsets = [0, 0], sizes = [2, 32], strides = [1, 1]} : vector<2x128xf32> to vector<2x32xf32>
    %cst_175 = arith.constant dense<0.000000e+00> : vector<2x384xf32>
    %688 = tpu.matmul %687, %653, %cst_175 {dimension_numbers = #tpu.dot_dimension_numbers<[1], [0], [0], [1], [0, 0, 1, 1], [], []>} : vector<2x32xf32>, vector<32x384xf32>, vector<2x384xf32> -> vector<2x384xf32>
    %689 = vector.extract_strided_slice %633 {offsets = [2, 0], sizes = [2, 128], strides = [1, 1]} : vector<16x128xf32> to vector<2x128xf32>
    %690 = vector.extract_strided_slice %688 {offsets = [0, 0], sizes = [2, 128], strides = [1, 1]} : vector<2x384xf32> to vector<2x128xf32>
    %691 = arith.addf %689, %690 : vector<2x128xf32>
    %692 = arith.negf %691 : vector<2x128xf32>
    %693 = math.exp %692 : vector<2x128xf32>
    %cst_176 = arith.constant 1.000000e+00 : f32
    %694 = vector.broadcast %cst_176 : f32 to vector<2x128xf32>
    %695 = arith.addf %694, %693 : vector<2x128xf32>
    %696 = arith.divf %694, %695 : vector<2x128xf32>
    %697 = vector.extract_strided_slice %641 {offsets = [2, 0], sizes = [2, 128], strides = [1, 1]} : vector<16x128xf32> to vector<2x128xf32>
    %698 = vector.extract_strided_slice %688 {offsets = [0, 128], sizes = [2, 128], strides = [1, 1]} : vector<2x384xf32> to vector<2x128xf32>
    %699 = arith.addf %697, %698 : vector<2x128xf32>
    %700 = arith.negf %699 : vector<2x128xf32>
    %701 = math.exp %700 : vector<2x128xf32>
    %cst_177 = arith.constant 1.000000e+00 : f32
    %702 = vector.broadcast %cst_177 : f32 to vector<2x128xf32>
    %703 = arith.addf %702, %701 : vector<2x128xf32>
    %704 = arith.divf %702, %703 : vector<2x128xf32>
    %705 = vector.extract_strided_slice %649 {offsets = [2, 0], sizes = [2, 128], strides = [1, 1]} : vector<16x128xf32> to vector<2x128xf32>
    %706 = vector.extract_strided_slice %688 {offsets = [0, 256], sizes = [2, 128], strides = [1, 1]} : vector<2x384xf32> to vector<2x128xf32>
    %707 = vector.broadcast %654 : vector<1x128xf32> to vector<2x128xf32>
    %708 = arith.addf %706, %707 : vector<2x128xf32>
    %709 = arith.mulf %696, %708 : vector<2x128xf32>
    %710 = arith.addf %705, %709 : vector<2x128xf32>
    %711 = math.tanh %710 : vector<2x128xf32>
    %cst_178 = arith.constant 1.000000e+00 : f32
    %712 = vector.broadcast %cst_178 : f32 to vector<2x128xf32>
    %713 = arith.subf %712, %704 : vector<2x128xf32>
    %714 = arith.mulf %713, %711 : vector<2x128xf32>
    %715 = arith.mulf %704, %685 : vector<2x128xf32>
    %716 = arith.addf %714, %715 : vector<2x128xf32>
    %c2_179 = arith.constant 2 : index
    %c0_180 = arith.constant 0 : index
    %717 = vector.load %arg4[%c2_179, %c0_180] : memref<16x128xf32, #tpu.memory_space<vmem>>, vector<2x128xf32>
    tpu.vector_store %arg4[%c2_179, %c0_180], %716 {strides = array<i32>} : memref<16x128xf32, #tpu.memory_space<vmem>>, vector<2x128xf32>,
    %718 = vector.extract_strided_slice %716 {offsets = [0, 0], sizes = [2, 32], strides = [1, 1]} : vector<2x128xf32> to vector<2x32xf32>
    %cst_181 = arith.constant dense<0.000000e+00> : vector<2x384xf32>
    %719 = tpu.matmul %718, %653, %cst_181 {dimension_numbers = #tpu.dot_dimension_numbers<[1], [0], [0], [1], [0, 0, 1, 1], [], []>} : vector<2x32xf32>, vector<32x384xf32>, vector<2x384xf32> -> vector<2x384xf32>
    %720 = vector.extract_strided_slice %633 {offsets = [4, 0], sizes = [2, 128], strides = [1, 1]} : vector<16x128xf32> to vector<2x128xf32>
    %721 = vector.extract_strided_slice %719 {offsets = [0, 0], sizes = [2, 128], strides = [1, 1]} : vector<2x384xf32> to vector<2x128xf32>
    %722 = arith.addf %720, %721 : vector<2x128xf32>
    %723 = arith.negf %722 : vector<2x128xf32>
    %724 = math.exp %723 : vector<2x128xf32>
    %cst_182 = arith.constant 1.000000e+00 : f32
    %725 = vector.broadcast %cst_182 : f32 to vector<2x128xf32>
    %726 = arith.addf %725, %724 : vector<2x128xf32>
    %727 = arith.divf %725, %726 : vector<2x128xf32>
    %728 = vector.extract_strided_slice %641 {offsets = [4, 0], sizes = [2, 128], strides = [1, 1]} : vector<16x128xf32> to vector<2x128xf32>
    %729 = vector.extract_strided_slice %719 {offsets = [0, 128], sizes = [2, 128], strides = [1, 1]} : vector<2x384xf32> to vector<2x128xf32>
    %730 = arith.addf %728, %729 : vector<2x128xf32>
    %731 = arith.negf %730 : vector<2x128xf32>
    %732 = math.exp %731 : vector<2x128xf32>
    %cst_183 = arith.constant 1.000000e+00 : f32
    %733 = vector.broadcast %cst_183 : f32 to vector<2x128xf32>
    %734 = arith.addf %733, %732 : vector<2x128xf32>
    %735 = arith.divf %733, %734 : vector<2x128xf32>
    %736 = vector.extract_strided_slice %649 {offsets = [4, 0], sizes = [2, 128], strides = [1, 1]} : vector<16x128xf32> to vector<2x128xf32>
    %737 = vector.extract_strided_slice %719 {offsets = [0, 256], sizes = [2, 128], strides = [1, 1]} : vector<2x384xf32> to vector<2x128xf32>
    %738 = vector.broadcast %654 : vector<1x128xf32> to vector<2x128xf32>
    %739 = arith.addf %737, %738 : vector<2x128xf32>
    %740 = arith.mulf %727, %739 : vector<2x128xf32>
    %741 = arith.addf %736, %740 : vector<2x128xf32>
    %742 = math.tanh %741 : vector<2x128xf32>
    %cst_184 = arith.constant 1.000000e+00 : f32
    %743 = vector.broadcast %cst_184 : f32 to vector<2x128xf32>
    %744 = arith.subf %743, %735 : vector<2x128xf32>
    %745 = arith.mulf %744, %742 : vector<2x128xf32>
    %746 = arith.mulf %735, %716 : vector<2x128xf32>
    %747 = arith.addf %745, %746 : vector<2x128xf32>
    %c4_185 = arith.constant 4 : index
    %c0_186 = arith.constant 0 : index
    %748 = vector.load %arg4[%c4_185, %c0_186] : memref<16x128xf32, #tpu.memory_space<vmem>>, vector<2x128xf32>
    tpu.vector_store %arg4[%c4_185, %c0_186], %747 {strides = array<i32>} : memref<16x128xf32, #tpu.memory_space<vmem>>, vector<2x128xf32>,
    %749 = vector.extract_strided_slice %747 {offsets = [0, 0], sizes = [2, 32], strides = [1, 1]} : vector<2x128xf32> to vector<2x32xf32>
    %cst_187 = arith.constant dense<0.000000e+00> : vector<2x384xf32>
    %750 = tpu.matmul %749, %653, %cst_187 {dimension_numbers = #tpu.dot_dimension_numbers<[1], [0], [0], [1], [0, 0, 1, 1], [], []>} : vector<2x32xf32>, vector<32x384xf32>, vector<2x384xf32> -> vector<2x384xf32>
    %751 = vector.extract_strided_slice %633 {offsets = [6, 0], sizes = [2, 128], strides = [1, 1]} : vector<16x128xf32> to vector<2x128xf32>
    %752 = vector.extract_strided_slice %750 {offsets = [0, 0], sizes = [2, 128], strides = [1, 1]} : vector<2x384xf32> to vector<2x128xf32>
    %753 = arith.addf %751, %752 : vector<2x128xf32>
    %754 = arith.negf %753 : vector<2x128xf32>
    %755 = math.exp %754 : vector<2x128xf32>
    %cst_188 = arith.constant 1.000000e+00 : f32
    %756 = vector.broadcast %cst_188 : f32 to vector<2x128xf32>
    %757 = arith.addf %756, %755 : vector<2x128xf32>
    %758 = arith.divf %756, %757 : vector<2x128xf32>
    %759 = vector.extract_strided_slice %641 {offsets = [6, 0], sizes = [2, 128], strides = [1, 1]} : vector<16x128xf32> to vector<2x128xf32>
    %760 = vector.extract_strided_slice %750 {offsets = [0, 128], sizes = [2, 128], strides = [1, 1]} : vector<2x384xf32> to vector<2x128xf32>
    %761 = arith.addf %759, %760 : vector<2x128xf32>
    %762 = arith.negf %761 : vector<2x128xf32>
    %763 = math.exp %762 : vector<2x128xf32>
    %cst_189 = arith.constant 1.000000e+00 : f32
    %764 = vector.broadcast %cst_189 : f32 to vector<2x128xf32>
    %765 = arith.addf %764, %763 : vector<2x128xf32>
    %766 = arith.divf %764, %765 : vector<2x128xf32>
    %767 = vector.extract_strided_slice %649 {offsets = [6, 0], sizes = [2, 128], strides = [1, 1]} : vector<16x128xf32> to vector<2x128xf32>
    %768 = vector.extract_strided_slice %750 {offsets = [0, 256], sizes = [2, 128], strides = [1, 1]} : vector<2x384xf32> to vector<2x128xf32>
    %769 = vector.broadcast %654 : vector<1x128xf32> to vector<2x128xf32>
    %770 = arith.addf %768, %769 : vector<2x128xf32>
    %771 = arith.mulf %758, %770 : vector<2x128xf32>
    %772 = arith.addf %767, %771 : vector<2x128xf32>
    %773 = math.tanh %772 : vector<2x128xf32>
    %cst_190 = arith.constant 1.000000e+00 : f32
    %774 = vector.broadcast %cst_190 : f32 to vector<2x128xf32>
    %775 = arith.subf %774, %766 : vector<2x128xf32>
    %776 = arith.mulf %775, %773 : vector<2x128xf32>
    %777 = arith.mulf %766, %747 : vector<2x128xf32>
    %778 = arith.addf %776, %777 : vector<2x128xf32>
    %c6_191 = arith.constant 6 : index
    %c0_192 = arith.constant 0 : index
    %779 = vector.load %arg4[%c6_191, %c0_192] : memref<16x128xf32, #tpu.memory_space<vmem>>, vector<2x128xf32>
    tpu.vector_store %arg4[%c6_191, %c0_192], %778 {strides = array<i32>} : memref<16x128xf32, #tpu.memory_space<vmem>>, vector<2x128xf32>,
    %780 = vector.extract_strided_slice %778 {offsets = [0, 0], sizes = [2, 32], strides = [1, 1]} : vector<2x128xf32> to vector<2x32xf32>
    %cst_193 = arith.constant dense<0.000000e+00> : vector<2x384xf32>
    %781 = tpu.matmul %780, %653, %cst_193 {dimension_numbers = #tpu.dot_dimension_numbers<[1], [0], [0], [1], [0, 0, 1, 1], [], []>} : vector<2x32xf32>, vector<32x384xf32>, vector<2x384xf32> -> vector<2x384xf32>
    %782 = vector.extract_strided_slice %633 {offsets = [8, 0], sizes = [2, 128], strides = [1, 1]} : vector<16x128xf32> to vector<2x128xf32>
    %783 = vector.extract_strided_slice %781 {offsets = [0, 0], sizes = [2, 128], strides = [1, 1]} : vector<2x384xf32> to vector<2x128xf32>
    %784 = arith.addf %782, %783 : vector<2x128xf32>
    %785 = arith.negf %784 : vector<2x128xf32>
    %786 = math.exp %785 : vector<2x128xf32>
    %cst_194 = arith.constant 1.000000e+00 : f32
    %787 = vector.broadcast %cst_194 : f32 to vector<2x128xf32>
    %788 = arith.addf %787, %786 : vector<2x128xf32>
    %789 = arith.divf %787, %788 : vector<2x128xf32>
    %790 = vector.extract_strided_slice %641 {offsets = [8, 0], sizes = [2, 128], strides = [1, 1]} : vector<16x128xf32> to vector<2x128xf32>
    %791 = vector.extract_strided_slice %781 {offsets = [0, 128], sizes = [2, 128], strides = [1, 1]} : vector<2x384xf32> to vector<2x128xf32>
    %792 = arith.addf %790, %791 : vector<2x128xf32>
    %793 = arith.negf %792 : vector<2x128xf32>
    %794 = math.exp %793 : vector<2x128xf32>
    %cst_195 = arith.constant 1.000000e+00 : f32
    %795 = vector.broadcast %cst_195 : f32 to vector<2x128xf32>
    %796 = arith.addf %795, %794 : vector<2x128xf32>
    %797 = arith.divf %795, %796 : vector<2x128xf32>
    %798 = vector.extract_strided_slice %649 {offsets = [8, 0], sizes = [2, 128], strides = [1, 1]} : vector<16x128xf32> to vector<2x128xf32>
    %799 = vector.extract_strided_slice %781 {offsets = [0, 256], sizes = [2, 128], strides = [1, 1]} : vector<2x384xf32> to vector<2x128xf32>
    %800 = vector.broadcast %654 : vector<1x128xf32> to vector<2x128xf32>
    %801 = arith.addf %799, %800 : vector<2x128xf32>
    %802 = arith.mulf %789, %801 : vector<2x128xf32>
    %803 = arith.addf %798, %802 : vector<2x128xf32>
    %804 = math.tanh %803 : vector<2x128xf32>
    %cst_196 = arith.constant 1.000000e+00 : f32
    %805 = vector.broadcast %cst_196 : f32 to vector<2x128xf32>
    %806 = arith.subf %805, %797 : vector<2x128xf32>
    %807 = arith.mulf %806, %804 : vector<2x128xf32>
    %808 = arith.mulf %797, %778 : vector<2x128xf32>
    %809 = arith.addf %807, %808 : vector<2x128xf32>
    %c8_197 = arith.constant 8 : index
    %c0_198 = arith.constant 0 : index
    %810 = vector.load %arg4[%c8_197, %c0_198] : memref<16x128xf32, #tpu.memory_space<vmem>>, vector<2x128xf32>
    tpu.vector_store %arg4[%c8_197, %c0_198], %809 {strides = array<i32>} : memref<16x128xf32, #tpu.memory_space<vmem>>, vector<2x128xf32>,
    %811 = vector.extract_strided_slice %809 {offsets = [0, 0], sizes = [2, 32], strides = [1, 1]} : vector<2x128xf32> to vector<2x32xf32>
    %cst_199 = arith.constant dense<0.000000e+00> : vector<2x384xf32>
    %812 = tpu.matmul %811, %653, %cst_199 {dimension_numbers = #tpu.dot_dimension_numbers<[1], [0], [0], [1], [0, 0, 1, 1], [], []>} : vector<2x32xf32>, vector<32x384xf32>, vector<2x384xf32> -> vector<2x384xf32>
    %813 = vector.extract_strided_slice %633 {offsets = [10, 0], sizes = [2, 128], strides = [1, 1]} : vector<16x128xf32> to vector<2x128xf32>
    %814 = vector.extract_strided_slice %812 {offsets = [0, 0], sizes = [2, 128], strides = [1, 1]} : vector<2x384xf32> to vector<2x128xf32>
    %815 = arith.addf %813, %814 : vector<2x128xf32>
    %816 = arith.negf %815 : vector<2x128xf32>
    %817 = math.exp %816 : vector<2x128xf32>
    %cst_200 = arith.constant 1.000000e+00 : f32
    %818 = vector.broadcast %cst_200 : f32 to vector<2x128xf32>
    %819 = arith.addf %818, %817 : vector<2x128xf32>
    %820 = arith.divf %818, %819 : vector<2x128xf32>
    %821 = vector.extract_strided_slice %641 {offsets = [10, 0], sizes = [2, 128], strides = [1, 1]} : vector<16x128xf32> to vector<2x128xf32>
    %822 = vector.extract_strided_slice %812 {offsets = [0, 128], sizes = [2, 128], strides = [1, 1]} : vector<2x384xf32> to vector<2x128xf32>
    %823 = arith.addf %821, %822 : vector<2x128xf32>
    %824 = arith.negf %823 : vector<2x128xf32>
    %825 = math.exp %824 : vector<2x128xf32>
    %cst_201 = arith.constant 1.000000e+00 : f32
    %826 = vector.broadcast %cst_201 : f32 to vector<2x128xf32>
    %827 = arith.addf %826, %825 : vector<2x128xf32>
    %828 = arith.divf %826, %827 : vector<2x128xf32>
    %829 = vector.extract_strided_slice %649 {offsets = [10, 0], sizes = [2, 128], strides = [1, 1]} : vector<16x128xf32> to vector<2x128xf32>
    %830 = vector.extract_strided_slice %812 {offsets = [0, 256], sizes = [2, 128], strides = [1, 1]} : vector<2x384xf32> to vector<2x128xf32>
    %831 = vector.broadcast %654 : vector<1x128xf32> to vector<2x128xf32>
    %832 = arith.addf %830, %831 : vector<2x128xf32>
    %833 = arith.mulf %820, %832 : vector<2x128xf32>
    %834 = arith.addf %829, %833 : vector<2x128xf32>
    %835 = math.tanh %834 : vector<2x128xf32>
    %cst_202 = arith.constant 1.000000e+00 : f32
    %836 = vector.broadcast %cst_202 : f32 to vector<2x128xf32>
    %837 = arith.subf %836, %828 : vector<2x128xf32>
    %838 = arith.mulf %837, %835 : vector<2x128xf32>
    %839 = arith.mulf %828, %809 : vector<2x128xf32>
    %840 = arith.addf %838, %839 : vector<2x128xf32>
    %c10_203 = arith.constant 10 : index
    %c0_204 = arith.constant 0 : index
    %841 = vector.load %arg4[%c10_203, %c0_204] : memref<16x128xf32, #tpu.memory_space<vmem>>, vector<2x128xf32>
    tpu.vector_store %arg4[%c10_203, %c0_204], %840 {strides = array<i32>} : memref<16x128xf32, #tpu.memory_space<vmem>>, vector<2x128xf32>,
    %842 = vector.extract_strided_slice %840 {offsets = [0, 0], sizes = [2, 32], strides = [1, 1]} : vector<2x128xf32> to vector<2x32xf32>
    %cst_205 = arith.constant dense<0.000000e+00> : vector<2x384xf32>
    %843 = tpu.matmul %842, %653, %cst_205 {dimension_numbers = #tpu.dot_dimension_numbers<[1], [0], [0], [1], [0, 0, 1, 1], [], []>} : vector<2x32xf32>, vector<32x384xf32>, vector<2x384xf32> -> vector<2x384xf32>
    %844 = vector.extract_strided_slice %633 {offsets = [12, 0], sizes = [2, 128], strides = [1, 1]} : vector<16x128xf32> to vector<2x128xf32>
    %845 = vector.extract_strided_slice %843 {offsets = [0, 0], sizes = [2, 128], strides = [1, 1]} : vector<2x384xf32> to vector<2x128xf32>
    %846 = arith.addf %844, %845 : vector<2x128xf32>
    %847 = arith.negf %846 : vector<2x128xf32>
    %848 = math.exp %847 : vector<2x128xf32>
    %cst_206 = arith.constant 1.000000e+00 : f32
    %849 = vector.broadcast %cst_206 : f32 to vector<2x128xf32>
    %850 = arith.addf %849, %848 : vector<2x128xf32>
    %851 = arith.divf %849, %850 : vector<2x128xf32>
    %852 = vector.extract_strided_slice %641 {offsets = [12, 0], sizes = [2, 128], strides = [1, 1]} : vector<16x128xf32> to vector<2x128xf32>
    %853 = vector.extract_strided_slice %843 {offsets = [0, 128], sizes = [2, 128], strides = [1, 1]} : vector<2x384xf32> to vector<2x128xf32>
    %854 = arith.addf %852, %853 : vector<2x128xf32>
    %855 = arith.negf %854 : vector<2x128xf32>
    %856 = math.exp %855 : vector<2x128xf32>
    %cst_207 = arith.constant 1.000000e+00 : f32
    %857 = vector.broadcast %cst_207 : f32 to vector<2x128xf32>
    %858 = arith.addf %857, %856 : vector<2x128xf32>
    %859 = arith.divf %857, %858 : vector<2x128xf32>
    %860 = vector.extract_strided_slice %649 {offsets = [12, 0], sizes = [2, 128], strides = [1, 1]} : vector<16x128xf32> to vector<2x128xf32>
    %861 = vector.extract_strided_slice %843 {offsets = [0, 256], sizes = [2, 128], strides = [1, 1]} : vector<2x384xf32> to vector<2x128xf32>
    %862 = vector.broadcast %654 : vector<1x128xf32> to vector<2x128xf32>
    %863 = arith.addf %861, %862 : vector<2x128xf32>
    %864 = arith.mulf %851, %863 : vector<2x128xf32>
    %865 = arith.addf %860, %864 : vector<2x128xf32>
    %866 = math.tanh %865 : vector<2x128xf32>
    %cst_208 = arith.constant 1.000000e+00 : f32
    %867 = vector.broadcast %cst_208 : f32 to vector<2x128xf32>
    %868 = arith.subf %867, %859 : vector<2x128xf32>
    %869 = arith.mulf %868, %866 : vector<2x128xf32>
    %870 = arith.mulf %859, %840 : vector<2x128xf32>
    %871 = arith.addf %869, %870 : vector<2x128xf32>
    %c12_209 = arith.constant 12 : index
    %c0_210 = arith.constant 0 : index
    %872 = vector.load %arg4[%c12_209, %c0_210] : memref<16x128xf32, #tpu.memory_space<vmem>>, vector<2x128xf32>
    tpu.vector_store %arg4[%c12_209, %c0_210], %871 {strides = array<i32>} : memref<16x128xf32, #tpu.memory_space<vmem>>, vector<2x128xf32>,
    %873 = vector.extract_strided_slice %871 {offsets = [0, 0], sizes = [2, 32], strides = [1, 1]} : vector<2x128xf32> to vector<2x32xf32>
    %cst_211 = arith.constant dense<0.000000e+00> : vector<2x384xf32>
    %874 = tpu.matmul %873, %653, %cst_211 {dimension_numbers = #tpu.dot_dimension_numbers<[1], [0], [0], [1], [0, 0, 1, 1], [], []>} : vector<2x32xf32>, vector<32x384xf32>, vector<2x384xf32> -> vector<2x384xf32>
    %875 = vector.extract_strided_slice %633 {offsets = [14, 0], sizes = [2, 128], strides = [1, 1]} : vector<16x128xf32> to vector<2x128xf32>
    %876 = vector.extract_strided_slice %874 {offsets = [0, 0], sizes = [2, 128], strides = [1, 1]} : vector<2x384xf32> to vector<2x128xf32>
    %877 = arith.addf %875, %876 : vector<2x128xf32>
    %878 = arith.negf %877 : vector<2x128xf32>
    %879 = math.exp %878 : vector<2x128xf32>
    %cst_212 = arith.constant 1.000000e+00 : f32
    %880 = vector.broadcast %cst_212 : f32 to vector<2x128xf32>
    %881 = arith.addf %880, %879 : vector<2x128xf32>
    %882 = arith.divf %880, %881 : vector<2x128xf32>
    %883 = vector.extract_strided_slice %641 {offsets = [14, 0], sizes = [2, 128], strides = [1, 1]} : vector<16x128xf32> to vector<2x128xf32>
    %884 = vector.extract_strided_slice %874 {offsets = [0, 128], sizes = [2, 128], strides = [1, 1]} : vector<2x384xf32> to vector<2x128xf32>
    %885 = arith.addf %883, %884 : vector<2x128xf32>
    %886 = arith.negf %885 : vector<2x128xf32>
    %887 = math.exp %886 : vector<2x128xf32>
    %cst_213 = arith.constant 1.000000e+00 : f32
    %888 = vector.broadcast %cst_213 : f32 to vector<2x128xf32>
    %889 = arith.addf %888, %887 : vector<2x128xf32>
    %890 = arith.divf %888, %889 : vector<2x128xf32>
    %891 = vector.extract_strided_slice %649 {offsets = [14, 0], sizes = [2, 128], strides = [1, 1]} : vector<16x128xf32> to vector<2x128xf32>
    %892 = vector.extract_strided_slice %874 {offsets = [0, 256], sizes = [2, 128], strides = [1, 1]} : vector<2x384xf32> to vector<2x128xf32>
    %893 = vector.broadcast %654 : vector<1x128xf32> to vector<2x128xf32>
    %894 = arith.addf %892, %893 : vector<2x128xf32>
    %895 = arith.mulf %882, %894 : vector<2x128xf32>
    %896 = arith.addf %891, %895 : vector<2x128xf32>
    %897 = math.tanh %896 : vector<2x128xf32>
    %cst_214 = arith.constant 1.000000e+00 : f32
    %898 = vector.broadcast %cst_214 : f32 to vector<2x128xf32>
    %899 = arith.subf %898, %890 : vector<2x128xf32>
    %900 = arith.mulf %899, %897 : vector<2x128xf32>
    %901 = arith.mulf %890, %871 : vector<2x128xf32>
    %902 = arith.addf %900, %901 : vector<2x128xf32>
    %c14_215 = arith.constant 14 : index
    %c0_216 = arith.constant 0 : index
    %903 = vector.load %arg4[%c14_215, %c0_216] : memref<16x128xf32, #tpu.memory_space<vmem>>, vector<2x128xf32>
    tpu.vector_store %arg4[%c14_215, %c0_216], %902 {strides = array<i32>} : memref<16x128xf32, #tpu.memory_space<vmem>>, vector<2x128xf32>,
    %c0_217 = arith.constant 0 : index
    %c0_218 = arith.constant 0 : index
    %904 = vector.load %arg4[%c0_217, %c0_218] : memref<16x128xf32, #tpu.memory_space<vmem>>, vector<16x128xf32>
    %905 = vector.extract_strided_slice %904 {offsets = [0, 0], sizes = [16, 32], strides = [1, 1]} : vector<16x128xf32> to vector<16x32xf32>
    %906 = vector.extract_strided_slice %23 {offsets = [32, 0], sizes = [16, 16], strides = [1, 1]} : vector<64x16xf32> to vector<16x16xf32>
    %c1192 = arith.constant 1192 : index
    %c0_219 = arith.constant 0 : index
    %907 = vector.load %arg2[%c1192, %c0_219] : memref<1336x128xf32, #tpu.memory_space<vmem>>, vector<16x128xf32>
    %908 = vector.extract_strided_slice %907 {offsets = [0, 0], sizes = [16, 64], strides = [1, 1]} : vector<16x128xf32> to vector<16x64xf32>
    %cst_220 = arith.constant dense<0.000000e+00> : vector<16x64xf32>
    %909 = tpu.matmul %906, %908, %cst_220 {dimension_numbers = #tpu.dot_dimension_numbers<[1], [0], [0], [1], [0, 0, 1, 1], [], []>} : vector<16x16xf32>, vector<16x64xf32>, vector<16x64xf32> -> vector<16x64xf32>
    %c1208 = arith.constant 1208 : index
    %c0_221 = arith.constant 0 : index
    %910 = vector.load %arg2[%c1208, %c0_221] : memref<1336x128xf32, #tpu.memory_space<vmem>>, vector<1x128xf32>
    %911 = vector.extract_strided_slice %910 {offsets = [0, 0], sizes = [1, 64], strides = [1, 1]} : vector<1x128xf32> to vector<1x64xf32>
    %912 = vector.broadcast %911 : vector<1x64xf32> to vector<16x64xf32>
    %913 = arith.addf %909, %912 : vector<16x64xf32>
    %914 = arith.negf %913 : vector<16x64xf32>
    %915 = math.exp %914 : vector<16x64xf32>
    %cst_222 = arith.constant 1.000000e+00 : f32
    %916 = vector.broadcast %cst_222 : f32 to vector<16x64xf32>
    %917 = arith.addf %916, %915 : vector<16x64xf32>
    %918 = arith.divf %916, %917 : vector<16x64xf32>
    %919 = vector.extract_strided_slice %918 {offsets = [0, 0], sizes = [16, 32], strides = [1, 1]} : vector<16x64xf32> to vector<16x32xf32>
    %920 = arith.mulf %919, %905 : vector<16x32xf32>
    %921 = vector.extract_strided_slice %918 {offsets = [0, 32], sizes = [16, 32], strides = [1, 1]} : vector<16x64xf32> to vector<16x32xf32>
    %922 = arith.addf %920, %921 : vector<16x32xf32>
    %c768 = arith.constant 768 : index
    %c0_223 = arith.constant 0 : index
    %923 = vector.load %arg2[%c768, %c0_223] : memref<1336x128xf32, #tpu.memory_space<vmem>>, vector<1x128xf32>
    %c696 = arith.constant 696 : index
    %c0_224 = arith.constant 0 : index
    %924 = vector.load %arg2[%c696, %c0_224] : memref<1336x128xf32, #tpu.memory_space<vmem>>, vector<32x128xf32>
    %cst_225 = arith.constant dense<0.000000e+00> : vector<16x128xf32>
    %925 = tpu.matmul %922, %924, %cst_225 {dimension_numbers = #tpu.dot_dimension_numbers<[1], [0], [0], [1], [0, 0, 1, 1], [], []>} : vector<16x32xf32>, vector<32x128xf32>, vector<16x128xf32> -> vector<16x128xf32>
    %926 = vector.broadcast %923 : vector<1x128xf32> to vector<16x128xf32>
    %927 = arith.addf %926, %925 : vector<16x128xf32>
    %c728 = arith.constant 728 : index
    %c0_226 = arith.constant 0 : index
    %928 = vector.load %arg2[%c728, %c0_226] : memref<1336x128xf32, #tpu.memory_space<vmem>>, vector<4x128xf32>
    %cst_227 = arith.constant dense<0.000000e+00> : vector<16x128xf32>
    %929 = tpu.matmul %0, %928, %cst_227 {dimension_numbers = #tpu.dot_dimension_numbers<[1], [0], [0], [1], [0, 0, 1, 1], [], []>} : vector<16x4xf32>, vector<4x128xf32>, vector<16x128xf32> -> vector<16x128xf32>
    %930 = arith.addf %927, %929 : vector<16x128xf32>
    %c848 = arith.constant 848 : index
    %c0_228 = arith.constant 0 : index
    %931 = vector.load %arg2[%c848, %c0_228] : memref<1336x128xf32, #tpu.memory_space<vmem>>, vector<1x128xf32>
    %c776 = arith.constant 776 : index
    %c0_229 = arith.constant 0 : index
    %932 = vector.load %arg2[%c776, %c0_229] : memref<1336x128xf32, #tpu.memory_space<vmem>>, vector<32x128xf32>
    %cst_230 = arith.constant dense<0.000000e+00> : vector<16x128xf32>
    %933 = tpu.matmul %922, %932, %cst_230 {dimension_numbers = #tpu.dot_dimension_numbers<[1], [0], [0], [1], [0, 0, 1, 1], [], []>} : vector<16x32xf32>, vector<32x128xf32>, vector<16x128xf32> -> vector<16x128xf32>
    %934 = vector.broadcast %931 : vector<1x128xf32> to vector<16x128xf32>
    %935 = arith.addf %934, %933 : vector<16x128xf32>
    %c808 = arith.constant 808 : index
    %c0_231 = arith.constant 0 : index
    %936 = vector.load %arg2[%c808, %c0_231] : memref<1336x128xf32, #tpu.memory_space<vmem>>, vector<4x128xf32>
    %cst_232 = arith.constant dense<0.000000e+00> : vector<16x128xf32>
    %937 = tpu.matmul %0, %936, %cst_232 {dimension_numbers = #tpu.dot_dimension_numbers<[1], [0], [0], [1], [0, 0, 1, 1], [], []>} : vector<16x4xf32>, vector<4x128xf32>, vector<16x128xf32> -> vector<16x128xf32>
    %938 = arith.addf %935, %937 : vector<16x128xf32>
    %c928 = arith.constant 928 : index
    %c0_233 = arith.constant 0 : index
    %939 = vector.load %arg2[%c928, %c0_233] : memref<1336x128xf32, #tpu.memory_space<vmem>>, vector<1x128xf32>
    %c856 = arith.constant 856 : index
    %c0_234 = arith.constant 0 : index
    %940 = vector.load %arg2[%c856, %c0_234] : memref<1336x128xf32, #tpu.memory_space<vmem>>, vector<32x128xf32>
    %cst_235 = arith.constant dense<0.000000e+00> : vector<16x128xf32>
    %941 = tpu.matmul %922, %940, %cst_235 {dimension_numbers = #tpu.dot_dimension_numbers<[1], [0], [0], [1], [0, 0, 1, 1], [], []>} : vector<16x32xf32>, vector<32x128xf32>, vector<16x128xf32> -> vector<16x128xf32>
    %942 = vector.broadcast %939 : vector<1x128xf32> to vector<16x128xf32>
    %943 = arith.addf %942, %941 : vector<16x128xf32>
    %c888 = arith.constant 888 : index
    %c0_236 = arith.constant 0 : index
    %944 = vector.load %arg2[%c888, %c0_236] : memref<1336x128xf32, #tpu.memory_space<vmem>>, vector<4x128xf32>
    %cst_237 = arith.constant dense<0.000000e+00> : vector<16x128xf32>
    %945 = tpu.matmul %0, %944, %cst_237 {dimension_numbers = #tpu.dot_dimension_numbers<[1], [0], [0], [1], [0, 0, 1, 1], [], []>} : vector<16x4xf32>, vector<4x128xf32>, vector<16x128xf32> -> vector<16x128xf32>
    %946 = arith.addf %943, %945 : vector<16x128xf32>
    %c736 = arith.constant 736 : index
    %c0_238 = arith.constant 0 : index
    %947 = vector.load %arg2[%c736, %c0_238] : memref<1336x128xf32, #tpu.memory_space<vmem>>, vector<32x128xf32>
    %c816 = arith.constant 816 : index
    %c0_239 = arith.constant 0 : index
    %948 = vector.load %arg2[%c816, %c0_239] : memref<1336x128xf32, #tpu.memory_space<vmem>>, vector<32x128xf32>
    %c896 = arith.constant 896 : index
    %c0_240 = arith.constant 0 : index
    %949 = vector.load %arg2[%c896, %c0_240] : memref<1336x128xf32, #tpu.memory_space<vmem>>, vector<32x128xf32>
    %950 = tpu.concatenate %947, %948, %949 in 1 : vector<32x128xf32>, vector<32x128xf32>, vector<32x128xf32> -> vector<32x384xf32>
    %c936 = arith.constant 936 : index
    %c0_241 = arith.constant 0 : index
    %951 = vector.load %arg2[%c936, %c0_241] : memref<1336x128xf32, #tpu.memory_space<vmem>>, vector<1x128xf32>
    %cst_242 = arith.constant 0.000000e+00 : f32
    %952 = vector.broadcast %cst_242 : f32 to vector<2x128xf32>
    %953 = vector.extract_strided_slice %952 {offsets = [0, 0], sizes = [2, 32], strides = [1, 1]} : vector<2x128xf32> to vector<2x32xf32>
    %cst_243 = arith.constant dense<0.000000e+00> : vector<2x384xf32>
    %954 = tpu.matmul %953, %950, %cst_243 {dimension_numbers = #tpu.dot_dimension_numbers<[1], [0], [0], [1], [0, 0, 1, 1], [], []>} : vector<2x32xf32>, vector<32x384xf32>, vector<2x384xf32> -> vector<2x384xf32>
    %955 = vector.extract_strided_slice %930 {offsets = [0, 0], sizes = [2, 128], strides = [1, 1]} : vector<16x128xf32> to vector<2x128xf32>
    %956 = vector.extract_strided_slice %954 {offsets = [0, 0], sizes = [2, 128], strides = [1, 1]} : vector<2x384xf32> to vector<2x128xf32>
    %957 = arith.addf %955, %956 : vector<2x128xf32>
    %958 = arith.negf %957 : vector<2x128xf32>
    %959 = math.exp %958 : vector<2x128xf32>
    %cst_244 = arith.constant 1.000000e+00 : f32
    %960 = vector.broadcast %cst_244 : f32 to vector<2x128xf32>
    %961 = arith.addf %960, %959 : vector<2x128xf32>
    %962 = arith.divf %960, %961 : vector<2x128xf32>
    %963 = vector.extract_strided_slice %938 {offsets = [0, 0], sizes = [2, 128], strides = [1, 1]} : vector<16x128xf32> to vector<2x128xf32>
    %964 = vector.extract_strided_slice %954 {offsets = [0, 128], sizes = [2, 128], strides = [1, 1]} : vector<2x384xf32> to vector<2x128xf32>
    %965 = arith.addf %963, %964 : vector<2x128xf32>
    %966 = arith.negf %965 : vector<2x128xf32>
    %967 = math.exp %966 : vector<2x128xf32>
    %cst_245 = arith.constant 1.000000e+00 : f32
    %968 = vector.broadcast %cst_245 : f32 to vector<2x128xf32>
    %969 = arith.addf %968, %967 : vector<2x128xf32>
    %970 = arith.divf %968, %969 : vector<2x128xf32>
    %971 = vector.extract_strided_slice %946 {offsets = [0, 0], sizes = [2, 128], strides = [1, 1]} : vector<16x128xf32> to vector<2x128xf32>
    %972 = vector.extract_strided_slice %954 {offsets = [0, 256], sizes = [2, 128], strides = [1, 1]} : vector<2x384xf32> to vector<2x128xf32>
    %973 = vector.broadcast %951 : vector<1x128xf32> to vector<2x128xf32>
    %974 = arith.addf %972, %973 : vector<2x128xf32>
    %975 = arith.mulf %962, %974 : vector<2x128xf32>
    %976 = arith.addf %971, %975 : vector<2x128xf32>
    %977 = math.tanh %976 : vector<2x128xf32>
    %cst_246 = arith.constant 1.000000e+00 : f32
    %978 = vector.broadcast %cst_246 : f32 to vector<2x128xf32>
    %979 = arith.subf %978, %970 : vector<2x128xf32>
    %980 = arith.mulf %979, %977 : vector<2x128xf32>
    %981 = arith.mulf %970, %952 : vector<2x128xf32>
    %982 = arith.addf %980, %981 : vector<2x128xf32>
    %c0_247 = arith.constant 0 : index
    %c0_248 = arith.constant 0 : index
    %983 = vector.load %arg4[%c0_247, %c0_248] : memref<16x128xf32, #tpu.memory_space<vmem>>, vector<2x128xf32>
    tpu.vector_store %arg4[%c0_247, %c0_248], %982 {strides = array<i32>} : memref<16x128xf32, #tpu.memory_space<vmem>>, vector<2x128xf32>,
    %984 = vector.extract_strided_slice %982 {offsets = [0, 0], sizes = [2, 32], strides = [1, 1]} : vector<2x128xf32> to vector<2x32xf32>
    %cst_249 = arith.constant dense<0.000000e+00> : vector<2x384xf32>
    %985 = tpu.matmul %984, %950, %cst_249 {dimension_numbers = #tpu.dot_dimension_numbers<[1], [0], [0], [1], [0, 0, 1, 1], [], []>} : vector<2x32xf32>, vector<32x384xf32>, vector<2x384xf32> -> vector<2x384xf32>
    %986 = vector.extract_strided_slice %930 {offsets = [2, 0], sizes = [2, 128], strides = [1, 1]} : vector<16x128xf32> to vector<2x128xf32>
    %987 = vector.extract_strided_slice %985 {offsets = [0, 0], sizes = [2, 128], strides = [1, 1]} : vector<2x384xf32> to vector<2x128xf32>
    %988 = arith.addf %986, %987 : vector<2x128xf32>
    %989 = arith.negf %988 : vector<2x128xf32>
    %990 = math.exp %989 : vector<2x128xf32>
    %cst_250 = arith.constant 1.000000e+00 : f32
    %991 = vector.broadcast %cst_250 : f32 to vector<2x128xf32>
    %992 = arith.addf %991, %990 : vector<2x128xf32>
    %993 = arith.divf %991, %992 : vector<2x128xf32>
    %994 = vector.extract_strided_slice %938 {offsets = [2, 0], sizes = [2, 128], strides = [1, 1]} : vector<16x128xf32> to vector<2x128xf32>
    %995 = vector.extract_strided_slice %985 {offsets = [0, 128], sizes = [2, 128], strides = [1, 1]} : vector<2x384xf32> to vector<2x128xf32>
    %996 = arith.addf %994, %995 : vector<2x128xf32>
    %997 = arith.negf %996 : vector<2x128xf32>
    %998 = math.exp %997 : vector<2x128xf32>
    %cst_251 = arith.constant 1.000000e+00 : f32
    %999 = vector.broadcast %cst_251 : f32 to vector<2x128xf32>
    %1000 = arith.addf %999, %998 : vector<2x128xf32>
    %1001 = arith.divf %999, %1000 : vector<2x128xf32>
    %1002 = vector.extract_strided_slice %946 {offsets = [2, 0], sizes = [2, 128], strides = [1, 1]} : vector<16x128xf32> to vector<2x128xf32>
    %1003 = vector.extract_strided_slice %985 {offsets = [0, 256], sizes = [2, 128], strides = [1, 1]} : vector<2x384xf32> to vector<2x128xf32>
    %1004 = vector.broadcast %951 : vector<1x128xf32> to vector<2x128xf32>
    %1005 = arith.addf %1003, %1004 : vector<2x128xf32>
    %1006 = arith.mulf %993, %1005 : vector<2x128xf32>
    %1007 = arith.addf %1002, %1006 : vector<2x128xf32>
    %1008 = math.tanh %1007 : vector<2x128xf32>
    %cst_252 = arith.constant 1.000000e+00 : f32
    %1009 = vector.broadcast %cst_252 : f32 to vector<2x128xf32>
    %1010 = arith.subf %1009, %1001 : vector<2x128xf32>
    %1011 = arith.mulf %1010, %1008 : vector<2x128xf32>
    %1012 = arith.mulf %1001, %982 : vector<2x128xf32>
    %1013 = arith.addf %1011, %1012 : vector<2x128xf32>
    %c2_253 = arith.constant 2 : index
    %c0_254 = arith.constant 0 : index
    %1014 = vector.load %arg4[%c2_253, %c0_254] : memref<16x128xf32, #tpu.memory_space<vmem>>, vector<2x128xf32>
    tpu.vector_store %arg4[%c2_253, %c0_254], %1013 {strides = array<i32>} : memref<16x128xf32, #tpu.memory_space<vmem>>, vector<2x128xf32>,
    %1015 = vector.extract_strided_slice %1013 {offsets = [0, 0], sizes = [2, 32], strides = [1, 1]} : vector<2x128xf32> to vector<2x32xf32>
    %cst_255 = arith.constant dense<0.000000e+00> : vector<2x384xf32>
    %1016 = tpu.matmul %1015, %950, %cst_255 {dimension_numbers = #tpu.dot_dimension_numbers<[1], [0], [0], [1], [0, 0, 1, 1], [], []>} : vector<2x32xf32>, vector<32x384xf32>, vector<2x384xf32> -> vector<2x384xf32>
    %1017 = vector.extract_strided_slice %930 {offsets = [4, 0], sizes = [2, 128], strides = [1, 1]} : vector<16x128xf32> to vector<2x128xf32>
    %1018 = vector.extract_strided_slice %1016 {offsets = [0, 0], sizes = [2, 128], strides = [1, 1]} : vector<2x384xf32> to vector<2x128xf32>
    %1019 = arith.addf %1017, %1018 : vector<2x128xf32>
    %1020 = arith.negf %1019 : vector<2x128xf32>
    %1021 = math.exp %1020 : vector<2x128xf32>
    %cst_256 = arith.constant 1.000000e+00 : f32
    %1022 = vector.broadcast %cst_256 : f32 to vector<2x128xf32>
    %1023 = arith.addf %1022, %1021 : vector<2x128xf32>
    %1024 = arith.divf %1022, %1023 : vector<2x128xf32>
    %1025 = vector.extract_strided_slice %938 {offsets = [4, 0], sizes = [2, 128], strides = [1, 1]} : vector<16x128xf32> to vector<2x128xf32>
    %1026 = vector.extract_strided_slice %1016 {offsets = [0, 128], sizes = [2, 128], strides = [1, 1]} : vector<2x384xf32> to vector<2x128xf32>
    %1027 = arith.addf %1025, %1026 : vector<2x128xf32>
    %1028 = arith.negf %1027 : vector<2x128xf32>
    %1029 = math.exp %1028 : vector<2x128xf32>
    %cst_257 = arith.constant 1.000000e+00 : f32
    %1030 = vector.broadcast %cst_257 : f32 to vector<2x128xf32>
    %1031 = arith.addf %1030, %1029 : vector<2x128xf32>
    %1032 = arith.divf %1030, %1031 : vector<2x128xf32>
    %1033 = vector.extract_strided_slice %946 {offsets = [4, 0], sizes = [2, 128], strides = [1, 1]} : vector<16x128xf32> to vector<2x128xf32>
    %1034 = vector.extract_strided_slice %1016 {offsets = [0, 256], sizes = [2, 128], strides = [1, 1]} : vector<2x384xf32> to vector<2x128xf32>
    %1035 = vector.broadcast %951 : vector<1x128xf32> to vector<2x128xf32>
    %1036 = arith.addf %1034, %1035 : vector<2x128xf32>
    %1037 = arith.mulf %1024, %1036 : vector<2x128xf32>
    %1038 = arith.addf %1033, %1037 : vector<2x128xf32>
    %1039 = math.tanh %1038 : vector<2x128xf32>
    %cst_258 = arith.constant 1.000000e+00 : f32
    %1040 = vector.broadcast %cst_258 : f32 to vector<2x128xf32>
    %1041 = arith.subf %1040, %1032 : vector<2x128xf32>
    %1042 = arith.mulf %1041, %1039 : vector<2x128xf32>
    %1043 = arith.mulf %1032, %1013 : vector<2x128xf32>
    %1044 = arith.addf %1042, %1043 : vector<2x128xf32>
    %c4_259 = arith.constant 4 : index
    %c0_260 = arith.constant 0 : index
    %1045 = vector.load %arg4[%c4_259, %c0_260] : memref<16x128xf32, #tpu.memory_space<vmem>>, vector<2x128xf32>
    tpu.vector_store %arg4[%c4_259, %c0_260], %1044 {strides = array<i32>} : memref<16x128xf32, #tpu.memory_space<vmem>>, vector<2x128xf32>,
    %1046 = vector.extract_strided_slice %1044 {offsets = [0, 0], sizes = [2, 32], strides = [1, 1]} : vector<2x128xf32> to vector<2x32xf32>
    %cst_261 = arith.constant dense<0.000000e+00> : vector<2x384xf32>
    %1047 = tpu.matmul %1046, %950, %cst_261 {dimension_numbers = #tpu.dot_dimension_numbers<[1], [0], [0], [1], [0, 0, 1, 1], [], []>} : vector<2x32xf32>, vector<32x384xf32>, vector<2x384xf32> -> vector<2x384xf32>
    %1048 = vector.extract_strided_slice %930 {offsets = [6, 0], sizes = [2, 128], strides = [1, 1]} : vector<16x128xf32> to vector<2x128xf32>
    %1049 = vector.extract_strided_slice %1047 {offsets = [0, 0], sizes = [2, 128], strides = [1, 1]} : vector<2x384xf32> to vector<2x128xf32>
    %1050 = arith.addf %1048, %1049 : vector<2x128xf32>
    %1051 = arith.negf %1050 : vector<2x128xf32>
    %1052 = math.exp %1051 : vector<2x128xf32>
    %cst_262 = arith.constant 1.000000e+00 : f32
    %1053 = vector.broadcast %cst_262 : f32 to vector<2x128xf32>
    %1054 = arith.addf %1053, %1052 : vector<2x128xf32>
    %1055 = arith.divf %1053, %1054 : vector<2x128xf32>
    %1056 = vector.extract_strided_slice %938 {offsets = [6, 0], sizes = [2, 128], strides = [1, 1]} : vector<16x128xf32> to vector<2x128xf32>
    %1057 = vector.extract_strided_slice %1047 {offsets = [0, 128], sizes = [2, 128], strides = [1, 1]} : vector<2x384xf32> to vector<2x128xf32>
    %1058 = arith.addf %1056, %1057 : vector<2x128xf32>
    %1059 = arith.negf %1058 : vector<2x128xf32>
    %1060 = math.exp %1059 : vector<2x128xf32>
    %cst_263 = arith.constant 1.000000e+00 : f32
    %1061 = vector.broadcast %cst_263 : f32 to vector<2x128xf32>
    %1062 = arith.addf %1061, %1060 : vector<2x128xf32>
    %1063 = arith.divf %1061, %1062 : vector<2x128xf32>
    %1064 = vector.extract_strided_slice %946 {offsets = [6, 0], sizes = [2, 128], strides = [1, 1]} : vector<16x128xf32> to vector<2x128xf32>
    %1065 = vector.extract_strided_slice %1047 {offsets = [0, 256], sizes = [2, 128], strides = [1, 1]} : vector<2x384xf32> to vector<2x128xf32>
    %1066 = vector.broadcast %951 : vector<1x128xf32> to vector<2x128xf32>
    %1067 = arith.addf %1065, %1066 : vector<2x128xf32>
    %1068 = arith.mulf %1055, %1067 : vector<2x128xf32>
    %1069 = arith.addf %1064, %1068 : vector<2x128xf32>
    %1070 = math.tanh %1069 : vector<2x128xf32>
    %cst_264 = arith.constant 1.000000e+00 : f32
    %1071 = vector.broadcast %cst_264 : f32 to vector<2x128xf32>
    %1072 = arith.subf %1071, %1063 : vector<2x128xf32>
    %1073 = arith.mulf %1072, %1070 : vector<2x128xf32>
    %1074 = arith.mulf %1063, %1044 : vector<2x128xf32>
    %1075 = arith.addf %1073, %1074 : vector<2x128xf32>
    %c6_265 = arith.constant 6 : index
    %c0_266 = arith.constant 0 : index
    %1076 = vector.load %arg4[%c6_265, %c0_266] : memref<16x128xf32, #tpu.memory_space<vmem>>, vector<2x128xf32>
    tpu.vector_store %arg4[%c6_265, %c0_266], %1075 {strides = array<i32>} : memref<16x128xf32, #tpu.memory_space<vmem>>, vector<2x128xf32>,
    %1077 = vector.extract_strided_slice %1075 {offsets = [0, 0], sizes = [2, 32], strides = [1, 1]} : vector<2x128xf32> to vector<2x32xf32>
    %cst_267 = arith.constant dense<0.000000e+00> : vector<2x384xf32>
    %1078 = tpu.matmul %1077, %950, %cst_267 {dimension_numbers = #tpu.dot_dimension_numbers<[1], [0], [0], [1], [0, 0, 1, 1], [], []>} : vector<2x32xf32>, vector<32x384xf32>, vector<2x384xf32> -> vector<2x384xf32>
    %1079 = vector.extract_strided_slice %930 {offsets = [8, 0], sizes = [2, 128], strides = [1, 1]} : vector<16x128xf32> to vector<2x128xf32>
    %1080 = vector.extract_strided_slice %1078 {offsets = [0, 0], sizes = [2, 128], strides = [1, 1]} : vector<2x384xf32> to vector<2x128xf32>
    %1081 = arith.addf %1079, %1080 : vector<2x128xf32>
    %1082 = arith.negf %1081 : vector<2x128xf32>
    %1083 = math.exp %1082 : vector<2x128xf32>
    %cst_268 = arith.constant 1.000000e+00 : f32
    %1084 = vector.broadcast %cst_268 : f32 to vector<2x128xf32>
    %1085 = arith.addf %1084, %1083 : vector<2x128xf32>
    %1086 = arith.divf %1084, %1085 : vector<2x128xf32>
    %1087 = vector.extract_strided_slice %938 {offsets = [8, 0], sizes = [2, 128], strides = [1, 1]} : vector<16x128xf32> to vector<2x128xf32>
    %1088 = vector.extract_strided_slice %1078 {offsets = [0, 128], sizes = [2, 128], strides = [1, 1]} : vector<2x384xf32> to vector<2x128xf32>
    %1089 = arith.addf %1087, %1088 : vector<2x128xf32>
    %1090 = arith.negf %1089 : vector<2x128xf32>
    %1091 = math.exp %1090 : vector<2x128xf32>
    %cst_269 = arith.constant 1.000000e+00 : f32
    %1092 = vector.broadcast %cst_269 : f32 to vector<2x128xf32>
    %1093 = arith.addf %1092, %1091 : vector<2x128xf32>
    %1094 = arith.divf %1092, %1093 : vector<2x128xf32>
    %1095 = vector.extract_strided_slice %946 {offsets = [8, 0], sizes = [2, 128], strides = [1, 1]} : vector<16x128xf32> to vector<2x128xf32>
    %1096 = vector.extract_strided_slice %1078 {offsets = [0, 256], sizes = [2, 128], strides = [1, 1]} : vector<2x384xf32> to vector<2x128xf32>
    %1097 = vector.broadcast %951 : vector<1x128xf32> to vector<2x128xf32>
    %1098 = arith.addf %1096, %1097 : vector<2x128xf32>
    %1099 = arith.mulf %1086, %1098 : vector<2x128xf32>
    %1100 = arith.addf %1095, %1099 : vector<2x128xf32>
    %1101 = math.tanh %1100 : vector<2x128xf32>
    %cst_270 = arith.constant 1.000000e+00 : f32
    %1102 = vector.broadcast %cst_270 : f32 to vector<2x128xf32>
    %1103 = arith.subf %1102, %1094 : vector<2x128xf32>
    %1104 = arith.mulf %1103, %1101 : vector<2x128xf32>
    %1105 = arith.mulf %1094, %1075 : vector<2x128xf32>
    %1106 = arith.addf %1104, %1105 : vector<2x128xf32>
    %c8_271 = arith.constant 8 : index
    %c0_272 = arith.constant 0 : index
    %1107 = vector.load %arg4[%c8_271, %c0_272] : memref<16x128xf32, #tpu.memory_space<vmem>>, vector<2x128xf32>
    tpu.vector_store %arg4[%c8_271, %c0_272], %1106 {strides = array<i32>} : memref<16x128xf32, #tpu.memory_space<vmem>>, vector<2x128xf32>,
    %1108 = vector.extract_strided_slice %1106 {offsets = [0, 0], sizes = [2, 32], strides = [1, 1]} : vector<2x128xf32> to vector<2x32xf32>
    %cst_273 = arith.constant dense<0.000000e+00> : vector<2x384xf32>
    %1109 = tpu.matmul %1108, %950, %cst_273 {dimension_numbers = #tpu.dot_dimension_numbers<[1], [0], [0], [1], [0, 0, 1, 1], [], []>} : vector<2x32xf32>, vector<32x384xf32>, vector<2x384xf32> -> vector<2x384xf32>
    %1110 = vector.extract_strided_slice %930 {offsets = [10, 0], sizes = [2, 128], strides = [1, 1]} : vector<16x128xf32> to vector<2x128xf32>
    %1111 = vector.extract_strided_slice %1109 {offsets = [0, 0], sizes = [2, 128], strides = [1, 1]} : vector<2x384xf32> to vector<2x128xf32>
    %1112 = arith.addf %1110, %1111 : vector<2x128xf32>
    %1113 = arith.negf %1112 : vector<2x128xf32>
    %1114 = math.exp %1113 : vector<2x128xf32>
    %cst_274 = arith.constant 1.000000e+00 : f32
    %1115 = vector.broadcast %cst_274 : f32 to vector<2x128xf32>
    %1116 = arith.addf %1115, %1114 : vector<2x128xf32>
    %1117 = arith.divf %1115, %1116 : vector<2x128xf32>
    %1118 = vector.extract_strided_slice %938 {offsets = [10, 0], sizes = [2, 128], strides = [1, 1]} : vector<16x128xf32> to vector<2x128xf32>
    %1119 = vector.extract_strided_slice %1109 {offsets = [0, 128], sizes = [2, 128], strides = [1, 1]} : vector<2x384xf32> to vector<2x128xf32>
    %1120 = arith.addf %1118, %1119 : vector<2x128xf32>
    %1121 = arith.negf %1120 : vector<2x128xf32>
    %1122 = math.exp %1121 : vector<2x128xf32>
    %cst_275 = arith.constant 1.000000e+00 : f32
    %1123 = vector.broadcast %cst_275 : f32 to vector<2x128xf32>
    %1124 = arith.addf %1123, %1122 : vector<2x128xf32>
    %1125 = arith.divf %1123, %1124 : vector<2x128xf32>
    %1126 = vector.extract_strided_slice %946 {offsets = [10, 0], sizes = [2, 128], strides = [1, 1]} : vector<16x128xf32> to vector<2x128xf32>
    %1127 = vector.extract_strided_slice %1109 {offsets = [0, 256], sizes = [2, 128], strides = [1, 1]} : vector<2x384xf32> to vector<2x128xf32>
    %1128 = vector.broadcast %951 : vector<1x128xf32> to vector<2x128xf32>
    %1129 = arith.addf %1127, %1128 : vector<2x128xf32>
    %1130 = arith.mulf %1117, %1129 : vector<2x128xf32>
    %1131 = arith.addf %1126, %1130 : vector<2x128xf32>
    %1132 = math.tanh %1131 : vector<2x128xf32>
    %cst_276 = arith.constant 1.000000e+00 : f32
    %1133 = vector.broadcast %cst_276 : f32 to vector<2x128xf32>
    %1134 = arith.subf %1133, %1125 : vector<2x128xf32>
    %1135 = arith.mulf %1134, %1132 : vector<2x128xf32>
    %1136 = arith.mulf %1125, %1106 : vector<2x128xf32>
    %1137 = arith.addf %1135, %1136 : vector<2x128xf32>
    %c10_277 = arith.constant 10 : index
    %c0_278 = arith.constant 0 : index
    %1138 = vector.load %arg4[%c10_277, %c0_278] : memref<16x128xf32, #tpu.memory_space<vmem>>, vector<2x128xf32>
    tpu.vector_store %arg4[%c10_277, %c0_278], %1137 {strides = array<i32>} : memref<16x128xf32, #tpu.memory_space<vmem>>, vector<2x128xf32>,
    %1139 = vector.extract_strided_slice %1137 {offsets = [0, 0], sizes = [2, 32], strides = [1, 1]} : vector<2x128xf32> to vector<2x32xf32>
    %cst_279 = arith.constant dense<0.000000e+00> : vector<2x384xf32>
    %1140 = tpu.matmul %1139, %950, %cst_279 {dimension_numbers = #tpu.dot_dimension_numbers<[1], [0], [0], [1], [0, 0, 1, 1], [], []>} : vector<2x32xf32>, vector<32x384xf32>, vector<2x384xf32> -> vector<2x384xf32>
    %1141 = vector.extract_strided_slice %930 {offsets = [12, 0], sizes = [2, 128], strides = [1, 1]} : vector<16x128xf32> to vector<2x128xf32>
    %1142 = vector.extract_strided_slice %1140 {offsets = [0, 0], sizes = [2, 128], strides = [1, 1]} : vector<2x384xf32> to vector<2x128xf32>
    %1143 = arith.addf %1141, %1142 : vector<2x128xf32>
    %1144 = arith.negf %1143 : vector<2x128xf32>
    %1145 = math.exp %1144 : vector<2x128xf32>
    %cst_280 = arith.constant 1.000000e+00 : f32
    %1146 = vector.broadcast %cst_280 : f32 to vector<2x128xf32>
    %1147 = arith.addf %1146, %1145 : vector<2x128xf32>
    %1148 = arith.divf %1146, %1147 : vector<2x128xf32>
    %1149 = vector.extract_strided_slice %938 {offsets = [12, 0], sizes = [2, 128], strides = [1, 1]} : vector<16x128xf32> to vector<2x128xf32>
    %1150 = vector.extract_strided_slice %1140 {offsets = [0, 128], sizes = [2, 128], strides = [1, 1]} : vector<2x384xf32> to vector<2x128xf32>
    %1151 = arith.addf %1149, %1150 : vector<2x128xf32>
    %1152 = arith.negf %1151 : vector<2x128xf32>
    %1153 = math.exp %1152 : vector<2x128xf32>
    %cst_281 = arith.constant 1.000000e+00 : f32
    %1154 = vector.broadcast %cst_281 : f32 to vector<2x128xf32>
    %1155 = arith.addf %1154, %1153 : vector<2x128xf32>
    %1156 = arith.divf %1154, %1155 : vector<2x128xf32>
    %1157 = vector.extract_strided_slice %946 {offsets = [12, 0], sizes = [2, 128], strides = [1, 1]} : vector<16x128xf32> to vector<2x128xf32>
    %1158 = vector.extract_strided_slice %1140 {offsets = [0, 256], sizes = [2, 128], strides = [1, 1]} : vector<2x384xf32> to vector<2x128xf32>
    %1159 = vector.broadcast %951 : vector<1x128xf32> to vector<2x128xf32>
    %1160 = arith.addf %1158, %1159 : vector<2x128xf32>
    %1161 = arith.mulf %1148, %1160 : vector<2x128xf32>
    %1162 = arith.addf %1157, %1161 : vector<2x128xf32>
    %1163 = math.tanh %1162 : vector<2x128xf32>
    %cst_282 = arith.constant 1.000000e+00 : f32
    %1164 = vector.broadcast %cst_282 : f32 to vector<2x128xf32>
    %1165 = arith.subf %1164, %1156 : vector<2x128xf32>
    %1166 = arith.mulf %1165, %1163 : vector<2x128xf32>
    %1167 = arith.mulf %1156, %1137 : vector<2x128xf32>
    %1168 = arith.addf %1166, %1167 : vector<2x128xf32>
    %c12_283 = arith.constant 12 : index
    %c0_284 = arith.constant 0 : index
    %1169 = vector.load %arg4[%c12_283, %c0_284] : memref<16x128xf32, #tpu.memory_space<vmem>>, vector<2x128xf32>
    tpu.vector_store %arg4[%c12_283, %c0_284], %1168 {strides = array<i32>} : memref<16x128xf32, #tpu.memory_space<vmem>>, vector<2x128xf32>,
    %1170 = vector.extract_strided_slice %1168 {offsets = [0, 0], sizes = [2, 32], strides = [1, 1]} : vector<2x128xf32> to vector<2x32xf32>
    %cst_285 = arith.constant dense<0.000000e+00> : vector<2x384xf32>
    %1171 = tpu.matmul %1170, %950, %cst_285 {dimension_numbers = #tpu.dot_dimension_numbers<[1], [0], [0], [1], [0, 0, 1, 1], [], []>} : vector<2x32xf32>, vector<32x384xf32>, vector<2x384xf32> -> vector<2x384xf32>
    %1172 = vector.extract_strided_slice %930 {offsets = [14, 0], sizes = [2, 128], strides = [1, 1]} : vector<16x128xf32> to vector<2x128xf32>
    %1173 = vector.extract_strided_slice %1171 {offsets = [0, 0], sizes = [2, 128], strides = [1, 1]} : vector<2x384xf32> to vector<2x128xf32>
    %1174 = arith.addf %1172, %1173 : vector<2x128xf32>
    %1175 = arith.negf %1174 : vector<2x128xf32>
    %1176 = math.exp %1175 : vector<2x128xf32>
    %cst_286 = arith.constant 1.000000e+00 : f32
    %1177 = vector.broadcast %cst_286 : f32 to vector<2x128xf32>
    %1178 = arith.addf %1177, %1176 : vector<2x128xf32>
    %1179 = arith.divf %1177, %1178 : vector<2x128xf32>
    %1180 = vector.extract_strided_slice %938 {offsets = [14, 0], sizes = [2, 128], strides = [1, 1]} : vector<16x128xf32> to vector<2x128xf32>
    %1181 = vector.extract_strided_slice %1171 {offsets = [0, 128], sizes = [2, 128], strides = [1, 1]} : vector<2x384xf32> to vector<2x128xf32>
    %1182 = arith.addf %1180, %1181 : vector<2x128xf32>
    %1183 = arith.negf %1182 : vector<2x128xf32>
    %1184 = math.exp %1183 : vector<2x128xf32>
    %cst_287 = arith.constant 1.000000e+00 : f32
    %1185 = vector.broadcast %cst_287 : f32 to vector<2x128xf32>
    %1186 = arith.addf %1185, %1184 : vector<2x128xf32>
    %1187 = arith.divf %1185, %1186 : vector<2x128xf32>
    %1188 = vector.extract_strided_slice %946 {offsets = [14, 0], sizes = [2, 128], strides = [1, 1]} : vector<16x128xf32> to vector<2x128xf32>
    %1189 = vector.extract_strided_slice %1171 {offsets = [0, 256], sizes = [2, 128], strides = [1, 1]} : vector<2x384xf32> to vector<2x128xf32>
    %1190 = vector.broadcast %951 : vector<1x128xf32> to vector<2x128xf32>
    %1191 = arith.addf %1189, %1190 : vector<2x128xf32>
    %1192 = arith.mulf %1179, %1191 : vector<2x128xf32>
    %1193 = arith.addf %1188, %1192 : vector<2x128xf32>
    %1194 = math.tanh %1193 : vector<2x128xf32>
    %cst_288 = arith.constant 1.000000e+00 : f32
    %1195 = vector.broadcast %cst_288 : f32 to vector<2x128xf32>
    %1196 = arith.subf %1195, %1187 : vector<2x128xf32>
    %1197 = arith.mulf %1196, %1194 : vector<2x128xf32>
    %1198 = arith.mulf %1187, %1168 : vector<2x128xf32>
    %1199 = arith.addf %1197, %1198 : vector<2x128xf32>
    %c14_289 = arith.constant 14 : index
    %c0_290 = arith.constant 0 : index
    %1200 = vector.load %arg4[%c14_289, %c0_290] : memref<16x128xf32, #tpu.memory_space<vmem>>, vector<2x128xf32>
    tpu.vector_store %arg4[%c14_289, %c0_290], %1199 {strides = array<i32>} : memref<16x128xf32, #tpu.memory_space<vmem>>, vector<2x128xf32>,
    %c0_291 = arith.constant 0 : index
    %c0_292 = arith.constant 0 : index
    %1201 = vector.load %arg4[%c0_291, %c0_292] : memref<16x128xf32, #tpu.memory_space<vmem>>, vector<16x128xf32>
    %1202 = vector.extract_strided_slice %1201 {offsets = [0, 0], sizes = [16, 32], strides = [1, 1]} : vector<16x128xf32> to vector<16x32xf32>
    %1203 = vector.extract_strided_slice %23 {offsets = [48, 0], sizes = [16, 16], strides = [1, 1]} : vector<64x16xf32> to vector<16x16xf32>
    %c1216 = arith.constant 1216 : index
    %c0_293 = arith.constant 0 : index
    %1204 = vector.load %arg2[%c1216, %c0_293] : memref<1336x128xf32, #tpu.memory_space<vmem>>, vector<16x128xf32>
    %1205 = vector.extract_strided_slice %1204 {offsets = [0, 0], sizes = [16, 64], strides = [1, 1]} : vector<16x128xf32> to vector<16x64xf32>
    %cst_294 = arith.constant dense<0.000000e+00> : vector<16x64xf32>
    %1206 = tpu.matmul %1203, %1205, %cst_294 {dimension_numbers = #tpu.dot_dimension_numbers<[1], [0], [0], [1], [0, 0, 1, 1], [], []>} : vector<16x16xf32>, vector<16x64xf32>, vector<16x64xf32> -> vector<16x64xf32>
    %c1232 = arith.constant 1232 : index
    %c0_295 = arith.constant 0 : index
    %1207 = vector.load %arg2[%c1232, %c0_295] : memref<1336x128xf32, #tpu.memory_space<vmem>>, vector<1x128xf32>
    %1208 = vector.extract_strided_slice %1207 {offsets = [0, 0], sizes = [1, 64], strides = [1, 1]} : vector<1x128xf32> to vector<1x64xf32>
    %1209 = vector.broadcast %1208 : vector<1x64xf32> to vector<16x64xf32>
    %1210 = arith.addf %1206, %1209 : vector<16x64xf32>
    %1211 = arith.negf %1210 : vector<16x64xf32>
    %1212 = math.exp %1211 : vector<16x64xf32>
    %cst_296 = arith.constant 1.000000e+00 : f32
    %1213 = vector.broadcast %cst_296 : f32 to vector<16x64xf32>
    %1214 = arith.addf %1213, %1212 : vector<16x64xf32>
    %1215 = arith.divf %1213, %1214 : vector<16x64xf32>
    %1216 = vector.extract_strided_slice %1215 {offsets = [0, 0], sizes = [16, 32], strides = [1, 1]} : vector<16x64xf32> to vector<16x32xf32>
    %1217 = arith.mulf %1216, %1202 : vector<16x32xf32>
    %1218 = vector.extract_strided_slice %1215 {offsets = [0, 32], sizes = [16, 32], strides = [1, 1]} : vector<16x64xf32> to vector<16x32xf32>
    %1219 = arith.addf %1217, %1218 : vector<16x32xf32>
    %c1296 = arith.constant 1296 : index
    %c0_297 = arith.constant 0 : index
    %1220 = vector.load %arg2[%c1296, %c0_297] : memref<1336x128xf32, #tpu.memory_space<vmem>>, vector<32x128xf32>
    %cst_298 = arith.constant dense<0.000000e+00> : vector<16x128xf32>
    %1221 = tpu.matmul %1219, %1220, %cst_298 {dimension_numbers = #tpu.dot_dimension_numbers<[1], [0], [0], [1], [0, 0, 1, 1], [], []>} : vector<16x32xf32>, vector<32x128xf32>, vector<16x128xf32> -> vector<16x128xf32>
    %c1328 = arith.constant 1328 : index
    %c0_299 = arith.constant 0 : index
    %1222 = vector.load %arg2[%c1328, %c0_299] : memref<1336x128xf32, #tpu.memory_space<vmem>>, vector<1x128xf32>
    %1223 = vector.broadcast %1222 : vector<1x128xf32> to vector<16x128xf32>
    %1224 = arith.addf %1221, %1223 : vector<16x128xf32>
    %c0_300 = arith.constant 0 : index
    %c0_301 = arith.constant 0 : index
    %1225 = vector.load %arg3[%c0_300, %c0_301] : memref<16x128xf32, #tpu.memory_space<vmem>>, vector<16x128xf32>
    tpu.vector_store %arg3[%c0_300, %c0_301], %1224 {strides = array<i32>} : memref<16x128xf32, #tpu.memory_space<vmem>>, vector<16x128xf32>,
    return
  }
}

</mosaic_0001>

<llo_original>
// kernel: unet_gru_forward.1
$region0: #{unet_gru_forward.1}
  #allocation0 [shape = 'u32[]', space=smem, size = 0x4, offset = 0x4, fixed_abs, tag = 'smem constant byte address 0x4 - core index']
  #allocation1 [shape = 'u32[144,128]{1,0:T(1,128)}', space=vmem, size = 0x12000, scoped, tag = 'internal scratch']
  #allocation2 [shape = 'f32[16,128]{1,0:T(8,128)}', space=vmem, size = 0x2000, scoped, tag = 'scratch operand']
  %s0 = inlined_call_operand.vmem [shape: f32[16,4], index: 0, kind: input, shape index: {}]
  %s1 = inlined_call_operand.vmem [shape: f32[64,6], index: 1, kind: input, shape index: {}]
  %s2 = inlined_call_operand.hbm [shape: f32[1336,128], index: 2, kind: input, shape index: {}]
  %s3 = inlined_call_operand.vmem [shape: f32[16,128], index: 3, kind: output, shape index: {}]
  %s4 = sld [smem:[#allocation0]]
  $region26: #{unet_gru_forward.1} parent=0
    _
  %s6 = ssub.s32 1, %s4
  %s7 = scalar_select 0, %s6, %s4
  $region1: #{unet_gru_forward.1} parent=0
    #allocation3 [shape = 'u8[684032]{0}', space=vmem, size = 0xa7000, scoped, tag = 'input window, operand 2, single buffered']
    #allocation4 [shape = 's32[1]{0}', space=sflag, size = 0x4, scoped, tag = 'scoped memory for unet_gru_forward.1']
    %8 = vsyncpa [#allocation4], 0
    // Predicated region
    $region2: #{unet_gru_forward.1} parent=1 // pred_check
      _
    $region3: #{unet_gru_forward.1} parent=1 // pred_check_branch
      %10 = sbr.rel (0) target = $region5
    $region4: #{unet_gru_forward.1} parent=1 // pred_region
      _
    $region5: #{unet_gru_forward.1} parent=1 // pred_fallthru
      _
    // Predicated region
    $region6: #{unet_gru_forward.1} parent=1 // pred_check
      _
    $region7: #{unet_gru_forward.1} parent=1 // pred_check_branch
      %12 = sbr.rel (0) target = $region9
    $region8: #{unet_gru_forward.1} parent=1 // pred_region
      _
    $region9: #{unet_gru_forward.1} parent=1 // pred_fallthru
      _
    // Predicated region
    $region10: #{unet_gru_forward.1} parent=1 // pred_check
      _
    $region11: #{unet_gru_forward.1} parent=1 // pred_check_branch
      %14 = sbr.rel (0) target = $region13
    $region12: #{unet_gru_forward.1} parent=1 // pred_region
      %s16 = ssub.s32 21376, 21376
      %17 = vsyncadd [#allocation4], %s16
      %s18 = sshll.u32 [#allocation3], 4
      %s19 = int_to_ptr.vmem [resolvable:$true] %s18
      %24 = dma.hbm_to_vmem [thread:$0]  %s2, 21376, %s19, [#allocation4], 128, 128, 8
    $region13: #{unet_gru_forward.1} parent=1 // pred_fallthru
      _
    // Predicated region
    $region14: #{unet_gru_forward.1} parent=1 // pred_check
      _
    $region15: #{unet_gru_forward.1} parent=1 // pred_check_branch
      %26 = sbr.rel (0) target = $region17
    $region16: #{unet_gru_forward.1} parent=1 // pred_region
      %27 = dma.done [#allocation4], 21376
    $region17: #{unet_gru_forward.1} parent=1 // pred_fallthru
      _
    %v28 = vld [vmem:[%s0] sm:$0xff]
    %v29 = vld [vmem:[%s0 + $0x8] sm:$0xff]
    %v30 = vld [vmem:[%s1] sm:$0xff]
    %v31 = vld [vmem:[%s1 + $0x8] sm:$0xff]
    %v32 = vld [vmem:[%s1 + $0x10] sm:$0xff]
    %v33 = vld [vmem:[%s1 + $0x18] sm:$0xff]
    %v34 = vld [vmem:[%s1 + $0x20] sm:$0xff]
    %v35 = vld [vmem:[%s1 + $0x28] sm:$0xff]
    %v36 = vld [vmem:[%s1 + $0x30] sm:$0xff]
    %v37 = vld [vmem:[%s1 + $0x38] sm:$0xff]
    %v38 = vld [vmem:[#allocation3 + $0x3b0] sm:$0x3f]
    %v39 = vld [vmem:[#allocation3 + $0x3f8] sm:$0xff]
    %v40 = vld [vmem:[#allocation3 + $0x400] sm:$0xff]
    %v41 = vld [vmem:[#allocation3 + $0x408] sm:$0xff]
    %v42 = vld [vmem:[#allocation3 + $0x410] sm:$0xff]
    %v43 = vld [vmem:[#allocation3 + $0x418] sm:$0xff]
    %v44 = vld [vmem:[#allocation3 + $0x420] sm:$0xff]
    %v45 = vld [vmem:[#allocation3 + $0x428] sm:$0xff]
    %v46 = vld [vmem:[#allocation3 + $0x430] sm:$0xff]
    %vm47 = vcmask 48128
    %v49 = vsel %vm47, %v30, 0
    %v52 = vsel %vm47, %v31, 0
    %v55 = vsel %vm47, %v32, 0
    %v58 = vsel %vm47, %v33, 0
    %v61 = vsel %vm47, %v34, 0
    %v64 = vsel %vm47, %v35, 0
    %v67 = vsel %vm47, %v36, 0
    %v70 = vsel %vm47, %v37, 0
    %vm72 = vcmask 1045504
    %v74 = vsel %vm72, %v38, 0
    %76 = vmatprep.subr.mxu0 0.0
    %77 = vmatpush1.msra.mxu0 0.0
    %78 = vmatprep.subr.mxu0 0.0
    %79 = vmatpush1.msra.mxu0 0.0
    %80 = vmatprep.subr.mxu0 0.0
    %81 = vmatpush1.msra.mxu0 0.0
    %82 = vmatprep.subr.mxu0 0.0
    %83 = vmatpush1.msra.mxu0 0.0
    %84 = vmatprep.subr.mxu0 0.0
    %85 = vmatpush1.msra.mxu0 0.0
    %86 = vmatprep.subr.mxu0 0.0
    %87 = vmatpush1.msra.mxu0 0.0
    %88 = vmatprep.subr.mxu0 0.0
    %89 = vmatpush1.msra.mxu0 0.0
    %90 = vmatprep.subr.mxu0 0.0
    %91 = vmatpush1.msra.mxu0 0.0
    %92 = vmatprep.subr.mxu0 0.0
    %93 = vmatpush1.msra.mxu0 0.0
    %94 = vmatprep.subr.mxu0 0.0
    %95 = vmatpush1.msra.mxu0 0.0
    %96 = vmatprep.subr.mxu0 0.0
    %97 = vmatpush1.msra.mxu0 0.0
    %98 = vmatprep.subr.mxu0 0.0
    %99 = vmatpush1.msra.mxu0 0.0
    %100 = vmatprep.subr.mxu0 0.0
    %101 = vmatpush1.msra.mxu0 0.0
    %102 = vmatprep.subr.mxu0 0.0
    %103 = vmatpush1.msra.mxu0 0.0
    %104 = vmatprep.subr.mxu0 0.0
    %105 = vmatpush1.msra.mxu0 0.0
    %106 = vmatprep.subr.mxu0 0.0
    %107 = vmatpush1.msra.mxu0 %v74
    %108 = vmatprep.subr.mxu0 0.0
    %109 = vmatpush2.msra.mxu0 0.0
    %110 = vmatprep.subr.mxu0 0.0
    %111 = vmatpush2.msra.mxu0 0.0
    %112 = vmatprep.subr.mxu0 0.0
    %113 = vmatpush2.msra.mxu0 0.0
    %114 = vmatprep.subr.mxu0 0.0
    %115 = vmatpush2.msra.mxu0 0.0
    %116 = vmatprep.subr.mxu0 0.0
    %117 = vmatpush2.msra.mxu0 0.0
    %118 = vmatprep.subr.mxu0 0.0
    %119 = vmatpush2.msra.mxu0 0.0
    %120 = vmatprep.subr.mxu0 0.0
    %121 = vmatpush2.msra.mxu0 0.0
    %122 = vmatprep.subr.mxu0 0.0
    %123 = vmatpush2.msra.mxu0 0.0
    %124 = vmatprep.subr.mxu0 0.0
    %125 = vmatpush2.msra.mxu0 0.0
    %126 = vmatprep.subr.mxu0 0.0
    %127 = vmatpush2.msra.mxu0 0.0
    %128 = vmatprep.subr.mxu0 0.0
    %129 = vmatpush2.msra.mxu0 0.0
    %130 = vmatprep.subr.mxu0 0.0
    %131 = vmatpush2.msra.mxu0 0.0
    %132 = vmatprep.subr.mxu0 0.0
    %133 = vmatpush2.msra.mxu0 0.0
    %134 = vmatprep.subr.mxu0 0.0
    %135 = vmatpush2.msra.mxu0 0.0
    %136 = vmatprep.subr.mxu0 0.0
    %137 = vmatpush2.msra.mxu0 0.0
    %138 = vmatprep.subr.mxu0 0.0
    %139 = vmatpush2.msra.mxu0 0.0
    %140 = vmatprep.mubr.f32.mxu0 0.0
    %141 = vmatmul.mubr.f32.gmra.mxu0 %v49
    %v142 = vpop.f32.mrf.mxu0
    %v143 = vadd.f32 %v39, %v142
    %v144 = vpop.f32.mrf.mxu0
    %145 = vmatprep.mubr.f32.mxu0 0.0
    %146 = vmatmul.mubr.f32.gmra.mxu0 %v52
    %v147 = vpop.f32.mrf.mxu0
    %v148 = vadd.f32 %v40, %v147
    %v149 = vpop.f32.mrf.mxu0
    %150 = vmatprep.mubr.f32.mxu0 0.0
    %151 = vmatmul.mubr.f32.gmra.mxu0 %v55
    %v152 = vpop.f32.mrf.mxu0
    %v153 = vadd.f32 %v41, %v152
    %v154 = vpop.f32.mrf.mxu0
    %155 = vmatprep.mubr.f32.mxu0 0.0
    %156 = vmatmul.mubr.f32.gmra.mxu0 %v58
    %v157 = vpop.f32.mrf.mxu0
    %v158 = vadd.f32 %v42, %v157
    %v159 = vpop.f32.mrf.mxu0
    %160 = vmatprep.mubr.f32.mxu0 0.0
    %161 = vmatmul.mubr.f32.gmra.mxu0 %v61
    %v162 = vpop.f32.mrf.mxu0
    %v163 = vadd.f32 %v43, %v162
    %v164 = vpop.f32.mrf.mxu0
    %165 = vmatprep.mubr.f32.mxu0 0.0
    %166 = vmatmul.mubr.f32.gmra.mxu0 %v64
    %v167 = vpop.f32.mrf.mxu0
    %v168 = vadd.f32 %v44, %v167
    %v169 = vpop.f32.mrf.mxu0
    %170 = vmatprep.mubr.f32.mxu0 0.0
    %171 = vmatmul.mubr.f32.gmra.mxu0 %v67
    %v172 = vpop.f32.mrf.mxu0
    %v173 = vadd.f32 %v45, %v172
    %v174 = vpop.f32.mrf.mxu0
    %175 = vmatprep.mubr.f32.mxu0 0.0
    %176 = vmatmul.mubr.f32.gmra.mxu0 %v70
    %v177 = vpop.f32.mrf.mxu0
    %v178 = vadd.f32 %v46, %v177
    %v179 = vpop.f32.mrf.mxu0
    %180 = vdwg.mxu0
    %v181 = vxor.u32 %v143, 2147483648
    %v182 = vxor.u32 %v148, 2147483648
    %v183 = vxor.u32 %v153, 2147483648
    %v184 = vxor.u32 %v158, 2147483648
    %v185 = vxor.u32 %v163, 2147483648
    %v186 = vxor.u32 %v168, 2147483648
    %v187 = vxor.u32 %v173, 2147483648
    %v188 = vxor.u32 %v178, 2147483648
    %v189 = vmul.f32 %v181, 1.442695
    %v190 = vpow.pop %v189
    %v191 = vmul.f32 %v182, 1.442695
    %v192 = vpow.pop %v191
    %v193 = vmul.f32 %v183, 1.442695
    %v194 = vpow.pop %v193
    %v195 = vmul.f32 %v184, 1.442695
    %v196 = vpow.pop %v195
    %v197 = vmul.f32 %v185, 1.442695
    %v198 = vpow.pop %v197
    %v199 = vmul.f32 %v186, 1.442695
    %v200 = vpow.pop %v199
    %v201 = vmul.f32 %v187, 1.442695
    %v202 = vpow.pop %v201
    %v203 = vmul.f32 %v188, 1.442695
    %v204 = vpow.pop %v203
    %v205 = vadd.f32 %v190, 1.0
    %v206 = vadd.f32 %v192, 1.0
    %v207 = vadd.f32 %v194, 1.0
    %v208 = vadd.f32 %v196, 1.0
    %v209 = vadd.f32 %v198, 1.0
    %v210 = vadd.f32 %v200, 1.0
    %v211 = vadd.f32 %v202, 1.0
    %v212 = vadd.f32 %v204, 1.0
    %v213 = vrcp.pop %v205
    %v214 = vmul.f32 1.0, %v213
    %v215 = vrcp.pop %v206
    %v216 = vmul.f32 1.0, %v215
    %v217 = vrcp.pop %v207
    %v218 = vmul.f32 1.0, %v217
    %v219 = vrcp.pop %v208
    %v220 = vmul.f32 1.0, %v219
    %v221 = vrcp.pop %v209
    %v222 = vmul.f32 1.0, %v221
    %v223 = vrcp.pop %v210
    %v224 = vmul.f32 1.0, %v223
    %v225 = vrcp.pop %v211
    %v226 = vmul.f32 1.0, %v225
    %v227 = vrcp.pop %v212
    %v228 = vmul.f32 1.0, %v227
    %v229 = vld [vmem:[#allocation3 + $0x3b8] sm:$0xff]
    %v230 = vld [vmem:[#allocation3 + $0x3c0] sm:$0xff]
    %v231 = vld [vmem:[#allocation3 + $0x3c8] sm:$0xff]
    %v232 = vld [vmem:[#allocation3 + $0x3d0] sm:$0xff]
    %v233 = vld [vmem:[#allocation3 + $0x3d8] sm:$0xff]
    %v234 = vld [vmem:[#allocation3 + $0x3e0] sm:$0xff]
    %v235 = vld [vmem:[#allocation3 + $0x3e8] sm:$0xff]
    %v236 = vld [vmem:[#allocation3 + $0x3f0] sm:$0xff]
    %v237 = vld [vmem:[#allocation3 + $0x438] sm:$0xff]
    %v238 = vld [vmem:[#allocation3 + $0x440] sm:$0xff]
    %v239 = vld [vmem:[#allocation3 + $0x448] sm:$0xff]
    %v240 = vld [vmem:[#allocation3 + $0x450] sm:$0xff]
    %v241 = vld [vmem:[#allocation3 + $0x458] sm:$0xff]
    %v242 = vld [vmem:[#allocation3 + $0x460] sm:$0xff]
    %v243 = vld [vmem:[#allocation3 + $0x468] sm:$0xff]
    %v244 = vld [vmem:[#allocation3 + $0x470] sm:$0xff]
    %vm245 = vcmask 523264
    %v247 = vsel %vm245, %v214, 0
    %v250 = vsel %vm245, %v216, 0
    %v253 = vsel %vm245, %v218, 0
    %v256 = vsel %vm245, %v220, 0
    %v259 = vsel %vm245, %v222, 0
    %v262 = vsel %vm245, %v224, 0
    %v265 = vsel %vm245, %v226, 0
    %v268 = vsel %vm245, %v228, 0
    %270 = vmatprep.subr.mxu0 0.0
    %271 = vmatpush1.msra.mxu0 0.0
    %272 = vmatprep.subr.mxu0 0.0
    %273 = vmatpush1.msra.mxu0 0.0
    %274 = vmatprep.subr.mxu0 0.0
    %275 = vmatpush1.msra.mxu0 0.0
    %276 = vmatprep.subr.mxu0 0.0
    %277 = vmatpush1.msra.mxu0 0.0
    %278 = vmatprep.subr.mxu0 0.0
    %279 = vmatpush1.msra.mxu0 0.0
    %280 = vmatprep.subr.mxu0 0.0
    %281 = vmatpush1.msra.mxu0 0.0
    %282 = vmatprep.subr.mxu0 0.0
    %283 = vmatpush1.msra.mxu0 0.0
    %284 = vmatprep.subr.mxu0 0.0
    %285 = vmatpush1.msra.mxu0 0.0
    %286 = vmatprep.subr.mxu0 0.0
    %287 = vmatpush1.msra.mxu0 %v236
    %288 = vmatprep.subr.mxu0 0.0
    %289 = vmatpush1.msra.mxu0 %v235
    %290 = vmatprep.subr.mxu0 0.0
    %291 = vmatpush1.msra.mxu0 %v234
    %292 = vmatprep.subr.mxu0 0.0
    %293 = vmatpush1.msra.mxu0 %v233
    %294 = vmatprep.subr.mxu0 0.0
    %295 = vmatpush1.msra.mxu0 %v232
    %296 = vmatprep.subr.mxu0 0.0
    %297 = vmatpush1.msra.mxu0 %v231
    %298 = vmatprep.subr.mxu0 0.0
    %299 = vmatpush1.msra.mxu0 %v230
    %300 = vmatprep.subr.mxu0 0.0
    %301 = vmatpush1.msra.mxu0 %v229
    %302 = vmatprep.subr.mxu0 0.0
    %303 = vmatpush2.msra.mxu0 0.0
    %304 = vmatprep.subr.mxu0 0.0
    %305 = vmatpush2.msra.mxu0 0.0
    %306 = vmatprep.subr.mxu0 0.0
    %307 = vmatpush2.msra.mxu0 0.0
    %308 = vmatprep.subr.mxu0 0.0
    %309 = vmatpush2.msra.mxu0 0.0
    %310 = vmatprep.subr.mxu0 0.0
    %311 = vmatpush2.msra.mxu0 0.0
    %312 = vmatprep.subr.mxu0 0.0
    %313 = vmatpush2.msra.mxu0 0.0
    %314 = vmatprep.subr.mxu0 0.0
    %315 = vmatpush2.msra.mxu0 0.0
    %316 = vmatprep.subr.mxu0 0.0
    %317 = vmatpush2.msra.mxu0 0.0
    %318 = vmatprep.subr.mxu0 0.0
    %319 = vmatpush2.msra.mxu0 0.0
    %320 = vmatprep.subr.mxu0 0.0
    %321 = vmatpush2.msra.mxu0 0.0
    %322 = vmatprep.subr.mxu0 0.0
    %323 = vmatpush2.msra.mxu0 0.0
    %324 = vmatprep.subr.mxu0 0.0
    %325 = vmatpush2.msra.mxu0 0.0
    %326 = vmatprep.subr.mxu0 0.0
    %327 = vmatpush2.msra.mxu0 0.0
    %328 = vmatprep.subr.mxu0 0.0
    %329 = vmatpush2.msra.mxu0 0.0
    %330 = vmatprep.subr.mxu0 0.0
    %331 = vmatpush2.msra.mxu0 0.0
    %332 = vmatprep.subr.mxu0 0.0
    %333 = vmatpush2.msra.mxu0 0.0
    %334 = vmatprep.mubr.f32.mxu0 0.0
    %335 = vmatmul.mubr.f32.gmra.mxu0 %v247
    %v336 = vpop.f32.mrf.mxu0
    %v337 = vadd.f32 %v237, %v336
    %v338 = vpop.f32.mrf.mxu0
    %339 = vmatprep.mubr.f32.mxu0 0.0
    %340 = vmatmul.mubr.f32.gmra.mxu0 %v250
    %v341 = vpop.f32.mrf.mxu0
    %v342 = vadd.f32 %v238, %v341
    %v343 = vpop.f32.mrf.mxu0
    %344 = vmatprep.mubr.f32.mxu0 0.0
    %345 = vmatmul.mubr.f32.gmra.mxu0 %v253
    %v346 = vpop.f32.mrf.mxu0
    %v347 = vadd.f32 %v239, %v346
    %v348 = vpop.f32.mrf.mxu0
    %349 = vmatprep.mubr.f32.mxu0 0.0
    %350 = vmatmul.mubr.f32.gmra.mxu0 %v256
    %v351 = vpop.f32.mrf.mxu0
    %v352 = vadd.f32 %v240, %v351
    %v353 = vpop.f32.mrf.mxu0
    %354 = vmatprep.mubr.f32.mxu0 0.0
    %355 = vmatmul.mubr.f32.gmra.mxu0 %v259
    %v356 = vpop.f32.mrf.mxu0
    %v357 = vadd.f32 %v241, %v356
    %v358 = vpop.f32.mrf.mxu0
    %359 = vmatprep.mubr.f32.mxu0 0.0
    %360 = vmatmul.mubr.f32.gmra.mxu0 %v262
    %v361 = vpop.f32.mrf.mxu0
    %v362 = vadd.f32 %v242, %v361
    %v363 = vpop.f32.mrf.mxu0
    %364 = vmatprep.mubr.f32.mxu0 0.0
    %365 = vmatmul.mubr.f32.gmra.mxu0 %v265
    %v366 = vpop.f32.mrf.mxu0
    %v367 = vadd.f32 %v243, %v366
    %v368 = vpop.f32.mrf.mxu0
    %369 = vmatprep.mubr.f32.mxu0 0.0
    %370 = vmatmul.mubr.f32.gmra.mxu0 %v268
    %v371 = vpop.f32.mrf.mxu0
    %v372 = vadd.f32 %v244, %v371
    %v373 = vpop.f32.mrf.mxu0
    %374 = vdwg.mxu0
    %v375 = vxor.u32 %v337, 2147483648
    %v376 = vxor.u32 %v342, 2147483648
    %v377 = vxor.u32 %v347, 2147483648
    %v378 = vxor.u32 %v352, 2147483648
    %v379 = vxor.u32 %v357, 2147483648
    %v380 = vxor.u32 %v362, 2147483648
    %v381 = vxor.u32 %v367, 2147483648
    %v382 = vxor.u32 %v372, 2147483648
    %v383 = vmul.f32 %v375, 1.442695
    %v384 = vpow.pop %v383
    %v385 = vmul.f32 %v376, 1.442695
    %v386 = vpow.pop %v385
    %v387 = vmul.f32 %v377, 1.442695
    %v388 = vpow.pop %v387
    %v389 = vmul.f32 %v378, 1.442695
    %v390 = vpow.pop %v389
    %v391 = vmul.f32 %v379, 1.442695
    %v392 = vpow.pop %v391
    %v393 = vmul.f32 %v380, 1.442695
    %v394 = vpow.pop %v393
    %v395 = vmul.f32 %v381, 1.442695
    %v396 = vpow.pop %v395
    %v397 = vmul.f32 %v382, 1.442695
    %v398 = vpow.pop %v397
    %v399 = vadd.f32 %v384, 1.0
    %v400 = vadd.f32 %v386, 1.0
    %v401 = vadd.f32 %v388, 1.0
    %v402 = vadd.f32 %v390, 1.0
    %v403 = vadd.f32 %v392, 1.0
    %v404 = vadd.f32 %v394, 1.0
    %v405 = vadd.f32 %v396, 1.0
    %v406 = vadd.f32 %v398, 1.0
    %v407 = vrcp.pop %v399
    %v408 = vmul.f32 1.0, %v407
    %v409 = vrcp.pop %v400
    %v410 = vmul.f32 1.0, %v409
    %v411 = vrcp.pop %v401
    %v412 = vmul.f32 1.0, %v411
    %v413 = vrcp.pop %v402
    %v414 = vmul.f32 1.0, %v413
    %v415 = vrcp.pop %v403
    %v416 = vmul.f32 1.0, %v415
    %v417 = vrcp.pop %v404
    %v418 = vmul.f32 1.0, %v417
    %v419 = vrcp.pop %v405
    %v420 = vmul.f32 1.0, %v419
    %v421 = vrcp.pop %v406
    %v422 = vmul.f32 1.0, %v421
    %v423 = vld [vmem:[#allocation3 + $0x28] sm:$0x1]
    %v424 = vld [vmem:[#allocation3] sm:$0xf]
    %vm425 = vcmask 31744
    %v427 = vsel %vm425, %v28, 0
    %v430 = vsel %vm425, %v29, 0
    %vm432 = vcmask 1043456
    %v434 = vsel %vm432, %v424, 0
    %436 = vmatprep.subr.mxu0 0.0
    %437 = vmatpush1.msra.mxu0 0.0
    %438 = vmatprep.subr.mxu0 0.0
    %439 = vmatpush1.msra.mxu0 0.0
    %440 = vmatprep.subr.mxu0 0.0
    %441 = vmatpush1.msra.mxu0 0.0
    %442 = vmatprep.subr.mxu0 0.0
    %443 = vmatpush1.msra.mxu0 0.0
    %444 = vmatprep.subr.mxu0 0.0
    %445 = vmatpush1.msra.mxu0 0.0
    %446 = vmatprep.subr.mxu0 0.0
    %447 = vmatpush1.msra.mxu0 0.0
    %448 = vmatprep.subr.mxu0 0.0
    %449 = vmatpush1.msra.mxu0 0.0
    %450 = vmatprep.subr.mxu0 0.0
    %451 = vmatpush1.msra.mxu0 0.0
    %452 = vmatprep.subr.mxu0 0.0
    %453 = vmatpush1.msra.mxu0 0.0
    %454 = vmatprep.subr.mxu0 0.0
    %455 = vmatpush1.msra.mxu0 0.0
    %456 = vmatprep.subr.mxu0 0.0
    %457 = vmatpush1.msra.mxu0 0.0
    %458 = vmatprep.subr.mxu0 0.0
    %459 = vmatpush1.msra.mxu0 0.0
    %460 = vmatprep.subr.mxu0 0.0
    %461 = vmatpush1.msra.mxu0 0.0
    %462 = vmatprep.subr.mxu0 0.0
    %463 = vmatpush1.msra.mxu0 0.0
    %464 = vmatprep.subr.mxu0 0.0
    %465 = vmatpush1.msra.mxu0 0.0
    %466 = vmatprep.subr.mxu0 0.0
    %467 = vmatpush1.msra.mxu0 %v434
    %468 = vmatprep.subr.mxu0 0.0
    %469 = vmatpush2.msra.mxu0 0.0
    %470 = vmatprep.subr.mxu0 0.0
    %471 = vmatpush2.msra.mxu0 0.0
    %472 = vmatprep.subr.mxu0 0.0
    %473 = vmatpush2.msra.mxu0 0.0
    %474 = vmatprep.subr.mxu0 0.0
    %475 = vmatpush2.msra.mxu0 0.0
    %476 = vmatprep.subr.mxu0 0.0
    %477 = vmatpush2.msra.mxu0 0.0
    %478 = vmatprep.subr.mxu0 0.0
    %479 = vmatpush2.msra.mxu0 0.0
    %480 = vmatprep.subr.mxu0 0.0
    %481 = vmatpush2.msra.mxu0 0.0
    %482 = vmatprep.subr.mxu0 0.0
    %483 = vmatpush2.msra.mxu0 0.0
    %484 = vmatprep.subr.mxu0 0.0
    %485 = vmatpush2.msra.mxu0 0.0
    %486 = vmatprep.subr.mxu0 0.0
    %487 = vmatpush2.msra.mxu0 0.0
    %488 = vmatprep.subr.mxu0 0.0
    %489 = vmatpush2.msra.mxu0 0.0
    %490 = vmatprep.subr.mxu0 0.0
    %491 = vmatpush2.msra.mxu0 0.0
    %492 = vmatprep.subr.mxu0 0.0
    %493 = vmatpush2.msra.mxu0 0.0
    %494 = vmatprep.subr.mxu0 0.0
    %495 = vmatpush2.msra.mxu0 0.0
    %496 = vmatprep.subr.mxu0 0.0
    %497 = vmatpush2.msra.mxu0 0.0
    %498 = vmatprep.subr.mxu0 0.0
    %499 = vmatpush2.msra.mxu0 0.0
    %500 = vmatprep.mubr.f32.mxu0 0.0
    %501 = vmatmul.mubr.f32.gmra.mxu0 %v427
    %v502 = vpop.f32.mrf.mxu0
    %v503 = vadd.f32 0.0, %v502
    %v504 = vpop.f32.mrf.mxu0
    %505 = vmatprep.mubr.f32.mxu0 0.0
    %506 = vmatmul.mubr.f32.gmra.mxu0 %v430
    %v507 = vpop.f32.mrf.mxu0
    %v508 = vadd.f32 0.0, %v507
    %v509 = vpop.f32.mrf.mxu0
    %510 = vdwg.mxu0
    %v511 = vlaneseq
    %v512 = vshrl.u32 %v511, 7
    %v513 = vsub.s32 0, %v512
    %v514 = vrot.slane %v423, %v513
    %v515 = vadd.f32 %v514, %v503
    %v516 = vadd.f32 %v514, %v508
    %v517 = vld [vmem:[#allocation3 + $0x58] sm:$0x1]
    %v518 = vld [vmem:[#allocation3 + $0x30] sm:$0xf]
    %v520 = vsel %vm432, %v518, 0
    %522 = vmatprep.subr.mxu0 0.0
    %523 = vmatpush1.msra.mxu0 0.0
    %524 = vmatprep.subr.mxu0 0.0
    %525 = vmatpush1.msra.mxu0 0.0
    %526 = vmatprep.subr.mxu0 0.0
    %527 = vmatpush1.msra.mxu0 0.0
    %528 = vmatprep.subr.mxu0 0.0
    %529 = vmatpush1.msra.mxu0 0.0
    %530 = vmatprep.subr.mxu0 0.0
    %531 = vmatpush1.msra.mxu0 0.0
    %532 = vmatprep.subr.mxu0 0.0
    %533 = vmatpush1.msra.mxu0 0.0
    %534 = vmatprep.subr.mxu0 0.0
    %535 = vmatpush1.msra.mxu0 0.0
    %536 = vmatprep.subr.mxu0 0.0
    %537 = vmatpush1.msra.mxu0 0.0
    %538 = vmatprep.subr.mxu0 0.0
    %539 = vmatpush1.msra.mxu0 0.0
    %540 = vmatprep.subr.mxu0 0.0
    %541 = vmatpush1.msra.mxu0 0.0
    %542 = vmatprep.subr.mxu0 0.0
    %543 = vmatpush1.msra.mxu0 0.0
    %544 = vmatprep.subr.mxu0 0.0
    %545 = vmatpush1.msra.mxu0 0.0
    %546 = vmatprep.subr.mxu0 0.0
    %547 = vmatpush1.msra.mxu0 0.0
    %548 = vmatprep.subr.mxu0 0.0
    %549 = vmatpush1.msra.mxu0 0.0
    %550 = vmatprep.subr.mxu0 0.0
    %551 = vmatpush1.msra.mxu0 0.0
    %552 = vmatprep.subr.mxu0 0.0
    %553 = vmatpush1.msra.mxu0 %v520
    %554 = vmatprep.subr.mxu0 0.0
    %555 = vmatpush2.msra.mxu0 0.0
    %556 = vmatprep.subr.mxu0 0.0
    %557 = vmatpush2.msra.mxu0 0.0
    %558 = vmatprep.subr.mxu0 0.0
    %559 = vmatpush2.msra.mxu0 0.0
    %560 = vmatprep.subr.mxu0 0.0
    %561 = vmatpush2.msra.mxu0 0.0
    %562 = vmatprep.subr.mxu0 0.0
    %563 = vmatpush2.msra.mxu0 0.0
    %564 = vmatprep.subr.mxu0 0.0
    %565 = vmatpush2.msra.mxu0 0.0
    %566 = vmatprep.subr.mxu0 0.0
    %567 = vmatpush2.msra.mxu0 0.0
    %568 = vmatprep.subr.mxu0 0.0
    %569 = vmatpush2.msra.mxu0 0.0
    %570 = vmatprep.subr.mxu0 0.0
    %571 = vmatpush2.msra.mxu0 0.0
    %572 = vmatprep.subr.mxu0 0.0
    %573 = vmatpush2.msra.mxu0 0.0
    %574 = vmatprep.subr.mxu0 0.0
    %575 = vmatpush2.msra.mxu0 0.0
    %576 = vmatprep.subr.mxu0 0.0
    %577 = vmatpush2.msra.mxu0 0.0
    %578 = vmatprep.subr.mxu0 0.0
    %579 = vmatpush2.msra.mxu0 0.0
    %580 = vmatprep.subr.mxu0 0.0
    %581 = vmatpush2.msra.mxu0 0.0
    %582 = vmatprep.subr.mxu0 0.0
    %583 = vmatpush2.msra.mxu0 0.0
    %584 = vmatprep.subr.mxu0 0.0
    %585 = vmatpush2.msra.mxu0 0.0
    %586 = vmatprep.mubr.f32.mxu0 0.0
    %587 = vmatmul.mubr.f32.gmra.mxu0 %v427
    %v588 = vpop.f32.mrf.mxu0
    %v589 = vadd.f32 0.0, %v588
    %v590 = vpop.f32.mrf.mxu0
    %591 = vmatprep.mubr.f32.mxu0 0.0
    %592 = vmatmul.mubr.f32.gmra.mxu0 %v430
    %v593 = vpop.f32.mrf.mxu0
    %v594 = vadd.f32 0.0, %v593
    %v595 = vpop.f32.mrf.mxu0
    %596 = vdwg.mxu0
    %v597 = vlaneseq
    %v598 = vshrl.u32 %v597, 7
    %v599 = vsub.s32 0, %v598
    %v600 = vrot.slane %v517, %v599
    %v601 = vadd.f32 %v600, %v589
    %v602 = vadd.f32 %v600, %v594
    %v603 = vld [vmem:[#allocation3 + $0x88] sm:$0x1]
    %v604 = vld [vmem:[#allocation3 + $0x60] sm:$0xf]
    %v606 = vsel %vm432, %v604, 0
    %608 = vmatprep.subr.mxu0 0.0
    %609 = vmatpush1.msra.mxu0 0.0
    %610 = vmatprep.subr.mxu0 0.0
    %611 = vmatpush1.msra.mxu0 0.0
    %612 = vmatprep.subr.mxu0 0.0
    %613 = vmatpush1.msra.mxu0 0.0
    %614 = vmatprep.subr.mxu0 0.0
    %615 = vmatpush1.msra.mxu0 0.0
    %616 = vmatprep.subr.mxu0 0.0
    %617 = vmatpush1.msra.mxu0 0.0
    %618 = vmatprep.subr.mxu0 0.0
    %619 = vmatpush1.msra.mxu0 0.0
    %620 = vmatprep.subr.mxu0 0.0
    %621 = vmatpush1.msra.mxu0 0.0
    %622 = vmatprep.subr.mxu0 0.0
    %623 = vmatpush1.msra.mxu0 0.0
    %624 = vmatprep.subr.mxu0 0.0
    %625 = vmatpush1.msra.mxu0 0.0
    %626 = vmatprep.subr.mxu0 0.0
    %627 = vmatpush1.msra.mxu0 0.0
    %628 = vmatprep.subr.mxu0 0.0
    %629 = vmatpush1.msra.mxu0 0.0
    %630 = vmatprep.subr.mxu0 0.0
    %631 = vmatpush1.msra.mxu0 0.0
    %632 = vmatprep.subr.mxu0 0.0
    %633 = vmatpush1.msra.mxu0 0.0
    %634 = vmatprep.subr.mxu0 0.0
    %635 = vmatpush1.msra.mxu0 0.0
    %636 = vmatprep.subr.mxu0 0.0
    %637 = vmatpush1.msra.mxu0 0.0
    %638 = vmatprep.subr.mxu0 0.0
    %639 = vmatpush1.msra.mxu0 %v606
    %640 = vmatprep.subr.mxu0 0.0
    %641 = vmatpush2.msra.mxu0 0.0
    %642 = vmatprep.subr.mxu0 0.0
    %643 = vmatpush2.msra.mxu0 0.0
    %644 = vmatprep.subr.mxu0 0.0
    %645 = vmatpush2.msra.mxu0 0.0
    %646 = vmatprep.subr.mxu0 0.0
    %647 = vmatpush2.msra.mxu0 0.0
    %648 = vmatprep.subr.mxu0 0.0
    %649 = vmatpush2.msra.mxu0 0.0
    %650 = vmatprep.subr.mxu0 0.0
    %651 = vmatpush2.msra.mxu0 0.0
    %652 = vmatprep.subr.mxu0 0.0
    %653 = vmatpush2.msra.mxu0 0.0
    %654 = vmatprep.subr.mxu0 0.0
    %655 = vmatpush2.msra.mxu0 0.0
    %656 = vmatprep.subr.mxu0 0.0
    %657 = vmatpush2.msra.mxu0 0.0
    %658 = vmatprep.subr.mxu0 0.0
    %659 = vmatpush2.msra.mxu0 0.0
    %660 = vmatprep.subr.mxu0 0.0
    %661 = vmatpush2.msra.mxu0 0.0
    %662 = vmatprep.subr.mxu0 0.0
    %663 = vmatpush2.msra.mxu0 0.0
    %664 = vmatprep.subr.mxu0 0.0
    %665 = vmatpush2.msra.mxu0 0.0
    %666 = vmatprep.subr.mxu0 0.0
    %667 = vmatpush2.msra.mxu0 0.0
    %668 = vmatprep.subr.mxu0 0.0
    %669 = vmatpush2.msra.mxu0 0.0
    %670 = vmatprep.subr.mxu0 0.0
    %671 = vmatpush2.msra.mxu0 0.0
    %672 = vmatprep.mubr.f32.mxu0 0.0
    %673 = vmatmul.mubr.f32.gmra.mxu0 %v427
    %v674 = vpop.f32.mrf.mxu0
    %v675 = vadd.f32 0.0, %v674
    %v676 = vpop.f32.mrf.mxu0
    %677 = vmatprep.mubr.f32.mxu0 0.0
    %678 = vmatmul.mubr.f32.gmra.mxu0 %v430
    %v679 = vpop.f32.mrf.mxu0
    %v680 = vadd.f32 0.0, %v679
    %v681 = vpop.f32.mrf.mxu0
    %682 = vdwg.mxu0
    %v683 = vlaneseq
    %v684 = vshrl.u32 %v683, 7
    %v685 = vsub.s32 0, %v684
    %v686 = vrot.slane %v603, %v685
    %v687 = vadd.f32 %v686, %v675
    %v688 = vadd.f32 %v686, %v680
    %v689 = vld [vmem:[#allocation3 + $0x8] sm:$0xff]
    %v690 = vld [vmem:[#allocation3 + $0x10] sm:$0xff]
    %v691 = vld [vmem:[#allocation3 + $0x18] sm:$0xff]
    %v692 = vld [vmem:[#allocation3 + $0x20] sm:$0xff]
    %v693 = vld [vmem:[#allocation3 + $0x38] sm:$0xff]
    %v694 = vld [vmem:[#allocation3 + $0x40] sm:$0xff]
    %v695 = vld [vmem:[#allocation3 + $0x48] sm:$0xff]
    %v696 = vld [vmem:[#allocation3 + $0x50] sm:$0xff]
    %v697 = vld [vmem:[#allocation3 + $0x68] sm:$0xff]
    %v698 = vld [vmem:[#allocation3 + $0x70] sm:$0xff]
    %v699 = vld [vmem:[#allocation3 + $0x78] sm:$0xff]
    %v700 = vld [vmem:[#allocation3 + $0x80] sm:$0xff]
    %v701 = vld [vmem:[#allocation3 + $0x90] sm:$0x1]
    %vm702 = vcmask 261120
    %v704 = vsel %vm702, 0.0, 0
    %706 = vmatprep.subr.mxu0 0.0
    %707 = vmatpush1.msra.mxu0 0.0
    %708 = vmatprep.subr.mxu0 0.0
    %709 = vmatpush1.msra.mxu0 0.0
    %710 = vmatprep.subr.mxu0 0.0
    %711 = vmatpush1.msra.mxu0 0.0
    %712 = vmatprep.subr.mxu0 0.0
    %713 = vmatpush1.msra.mxu0 0.0
    %714 = vmatprep.subr.mxu0 0.0
    %715 = vmatpush1.msra.mxu0 0.0
    %716 = vmatprep.subr.mxu0 0.0
    %717 = vmatpush1.msra.mxu0 0.0
    %718 = vmatprep.subr.mxu0 0.0
    %719 = vmatpush1.msra.mxu0 0.0
    %720 = vmatprep.subr.mxu0 0.0
    %721 = vmatpush1.msra.mxu0 0.0
    %722 = vmatprep.subr.mxu0 0.0
    %723 = vmatpush1.msra.mxu0 0.0
    %724 = vmatprep.subr.mxu0 0.0
    %725 = vmatpush1.msra.mxu0 0.0
    %726 = vmatprep.subr.mxu0 0.0
    %727 = vmatpush1.msra.mxu0 0.0
    %728 = vmatprep.subr.mxu0 0.0
    %729 = vmatpush1.msra.mxu0 0.0
    %730 = vmatprep.subr.mxu0 %v696
    %731 = vmatpush1.msra.mxu0 %v692
    %732 = vmatprep.subr.mxu0 %v695
    %733 = vmatpush1.msra.mxu0 %v691
    %734 = vmatprep.subr.mxu0 %v694
    %735 = vmatpush1.msra.mxu0 %v690
    %736 = vmatprep.subr.mxu0 %v693
    %737 = vmatpush1.msra.mxu0 %v689
    %738 = vmatprep.subr.mxu0 0.0
    %739 = vmatpush2.msra.mxu0 0.0
    %740 = vmatprep.subr.mxu0 0.0
    %741 = vmatpush2.msra.mxu0 0.0
    %742 = vmatprep.subr.mxu0 0.0
    %743 = vmatpush2.msra.mxu0 0.0
    %744 = vmatprep.subr.mxu0 0.0
    %745 = vmatpush2.msra.mxu0 0.0
    %746 = vmatprep.subr.mxu0 0.0
    %747 = vmatpush2.msra.mxu0 0.0
    %748 = vmatprep.subr.mxu0 0.0
    %749 = vmatpush2.msra.mxu0 0.0
    %750 = vmatprep.subr.mxu0 0.0
    %751 = vmatpush2.msra.mxu0 0.0
    %752 = vmatprep.subr.mxu0 0.0
    %753 = vmatpush2.msra.mxu0 0.0
    %754 = vmatprep.subr.mxu0 0.0
    %755 = vmatpush2.msra.mxu0 0.0
    %756 = vmatprep.subr.mxu0 0.0
    %757 = vmatpush2.msra.mxu0 0.0
    %758 = vmatprep.subr.mxu0 0.0
    %759 = vmatpush2.msra.mxu0 0.0
    %760 = vmatprep.subr.mxu0 0.0
    %761 = vmatpush2.msra.mxu0 0.0
    %762 = vmatprep.subr.mxu0 0.0
    %763 = vmatpush2.msra.mxu0 0.0
    %764 = vmatprep.subr.mxu0 0.0
    %765 = vmatpush2.msra.mxu0 0.0
    %766 = vmatprep.subr.mxu0 0.0
    %767 = vmatpush2.msra.mxu0 0.0
    %768 = vmatprep.subr.mxu0 0.0
    %769 = vmatpush2.msra.mxu0 0.0
    %770 = vmatprep.mubr.f32.mxu0 0.0
    %771 = vmatmul.mubr.f32.gmra.mxu0 %v704
    %v772 = vpop.f32.mrf.mxu0
    %v773 = vadd.f32 0.0, %v772
    %v774 = vpop.f32.mrf.mxu0
    %v775 = vadd.f32 0.0, %v774
    %776 = vdwg.mxu0
    %777 = vmatprep.subr.mxu0 0.0
    %778 = vmatpush1.msra.mxu0 0.0
    %779 = vmatprep.subr.mxu0 0.0
    %780 = vmatpush1.msra.mxu0 0.0
    %781 = vmatprep.subr.mxu0 0.0
    %782 = vmatpush1.msra.mxu0 0.0
    %783 = vmatprep.subr.mxu0 0.0
    %784 = vmatpush1.msra.mxu0 0.0
    %785 = vmatprep.subr.mxu0 0.0
    %786 = vmatpush1.msra.mxu0 0.0
    %787 = vmatprep.subr.mxu0 0.0
    %788 = vmatpush1.msra.mxu0 0.0
    %789 = vmatprep.subr.mxu0 0.0
    %790 = vmatpush1.msra.mxu0 0.0
    %791 = vmatprep.subr.mxu0 0.0
    %792 = vmatpush1.msra.mxu0 0.0
    %793 = vmatprep.subr.mxu0 0.0
    %794 = vmatpush1.msra.mxu0 0.0
    %795 = vmatprep.subr.mxu0 0.0
    %796 = vmatpush1.msra.mxu0 0.0
    %797 = vmatprep.subr.mxu0 0.0
    %798 = vmatpush1.msra.mxu0 0.0
    %799 = vmatprep.subr.mxu0 0.0
    %800 = vmatpush1.msra.mxu0 0.0
    %801 = vmatprep.subr.mxu0 0.0
    %802 = vmatpush1.msra.mxu0 %v700
    %803 = vmatprep.subr.mxu0 0.0
    %804 = vmatpush1.msra.mxu0 %v699
    %805 = vmatprep.subr.mxu0 0.0
    %806 = vmatpush1.msra.mxu0 %v698
    %807 = vmatprep.subr.mxu0 0.0
    %808 = vmatpush1.msra.mxu0 %v697
    %809 = vmatprep.subr.mxu0 0.0
    %810 = vmatpush2.msra.mxu0 0.0
    %811 = vmatprep.subr.mxu0 0.0
    %812 = vmatpush2.msra.mxu0 0.0
    %813 = vmatprep.subr.mxu0 0.0
    %814 = vmatpush2.msra.mxu0 0.0
    %815 = vmatprep.subr.mxu0 0.0
    %816 = vmatpush2.msra.mxu0 0.0
    %817 = vmatprep.subr.mxu0 0.0
    %818 = vmatpush2.msra.mxu0 0.0
    %819 = vmatprep.subr.mxu0 0.0
    %820 = vmatpush2.msra.mxu0 0.0
    %821 = vmatprep.subr.mxu0 0.0
    %822 = vmatpush2.msra.mxu0 0.0
    %823 = vmatprep.subr.mxu0 0.0
    %824 = vmatpush2.msra.mxu0 0.0
    %825 = vmatprep.subr.mxu0 0.0
    %826 = vmatpush2.msra.mxu0 0.0
    %827 = vmatprep.subr.mxu0 0.0
    %828 = vmatpush2.msra.mxu0 0.0
    %829 = vmatprep.subr.mxu0 0.0
    %830 = vmatpush2.msra.mxu0 0.0
    %831 = vmatprep.subr.mxu0 0.0
    %832 = vmatpush2.msra.mxu0 0.0
    %833 = vmatprep.subr.mxu0 0.0
    %834 = vmatpush2.msra.mxu0 0.0
    %835 = vmatprep.subr.mxu0 0.0
    %836 = vmatpush2.msra.mxu0 0.0
    %837 = vmatprep.subr.mxu0 0.0
    %838 = vmatpush2.msra.mxu0 0.0
    %839 = vmatprep.subr.mxu0 0.0
    %840 = vmatpush2.msra.mxu0 0.0
    %841 = vmatprep.mubr.f32.mxu0 0.0
    %842 = vmatmul.mubr.f32.gmra.mxu0 %v704
    %v843 = vpop.f32.mrf.mxu0
    %v844 = vadd.f32 0.0, %v843
    %v845 = vpop.f32.mrf.mxu0
    %846 = vdwg.mxu0
    %v847 = vadd.f32 %v515, %v773
    %v848 = vxor.u32 %v847, 2147483648
    %v849 = vmul.f32 %v848, 1.442695
    %v850 = vpow.pop %v849
    %v851 = vadd.f32 %v850, 1.0
    %v852 = vrcp.pop %v851
    %v853 = vmul.f32 1.0, %v852
    %v854 = vadd.f32 %v601, %v775
    %v855 = vxor.u32 %v854, 2147483648
    %v856 = vmul.f32 %v855, 1.442695
    %v857 = vpow.pop %v856
    %v858 = vadd.f32 %v857, 1.0
    %v859 = vrcp.pop %v858
    %v860 = vmul.f32 1.0, %v859
    %v861 = vlaneseq
    %v862 = vshrl.u32 %v861, 7
    %v863 = vsub.s32 0, %v862
    %v864 = vrot.slane %v701, %v863
    %v865 = vadd.f32 %v844, %v864
    %v866 = vmul.f32 %v853, %v865
    %v867 = vadd.f32 %v687, %v866
    %v868 = vtanh.pop %v867
    %v869 = vsub.f32 1.0, %v860
    %v870 = vmul.f32 %v869, %v868
    %v871 = vmul.f32 %v860, 0.0
    %v872 = vadd.f32 %v870, %v871
    %873 = vst [vmem:[#allocation2] sm:$0x3] %v872
    %v875 = vsel %vm702, %v872, 0
    %877 = vmatprep.subr.mxu0 0.0
    %878 = vmatpush1.msra.mxu0 0.0
    %879 = vmatprep.subr.mxu0 0.0
    %880 = vmatpush1.msra.mxu0 0.0
    %881 = vmatprep.subr.mxu0 0.0
    %882 = vmatpush1.msra.mxu0 0.0
    %883 = vmatprep.subr.mxu0 0.0
    %884 = vmatpush1.msra.mxu0 0.0
    %885 = vmatprep.subr.mxu0 0.0
    %886 = vmatpush1.msra.mxu0 0.0
    %887 = vmatprep.subr.mxu0 0.0
    %888 = vmatpush1.msra.mxu0 0.0
    %889 = vmatprep.subr.mxu0 0.0
    %890 = vmatpush1.msra.mxu0 0.0
    %891 = vmatprep.subr.mxu0 0.0
    %892 = vmatpush1.msra.mxu0 0.0
    %893 = vmatprep.subr.mxu0 0.0
    %894 = vmatpush1.msra.mxu0 0.0
    %895 = vmatprep.subr.mxu0 0.0
    %896 = vmatpush1.msra.mxu0 0.0
    %897 = vmatprep.subr.mxu0 0.0
    %898 = vmatpush1.msra.mxu0 0.0
    %899 = vmatprep.subr.mxu0 0.0
    %900 = vmatpush1.msra.mxu0 0.0
    %901 = vmatprep.subr.mxu0 %v696
    %902 = vmatpush1.msra.mxu0 %v692
    %903 = vmatprep.subr.mxu0 %v695
    %904 = vmatpush1.msra.mxu0 %v691
    %905 = vmatprep.subr.mxu0 %v694
    %906 = vmatpush1.msra.mxu0 %v690
    %907 = vmatprep.subr.mxu0 %v693
    %908 = vmatpush1.msra.mxu0 %v689
    %909 = vmatprep.subr.mxu0 0.0
    %910 = vmatpush2.msra.mxu0 0.0
    %911 = vmatprep.subr.mxu0 0.0
    %912 = vmatpush2.msra.mxu0 0.0
    %913 = vmatprep.subr.mxu0 0.0
    %914 = vmatpush2.msra.mxu0 0.0
    %915 = vmatprep.subr.mxu0 0.0
    %916 = vmatpush2.msra.mxu0 0.0
    %917 = vmatprep.subr.mxu0 0.0
    %918 = vmatpush2.msra.mxu0 0.0
    %919 = vmatprep.subr.mxu0 0.0
    %920 = vmatpush2.msra.mxu0 0.0
    %921 = vmatprep.subr.mxu0 0.0
    %922 = vmatpush2.msra.mxu0 0.0
    %923 = vmatprep.subr.mxu0 0.0
    %924 = vmatpush2.msra.mxu0 0.0
    %925 = vmatprep.subr.mxu0 0.0
    %926 = vmatpush2.msra.mxu0 0.0
    %927 = vmatprep.subr.mxu0 0.0
    %928 = vmatpush2.msra.mxu0 0.0
    %929 = vmatprep.subr.mxu0 0.0
    %930 = vmatpush2.msra.mxu0 0.0
    %931 = vmatprep.subr.mxu0 0.0
    %932 = vmatpush2.msra.mxu0 0.0
    %933 = vmatprep.subr.mxu0 0.0
    %934 = vmatpush2.msra.mxu0 0.0
    %935 = vmatprep.subr.mxu0 0.0
    %936 = vmatpush2.msra.mxu0 0.0
    %937 = vmatprep.subr.mxu0 0.0
    %938 = vmatpush2.msra.mxu0 0.0
    %939 = vmatprep.subr.mxu0 0.0
    %940 = vmatpush2.msra.mxu0 0.0
    %941 = vmatprep.mubr.f32.mxu0 0.0
    %942 = vmatmul.mubr.f32.gmra.mxu0 %v875
    %v943 = vpop.f32.mrf.mxu0
    %v944 = vadd.f32 0.0, %v943
    %v945 = vpop.f32.mrf.mxu0
    %v946 = vadd.f32 0.0, %v945
    %947 = vdwg.mxu0
    %948 = vmatprep.subr.mxu0 0.0
    %949 = vmatpush1.msra.mxu0 0.0
    %950 = vmatprep.subr.mxu0 0.0
    %951 = vmatpush1.msra.mxu0 0.0
    %952 = vmatprep.subr.mxu0 0.0
    %953 = vmatpush1.msra.mxu0 0.0
    %954 = vmatprep.subr.mxu0 0.0
    %955 = vmatpush1.msra.mxu0 0.0
    %956 = vmatprep.subr.mxu0 0.0
    %957 = vmatpush1.msra.mxu0 0.0
    %958 = vmatprep.subr.mxu0 0.0
    %959 = vmatpush1.msra.mxu0 0.0
    %960 = vmatprep.subr.mxu0 0.0
    %961 = vmatpush1.msra.mxu0 0.0
    %962 = vmatprep.subr.mxu0 0.0
    %963 = vmatpush1.msra.mxu0 0.0
    %964 = vmatprep.subr.mxu0 0.0
    %965 = vmatpush1.msra.mxu0 0.0
    %966 = vmatprep.subr.mxu0 0.0
    %967 = vmatpush1.msra.mxu0 0.0
    %968 = vmatprep.subr.mxu0 0.0
    %969 = vmatpush1.msra.mxu0 0.0
    %970 = vmatprep.subr.mxu0 0.0
    %971 = vmatpush1.msra.mxu0 0.0
    %972 = vmatprep.subr.mxu0 0.0
    %973 = vmatpush1.msra.mxu0 %v700
    %974 = vmatprep.subr.mxu0 0.0
    %975 = vmatpush1.msra.mxu0 %v699
    %976 = vmatprep.subr.mxu0 0.0
    %977 = vmatpush1.msra.mxu0 %v698
    %978 = vmatprep.subr.mxu0 0.0
    %979 = vmatpush1.msra.mxu0 %v697
    %980 = vmatprep.subr.mxu0 0.0
    %981 = vmatpush2.msra.mxu0 0.0
    %982 = vmatprep.subr.mxu0 0.0
    %983 = vmatpush2.msra.mxu0 0.0
    %984 = vmatprep.subr.mxu0 0.0
    %985 = vmatpush2.msra.mxu0 0.0
    %986 = vmatprep.subr.mxu0 0.0
    %987 = vmatpush2.msra.mxu0 0.0
    %988 = vmatprep.subr.mxu0 0.0
    %989 = vmatpush2.msra.mxu0 0.0
    %990 = vmatprep.subr.mxu0 0.0
    %991 = vmatpush2.msra.mxu0 0.0
    %992 = vmatprep.subr.mxu0 0.0
    %993 = vmatpush2.msra.mxu0 0.0
    %994 = vmatprep.subr.mxu0 0.0
    %995 = vmatpush2.msra.mxu0 0.0
    %996 = vmatprep.subr.mxu0 0.0
    %997 = vmatpush2.msra.mxu0 0.0
    %998 = vmatprep.subr.mxu0 0.0
    %999 = vmatpush2.msra.mxu0 0.0
    %1000 = vmatprep.subr.mxu0 0.0
    %1001 = vmatpush2.msra.mxu0 0.0
    %1002 = vmatprep.subr.mxu0 0.0
    %1003 = vmatpush2.msra.mxu0 0.0
    %1004 = vmatprep.subr.mxu0 0.0
    %1005 = vmatpush2.msra.mxu0 0.0
    %1006 = vmatprep.subr.mxu0 0.0
    %1007 = vmatpush2.msra.mxu0 0.0
    %1008 = vmatprep.subr.mxu0 0.0
    %1009 = vmatpush2.msra.mxu0 0.0
    %1010 = vmatprep.subr.mxu0 0.0
    %1011 = vmatpush2.msra.mxu0 0.0
    %1012 = vmatprep.mubr.f32.mxu0 0.0
    %1013 = vmatmul.mubr.f32.gmra.mxu0 %v875
    %v1014 = vpop.f32.mrf.mxu0
    %v1015 = vadd.f32 0.0, %v1014
    %v1016 = vpop.f32.mrf.mxu0
    %1017 = vdwg.mxu0
    %v1019 = vrot.slane %v944, 6
    %v1021 = vadd.f32 %v515, %v1019
    %v1022 = vxor.u32 %v1021, 2147483648
    %v1023 = vmul.f32 %v1022, 1.442695
    %v1024 = vpow.pop %v1023
    %v1025 = vadd.f32 %v1024, 1.0
    %v1026 = vrcp.pop %v1025
    %v1027 = vmul.f32 1.0, %v1026
    %v1029 = vrot.slane %v946, 6
    %v1031 = vadd.f32 %v601, %v1029
    %v1032 = vxor.u32 %v1031, 2147483648
    %v1033 = vmul.f32 %v1032, 1.442695
    %v1034 = vpow.pop %v1033
    %v1035 = vadd.f32 %v1034, 1.0
    %v1036 = vrcp.pop %v1035
    %v1037 = vmul.f32 1.0, %v1036
    %v1038 = vadd.f32 %v1015, %v864
    %v1040 = vrot.slane %v1038, 6
    %v1042 = vmul.f32 %v1027, %v1040
    %v1043 = vadd.f32 %v687, %v1042
    %v1044 = vtanh.pop %v1043
    %v1045 = vsub.f32 1.0, %v1037
    %v1046 = vmul.f32 %v1045, %v1044
    %v1047 = vrot.slane %v872, 6
    %v1049 = vmul.f32 %v1037, %v1047
    %v1050 = vadd.f32 %v1046, %v1049
    %1051 = vst [vmem:[#allocation2] sm:$0xc] %v1050
    %v1053 = vrot.slane %v1050, 2
    %v1054 = vsel %vm702, %v1053, 0
    %1056 = vmatprep.subr.mxu0 0.0
    %1057 = vmatpush1.msra.mxu0 0.0
    %1058 = vmatprep.subr.mxu0 0.0
    %1059 = vmatpush1.msra.mxu0 0.0
    %1060 = vmatprep.subr.mxu0 0.0
    %1061 = vmatpush1.msra.mxu0 0.0
    %1062 = vmatprep.subr.mxu0 0.0
    %1063 = vmatpush1.msra.mxu0 0.0
    %1064 = vmatprep.subr.mxu0 0.0
    %1065 = vmatpush1.msra.mxu0 0.0
    %1066 = vmatprep.subr.mxu0 0.0
    %1067 = vmatpush1.msra.mxu0 0.0
    %1068 = vmatprep.subr.mxu0 0.0
    %1069 = vmatpush1.msra.mxu0 0.0
    %1070 = vmatprep.subr.mxu0 0.0
    %1071 = vmatpush1.msra.mxu0 0.0
    %1072 = vmatprep.subr.mxu0 0.0
    %1073 = vmatpush1.msra.mxu0 0.0
    %1074 = vmatprep.subr.mxu0 0.0
    %1075 = vmatpush1.msra.mxu0 0.0
    %1076 = vmatprep.subr.mxu0 0.0
    %1077 = vmatpush1.msra.mxu0 0.0
    %1078 = vmatprep.subr.mxu0 0.0
    %1079 = vmatpush1.msra.mxu0 0.0
    %1080 = vmatprep.subr.mxu0 %v696
    %1081 = vmatpush1.msra.mxu0 %v692
    %1082 = vmatprep.subr.mxu0 %v695
    %1083 = vmatpush1.msra.mxu0 %v691
    %1084 = vmatprep.subr.mxu0 %v694
    %1085 = vmatpush1.msra.mxu0 %v690
    %1086 = vmatprep.subr.mxu0 %v693
    %1087 = vmatpush1.msra.mxu0 %v689
    %1088 = vmatprep.subr.mxu0 0.0
    %1089 = vmatpush2.msra.mxu0 0.0
    %1090 = vmatprep.subr.mxu0 0.0
    %1091 = vmatpush2.msra.mxu0 0.0
    %1092 = vmatprep.subr.mxu0 0.0
    %1093 = vmatpush2.msra.mxu0 0.0
    %1094 = vmatprep.subr.mxu0 0.0
    %1095 = vmatpush2.msra.mxu0 0.0
    %1096 = vmatprep.subr.mxu0 0.0
    %1097 = vmatpush2.msra.mxu0 0.0
    %1098 = vmatprep.subr.mxu0 0.0
    %1099 = vmatpush2.msra.mxu0 0.0
    %1100 = vmatprep.subr.mxu0 0.0
    %1101 = vmatpush2.msra.mxu0 0.0
    %1102 = vmatprep.subr.mxu0 0.0
    %1103 = vmatpush2.msra.mxu0 0.0
    %1104 = vmatprep.subr.mxu0 0.0
    %1105 = vmatpush2.msra.mxu0 0.0
    %1106 = vmatprep.subr.mxu0 0.0
    %1107 = vmatpush2.msra.mxu0 0.0
    %1108 = vmatprep.subr.mxu0 0.0
    %1109 = vmatpush2.msra.mxu0 0.0
    %1110 = vmatprep.subr.mxu0 0.0
    %1111 = vmatpush2.msra.mxu0 0.0
    %1112 = vmatprep.subr.mxu0 0.0
    %1113 = vmatpush2.msra.mxu0 0.0
    %1114 = vmatprep.subr.mxu0 0.0
    %1115 = vmatpush2.msra.mxu0 0.0
    %1116 = vmatprep.subr.mxu0 0.0
    %1117 = vmatpush2.msra.mxu0 0.0
    %1118 = vmatprep.subr.mxu0 0.0
    %1119 = vmatpush2.msra.mxu0 0.0
    %1120 = vmatprep.mubr.f32.mxu0 0.0
    %1121 = vmatmul.mubr.f32.gmra.mxu0 %v1054
    %v1122 = vpop.f32.mrf.mxu0
    %v1123 = vadd.f32 0.0, %v1122
    %v1124 = vpop.f32.mrf.mxu0
    %v1125 = vadd.f32 0.0, %v1124
    %1126 = vdwg.mxu0
    %1127 = vmatprep.subr.mxu0 0.0
    %1128 = vmatpush1.msra.mxu0 0.0
    %1129 = vmatprep.subr.mxu0 0.0
    %1130 = vmatpush1.msra.mxu0 0.0
    %1131 = vmatprep.subr.mxu0 0.0
    %1132 = vmatpush1.msra.mxu0 0.0
    %1133 = vmatprep.subr.mxu0 0.0
    %1134 = vmatpush1.msra.mxu0 0.0
    %1135 = vmatprep.subr.mxu0 0.0
    %1136 = vmatpush1.msra.mxu0 0.0
    %1137 = vmatprep.subr.mxu0 0.0
    %1138 = vmatpush1.msra.mxu0 0.0
    %1139 = vmatprep.subr.mxu0 0.0
    %1140 = vmatpush1.msra.mxu0 0.0
    %1141 = vmatprep.subr.mxu0 0.0
    %1142 = vmatpush1.msra.mxu0 0.0
    %1143 = vmatprep.subr.mxu0 0.0
    %1144 = vmatpush1.msra.mxu0 0.0
    %1145 = vmatprep.subr.mxu0 0.0
    %1146 = vmatpush1.msra.mxu0 0.0
    %1147 = vmatprep.subr.mxu0 0.0
    %1148 = vmatpush1.msra.mxu0 0.0
    %1149 = vmatprep.subr.mxu0 0.0
    %1150 = vmatpush1.msra.mxu0 0.0
    %1151 = vmatprep.subr.mxu0 0.0
    %1152 = vmatpush1.msra.mxu0 %v700
    %1153 = vmatprep.subr.mxu0 0.0
    %1154 = vmatpush1.msra.mxu0 %v699
    %1155 = vmatprep.subr.mxu0 0.0
    %1156 = vmatpush1.msra.mxu0 %v698
    %1157 = vmatprep.subr.mxu0 0.0
    %1158 = vmatpush1.msra.mxu0 %v697
    %1159 = vmatprep.subr.mxu0 0.0
    %1160 = vmatpush2.msra.mxu0 0.0
    %1161 = vmatprep.subr.mxu0 0.0
    %1162 = vmatpush2.msra.mxu0 0.0
    %1163 = vmatprep.subr.mxu0 0.0
    %1164 = vmatpush2.msra.mxu0 0.0
    %1165 = vmatprep.subr.mxu0 0.0
    %1166 = vmatpush2.msra.mxu0 0.0
    %1167 = vmatprep.subr.mxu0 0.0
    %1168 = vmatpush2.msra.mxu0 0.0
    %1169 = vmatprep.subr.mxu0 0.0
    %1170 = vmatpush2.msra.mxu0 0.0
    %1171 = vmatprep.subr.mxu0 0.0
    %1172 = vmatpush2.msra.mxu0 0.0
    %1173 = vmatprep.subr.mxu0 0.0
    %1174 = vmatpush2.msra.mxu0 0.0
    %1175 = vmatprep.subr.mxu0 0.0
    %1176 = vmatpush2.msra.mxu0 0.0
    %1177 = vmatprep.subr.mxu0 0.0
    %1178 = vmatpush2.msra.mxu0 0.0
    %1179 = vmatprep.subr.mxu0 0.0
    %1180 = vmatpush2.msra.mxu0 0.0
    %1181 = vmatprep.subr.mxu0 0.0
    %1182 = vmatpush2.msra.mxu0 0.0
    %1183 = vmatprep.subr.mxu0 0.0
    %1184 = vmatpush2.msra.mxu0 0.0
    %1185 = vmatprep.subr.mxu0 0.0
    %1186 = vmatpush2.msra.mxu0 0.0
    %1187 = vmatprep.subr.mxu0 0.0
    %1188 = vmatpush2.msra.mxu0 0.0
    %1189 = vmatprep.subr.mxu0 0.0
    %1190 = vmatpush2.msra.mxu0 0.0
    %1191 = vmatprep.mubr.f32.mxu0 0.0
    %1192 = vmatmul.mubr.f32.gmra.mxu0 %v1054
    %v1193 = vpop.f32.mrf.mxu0
    %v1194 = vadd.f32 0.0, %v1193
    %v1195 = vpop.f32.mrf.mxu0
    %1196 = vdwg.mxu0
    %v1198 = vrot.slane %v1123, 4
    %v1200 = vadd.f32 %v515, %v1198
    %v1201 = vxor.u32 %v1200, 2147483648
    %v1202 = vmul.f32 %v1201, 1.442695
    %v1203 = vpow.pop %v1202
    %v1204 = vadd.f32 %v1203, 1.0
    %v1205 = vrcp.pop %v1204
    %v1206 = vmul.f32 1.0, %v1205
    %v1208 = vrot.slane %v1125, 4
    %v1210 = vadd.f32 %v601, %v1208
    %v1211 = vxor.u32 %v1210, 2147483648
    %v1212 = vmul.f32 %v1211, 1.442695
    %v1213 = vpow.pop %v1212
    %v1214 = vadd.f32 %v1213, 1.0
    %v1215 = vrcp.pop %v1214
    %v1216 = vmul.f32 1.0, %v1215
    %v1217 = vadd.f32 %v1194, %v864
    %v1219 = vrot.slane %v1217, 4
    %v1221 = vmul.f32 %v1206, %v1219
    %v1222 = vadd.f32 %v687, %v1221
    %v1223 = vtanh.pop %v1222
    %v1224 = vsub.f32 1.0, %v1216
    %v1225 = vmul.f32 %v1224, %v1223
    %v1226 = vrot.slane %v1050, 6
    %v1228 = vmul.f32 %v1216, %v1226
    %v1229 = vadd.f32 %v1225, %v1228
    %1230 = vst [vmem:[#allocation2] sm:$0x30] %v1229
    %v1232 = vrot.slane %v1229, 4
    %v1233 = vsel %vm702, %v1232, 0
    %1235 = vmatprep.subr.mxu0 0.0
    %1236 = vmatpush1.msra.mxu0 0.0
    %1237 = vmatprep.subr.mxu0 0.0
    %1238 = vmatpush1.msra.mxu0 0.0
    %1239 = vmatprep.subr.mxu0 0.0
    %1240 = vmatpush1.msra.mxu0 0.0
    %1241 = vmatprep.subr.mxu0 0.0
    %1242 = vmatpush1.msra.mxu0 0.0
    %1243 = vmatprep.subr.mxu0 0.0
    %1244 = vmatpush1.msra.mxu0 0.0
    %1245 = vmatprep.subr.mxu0 0.0
    %1246 = vmatpush1.msra.mxu0 0.0
    %1247 = vmatprep.subr.mxu0 0.0
    %1248 = vmatpush1.msra.mxu0 0.0
    %1249 = vmatprep.subr.mxu0 0.0
    %1250 = vmatpush1.msra.mxu0 0.0
    %1251 = vmatprep.subr.mxu0 0.0
    %1252 = vmatpush1.msra.mxu0 0.0
    %1253 = vmatprep.subr.mxu0 0.0
    %1254 = vmatpush1.msra.mxu0 0.0
    %1255 = vmatprep.subr.mxu0 0.0
    %1256 = vmatpush1.msra.mxu0 0.0
    %1257 = vmatprep.subr.mxu0 0.0
    %1258 = vmatpush1.msra.mxu0 0.0
    %1259 = vmatprep.subr.mxu0 %v696
    %1260 = vmatpush1.msra.mxu0 %v692
    %1261 = vmatprep.subr.mxu0 %v695
    %1262 = vmatpush1.msra.mxu0 %v691
    %1263 = vmatprep.subr.mxu0 %v694
    %1264 = vmatpush1.msra.mxu0 %v690
    %1265 = vmatprep.subr.mxu0 %v693
    %1266 = vmatpush1.msra.mxu0 %v689
    %1267 = vmatprep.subr.mxu0 0.0
    %1268 = vmatpush2.msra.mxu0 0.0
    %1269 = vmatprep.subr.mxu0 0.0
    %1270 = vmatpush2.msra.mxu0 0.0
    %1271 = vmatprep.subr.mxu0 0.0
    %1272 = vmatpush2.msra.mxu0 0.0
    %1273 = vmatprep.subr.mxu0 0.0
    %1274 = vmatpush2.msra.mxu0 0.0
    %1275 = vmatprep.subr.mxu0 0.0
    %1276 = vmatpush2.msra.mxu0 0.0
    %1277 = vmatprep.subr.mxu0 0.0
    %1278 = vmatpush2.msra.mxu0 0.0
    %1279 = vmatprep.subr.mxu0 0.0
    %1280 = vmatpush2.msra.mxu0 0.0
    %1281 = vmatprep.subr.mxu0 0.0
    %1282 = vmatpush2.msra.mxu0 0.0
    %1283 = vmatprep.subr.mxu0 0.0
    %1284 = vmatpush2.msra.mxu0 0.0
    %1285 = vmatprep.subr.mxu0 0.0
    %1286 = vmatpush2.msra.mxu0 0.0
    %1287 = vmatprep.subr.mxu0 0.0
    %1288 = vmatpush2.msra.mxu0 0.0
    %1289 = vmatprep.subr.mxu0 0.0
    %1290 = vmatpush2.msra.mxu0 0.0
    %1291 = vmatprep.subr.mxu0 0.0
    %1292 = vmatpush2.msra.mxu0 0.0
    %1293 = vmatprep.subr.mxu0 0.0
    %1294 = vmatpush2.msra.mxu0 0.0
    %1295 = vmatprep.subr.mxu0 0.0
    %1296 = vmatpush2.msra.mxu0 0.0
    %1297 = vmatprep.subr.mxu0 0.0
    %1298 = vmatpush2.msra.mxu0 0.0
    %1299 = vmatprep.mubr.f32.mxu0 0.0
    %1300 = vmatmul.mubr.f32.gmra.mxu0 %v1233
    %v1301 = vpop.f32.mrf.mxu0
    %v1302 = vadd.f32 0.0, %v1301
    %v1303 = vpop.f32.mrf.mxu0
    %v1304 = vadd.f32 0.0, %v1303
    %1305 = vdwg.mxu0
    %1306 = vmatprep.subr.mxu0 0.0
    %1307 = vmatpush1.msra.mxu0 0.0
    %1308 = vmatprep.subr.mxu0 0.0
    %1309 = vmatpush1.msra.mxu0 0.0
    %1310 = vmatprep.subr.mxu0 0.0
    %1311 = vmatpush1.msra.mxu0 0.0
    %1312 = vmatprep.subr.mxu0 0.0
    %1313 = vmatpush1.msra.mxu0 0.0
    %1314 = vmatprep.subr.mxu0 0.0
    %1315 = vmatpush1.msra.mxu0 0.0
    %1316 = vmatprep.subr.mxu0 0.0
    %1317 = vmatpush1.msra.mxu0 0.0
    %1318 = vmatprep.subr.mxu0 0.0
    %1319 = vmatpush1.msra.mxu0 0.0
    %1320 = vmatprep.subr.mxu0 0.0
    %1321 = vmatpush1.msra.mxu0 0.0
    %1322 = vmatprep.subr.mxu0 0.0
    %1323 = vmatpush1.msra.mxu0 0.0
    %1324 = vmatprep.subr.mxu0 0.0
    %1325 = vmatpush1.msra.mxu0 0.0
    %1326 = vmatprep.subr.mxu0 0.0
    %1327 = vmatpush1.msra.mxu0 0.0
    %1328 = vmatprep.subr.mxu0 0.0
    %1329 = vmatpush1.msra.mxu0 0.0
    %1330 = vmatprep.subr.mxu0 0.0
    %1331 = vmatpush1.msra.mxu0 %v700
    %1332 = vmatprep.subr.mxu0 0.0
    %1333 = vmatpush1.msra.mxu0 %v699
    %1334 = vmatprep.subr.mxu0 0.0
    %1335 = vmatpush1.msra.mxu0 %v698
    %1336 = vmatprep.subr.mxu0 0.0
    %1337 = vmatpush1.msra.mxu0 %v697
    %1338 = vmatprep.subr.mxu0 0.0
    %1339 = vmatpush2.msra.mxu0 0.0
    %1340 = vmatprep.subr.mxu0 0.0
    %1341 = vmatpush2.msra.mxu0 0.0
    %1342 = vmatprep.subr.mxu0 0.0
    %1343 = vmatpush2.msra.mxu0 0.0
    %1344 = vmatprep.subr.mxu0 0.0
    %1345 = vmatpush2.msra.mxu0 0.0
    %1346 = vmatprep.subr.mxu0 0.0
    %1347 = vmatpush2.msra.mxu0 0.0
    %1348 = vmatprep.subr.mxu0 0.0
    %1349 = vmatpush2.msra.mxu0 0.0
    %1350 = vmatprep.subr.mxu0 0.0
    %1351 = vmatpush2.msra.mxu0 0.0
    %1352 = vmatprep.subr.mxu0 0.0
    %1353 = vmatpush2.msra.mxu0 0.0
    %1354 = vmatprep.subr.mxu0 0.0
    %1355 = vmatpush2.msra.mxu0 0.0
    %1356 = vmatprep.subr.mxu0 0.0
    %1357 = vmatpush2.msra.mxu0 0.0
    %1358 = vmatprep.subr.mxu0 0.0
    %1359 = vmatpush2.msra.mxu0 0.0
    %1360 = vmatprep.subr.mxu0 0.0
    %1361 = vmatpush2.msra.mxu0 0.0
    %1362 = vmatprep.subr.mxu0 0.0
    %1363 = vmatpush2.msra.mxu0 0.0
    %1364 = vmatprep.subr.mxu0 0.0
    %1365 = vmatpush2.msra.mxu0 0.0
    %1366 = vmatprep.subr.mxu0 0.0
    %1367 = vmatpush2.msra.mxu0 0.0
    %1368 = vmatprep.subr.mxu0 0.0
    %1369 = vmatpush2.msra.mxu0 0.0
    %1370 = vmatprep.mubr.f32.mxu0 0.0
    %1371 = vmatmul.mubr.f32.gmra.mxu0 %v1233
    %v1372 = vpop.f32.mrf.mxu0
    %v1373 = vadd.f32 0.0, %v1372
    %v1374 = vpop.f32.mrf.mxu0
    %1375 = vdwg.mxu0
    %v1377 = vrot.slane %v1302, 2
    %v1379 = vadd.f32 %v515, %v1377
    %v1380 = vxor.u32 %v1379, 2147483648
    %v1381 = vmul.f32 %v1380, 1.442695
    %v1382 = vpow.pop %v1381
    %v1383 = vadd.f32 %v1382, 1.0
    %v1384 = vrcp.pop %v1383
    %v1385 = vmul.f32 1.0, %v1384
    %v1387 = vrot.slane %v1304, 2
    %v1389 = vadd.f32 %v601, %v1387
    %v1390 = vxor.u32 %v1389, 2147483648
    %v1391 = vmul.f32 %v1390, 1.442695
    %v1392 = vpow.pop %v1391
    %v1393 = vadd.f32 %v1392, 1.0
    %v1394 = vrcp.pop %v1393
    %v1395 = vmul.f32 1.0, %v1394
    %v1396 = vadd.f32 %v1373, %v864
    %v1398 = vrot.slane %v1396, 2
    %v1400 = vmul.f32 %v1385, %v1398
    %v1401 = vadd.f32 %v687, %v1400
    %v1402 = vtanh.pop %v1401
    %v1403 = vsub.f32 1.0, %v1395
    %v1404 = vmul.f32 %v1403, %v1402
    %v1405 = vrot.slane %v1229, 6
    %v1407 = vmul.f32 %v1395, %v1405
    %v1408 = vadd.f32 %v1404, %v1407
    %1409 = vst [vmem:[#allocation2] sm:$0xc0] %v1408
    %v1411 = vrot.slane %v1408, 6
    %v1412 = vsel %vm702, %v1411, 0
    %1414 = vmatprep.subr.mxu0 0.0
    %1415 = vmatpush1.msra.mxu0 0.0
    %1416 = vmatprep.subr.mxu0 0.0
    %1417 = vmatpush1.msra.mxu0 0.0
    %1418 = vmatprep.subr.mxu0 0.0
    %1419 = vmatpush1.msra.mxu0 0.0
    %1420 = vmatprep.subr.mxu0 0.0
    %1421 = vmatpush1.msra.mxu0 0.0
    %1422 = vmatprep.subr.mxu0 0.0
    %1423 = vmatpush1.msra.mxu0 0.0
    %1424 = vmatprep.subr.mxu0 0.0
    %1425 = vmatpush1.msra.mxu0 0.0
    %1426 = vmatprep.subr.mxu0 0.0
    %1427 = vmatpush1.msra.mxu0 0.0
    %1428 = vmatprep.subr.mxu0 0.0
    %1429 = vmatpush1.msra.mxu0 0.0
    %1430 = vmatprep.subr.mxu0 0.0
    %1431 = vmatpush1.msra.mxu0 0.0
    %1432 = vmatprep.subr.mxu0 0.0
    %1433 = vmatpush1.msra.mxu0 0.0
    %1434 = vmatprep.subr.mxu0 0.0
    %1435 = vmatpush1.msra.mxu0 0.0
    %1436 = vmatprep.subr.mxu0 0.0
    %1437 = vmatpush1.msra.mxu0 0.0
    %1438 = vmatprep.subr.mxu0 %v696
    %1439 = vmatpush1.msra.mxu0 %v692
    %1440 = vmatprep.subr.mxu0 %v695
    %1441 = vmatpush1.msra.mxu0 %v691
    %1442 = vmatprep.subr.mxu0 %v694
    %1443 = vmatpush1.msra.mxu0 %v690
    %1444 = vmatprep.subr.mxu0 %v693
    %1445 = vmatpush1.msra.mxu0 %v689
    %1446 = vmatprep.subr.mxu0 0.0
    %1447 = vmatpush2.msra.mxu0 0.0
    %1448 = vmatprep.subr.mxu0 0.0
    %1449 = vmatpush2.msra.mxu0 0.0
    %1450 = vmatprep.subr.mxu0 0.0
    %1451 = vmatpush2.msra.mxu0 0.0
    %1452 = vmatprep.subr.mxu0 0.0
    %1453 = vmatpush2.msra.mxu0 0.0
    %1454 = vmatprep.subr.mxu0 0.0
    %1455 = vmatpush2.msra.mxu0 0.0
    %1456 = vmatprep.subr.mxu0 0.0
    %1457 = vmatpush2.msra.mxu0 0.0
    %1458 = vmatprep.subr.mxu0 0.0
    %1459 = vmatpush2.msra.mxu0 0.0
    %1460 = vmatprep.subr.mxu0 0.0
    %1461 = vmatpush2.msra.mxu0 0.0
    %1462 = vmatprep.subr.mxu0 0.0
    %1463 = vmatpush2.msra.mxu0 0.0
    %1464 = vmatprep.subr.mxu0 0.0
    %1465 = vmatpush2.msra.mxu0 0.0
    %1466 = vmatprep.subr.mxu0 0.0
    %1467 = vmatpush2.msra.mxu0 0.0
    %1468 = vmatprep.subr.mxu0 0.0
    %1469 = vmatpush2.msra.mxu0 0.0
    %1470 = vmatprep.subr.mxu0 0.0
    %1471 = vmatpush2.msra.mxu0 0.0
    %1472 = vmatprep.subr.mxu0 0.0
    %1473 = vmatpush2.msra.mxu0 0.0
    %1474 = vmatprep.subr.mxu0 0.0
    %1475 = vmatpush2.msra.mxu0 0.0
    %1476 = vmatprep.subr.mxu0 0.0
    %1477 = vmatpush2.msra.mxu0 0.0
    %1478 = vmatprep.mubr.f32.mxu0 0.0
    %1479 = vmatmul.mubr.f32.gmra.mxu0 %v1412
    %v1480 = vpop.f32.mrf.mxu0
    %v1481 = vadd.f32 0.0, %v1480
    %v1482 = vpop.f32.mrf.mxu0
    %v1483 = vadd.f32 0.0, %v1482
    %1484 = vdwg.mxu0
    %1485 = vmatprep.subr.mxu0 0.0
    %1486 = vmatpush1.msra.mxu0 0.0
    %1487 = vmatprep.subr.mxu0 0.0
    %1488 = vmatpush1.msra.mxu0 0.0
    %1489 = vmatprep.subr.mxu0 0.0
    %1490 = vmatpush1.msra.mxu0 0.0
    %1491 = vmatprep.subr.mxu0 0.0
    %1492 = vmatpush1.msra.mxu0 0.0
    %1493 = vmatprep.subr.mxu0 0.0
    %1494 = vmatpush1.msra.mxu0 0.0
    %1495 = vmatprep.subr.mxu0 0.0
    %1496 = vmatpush1.msra.mxu0 0.0
    %1497 = vmatprep.subr.mxu0 0.0
    %1498 = vmatpush1.msra.mxu0 0.0
    %1499 = vmatprep.subr.mxu0 0.0
    %1500 = vmatpush1.msra.mxu0 0.0
    %1501 = vmatprep.subr.mxu0 0.0
    %1502 = vmatpush1.msra.mxu0 0.0
    %1503 = vmatprep.subr.mxu0 0.0
    %1504 = vmatpush1.msra.mxu0 0.0
    %1505 = vmatprep.subr.mxu0 0.0
    %1506 = vmatpush1.msra.mxu0 0.0
    %1507 = vmatprep.subr.mxu0 0.0
    %1508 = vmatpush1.msra.mxu0 0.0
    %1509 = vmatprep.subr.mxu0 0.0
    %1510 = vmatpush1.msra.mxu0 %v700
    %1511 = vmatprep.subr.mxu0 0.0
    %1512 = vmatpush1.msra.mxu0 %v699
    %1513 = vmatprep.subr.mxu0 0.0
    %1514 = vmatpush1.msra.mxu0 %v698
    %1515 = vmatprep.subr.mxu0 0.0
    %1516 = vmatpush1.msra.mxu0 %v697
    %1517 = vmatprep.subr.mxu0 0.0
    %1518 = vmatpush2.msra.mxu0 0.0
    %1519 = vmatprep.subr.mxu0 0.0
    %1520 = vmatpush2.msra.mxu0 0.0
    %1521 = vmatprep.subr.mxu0 0.0
    %1522 = vmatpush2.msra.mxu0 0.0
    %1523 = vmatprep.subr.mxu0 0.0
    %1524 = vmatpush2.msra.mxu0 0.0
    %1525 = vmatprep.subr.mxu0 0.0
    %1526 = vmatpush2.msra.mxu0 0.0
    %1527 = vmatprep.subr.mxu0 0.0
    %1528 = vmatpush2.msra.mxu0 0.0
    %1529 = vmatprep.subr.mxu0 0.0
    %1530 = vmatpush2.msra.mxu0 0.0
    %1531 = vmatprep.subr.mxu0 0.0
    %1532 = vmatpush2.msra.mxu0 0.0
    %1533 = vmatprep.subr.mxu0 0.0
    %1534 = vmatpush2.msra.mxu0 0.0
    %1535 = vmatprep.subr.mxu0 0.0
    %1536 = vmatpush2.msra.mxu0 0.0
    %1537 = vmatprep.subr.mxu0 0.0
    %1538 = vmatpush2.msra.mxu0 0.0
    %1539 = vmatprep.subr.mxu0 0.0
    %1540 = vmatpush2.msra.mxu0 0.0
    %1541 = vmatprep.subr.mxu0 0.0
    %1542 = vmatpush2.msra.mxu0 0.0
    %1543 = vmatprep.subr.mxu0 0.0
    %1544 = vmatpush2.msra.mxu0 0.0
    %1545 = vmatprep.subr.mxu0 0.0
    %1546 = vmatpush2.msra.mxu0 0.0
    %1547 = vmatprep.subr.mxu0 0.0
    %1548 = vmatpush2.msra.mxu0 0.0
    %1549 = vmatprep.mubr.f32.mxu0 0.0
    %1550 = vmatmul.mubr.f32.gmra.mxu0 %v1412
    %v1551 = vpop.f32.mrf.mxu0
    %v1552 = vadd.f32 0.0, %v1551
    %v1553 = vpop.f32.mrf.mxu0
    %1554 = vdwg.mxu0
    %v1555 = vadd.f32 %v516, %v1481
    %v1556 = vxor.u32 %v1555, 2147483648
    %v1557 = vmul.f32 %v1556, 1.442695
    %v1558 = vpow.pop %v1557
    %v1559 = vadd.f32 %v1558, 1.0
    %v1560 = vrcp.pop %v1559
    %v1561 = vmul.f32 1.0, %v1560
    %v1562 = vadd.f32 %v602, %v1483
    %v1563 = vxor.u32 %v1562, 2147483648
    %v1564 = vmul.f32 %v1563, 1.442695
    %v1565 = vpow.pop %v1564
    %v1566 = vadd.f32 %v1565, 1.0
    %v1567 = vrcp.pop %v1566
    %v1568 = vmul.f32 1.0, %v1567
    %v1569 = vadd.f32 %v1552, %v864
    %v1570 = vmul.f32 %v1561, %v1569
    %v1571 = vadd.f32 %v688, %v1570
    %v1572 = vtanh.pop %v1571
    %v1573 = vsub.f32 1.0, %v1568
    %v1574 = vmul.f32 %v1573, %v1572
    %v1576 = vmul.f32 %v1568, %v1411
    %v1577 = vadd.f32 %v1574, %v1576
    %1578 = vst [vmem:[#allocation2 + $0x8] sm:$0x3] %v1577
    %v1580 = vsel %vm702, %v1577, 0
    %1582 = vmatprep.subr.mxu0 0.0
    %1583 = vmatpush1.msra.mxu0 0.0
    %1584 = vmatprep.subr.mxu0 0.0
    %1585 = vmatpush1.msra.mxu0 0.0
    %1586 = vmatprep.subr.mxu0 0.0
    %1587 = vmatpush1.msra.mxu0 0.0
    %1588 = vmatprep.subr.mxu0 0.0
    %1589 = vmatpush1.msra.mxu0 0.0
    %1590 = vmatprep.subr.mxu0 0.0
    %1591 = vmatpush1.msra.mxu0 0.0
    %1592 = vmatprep.subr.mxu0 0.0
    %1593 = vmatpush1.msra.mxu0 0.0
    %1594 = vmatprep.subr.mxu0 0.0
    %1595 = vmatpush1.msra.mxu0 0.0
    %1596 = vmatprep.subr.mxu0 0.0
    %1597 = vmatpush1.msra.mxu0 0.0
    %1598 = vmatprep.subr.mxu0 0.0
    %1599 = vmatpush1.msra.mxu0 0.0
    %1600 = vmatprep.subr.mxu0 0.0
    %1601 = vmatpush1.msra.mxu0 0.0
    %1602 = vmatprep.subr.mxu0 0.0
    %1603 = vmatpush1.msra.mxu0 0.0
    %1604 = vmatprep.subr.mxu0 0.0
    %1605 = vmatpush1.msra.mxu0 0.0
    %1606 = vmatprep.subr.mxu0 %v696
    %1607 = vmatpush1.msra.mxu0 %v692
    %1608 = vmatprep.subr.mxu0 %v695
    %1609 = vmatpush1.msra.mxu0 %v691
    %1610 = vmatprep.subr.mxu0 %v694
    %1611 = vmatpush1.msra.mxu0 %v690
    %1612 = vmatprep.subr.mxu0 %v693
    %1613 = vmatpush1.msra.mxu0 %v689
    %1614 = vmatprep.subr.mxu0 0.0
    %1615 = vmatpush2.msra.mxu0 0.0
    %1616 = vmatprep.subr.mxu0 0.0
    %1617 = vmatpush2.msra.mxu0 0.0
    %1618 = vmatprep.subr.mxu0 0.0
    %1619 = vmatpush2.msra.mxu0 0.0
    %1620 = vmatprep.subr.mxu0 0.0
    %1621 = vmatpush2.msra.mxu0 0.0
    %1622 = vmatprep.subr.mxu0 0.0
    %1623 = vmatpush2.msra.mxu0 0.0
    %1624 = vmatprep.subr.mxu0 0.0
    %1625 = vmatpush2.msra.mxu0 0.0
    %1626 = vmatprep.subr.mxu0 0.0
    %1627 = vmatpush2.msra.mxu0 0.0
    %1628 = vmatprep.subr.mxu0 0.0
    %1629 = vmatpush2.msra.mxu0 0.0
    %1630 = vmatprep.subr.mxu0 0.0
    %1631 = vmatpush2.msra.mxu0 0.0
    %1632 = vmatprep.subr.mxu0 0.0
    %1633 = vmatpush2.msra.mxu0 0.0
    %1634 = vmatprep.subr.mxu0 0.0
    %1635 = vmatpush2.msra.mxu0 0.0
    %1636 = vmatprep.subr.mxu0 0.0
    %1637 = vmatpush2.msra.mxu0 0.0
    %1638 = vmatprep.subr.mxu0 0.0
    %1639 = vmatpush2.msra.mxu0 0.0
    %1640 = vmatprep.subr.mxu0 0.0
    %1641 = vmatpush2.msra.mxu0 0.0
    %1642 = vmatprep.subr.mxu0 0.0
    %1643 = vmatpush2.msra.mxu0 0.0
    %1644 = vmatprep.subr.mxu0 0.0
    %1645 = vmatpush2.msra.mxu0 0.0
    %1646 = vmatprep.mubr.f32.mxu0 0.0
    %1647 = vmatmul.mubr.f32.gmra.mxu0 %v1580
    %v1648 = vpop.f32.mrf.mxu0
    %v1649 = vadd.f32 0.0, %v1648
    %v1650 = vpop.f32.mrf.mxu0
    %v1651 = vadd.f32 0.0, %v1650
    %1652 = vdwg.mxu0
    %1653 = vmatprep.subr.mxu0 0.0
    %1654 = vmatpush1.msra.mxu0 0.0
    %1655 = vmatprep.subr.mxu0 0.0
    %1656 = vmatpush1.msra.mxu0 0.0
    %1657 = vmatprep.subr.mxu0 0.0
    %1658 = vmatpush1.msra.mxu0 0.0
    %1659 = vmatprep.subr.mxu0 0.0
    %1660 = vmatpush1.msra.mxu0 0.0
    %1661 = vmatprep.subr.mxu0 0.0
    %1662 = vmatpush1.msra.mxu0 0.0
    %1663 = vmatprep.subr.mxu0 0.0
    %1664 = vmatpush1.msra.mxu0 0.0
    %1665 = vmatprep.subr.mxu0 0.0
    %1666 = vmatpush1.msra.mxu0 0.0
    %1667 = vmatprep.subr.mxu0 0.0
    %1668 = vmatpush1.msra.mxu0 0.0
    %1669 = vmatprep.subr.mxu0 0.0
    %1670 = vmatpush1.msra.mxu0 0.0
    %1671 = vmatprep.subr.mxu0 0.0
    %1672 = vmatpush1.msra.mxu0 0.0
    %1673 = vmatprep.subr.mxu0 0.0
    %1674 = vmatpush1.msra.mxu0 0.0
    %1675 = vmatprep.subr.mxu0 0.0
    %1676 = vmatpush1.msra.mxu0 0.0
    %1677 = vmatprep.subr.mxu0 0.0
    %1678 = vmatpush1.msra.mxu0 %v700
    %1679 = vmatprep.subr.mxu0 0.0
    %1680 = vmatpush1.msra.mxu0 %v699
    %1681 = vmatprep.subr.mxu0 0.0
    %1682 = vmatpush1.msra.mxu0 %v698
    %1683 = vmatprep.subr.mxu0 0.0
    %1684 = vmatpush1.msra.mxu0 %v697
    %1685 = vmatprep.subr.mxu0 0.0
    %1686 = vmatpush2.msra.mxu0 0.0
    %1687 = vmatprep.subr.mxu0 0.0
    %1688 = vmatpush2.msra.mxu0 0.0
    %1689 = vmatprep.subr.mxu0 0.0
    %1690 = vmatpush2.msra.mxu0 0.0
    %1691 = vmatprep.subr.mxu0 0.0
    %1692 = vmatpush2.msra.mxu0 0.0
    %1693 = vmatprep.subr.mxu0 0.0
    %1694 = vmatpush2.msra.mxu0 0.0
    %1695 = vmatprep.subr.mxu0 0.0
    %1696 = vmatpush2.msra.mxu0 0.0
    %1697 = vmatprep.subr.mxu0 0.0
    %1698 = vmatpush2.msra.mxu0 0.0
    %1699 = vmatprep.subr.mxu0 0.0
    %1700 = vmatpush2.msra.mxu0 0.0
    %1701 = vmatprep.subr.mxu0 0.0
    %1702 = vmatpush2.msra.mxu0 0.0
    %1703 = vmatprep.subr.mxu0 0.0
    %1704 = vmatpush2.msra.mxu0 0.0
    %1705 = vmatprep.subr.mxu0 0.0
    %1706 = vmatpush2.msra.mxu0 0.0
    %1707 = vmatprep.subr.mxu0 0.0
    %1708 = vmatpush2.msra.mxu0 0.0
    %1709 = vmatprep.subr.mxu0 0.0
    %1710 = vmatpush2.msra.mxu0 0.0
    %1711 = vmatprep.subr.mxu0 0.0
    %1712 = vmatpush2.msra.mxu0 0.0
    %1713 = vmatprep.subr.mxu0 0.0
    %1714 = vmatpush2.msra.mxu0 0.0
    %1715 = vmatprep.subr.mxu0 0.0
    %1716 = vmatpush2.msra.mxu0 0.0
    %1717 = vmatprep.mubr.f32.mxu0 0.0
    %1718 = vmatmul.mubr.f32.gmra.mxu0 %v1580
    %v1719 = vpop.f32.mrf.mxu0
    %v1720 = vadd.f32 0.0, %v1719
    %v1721 = vpop.f32.mrf.mxu0
    %1722 = vdwg.mxu0
    %v1724 = vrot.slane %v1649, 6
    %v1726 = vadd.f32 %v516, %v1724
    %v1727 = vxor.u32 %v1726, 2147483648
    %v1728 = vmul.f32 %v1727, 1.442695
    %v1729 = vpow.pop %v1728
    %v1730 = vadd.f32 %v1729, 1.0
    %v1731 = vrcp.pop %v1730
    %v1732 = vmul.f32 1.0, %v1731
    %v1734 = vrot.slane %v1651, 6
    %v1736 = vadd.f32 %v602, %v1734
    %v1737 = vxor.u32 %v1736, 2147483648
    %v1738 = vmul.f32 %v1737, 1.442695
    %v1739 = vpow.pop %v1738
    %v1740 = vadd.f32 %v1739, 1.0
    %v1741 = vrcp.pop %v1740
    %v1742 = vmul.f32 1.0, %v1741
    %v1743 = vadd.f32 %v1720, %v864
    %v1745 = vrot.slane %v1743, 6
    %v1747 = vmul.f32 %v1732, %v1745
    %v1748 = vadd.f32 %v688, %v1747
    %v1749 = vtanh.pop %v1748
    %v1750 = vsub.f32 1.0, %v1742
    %v1751 = vmul.f32 %v1750, %v1749
    %v1752 = vrot.slane %v1577, 6
    %v1754 = vmul.f32 %v1742, %v1752
    %v1755 = vadd.f32 %v1751, %v1754
    %1756 = vst [vmem:[#allocation2 + $0x8] sm:$0xc] %v1755
    %v1758 = vrot.slane %v1755, 2
    %v1759 = vsel %vm702, %v1758, 0
    %1761 = vmatprep.subr.mxu0 0.0
    %1762 = vmatpush1.msra.mxu0 0.0
    %1763 = vmatprep.subr.mxu0 0.0
    %1764 = vmatpush1.msra.mxu0 0.0
    %1765 = vmatprep.subr.mxu0 0.0
    %1766 = vmatpush1.msra.mxu0 0.0
    %1767 = vmatprep.subr.mxu0 0.0
    %1768 = vmatpush1.msra.mxu0 0.0
    %1769 = vmatprep.subr.mxu0 0.0
    %1770 = vmatpush1.msra.mxu0 0.0
    %1771 = vmatprep.subr.mxu0 0.0
    %1772 = vmatpush1.msra.mxu0 0.0
    %1773 = vmatprep.subr.mxu0 0.0
    %1774 = vmatpush1.msra.mxu0 0.0
    %1775 = vmatprep.subr.mxu0 0.0
    %1776 = vmatpush1.msra.mxu0 0.0
    %1777 = vmatprep.subr.mxu0 0.0
    %1778 = vmatpush1.msra.mxu0 0.0
    %1779 = vmatprep.subr.mxu0 0.0
    %1780 = vmatpush1.msra.mxu0 0.0
    %1781 = vmatprep.subr.mxu0 0.0
    %1782 = vmatpush1.msra.mxu0 0.0
    %1783 = vmatprep.subr.mxu0 0.0
    %1784 = vmatpush1.msra.mxu0 0.0
    %1785 = vmatprep.subr.mxu0 %v696
    %1786 = vmatpush1.msra.mxu0 %v692
    %1787 = vmatprep.subr.mxu0 %v695
    %1788 = vmatpush1.msra.mxu0 %v691
    %1789 = vmatprep.subr.mxu0 %v694
    %1790 = vmatpush1.msra.mxu0 %v690
    %1791 = vmatprep.subr.mxu0 %v693
    %1792 = vmatpush1.msra.mxu0 %v689
    %1793 = vmatprep.subr.mxu0 0.0
    %1794 = vmatpush2.msra.mxu0 0.0
    %1795 = vmatprep.subr.mxu0 0.0
    %1796 = vmatpush2.msra.mxu0 0.0
    %1797 = vmatprep.subr.mxu0 0.0
    %1798 = vmatpush2.msra.mxu0 0.0
    %1799 = vmatprep.subr.mxu0 0.0
    %1800 = vmatpush2.msra.mxu0 0.0
    %1801 = vmatprep.subr.mxu0 0.0
    %1802 = vmatpush2.msra.mxu0 0.0
    %1803 = vmatprep.subr.mxu0 0.0
    %1804 = vmatpush2.msra.mxu0 0.0
    %1805 = vmatprep.subr.mxu0 0.0
    %1806 = vmatpush2.msra.mxu0 0.0
    %1807 = vmatprep.subr.mxu0 0.0
    %1808 = vmatpush2.msra.mxu0 0.0
    %1809 = vmatprep.subr.mxu0 0.0
    %1810 = vmatpush2.msra.mxu0 0.0
    %1811 = vmatprep.subr.mxu0 0.0
    %1812 = vmatpush2.msra.mxu0 0.0
    %1813 = vmatprep.subr.mxu0 0.0
    %1814 = vmatpush2.msra.mxu0 0.0
    %1815 = vmatprep.subr.mxu0 0.0
    %1816 = vmatpush2.msra.mxu0 0.0
    %1817 = vmatprep.subr.mxu0 0.0
    %1818 = vmatpush2.msra.mxu0 0.0
    %1819 = vmatprep.subr.mxu0 0.0
    %1820 = vmatpush2.msra.mxu0 0.0
    %1821 = vmatprep.subr.mxu0 0.0
    %1822 = vmatpush2.msra.mxu0 0.0
    %1823 = vmatprep.subr.mxu0 0.0
    %1824 = vmatpush2.msra.mxu0 0.0
    %1825 = vmatprep.mubr.f32.mxu0 0.0
    %1826 = vmatmul.mubr.f32.gmra.mxu0 %v1759
    %v1827 = vpop.f32.mrf.mxu0
    %v1828 = vadd.f32 0.0, %v1827
    %v1829 = vpop.f32.mrf.mxu0
    %v1830 = vadd.f32 0.0, %v1829
    %1831 = vdwg.mxu0
    %1832 = vmatprep.subr.mxu0 0.0
    %1833 = vmatpush1.msra.mxu0 0.0
    %1834 = vmatprep.subr.mxu0 0.0
    %1835 = vmatpush1.msra.mxu0 0.0
    %1836 = vmatprep.subr.mxu0 0.0
    %1837 = vmatpush1.msra.mxu0 0.0
    %1838 = vmatprep.subr.mxu0 0.0
    %1839 = vmatpush1.msra.mxu0 0.0
    %1840 = vmatprep.subr.mxu0 0.0
    %1841 = vmatpush1.msra.mxu0 0.0
    %1842 = vmatprep.subr.mxu0 0.0
    %1843 = vmatpush1.msra.mxu0 0.0
    %1844 = vmatprep.subr.mxu0 0.0
    %1845 = vmatpush1.msra.mxu0 0.0
    %1846 = vmatprep.subr.mxu0 0.0
    %1847 = vmatpush1.msra.mxu0 0.0
    %1848 = vmatprep.subr.mxu0 0.0
    %1849 = vmatpush1.msra.mxu0 0.0
    %1850 = vmatprep.subr.mxu0 0.0
    %1851 = vmatpush1.msra.mxu0 0.0
    %1852 = vmatprep.subr.mxu0 0.0
    %1853 = vmatpush1.msra.mxu0 0.0
    %1854 = vmatprep.subr.mxu0 0.0
    %1855 = vmatpush1.msra.mxu0 0.0
    %1856 = vmatprep.subr.mxu0 0.0
    %1857 = vmatpush1.msra.mxu0 %v700
    %1858 = vmatprep.subr.mxu0 0.0
    %1859 = vmatpush1.msra.mxu0 %v699
    %1860 = vmatprep.subr.mxu0 0.0
    %1861 = vmatpush1.msra.mxu0 %v698
    %1862 = vmatprep.subr.mxu0 0.0
    %1863 = vmatpush1.msra.mxu0 %v697
    %1864 = vmatprep.subr.mxu0 0.0
    %1865 = vmatpush2.msra.mxu0 0.0
    %1866 = vmatprep.subr.mxu0 0.0
    %1867 = vmatpush2.msra.mxu0 0.0
    %1868 = vmatprep.subr.mxu0 0.0
    %1869 = vmatpush2.msra.mxu0 0.0
    %1870 = vmatprep.subr.mxu0 0.0
    %1871 = vmatpush2.msra.mxu0 0.0
    %1872 = vmatprep.subr.mxu0 0.0
    %1873 = vmatpush2.msra.mxu0 0.0
    %1874 = vmatprep.subr.mxu0 0.0
    %1875 = vmatpush2.msra.mxu0 0.0
    %1876 = vmatprep.subr.mxu0 0.0
    %1877 = vmatpush2.msra.mxu0 0.0
    %1878 = vmatprep.subr.mxu0 0.0
    %1879 = vmatpush2.msra.mxu0 0.0
    %1880 = vmatprep.subr.mxu0 0.0
    %1881 = vmatpush2.msra.mxu0 0.0
    %1882 = vmatprep.subr.mxu0 0.0
    %1883 = vmatpush2.msra.mxu0 0.0
    %1884 = vmatprep.subr.mxu0 0.0
    %1885 = vmatpush2.msra.mxu0 0.0
    %1886 = vmatprep.subr.mxu0 0.0
    %1887 = vmatpush2.msra.mxu0 0.0
    %1888 = vmatprep.subr.mxu0 0.0
    %1889 = vmatpush2.msra.mxu0 0.0
    %1890 = vmatprep.subr.mxu0 0.0
    %1891 = vmatpush2.msra.mxu0 0.0
    %1892 = vmatprep.subr.mxu0 0.0
    %1893 = vmatpush2.msra.mxu0 0.0
    %1894 = vmatprep.subr.mxu0 0.0
    %1895 = vmatpush2.msra.mxu0 0.0
    %1896 = vmatprep.mubr.f32.mxu0 0.0
    %1897 = vmatmul.mubr.f32.gmra.mxu0 %v1759
    %v1898 = vpop.f32.mrf.mxu0
    %v1899 = vadd.f32 0.0, %v1898
    %v1900 = vpop.f32.mrf.mxu0
    %1901 = vdwg.mxu0
    %v1903 = vrot.slane %v1828, 4
    %v1905 = vadd.f32 %v516, %v1903
    %v1906 = vxor.u32 %v1905, 2147483648
    %v1907 = vmul.f32 %v1906, 1.442695
    %v1908 = vpow.pop %v1907
    %v1909 = vadd.f32 %v1908, 1.0
    %v1910 = vrcp.pop %v1909
    %v1911 = vmul.f32 1.0, %v1910
    %v1913 = vrot.slane %v1830, 4
    %v1915 = vadd.f32 %v602, %v1913
    %v1916 = vxor.u32 %v1915, 2147483648
    %v1917 = vmul.f32 %v1916, 1.442695
    %v1918 = vpow.pop %v1917
    %v1919 = vadd.f32 %v1918, 1.0
    %v1920 = vrcp.pop %v1919
    %v1921 = vmul.f32 1.0, %v1920
    %v1922 = vadd.f32 %v1899, %v864
    %v1924 = vrot.slane %v1922, 4
    %v1926 = vmul.f32 %v1911, %v1924
    %v1927 = vadd.f32 %v688, %v1926
    %v1928 = vtanh.pop %v1927
    %v1929 = vsub.f32 1.0, %v1921
    %v1930 = vmul.f32 %v1929, %v1928
    %v1931 = vrot.slane %v1755, 6
    %v1933 = vmul.f32 %v1921, %v1931
    %v1934 = vadd.f32 %v1930, %v1933
    %1935 = vst [vmem:[#allocation2 + $0x8] sm:$0x30] %v1934
    %v1937 = vrot.slane %v1934, 4
    %v1938 = vsel %vm702, %v1937, 0
    %1940 = vmatprep.subr.mxu0 0.0
    %1941 = vmatpush1.msra.mxu0 0.0
    %1942 = vmatprep.subr.mxu0 0.0
    %1943 = vmatpush1.msra.mxu0 0.0
    %1944 = vmatprep.subr.mxu0 0.0
    %1945 = vmatpush1.msra.mxu0 0.0
    %1946 = vmatprep.subr.mxu0 0.0
    %1947 = vmatpush1.msra.mxu0 0.0
    %1948 = vmatprep.subr.mxu0 0.0
    %1949 = vmatpush1.msra.mxu0 0.0
    %1950 = vmatprep.subr.mxu0 0.0
    %1951 = vmatpush1.msra.mxu0 0.0
    %1952 = vmatprep.subr.mxu0 0.0
    %1953 = vmatpush1.msra.mxu0 0.0
    %1954 = vmatprep.subr.mxu0 0.0
    %1955 = vmatpush1.msra.mxu0 0.0
    %1956 = vmatprep.subr.mxu0 0.0
    %1957 = vmatpush1.msra.mxu0 0.0
    %1958 = vmatprep.subr.mxu0 0.0
    %1959 = vmatpush1.msra.mxu0 0.0
    %1960 = vmatprep.subr.mxu0 0.0
    %1961 = vmatpush1.msra.mxu0 0.0
    %1962 = vmatprep.subr.mxu0 0.0
    %1963 = vmatpush1.msra.mxu0 0.0
    %1964 = vmatprep.subr.mxu0 %v696
    %1965 = vmatpush1.msra.mxu0 %v692
    %1966 = vmatprep.subr.mxu0 %v695
    %1967 = vmatpush1.msra.mxu0 %v691
    %1968 = vmatprep.subr.mxu0 %v694
    %1969 = vmatpush1.msra.mxu0 %v690
    %1970 = vmatprep.subr.mxu0 %v693
    %1971 = vmatpush1.msra.mxu0 %v689
    %1972 = vmatprep.subr.mxu0 0.0
    %1973 = vmatpush2.msra.mxu0 0.0
    %1974 = vmatprep.subr.mxu0 0.0
    %1975 = vmatpush2.msra.mxu0 0.0
    %1976 = vmatprep.subr.mxu0 0.0
    %1977 = vmatpush2.msra.mxu0 0.0
    %1978 = vmatprep.subr.mxu0 0.0
    %1979 = vmatpush2.msra.mxu0 0.0
    %1980 = vmatprep.subr.mxu0 0.0
    %1981 = vmatpush2.msra.mxu0 0.0
    %1982 = vmatprep.subr.mxu0 0.0
    %1983 = vmatpush2.msra.mxu0 0.0
    %1984 = vmatprep.subr.mxu0 0.0
    %1985 = vmatpush2.msra.mxu0 0.0
    %1986 = vmatprep.subr.mxu0 0.0
    %1987 = vmatpush2.msra.mxu0 0.0
    %1988 = vmatprep.subr.mxu0 0.0
    %1989 = vmatpush2.msra.mxu0 0.0
    %1990 = vmatprep.subr.mxu0 0.0
    %1991 = vmatpush2.msra.mxu0 0.0
    %1992 = vmatprep.subr.mxu0 0.0
    %1993 = vmatpush2.msra.mxu0 0.0
    %1994 = vmatprep.subr.mxu0 0.0
    %1995 = vmatpush2.msra.mxu0 0.0
    %1996 = vmatprep.subr.mxu0 0.0
    %1997 = vmatpush2.msra.mxu0 0.0
    %1998 = vmatprep.subr.mxu0 0.0
    %1999 = vmatpush2.msra.mxu0 0.0
    %2000 = vmatprep.subr.mxu0 0.0
    %2001 = vmatpush2.msra.mxu0 0.0
    %2002 = vmatprep.subr.mxu0 0.0
    %2003 = vmatpush2.msra.mxu0 0.0
    %2004 = vmatprep.mubr.f32.mxu0 0.0
    %2005 = vmatmul.mubr.f32.gmra.mxu0 %v1938
    %v2006 = vpop.f32.mrf.mxu0
    %v2007 = vadd.f32 0.0, %v2006
    %v2008 = vpop.f32.mrf.mxu0
    %v2009 = vadd.f32 0.0, %v2008
    %2010 = vdwg.mxu0
    %2011 = vmatprep.subr.mxu0 0.0
    %2012 = vmatpush1.msra.mxu0 0.0
    %2013 = vmatprep.subr.mxu0 0.0
    %2014 = vmatpush1.msra.mxu0 0.0
    %2015 = vmatprep.subr.mxu0 0.0
    %2016 = vmatpush1.msra.mxu0 0.0
    %2017 = vmatprep.subr.mxu0 0.0
    %2018 = vmatpush1.msra.mxu0 0.0
    %2019 = vmatprep.subr.mxu0 0.0
    %2020 = vmatpush1.msra.mxu0 0.0
    %2021 = vmatprep.subr.mxu0 0.0
    %2022 = vmatpush1.msra.mxu0 0.0
    %2023 = vmatprep.subr.mxu0 0.0
    %2024 = vmatpush1.msra.mxu0 0.0
    %2025 = vmatprep.subr.mxu0 0.0
    %2026 = vmatpush1.msra.mxu0 0.0
    %2027 = vmatprep.subr.mxu0 0.0
    %2028 = vmatpush1.msra.mxu0 0.0
    %2029 = vmatprep.subr.mxu0 0.0
    %2030 = vmatpush1.msra.mxu0 0.0
    %2031 = vmatprep.subr.mxu0 0.0
    %2032 = vmatpush1.msra.mxu0 0.0
    %2033 = vmatprep.subr.mxu0 0.0
    %2034 = vmatpush1.msra.mxu0 0.0
    %2035 = vmatprep.subr.mxu0 0.0
    %2036 = vmatpush1.msra.mxu0 %v700
    %2037 = vmatprep.subr.mxu0 0.0
    %2038 = vmatpush1.msra.mxu0 %v699
    %2039 = vmatprep.subr.mxu0 0.0
    %2040 = vmatpush1.msra.mxu0 %v698
    %2041 = vmatprep.subr.mxu0 0.0
    %2042 = vmatpush1.msra.mxu0 %v697
    %2043 = vmatprep.subr.mxu0 0.0
    %2044 = vmatpush2.msra.mxu0 0.0
    %2045 = vmatprep.subr.mxu0 0.0
    %2046 = vmatpush2.msra.mxu0 0.0
    %2047 = vmatprep.subr.mxu0 0.0
    %2048 = vmatpush2.msra.mxu0 0.0
    %2049 = vmatprep.subr.mxu0 0.0
    %2050 = vmatpush2.msra.mxu0 0.0
    %2051 = vmatprep.subr.mxu0 0.0
    %2052 = vmatpush2.msra.mxu0 0.0
    %2053 = vmatprep.subr.mxu0 0.0
    %2054 = vmatpush2.msra.mxu0 0.0
    %2055 = vmatprep.subr.mxu0 0.0
    %2056 = vmatpush2.msra.mxu0 0.0
    %2057 = vmatprep.subr.mxu0 0.0
    %2058 = vmatpush2.msra.mxu0 0.0
    %2059 = vmatprep.subr.mxu0 0.0
    %2060 = vmatpush2.msra.mxu0 0.0
    %2061 = vmatprep.subr.mxu0 0.0
    %2062 = vmatpush2.msra.mxu0 0.0
    %2063 = vmatprep.subr.mxu0 0.0
    %2064 = vmatpush2.msra.mxu0 0.0
    %2065 = vmatprep.subr.mxu0 0.0
    %2066 = vmatpush2.msra.mxu0 0.0
    %2067 = vmatprep.subr.mxu0 0.0
    %2068 = vmatpush2.msra.mxu0 0.0
    %2069 = vmatprep.subr.mxu0 0.0
    %2070 = vmatpush2.msra.mxu0 0.0
    %2071 = vmatprep.subr.mxu0 0.0
    %2072 = vmatpush2.msra.mxu0 0.0
    %2073 = vmatprep.subr.mxu0 0.0
    %2074 = vmatpush2.msra.mxu0 0.0
    %2075 = vmatprep.mubr.f32.mxu0 0.0
    %2076 = vmatmul.mubr.f32.gmra.mxu0 %v1938
    %v2077 = vpop.f32.mrf.mxu0
    %v2078 = vadd.f32 0.0, %v2077
    %v2079 = vpop.f32.mrf.mxu0
    %2080 = vdwg.mxu0
    %v2082 = vrot.slane %v2007, 2
    %v2084 = vadd.f32 %v516, %v2082
    %v2085 = vxor.u32 %v2084, 2147483648
    %v2086 = vmul.f32 %v2085, 1.442695
    %v2087 = vpow.pop %v2086
    %v2088 = vadd.f32 %v2087, 1.0
    %v2089 = vrcp.pop %v2088
    %v2090 = vmul.f32 1.0, %v2089
    %v2092 = vrot.slane %v2009, 2
    %v2094 = vadd.f32 %v602, %v2092
    %v2095 = vxor.u32 %v2094, 2147483648
    %v2096 = vmul.f32 %v2095, 1.442695
    %v2097 = vpow.pop %v2096
    %v2098 = vadd.f32 %v2097, 1.0
    %v2099 = vrcp.pop %v2098
    %v2100 = vmul.f32 1.0, %v2099
    %v2101 = vadd.f32 %v2078, %v864
    %v2103 = vrot.slane %v2101, 2
    %v2105 = vmul.f32 %v2090, %v2103
    %v2106 = vadd.f32 %v688, %v2105
    %v2107 = vtanh.pop %v2106
    %v2108 = vsub.f32 1.0, %v2100
    %v2109 = vmul.f32 %v2108, %v2107
    %v2110 = vrot.slane %v1934, 6
    %v2112 = vmul.f32 %v2100, %v2110
    %v2113 = vadd.f32 %v2109, %v2112
    %2114 = vst [vmem:[#allocation2 + $0x8] sm:$0xc0] %v2113
    %v2115 = vld [vmem:[#allocation2] sm:$0xff]
    %v2116 = vld [vmem:[#allocation2 + $0x8] sm:$0xff]
    %v2117 = vld [vmem:[#allocation3 + $0x478] sm:$0xff]
    %v2118 = vld [vmem:[#allocation3 + $0x480] sm:$0xff]
    %v2119 = vld [vmem:[#allocation3 + $0x488] sm:$0x1]
    %v2120 = vlaneseq
    %v2121 = vshrl.u32 %v2120, 7
    %v2122 = vsub.s32 0, %v2121
    %v2123 = vrot.slane %v2119, %v2122
    %vm2124 = vcmask 130048
    %v2126 = vsel %vm2124, %v408, 0
    %v2129 = vsel %vm2124, %v410, 0
    %2131 = vmatprep.subr.mxu0 0.0
    %2132 = vmatpush1.msra.mxu0 0.0
    %2133 = vmatprep.subr.mxu0 0.0
    %2134 = vmatpush1.msra.mxu0 0.0
    %2135 = vmatprep.subr.mxu0 0.0
    %2136 = vmatpush1.msra.mxu0 0.0
    %2137 = vmatprep.subr.mxu0 0.0
    %2138 = vmatpush1.msra.mxu0 0.0
    %2139 = vmatprep.subr.mxu0 0.0
    %2140 = vmatpush1.msra.mxu0 0.0
    %2141 = vmatprep.subr.mxu0 0.0
    %2142 = vmatpush1.msra.mxu0 0.0
    %2143 = vmatprep.subr.mxu0 0.0
    %2144 = vmatpush1.msra.mxu0 0.0
    %2145 = vmatprep.subr.mxu0 0.0
    %2146 = vmatpush1.msra.mxu0 0.0
    %2147 = vmatprep.subr.mxu0 0.0
    %2148 = vmatpush1.msra.mxu0 0.0
    %2149 = vmatprep.subr.mxu0 0.0
    %2150 = vmatpush1.msra.mxu0 0.0
    %2151 = vmatprep.subr.mxu0 0.0
    %2152 = vmatpush1.msra.mxu0 0.0
    %2153 = vmatprep.subr.mxu0 0.0
    %2154 = vmatpush1.msra.mxu0 0.0
    %2155 = vmatprep.subr.mxu0 0.0
    %2156 = vmatpush1.msra.mxu0 0.0
    %2157 = vmatprep.subr.mxu0 0.0
    %2158 = vmatpush1.msra.mxu0 0.0
    %2159 = vmatprep.subr.mxu0 0.0
    %2160 = vmatpush1.msra.mxu0 %v2118
    %2161 = vmatprep.subr.mxu0 0.0
    %2162 = vmatpush1.msra.mxu0 %v2117
    %2163 = vmatprep.subr.mxu0 0.0
    %2164 = vmatpush2.msra.mxu0 0.0
    %2165 = vmatprep.subr.mxu0 0.0
    %2166 = vmatpush2.msra.mxu0 0.0
    %2167 = vmatprep.subr.mxu0 0.0
    %2168 = vmatpush2.msra.mxu0 0.0
    %2169 = vmatprep.subr.mxu0 0.0
    %2170 = vmatpush2.msra.mxu0 0.0
    %2171 = vmatprep.subr.mxu0 0.0
    %2172 = vmatpush2.msra.mxu0 0.0
    %2173 = vmatprep.subr.mxu0 0.0
    %2174 = vmatpush2.msra.mxu0 0.0
    %2175 = vmatprep.subr.mxu0 0.0
    %2176 = vmatpush2.msra.mxu0 0.0
    %2177 = vmatprep.subr.mxu0 0.0
    %2178 = vmatpush2.msra.mxu0 0.0
    %2179 = vmatprep.subr.mxu0 0.0
    %2180 = vmatpush2.msra.mxu0 0.0
    %2181 = vmatprep.subr.mxu0 0.0
    %2182 = vmatpush2.msra.mxu0 0.0
    %2183 = vmatprep.subr.mxu0 0.0
    %2184 = vmatpush2.msra.mxu0 0.0
    %2185 = vmatprep.subr.mxu0 0.0
    %2186 = vmatpush2.msra.mxu0 0.0
    %2187 = vmatprep.subr.mxu0 0.0
    %2188 = vmatpush2.msra.mxu0 0.0
    %2189 = vmatprep.subr.mxu0 0.0
    %2190 = vmatpush2.msra.mxu0 0.0
    %2191 = vmatprep.subr.mxu0 0.0
    %2192 = vmatpush2.msra.mxu0 0.0
    %2193 = vmatprep.subr.mxu0 0.0
    %2194 = vmatpush2.msra.mxu0 0.0
    %2195 = vmatprep.mubr.f32.mxu0 0.0
    %2196 = vmatmul.mubr.f32.gmra.mxu0 %v2126
    %v2197 = vpop.f32.mrf.mxu0
    %v2198 = vadd.f32 %v2123, %v2197
    %v2199 = vpop.f32.mrf.mxu0
    %2200 = vmatprep.mubr.f32.mxu0 0.0
    %2201 = vmatmul.mubr.f32.gmra.mxu0 %v2129
    %v2202 = vpop.f32.mrf.mxu0
    %v2203 = vadd.f32 %v2123, %v2202
    %v2204 = vpop.f32.mrf.mxu0
    %2205 = vdwg.mxu0
    %v2206 = vxor.u32 %v2198, 2147483648
    %v2207 = vxor.u32 %v2203, 2147483648
    %v2208 = vmul.f32 %v2206, 1.442695
    %v2209 = vpow.pop %v2208
    %v2210 = vmul.f32 %v2207, 1.442695
    %v2211 = vpow.pop %v2210
    %v2212 = vadd.f32 %v2209, 1.0
    %v2213 = vadd.f32 %v2211, 1.0
    %v2214 = vrcp.pop %v2212
    %v2215 = vmul.f32 1.0, %v2214
    %v2216 = vrcp.pop %v2213
    %v2217 = vmul.f32 1.0, %v2216
    %v2218 = vmul.f32 %v2215, %v2115
    %v2219 = vmul.f32 %v2217, %v2116
    %2222 = vrot.lane.b32.xlu0 %v2215, 96
    %v2223 = vpop.permute.xlu0 %2222
    %2224 = vrot.lane.b32.xlu0 %v2217, 96
    %v2225 = vpop.permute.xlu0 %2224
    %v2228 = vadd.f32 %v2218, %v2223
    %v2229 = vadd.f32 %v2219, %v2225
    %v2230 = vld [vmem:[#allocation3 + $0xd8] sm:$0x1]
    %v2231 = vld [vmem:[#allocation3 + $0x98] sm:$0xff]
    %v2232 = vld [vmem:[#allocation3 + $0xa0] sm:$0xff]
    %v2233 = vld [vmem:[#allocation3 + $0xa8] sm:$0xff]
    %v2234 = vld [vmem:[#allocation3 + $0xb0] sm:$0xff]
    %v2236 = vsel %vm702, %v2228, 0
    %v2239 = vsel %vm702, %v2229, 0
    %2241 = vmatprep.subr.mxu0 0.0
    %2242 = vmatpush1.msra.mxu0 0.0
    %2243 = vmatprep.subr.mxu0 0.0
    %2244 = vmatpush1.msra.mxu0 0.0
    %2245 = vmatprep.subr.mxu0 0.0
    %2246 = vmatpush1.msra.mxu0 0.0
    %2247 = vmatprep.subr.mxu0 0.0
    %2248 = vmatpush1.msra.mxu0 0.0
    %2249 = vmatprep.subr.mxu0 0.0
    %2250 = vmatpush1.msra.mxu0 0.0
    %2251 = vmatprep.subr.mxu0 0.0
    %2252 = vmatpush1.msra.mxu0 0.0
    %2253 = vmatprep.subr.mxu0 0.0
    %2254 = vmatpush1.msra.mxu0 0.0
    %2255 = vmatprep.subr.mxu0 0.0
    %2256 = vmatpush1.msra.mxu0 0.0
    %2257 = vmatprep.subr.mxu0 0.0
    %2258 = vmatpush1.msra.mxu0 0.0
    %2259 = vmatprep.subr.mxu0 0.0
    %2260 = vmatpush1.msra.mxu0 0.0
    %2261 = vmatprep.subr.mxu0 0.0
    %2262 = vmatpush1.msra.mxu0 0.0
    %2263 = vmatprep.subr.mxu0 0.0
    %2264 = vmatpush1.msra.mxu0 0.0
    %2265 = vmatprep.subr.mxu0 0.0
    %2266 = vmatpush1.msra.mxu0 %v2234
    %2267 = vmatprep.subr.mxu0 0.0
    %2268 = vmatpush1.msra.mxu0 %v2233
    %2269 = vmatprep.subr.mxu0 0.0
    %2270 = vmatpush1.msra.mxu0 %v2232
    %2271 = vmatprep.subr.mxu0 0.0
    %2272 = vmatpush1.msra.mxu0 %v2231
    %2273 = vmatprep.subr.mxu0 0.0
    %2274 = vmatpush2.msra.mxu0 0.0
    %2275 = vmatprep.subr.mxu0 0.0
    %2276 = vmatpush2.msra.mxu0 0.0
    %2277 = vmatprep.subr.mxu0 0.0
    %2278 = vmatpush2.msra.mxu0 0.0
    %2279 = vmatprep.subr.mxu0 0.0
    %2280 = vmatpush2.msra.mxu0 0.0
    %2281 = vmatprep.subr.mxu0 0.0
    %2282 = vmatpush2.msra.mxu0 0.0
    %2283 = vmatprep.subr.mxu0 0.0
    %2284 = vmatpush2.msra.mxu0 0.0
    %2285 = vmatprep.subr.mxu0 0.0
    %2286 = vmatpush2.msra.mxu0 0.0
    %2287 = vmatprep.subr.mxu0 0.0
    %2288 = vmatpush2.msra.mxu0 0.0
    %2289 = vmatprep.subr.mxu0 0.0
    %2290 = vmatpush2.msra.mxu0 0.0
    %2291 = vmatprep.subr.mxu0 0.0
    %2292 = vmatpush2.msra.mxu0 0.0
    %2293 = vmatprep.subr.mxu0 0.0
    %2294 = vmatpush2.msra.mxu0 0.0
    %2295 = vmatprep.subr.mxu0 0.0
    %2296 = vmatpush2.msra.mxu0 0.0
    %2297 = vmatprep.subr.mxu0 0.0
    %2298 = vmatpush2.msra.mxu0 0.0
    %2299 = vmatprep.subr.mxu0 0.0
    %2300 = vmatpush2.msra.mxu0 0.0
    %2301 = vmatprep.subr.mxu0 0.0
    %2302 = vmatpush2.msra.mxu0 0.0
    %2303 = vmatprep.subr.mxu0 0.0
    %2304 = vmatpush2.msra.mxu0 0.0
    %2305 = vmatprep.mubr.f32.mxu0 0.0
    %2306 = vmatmul.mubr.f32.gmra.mxu0 %v2236
    %v2307 = vpop.f32.mrf.mxu0
    %v2308 = vadd.f32 0.0, %v2307
    %v2309 = vpop.f32.mrf.mxu0
    %2310 = vmatprep.mubr.f32.mxu0 0.0
    %2311 = vmatmul.mubr.f32.gmra.mxu0 %v2239
    %v2312 = vpop.f32.mrf.mxu0
    %v2313 = vadd.f32 0.0, %v2312
    %v2314 = vpop.f32.mrf.mxu0
    %2315 = vdwg.mxu0
    %v2316 = vlaneseq
    %v2317 = vshrl.u32 %v2316, 7
    %v2318 = vsub.s32 0, %v2317
    %v2319 = vrot.slane %v2230, %v2318
    %v2320 = vadd.f32 %v2319, %v2308
    %v2321 = vadd.f32 %v2319, %v2313
    %v2322 = vld [vmem:[#allocation3 + $0x120] sm:$0x1]
    %v2323 = vld [vmem:[#allocation3 + $0xe0] sm:$0xff]
    %v2324 = vld [vmem:[#allocation3 + $0xe8] sm:$0xff]
    %v2325 = vld [vmem:[#allocation3 + $0xf0] sm:$0xff]
    %v2326 = vld [vmem:[#allocation3 + $0xf8] sm:$0xff]
    %2327 = vmatprep.subr.mxu0 0.0
    %2328 = vmatpush1.msra.mxu0 0.0
    %2329 = vmatprep.subr.mxu0 0.0
    %2330 = vmatpush1.msra.mxu0 0.0
    %2331 = vmatprep.subr.mxu0 0.0
    %2332 = vmatpush1.msra.mxu0 0.0
    %2333 = vmatprep.subr.mxu0 0.0
    %2334 = vmatpush1.msra.mxu0 0.0
    %2335 = vmatprep.subr.mxu0 0.0
    %2336 = vmatpush1.msra.mxu0 0.0
    %2337 = vmatprep.subr.mxu0 0.0
    %2338 = vmatpush1.msra.mxu0 0.0
    %2339 = vmatprep.subr.mxu0 0.0
    %2340 = vmatpush1.msra.mxu0 0.0
    %2341 = vmatprep.subr.mxu0 0.0
    %2342 = vmatpush1.msra.mxu0 0.0
    %2343 = vmatprep.subr.mxu0 0.0
    %2344 = vmatpush1.msra.mxu0 0.0
    %2345 = vmatprep.subr.mxu0 0.0
    %2346 = vmatpush1.msra.mxu0 0.0
    %2347 = vmatprep.subr.mxu0 0.0
    %2348 = vmatpush1.msra.mxu0 0.0
    %2349 = vmatprep.subr.mxu0 0.0
    %2350 = vmatpush1.msra.mxu0 0.0
    %2351 = vmatprep.subr.mxu0 0.0
    %2352 = vmatpush1.msra.mxu0 %v2326
    %2353 = vmatprep.subr.mxu0 0.0
    %2354 = vmatpush1.msra.mxu0 %v2325
    %2355 = vmatprep.subr.mxu0 0.0
    %2356 = vmatpush1.msra.mxu0 %v2324
    %2357 = vmatprep.subr.mxu0 0.0
    %2358 = vmatpush1.msra.mxu0 %v2323
    %2359 = vmatprep.subr.mxu0 0.0
    %2360 = vmatpush2.msra.mxu0 0.0
    %2361 = vmatprep.subr.mxu0 0.0
    %2362 = vmatpush2.msra.mxu0 0.0
    %2363 = vmatprep.subr.mxu0 0.0
    %2364 = vmatpush2.msra.mxu0 0.0
    %2365 = vmatprep.subr.mxu0 0.0
    %2366 = vmatpush2.msra.mxu0 0.0
    %2367 = vmatprep.subr.mxu0 0.0
    %2368 = vmatpush2.msra.mxu0 0.0
    %2369 = vmatprep.subr.mxu0 0.0
    %2370 = vmatpush2.msra.mxu0 0.0
    %2371 = vmatprep.subr.mxu0 0.0
    %2372 = vmatpush2.msra.mxu0 0.0
    %2373 = vmatprep.subr.mxu0 0.0
    %2374 = vmatpush2.msra.mxu0 0.0
    %2375 = vmatprep.subr.mxu0 0.0
    %2376 = vmatpush2.msra.mxu0 0.0
    %2377 = vmatprep.subr.mxu0 0.0
    %2378 = vmatpush2.msra.mxu0 0.0
    %2379 = vmatprep.subr.mxu0 0.0
    %2380 = vmatpush2.msra.mxu0 0.0
    %2381 = vmatprep.subr.mxu0 0.0
    %2382 = vmatpush2.msra.mxu0 0.0
    %2383 = vmatprep.subr.mxu0 0.0
    %2384 = vmatpush2.msra.mxu0 0.0
    %2385 = vmatprep.subr.mxu0 0.0
    %2386 = vmatpush2.msra.mxu0 0.0
    %2387 = vmatprep.subr.mxu0 0.0
    %2388 = vmatpush2.msra.mxu0 0.0
    %2389 = vmatprep.subr.mxu0 0.0
    %2390 = vmatpush2.msra.mxu0 0.0
    %2391 = vmatprep.mubr.f32.mxu0 0.0
    %2392 = vmatmul.mubr.f32.gmra.mxu0 %v2236
    %v2393 = vpop.f32.mrf.mxu0
    %v2394 = vadd.f32 0.0, %v2393
    %v2395 = vpop.f32.mrf.mxu0
    %2396 = vmatprep.mubr.f32.mxu0 0.0
    %2397 = vmatmul.mubr.f32.gmra.mxu0 %v2239
    %v2398 = vpop.f32.mrf.mxu0
    %v2399 = vadd.f32 0.0, %v2398
    %v2400 = vpop.f32.mrf.mxu0
    %2401 = vdwg.mxu0
    %v2402 = vlaneseq
    %v2403 = vshrl.u32 %v2402, 7
    %v2404 = vsub.s32 0, %v2403
    %v2405 = vrot.slane %v2322, %v2404
    %v2406 = vadd.f32 %v2405, %v2394
    %v2407 = vadd.f32 %v2405, %v2399
    %v2408 = vld [vmem:[#allocation3 + $0x168] sm:$0x1]
    %v2409 = vld [vmem:[#allocation3 + $0x128] sm:$0xff]
    %v2410 = vld [vmem:[#allocation3 + $0x130] sm:$0xff]
    %v2411 = vld [vmem:[#allocation3 + $0x138] sm:$0xff]
    %v2412 = vld [vmem:[#allocation3 + $0x140] sm:$0xff]
    %2413 = vmatprep.subr.mxu0 0.0
    %2414 = vmatpush1.msra.mxu0 0.0
    %2415 = vmatprep.subr.mxu0 0.0
    %2416 = vmatpush1.msra.mxu0 0.0
    %2417 = vmatprep.subr.mxu0 0.0
    %2418 = vmatpush1.msra.mxu0 0.0
    %2419 = vmatprep.subr.mxu0 0.0
    %2420 = vmatpush1.msra.mxu0 0.0
    %2421 = vmatprep.subr.mxu0 0.0
    %2422 = vmatpush1.msra.mxu0 0.0
    %2423 = vmatprep.subr.mxu0 0.0
    %2424 = vmatpush1.msra.mxu0 0.0
    %2425 = vmatprep.subr.mxu0 0.0
    %2426 = vmatpush1.msra.mxu0 0.0
    %2427 = vmatprep.subr.mxu0 0.0
    %2428 = vmatpush1.msra.mxu0 0.0
    %2429 = vmatprep.subr.mxu0 0.0
    %2430 = vmatpush1.msra.mxu0 0.0
    %2431 = vmatprep.subr.mxu0 0.0
    %2432 = vmatpush1.msra.mxu0 0.0
    %2433 = vmatprep.subr.mxu0 0.0
    %2434 = vmatpush1.msra.mxu0 0.0
    %2435 = vmatprep.subr.mxu0 0.0
    %2436 = vmatpush1.msra.mxu0 0.0
    %2437 = vmatprep.subr.mxu0 0.0
    %2438 = vmatpush1.msra.mxu0 %v2412
    %2439 = vmatprep.subr.mxu0 0.0
    %2440 = vmatpush1.msra.mxu0 %v2411
    %2441 = vmatprep.subr.mxu0 0.0
    %2442 = vmatpush1.msra.mxu0 %v2410
    %2443 = vmatprep.subr.mxu0 0.0
    %2444 = vmatpush1.msra.mxu0 %v2409
    %2445 = vmatprep.subr.mxu0 0.0
    %2446 = vmatpush2.msra.mxu0 0.0
    %2447 = vmatprep.subr.mxu0 0.0
    %2448 = vmatpush2.msra.mxu0 0.0
    %2449 = vmatprep.subr.mxu0 0.0
    %2450 = vmatpush2.msra.mxu0 0.0
    %2451 = vmatprep.subr.mxu0 0.0
    %2452 = vmatpush2.msra.mxu0 0.0
    %2453 = vmatprep.subr.mxu0 0.0
    %2454 = vmatpush2.msra.mxu0 0.0
    %2455 = vmatprep.subr.mxu0 0.0
    %2456 = vmatpush2.msra.mxu0 0.0
    %2457 = vmatprep.subr.mxu0 0.0
    %2458 = vmatpush2.msra.mxu0 0.0
    %2459 = vmatprep.subr.mxu0 0.0
    %2460 = vmatpush2.msra.mxu0 0.0
    %2461 = vmatprep.subr.mxu0 0.0
    %2462 = vmatpush2.msra.mxu0 0.0
    %2463 = vmatprep.subr.mxu0 0.0
    %2464 = vmatpush2.msra.mxu0 0.0
    %2465 = vmatprep.subr.mxu0 0.0
    %2466 = vmatpush2.msra.mxu0 0.0
    %2467 = vmatprep.subr.mxu0 0.0
    %2468 = vmatpush2.msra.mxu0 0.0
    %2469 = vmatprep.subr.mxu0 0.0
    %2470 = vmatpush2.msra.mxu0 0.0
    %2471 = vmatprep.subr.mxu0 0.0
    %2472 = vmatpush2.msra.mxu0 0.0
    %2473 = vmatprep.subr.mxu0 0.0
    %2474 = vmatpush2.msra.mxu0 0.0
    %2475 = vmatprep.subr.mxu0 0.0
    %2476 = vmatpush2.msra.mxu0 0.0
    %2477 = vmatprep.mubr.f32.mxu0 0.0
    %2478 = vmatmul.mubr.f32.gmra.mxu0 %v2236
    %v2479 = vpop.f32.mrf.mxu0
    %v2480 = vadd.f32 0.0, %v2479
    %v2481 = vpop.f32.mrf.mxu0
    %2482 = vmatprep.mubr.f32.mxu0 0.0
    %2483 = vmatmul.mubr.f32.gmra.mxu0 %v2239
    %v2484 = vpop.f32.mrf.mxu0
    %v2485 = vadd.f32 0.0, %v2484
    %v2486 = vpop.f32.mrf.mxu0
    %2487 = vdwg.mxu0
    %v2488 = vlaneseq
    %v2489 = vshrl.u32 %v2488, 7
    %v2490 = vsub.s32 0, %v2489
    %v2491 = vrot.slane %v2408, %v2490
    %v2492 = vadd.f32 %v2491, %v2480
    %v2493 = vadd.f32 %v2491, %v2485
    %v2494 = vld [vmem:[#allocation3 + $0xb8] sm:$0xff]
    %v2495 = vld [vmem:[#allocation3 + $0xc0] sm:$0xff]
    %v2496 = vld [vmem:[#allocation3 + $0xc8] sm:$0xff]
    %v2497 = vld [vmem:[#allocation3 + $0xd0] sm:$0xff]
    %v2498 = vld [vmem:[#allocation3 + $0x100] sm:$0xff]
    %v2499 = vld [vmem:[#allocation3 + $0x108] sm:$0xff]
    %v2500 = vld [vmem:[#allocation3 + $0x110] sm:$0xff]
    %v2501 = vld [vmem:[#allocation3 + $0x118] sm:$0xff]
    %v2502 = vld [vmem:[#allocation3 + $0x148] sm:$0xff]
    %v2503 = vld [vmem:[#allocation3 + $0x150] sm:$0xff]
    %v2504 = vld [vmem:[#allocation3 + $0x158] sm:$0xff]
    %v2505 = vld [vmem:[#allocation3 + $0x160] sm:$0xff]
    %v2506 = vld [vmem:[#allocation3 + $0x170] sm:$0x1]
    %2507 = vmatprep.subr.mxu0 0.0
    %2508 = vmatpush1.msra.mxu0 0.0
    %2509 = vmatprep.subr.mxu0 0.0
    %2510 = vmatpush1.msra.mxu0 0.0
    %2511 = vmatprep.subr.mxu0 0.0
    %2512 = vmatpush1.msra.mxu0 0.0
    %2513 = vmatprep.subr.mxu0 0.0
    %2514 = vmatpush1.msra.mxu0 0.0
    %2515 = vmatprep.subr.mxu0 0.0
    %2516 = vmatpush1.msra.mxu0 0.0
    %2517 = vmatprep.subr.mxu0 0.0
    %2518 = vmatpush1.msra.mxu0 0.0
    %2519 = vmatprep.subr.mxu0 0.0
    %2520 = vmatpush1.msra.mxu0 0.0
    %2521 = vmatprep.subr.mxu0 0.0
    %2522 = vmatpush1.msra.mxu0 0.0
    %2523 = vmatprep.subr.mxu0 0.0
    %2524 = vmatpush1.msra.mxu0 0.0
    %2525 = vmatprep.subr.mxu0 0.0
    %2526 = vmatpush1.msra.mxu0 0.0
    %2527 = vmatprep.subr.mxu0 0.0
    %2528 = vmatpush1.msra.mxu0 0.0
    %2529 = vmatprep.subr.mxu0 0.0
    %2530 = vmatpush1.msra.mxu0 0.0
    %2531 = vmatprep.subr.mxu0 %v2501
    %2532 = vmatpush1.msra.mxu0 %v2497
    %2533 = vmatprep.subr.mxu0 %v2500
    %2534 = vmatpush1.msra.mxu0 %v2496
    %2535 = vmatprep.subr.mxu0 %v2499
    %2536 = vmatpush1.msra.mxu0 %v2495
    %2537 = vmatprep.subr.mxu0 %v2498
    %2538 = vmatpush1.msra.mxu0 %v2494
    %2539 = vmatprep.subr.mxu0 0.0
    %2540 = vmatpush2.msra.mxu0 0.0
    %2541 = vmatprep.subr.mxu0 0.0
    %2542 = vmatpush2.msra.mxu0 0.0
    %2543 = vmatprep.subr.mxu0 0.0
    %2544 = vmatpush2.msra.mxu0 0.0
    %2545 = vmatprep.subr.mxu0 0.0
    %2546 = vmatpush2.msra.mxu0 0.0
    %2547 = vmatprep.subr.mxu0 0.0
    %2548 = vmatpush2.msra.mxu0 0.0
    %2549 = vmatprep.subr.mxu0 0.0
    %2550 = vmatpush2.msra.mxu0 0.0
    %2551 = vmatprep.subr.mxu0 0.0
    %2552 = vmatpush2.msra.mxu0 0.0
    %2553 = vmatprep.subr.mxu0 0.0
    %2554 = vmatpush2.msra.mxu0 0.0
    %2555 = vmatprep.subr.mxu0 0.0
    %2556 = vmatpush2.msra.mxu0 0.0
    %2557 = vmatprep.subr.mxu0 0.0
    %2558 = vmatpush2.msra.mxu0 0.0
    %2559 = vmatprep.subr.mxu0 0.0
    %2560 = vmatpush2.msra.mxu0 0.0
    %2561 = vmatprep.subr.mxu0 0.0
    %2562 = vmatpush2.msra.mxu0 0.0
    %2563 = vmatprep.subr.mxu0 0.0
    %2564 = vmatpush2.msra.mxu0 0.0
    %2565 = vmatprep.subr.mxu0 0.0
    %2566 = vmatpush2.msra.mxu0 0.0
    %2567 = vmatprep.subr.mxu0 0.0
    %2568 = vmatpush2.msra.mxu0 0.0
    %2569 = vmatprep.subr.mxu0 0.0
    %2570 = vmatpush2.msra.mxu0 0.0
    %2571 = vmatprep.mubr.f32.mxu0 0.0
    %2572 = vmatmul.mubr.f32.gmra.mxu0 %v704
    %v2573 = vpop.f32.mrf.mxu0
    %v2574 = vadd.f32 0.0, %v2573
    %v2575 = vpop.f32.mrf.mxu0
    %v2576 = vadd.f32 0.0, %v2575
    %2577 = vdwg.mxu0
    %2578 = vmatprep.subr.mxu0 0.0
    %2579 = vmatpush1.msra.mxu0 0.0
    %2580 = vmatprep.subr.mxu0 0.0
    %2581 = vmatpush1.msra.mxu0 0.0
    %2582 = vmatprep.subr.mxu0 0.0
    %2583 = vmatpush1.msra.mxu0 0.0
    %2584 = vmatprep.subr.mxu0 0.0
    %2585 = vmatpush1.msra.mxu0 0.0
    %2586 = vmatprep.subr.mxu0 0.0
    %2587 = vmatpush1.msra.mxu0 0.0
    %2588 = vmatprep.subr.mxu0 0.0
    %2589 = vmatpush1.msra.mxu0 0.0
    %2590 = vmatprep.subr.mxu0 0.0
    %2591 = vmatpush1.msra.mxu0 0.0
    %2592 = vmatprep.subr.mxu0 0.0
    %2593 = vmatpush1.msra.mxu0 0.0
    %2594 = vmatprep.subr.mxu0 0.0
    %2595 = vmatpush1.msra.mxu0 0.0
    %2596 = vmatprep.subr.mxu0 0.0
    %2597 = vmatpush1.msra.mxu0 0.0
    %2598 = vmatprep.subr.mxu0 0.0
    %2599 = vmatpush1.msra.mxu0 0.0
    %2600 = vmatprep.subr.mxu0 0.0
    %2601 = vmatpush1.msra.mxu0 0.0
    %2602 = vmatprep.subr.mxu0 0.0
    %2603 = vmatpush1.msra.mxu0 %v2505
    %2604 = vmatprep.subr.mxu0 0.0
    %2605 = vmatpush1.msra.mxu0 %v2504
    %2606 = vmatprep.subr.mxu0 0.0
    %2607 = vmatpush1.msra.mxu0 %v2503
    %2608 = vmatprep.subr.mxu0 0.0
    %2609 = vmatpush1.msra.mxu0 %v2502
    %2610 = vmatprep.subr.mxu0 0.0
    %2611 = vmatpush2.msra.mxu0 0.0
    %2612 = vmatprep.subr.mxu0 0.0
    %2613 = vmatpush2.msra.mxu0 0.0
    %2614 = vmatprep.subr.mxu0 0.0
    %2615 = vmatpush2.msra.mxu0 0.0
    %2616 = vmatprep.subr.mxu0 0.0
    %2617 = vmatpush2.msra.mxu0 0.0
    %2618 = vmatprep.subr.mxu0 0.0
    %2619 = vmatpush2.msra.mxu0 0.0
    %2620 = vmatprep.subr.mxu0 0.0
    %2621 = vmatpush2.msra.mxu0 0.0
    %2622 = vmatprep.subr.mxu0 0.0
    %2623 = vmatpush2.msra.mxu0 0.0
    %2624 = vmatprep.subr.mxu0 0.0
    %2625 = vmatpush2.msra.mxu0 0.0
    %2626 = vmatprep.subr.mxu0 0.0
    %2627 = vmatpush2.msra.mxu0 0.0
    %2628 = vmatprep.subr.mxu0 0.0
    %2629 = vmatpush2.msra.mxu0 0.0
    %2630 = vmatprep.subr.mxu0 0.0
    %2631 = vmatpush2.msra.mxu0 0.0
    %2632 = vmatprep.subr.mxu0 0.0
    %2633 = vmatpush2.msra.mxu0 0.0
    %2634 = vmatprep.subr.mxu0 0.0
    %2635 = vmatpush2.msra.mxu0 0.0
    %2636 = vmatprep.subr.mxu0 0.0
    %2637 = vmatpush2.msra.mxu0 0.0
    %2638 = vmatprep.subr.mxu0 0.0
    %2639 = vmatpush2.msra.mxu0 0.0
    %2640 = vmatprep.subr.mxu0 0.0
    %2641 = vmatpush2.msra.mxu0 0.0
    %2642 = vmatprep.mubr.f32.mxu0 0.0
    %2643 = vmatmul.mubr.f32.gmra.mxu0 %v704
    %v2644 = vpop.f32.mrf.mxu0
    %v2645 = vadd.f32 0.0, %v2644
    %v2646 = vpop.f32.mrf.mxu0
    %2647 = vdwg.mxu0
    %v2648 = vadd.f32 %v2320, %v2574
    %v2649 = vxor.u32 %v2648, 2147483648
    %v2650 = vmul.f32 %v2649, 1.442695
    %v2651 = vpow.pop %v2650
    %v2652 = vadd.f32 %v2651, 1.0
    %v2653 = vrcp.pop %v2652
    %v2654 = vmul.f32 1.0, %v2653
    %v2655 = vadd.f32 %v2406, %v2576
    %v2656 = vxor.u32 %v2655, 2147483648
    %v2657 = vmul.f32 %v2656, 1.442695
    %v2658 = vpow.pop %v2657
    %v2659 = vadd.f32 %v2658, 1.0
    %v2660 = vrcp.pop %v2659
    %v2661 = vmul.f32 1.0, %v2660
    %v2662 = vlaneseq
    %v2663 = vshrl.u32 %v2662, 7
    %v2664 = vsub.s32 0, %v2663
    %v2665 = vrot.slane %v2506, %v2664
    %v2666 = vadd.f32 %v2645, %v2665
    %v2667 = vmul.f32 %v2654, %v2666
    %v2668 = vadd.f32 %v2492, %v2667
    %v2669 = vtanh.pop %v2668
    %v2670 = vsub.f32 1.0, %v2661
    %v2671 = vmul.f32 %v2670, %v2669
    %v2672 = vmul.f32 %v2661, 0.0
    %v2673 = vadd.f32 %v2671, %v2672
    %2674 = vst [vmem:[#allocation2] sm:$0x3] %v2673
    %v2676 = vsel %vm702, %v2673, 0
    %2678 = vmatprep.subr.mxu0 0.0
    %2679 = vmatpush1.msra.mxu0 0.0
    %2680 = vmatprep.subr.mxu0 0.0
    %2681 = vmatpush1.msra.mxu0 0.0
    %2682 = vmatprep.subr.mxu0 0.0
    %2683 = vmatpush1.msra.mxu0 0.0
    %2684 = vmatprep.subr.mxu0 0.0
    %2685 = vmatpush1.msra.mxu0 0.0
    %2686 = vmatprep.subr.mxu0 0.0
    %2687 = vmatpush1.msra.mxu0 0.0
    %2688 = vmatprep.subr.mxu0 0.0
    %2689 = vmatpush1.msra.mxu0 0.0
    %2690 = vmatprep.subr.mxu0 0.0
    %2691 = vmatpush1.msra.mxu0 0.0
    %2692 = vmatprep.subr.mxu0 0.0
    %2693 = vmatpush1.msra.mxu0 0.0
    %2694 = vmatprep.subr.mxu0 0.0
    %2695 = vmatpush1.msra.mxu0 0.0
    %2696 = vmatprep.subr.mxu0 0.0
    %2697 = vmatpush1.msra.mxu0 0.0
    %2698 = vmatprep.subr.mxu0 0.0
    %2699 = vmatpush1.msra.mxu0 0.0
    %2700 = vmatprep.subr.mxu0 0.0
    %2701 = vmatpush1.msra.mxu0 0.0
    %2702 = vmatprep.subr.mxu0 %v2501
    %2703 = vmatpush1.msra.mxu0 %v2497
    %2704 = vmatprep.subr.mxu0 %v2500
    %2705 = vmatpush1.msra.mxu0 %v2496
    %2706 = vmatprep.subr.mxu0 %v2499
    %2707 = vmatpush1.msra.mxu0 %v2495
    %2708 = vmatprep.subr.mxu0 %v2498
    %2709 = vmatpush1.msra.mxu0 %v2494
    %2710 = vmatprep.subr.mxu0 0.0
    %2711 = vmatpush2.msra.mxu0 0.0
    %2712 = vmatprep.subr.mxu0 0.0
    %2713 = vmatpush2.msra.mxu0 0.0
    %2714 = vmatprep.subr.mxu0 0.0
    %2715 = vmatpush2.msra.mxu0 0.0
    %2716 = vmatprep.subr.mxu0 0.0
    %2717 = vmatpush2.msra.mxu0 0.0
    %2718 = vmatprep.subr.mxu0 0.0
    %2719 = vmatpush2.msra.mxu0 0.0
    %2720 = vmatprep.subr.mxu0 0.0
    %2721 = vmatpush2.msra.mxu0 0.0
    %2722 = vmatprep.subr.mxu0 0.0
    %2723 = vmatpush2.msra.mxu0 0.0
    %2724 = vmatprep.subr.mxu0 0.0
    %2725 = vmatpush2.msra.mxu0 0.0
    %2726 = vmatprep.subr.mxu0 0.0
    %2727 = vmatpush2.msra.mxu0 0.0
    %2728 = vmatprep.subr.mxu0 0.0
    %2729 = vmatpush2.msra.mxu0 0.0
    %2730 = vmatprep.subr.mxu0 0.0
    %2731 = vmatpush2.msra.mxu0 0.0
    %2732 = vmatprep.subr.mxu0 0.0
    %2733 = vmatpush2.msra.mxu0 0.0
    %2734 = vmatprep.subr.mxu0 0.0
    %2735 = vmatpush2.msra.mxu0 0.0
    %2736 = vmatprep.subr.mxu0 0.0
    %2737 = vmatpush2.msra.mxu0 0.0
    %2738 = vmatprep.subr.mxu0 0.0
    %2739 = vmatpush2.msra.mxu0 0.0
    %2740 = vmatprep.subr.mxu0 0.0
    %2741 = vmatpush2.msra.mxu0 0.0
    %2742 = vmatprep.mubr.f32.mxu0 0.0
    %2743 = vmatmul.mubr.f32.gmra.mxu0 %v2676
    %v2744 = vpop.f32.mrf.mxu0
    %v2745 = vadd.f32 0.0, %v2744
    %v2746 = vpop.f32.mrf.mxu0
    %v2747 = vadd.f32 0.0, %v2746
    %2748 = vdwg.mxu0
    %2749 = vmatprep.subr.mxu0 0.0
    %2750 = vmatpush1.msra.mxu0 0.0
    %2751 = vmatprep.subr.mxu0 0.0
    %2752 = vmatpush1.msra.mxu0 0.0
    %2753 = vmatprep.subr.mxu0 0.0
    %2754 = vmatpush1.msra.mxu0 0.0
    %2755 = vmatprep.subr.mxu0 0.0
    %2756 = vmatpush1.msra.mxu0 0.0
    %2757 = vmatprep.subr.mxu0 0.0
    %2758 = vmatpush1.msra.mxu0 0.0
    %2759 = vmatprep.subr.mxu0 0.0
    %2760 = vmatpush1.msra.mxu0 0.0
    %2761 = vmatprep.subr.mxu0 0.0
    %2762 = vmatpush1.msra.mxu0 0.0
    %2763 = vmatprep.subr.mxu0 0.0
    %2764 = vmatpush1.msra.mxu0 0.0
    %2765 = vmatprep.subr.mxu0 0.0
    %2766 = vmatpush1.msra.mxu0 0.0
    %2767 = vmatprep.subr.mxu0 0.0
    %2768 = vmatpush1.msra.mxu0 0.0
    %2769 = vmatprep.subr.mxu0 0.0
    %2770 = vmatpush1.msra.mxu0 0.0
    %2771 = vmatprep.subr.mxu0 0.0
    %2772 = vmatpush1.msra.mxu0 0.0
    %2773 = vmatprep.subr.mxu0 0.0
    %2774 = vmatpush1.msra.mxu0 %v2505
    %2775 = vmatprep.subr.mxu0 0.0
    %2776 = vmatpush1.msra.mxu0 %v2504
    %2777 = vmatprep.subr.mxu0 0.0
    %2778 = vmatpush1.msra.mxu0 %v2503
    %2779 = vmatprep.subr.mxu0 0.0
    %2780 = vmatpush1.msra.mxu0 %v2502
    %2781 = vmatprep.subr.mxu0 0.0
    %2782 = vmatpush2.msra.mxu0 0.0
    %2783 = vmatprep.subr.mxu0 0.0
    %2784 = vmatpush2.msra.mxu0 0.0
    %2785 = vmatprep.subr.mxu0 0.0
    %2786 = vmatpush2.msra.mxu0 0.0
    %2787 = vmatprep.subr.mxu0 0.0
    %2788 = vmatpush2.msra.mxu0 0.0
    %2789 = vmatprep.subr.mxu0 0.0
    %2790 = vmatpush2.msra.mxu0 0.0
    %2791 = vmatprep.subr.mxu0 0.0
    %2792 = vmatpush2.msra.mxu0 0.0
    %2793 = vmatprep.subr.mxu0 0.0
    %2794 = vmatpush2.msra.mxu0 0.0
    %2795 = vmatprep.subr.mxu0 0.0
    %2796 = vmatpush2.msra.mxu0 0.0
    %2797 = vmatprep.subr.mxu0 0.0
    %2798 = vmatpush2.msra.mxu0 0.0
    %2799 = vmatprep.subr.mxu0 0.0
    %2800 = vmatpush2.msra.mxu0 0.0
    %2801 = vmatprep.subr.mxu0 0.0
    %2802 = vmatpush2.msra.mxu0 0.0
    %2803 = vmatprep.subr.mxu0 0.0
    %2804 = vmatpush2.msra.mxu0 0.0
    %2805 = vmatprep.subr.mxu0 0.0
    %2806 = vmatpush2.msra.mxu0 0.0
    %2807 = vmatprep.subr.mxu0 0.0
    %2808 = vmatpush2.msra.mxu0 0.0
    %2809 = vmatprep.subr.mxu0 0.0
    %2810 = vmatpush2.msra.mxu0 0.0
    %2811 = vmatprep.subr.mxu0 0.0
    %2812 = vmatpush2.msra.mxu0 0.0
    %2813 = vmatprep.mubr.f32.mxu0 0.0
    %2814 = vmatmul.mubr.f32.gmra.mxu0 %v2676
    %v2815 = vpop.f32.mrf.mxu0
    %v2816 = vadd.f32 0.0, %v2815
    %v2817 = vpop.f32.mrf.mxu0
    %2818 = vdwg.mxu0
    %v2820 = vrot.slane %v2745, 6
    %v2822 = vadd.f32 %v2320, %v2820
    %v2823 = vxor.u32 %v2822, 2147483648
    %v2824 = vmul.f32 %v2823, 1.442695
    %v2825 = vpow.pop %v2824
    %v2826 = vadd.f32 %v2825, 1.0
    %v2827 = vrcp.pop %v2826
    %v2828 = vmul.f32 1.0, %v2827
    %v2830 = vrot.slane %v2747, 6
    %v2832 = vadd.f32 %v2406, %v2830
    %v2833 = vxor.u32 %v2832, 2147483648
    %v2834 = vmul.f32 %v2833, 1.442695
    %v2835 = vpow.pop %v2834
    %v2836 = vadd.f32 %v2835, 1.0
    %v2837 = vrcp.pop %v2836
    %v2838 = vmul.f32 1.0, %v2837
    %v2839 = vadd.f32 %v2816, %v2665
    %v2841 = vrot.slane %v2839, 6
    %v2843 = vmul.f32 %v2828, %v2841
    %v2844 = vadd.f32 %v2492, %v2843
    %v2845 = vtanh.pop %v2844
    %v2846 = vsub.f32 1.0, %v2838
    %v2847 = vmul.f32 %v2846, %v2845
    %v2848 = vrot.slane %v2673, 6
    %v2850 = vmul.f32 %v2838, %v2848
    %v2851 = vadd.f32 %v2847, %v2850
    %2852 = vst [vmem:[#allocation2] sm:$0xc] %v2851
    %v2854 = vrot.slane %v2851, 2
    %v2855 = vsel %vm702, %v2854, 0
    %2857 = vmatprep.subr.mxu0 0.0
    %2858 = vmatpush1.msra.mxu0 0.0
    %2859 = vmatprep.subr.mxu0 0.0
    %2860 = vmatpush1.msra.mxu0 0.0
    %2861 = vmatprep.subr.mxu0 0.0
    %2862 = vmatpush1.msra.mxu0 0.0
    %2863 = vmatprep.subr.mxu0 0.0
    %2864 = vmatpush1.msra.mxu0 0.0
    %2865 = vmatprep.subr.mxu0 0.0
    %2866 = vmatpush1.msra.mxu0 0.0
    %2867 = vmatprep.subr.mxu0 0.0
    %2868 = vmatpush1.msra.mxu0 0.0
    %2869 = vmatprep.subr.mxu0 0.0
    %2870 = vmatpush1.msra.mxu0 0.0
    %2871 = vmatprep.subr.mxu0 0.0
    %2872 = vmatpush1.msra.mxu0 0.0
    %2873 = vmatprep.subr.mxu0 0.0
    %2874 = vmatpush1.msra.mxu0 0.0
    %2875 = vmatprep.subr.mxu0 0.0
    %2876 = vmatpush1.msra.mxu0 0.0
    %2877 = vmatprep.subr.mxu0 0.0
    %2878 = vmatpush1.msra.mxu0 0.0
    %2879 = vmatprep.subr.mxu0 0.0
    %2880 = vmatpush1.msra.mxu0 0.0
    %2881 = vmatprep.subr.mxu0 %v2501
    %2882 = vmatpush1.msra.mxu0 %v2497
    %2883 = vmatprep.subr.mxu0 %v2500
    %2884 = vmatpush1.msra.mxu0 %v2496
    %2885 = vmatprep.subr.mxu0 %v2499
    %2886 = vmatpush1.msra.mxu0 %v2495
    %2887 = vmatprep.subr.mxu0 %v2498
    %2888 = vmatpush1.msra.mxu0 %v2494
    %2889 = vmatprep.subr.mxu0 0.0
    %2890 = vmatpush2.msra.mxu0 0.0
    %2891 = vmatprep.subr.mxu0 0.0
    %2892 = vmatpush2.msra.mxu0 0.0
    %2893 = vmatprep.subr.mxu0 0.0
    %2894 = vmatpush2.msra.mxu0 0.0
    %2895 = vmatprep.subr.mxu0 0.0
    %2896 = vmatpush2.msra.mxu0 0.0
    %2897 = vmatprep.subr.mxu0 0.0
    %2898 = vmatpush2.msra.mxu0 0.0
    %2899 = vmatprep.subr.mxu0 0.0
    %2900 = vmatpush2.msra.mxu0 0.0
    %2901 = vmatprep.subr.mxu0 0.0
    %2902 = vmatpush2.msra.mxu0 0.0
    %2903 = vmatprep.subr.mxu0 0.0
    %2904 = vmatpush2.msra.mxu0 0.0
    %2905 = vmatprep.subr.mxu0 0.0
    %2906 = vmatpush2.msra.mxu0 0.0
    %2907 = vmatprep.subr.mxu0 0.0
    %2908 = vmatpush2.msra.mxu0 0.0
    %2909 = vmatprep.subr.mxu0 0.0
    %2910 = vmatpush2.msra.mxu0 0.0
    %2911 = vmatprep.subr.mxu0 0.0
    %2912 = vmatpush2.msra.mxu0 0.0
    %2913 = vmatprep.subr.mxu0 0.0
    %2914 = vmatpush2.msra.mxu0 0.0
    %2915 = vmatprep.subr.mxu0 0.0
    %2916 = vmatpush2.msra.mxu0 0.0
    %2917 = vmatprep.subr.mxu0 0.0
    %2918 = vmatpush2.msra.mxu0 0.0
    %2919 = vmatprep.subr.mxu0 0.0
    %2920 = vmatpush2.msra.mxu0 0.0
    %2921 = vmatprep.mubr.f32.mxu0 0.0
    %2922 = vmatmul.mubr.f32.gmra.mxu0 %v2855
    %v2923 = vpop.f32.mrf.mxu0
    %v2924 = vadd.f32 0.0, %v2923
    %v2925 = vpop.f32.mrf.mxu0
    %v2926 = vadd.f32 0.0, %v2925
    %2927 = vdwg.mxu0
    %2928 = vmatprep.subr.mxu0 0.0
    %2929 = vmatpush1.msra.mxu0 0.0
    %2930 = vmatprep.subr.mxu0 0.0
    %2931 = vmatpush1.msra.mxu0 0.0
    %2932 = vmatprep.subr.mxu0 0.0
    %2933 = vmatpush1.msra.mxu0 0.0
    %2934 = vmatprep.subr.mxu0 0.0
    %2935 = vmatpush1.msra.mxu0 0.0
    %2936 = vmatprep.subr.mxu0 0.0
    %2937 = vmatpush1.msra.mxu0 0.0
    %2938 = vmatprep.subr.mxu0 0.0
    %2939 = vmatpush1.msra.mxu0 0.0
    %2940 = vmatprep.subr.mxu0 0.0
    %2941 = vmatpush1.msra.mxu0 0.0
    %2942 = vmatprep.subr.mxu0 0.0
    %2943 = vmatpush1.msra.mxu0 0.0
    %2944 = vmatprep.subr.mxu0 0.0
    %2945 = vmatpush1.msra.mxu0 0.0
    %2946 = vmatprep.subr.mxu0 0.0
    %2947 = vmatpush1.msra.mxu0 0.0
    %2948 = vmatprep.subr.mxu0 0.0
    %2949 = vmatpush1.msra.mxu0 0.0
    %2950 = vmatprep.subr.mxu0 0.0
    %2951 = vmatpush1.msra.mxu0 0.0
    %2952 = vmatprep.subr.mxu0 0.0
    %2953 = vmatpush1.msra.mxu0 %v2505
    %2954 = vmatprep.subr.mxu0 0.0
    %2955 = vmatpush1.msra.mxu0 %v2504
    %2956 = vmatprep.subr.mxu0 0.0
    %2957 = vmatpush1.msra.mxu0 %v2503
    %2958 = vmatprep.subr.mxu0 0.0
    %2959 = vmatpush1.msra.mxu0 %v2502
    %2960 = vmatprep.subr.mxu0 0.0
    %2961 = vmatpush2.msra.mxu0 0.0
    %2962 = vmatprep.subr.mxu0 0.0
    %2963 = vmatpush2.msra.mxu0 0.0
    %2964 = vmatprep.subr.mxu0 0.0
    %2965 = vmatpush2.msra.mxu0 0.0
    %2966 = vmatprep.subr.mxu0 0.0
    %2967 = vmatpush2.msra.mxu0 0.0
    %2968 = vmatprep.subr.mxu0 0.0
    %2969 = vmatpush2.msra.mxu0 0.0
    %2970 = vmatprep.subr.mxu0 0.0
    %2971 = vmatpush2.msra.mxu0 0.0
    %2972 = vmatprep.subr.mxu0 0.0
    %2973 = vmatpush2.msra.mxu0 0.0
    %2974 = vmatprep.subr.mxu0 0.0
    %2975 = vmatpush2.msra.mxu0 0.0
    %2976 = vmatprep.subr.mxu0 0.0
    %2977 = vmatpush2.msra.mxu0 0.0
    %2978 = vmatprep.subr.mxu0 0.0
    %2979 = vmatpush2.msra.mxu0 0.0
    %2980 = vmatprep.subr.mxu0 0.0
    %2981 = vmatpush2.msra.mxu0 0.0
    %2982 = vmatprep.subr.mxu0 0.0
    %2983 = vmatpush2.msra.mxu0 0.0
    %2984 = vmatprep.subr.mxu0 0.0
    %2985 = vmatpush2.msra.mxu0 0.0
    %2986 = vmatprep.subr.mxu0 0.0
    %2987 = vmatpush2.msra.mxu0 0.0
    %2988 = vmatprep.subr.mxu0 0.0
    %2989 = vmatpush2.msra.mxu0 0.0
    %2990 = vmatprep.subr.mxu0 0.0
    %2991 = vmatpush2.msra.mxu0 0.0
    %2992 = vmatprep.mubr.f32.mxu0 0.0
    %2993 = vmatmul.mubr.f32.gmra.mxu0 %v2855
    %v2994 = vpop.f32.mrf.mxu0
    %v2995 = vadd.f32 0.0, %v2994
    %v2996 = vpop.f32.mrf.mxu0
    %2997 = vdwg.mxu0
    %v2999 = vrot.slane %v2924, 4
    %v3001 = vadd.f32 %v2320, %v2999
    %v3002 = vxor.u32 %v3001, 2147483648
    %v3003 = vmul.f32 %v3002, 1.442695
    %v3004 = vpow.pop %v3003
    %v3005 = vadd.f32 %v3004, 1.0
    %v3006 = vrcp.pop %v3005
    %v3007 = vmul.f32 1.0, %v3006
    %v3009 = vrot.slane %v2926, 4
    %v3011 = vadd.f32 %v2406, %v3009
    %v3012 = vxor.u32 %v3011, 2147483648
    %v3013 = vmul.f32 %v3012, 1.442695
    %v3014 = vpow.pop %v3013
    %v3015 = vadd.f32 %v3014, 1.0
    %v3016 = vrcp.pop %v3015
    %v3017 = vmul.f32 1.0, %v3016
    %v3018 = vadd.f32 %v2995, %v2665
    %v3020 = vrot.slane %v3018, 4
    %v3022 = vmul.f32 %v3007, %v3020
    %v3023 = vadd.f32 %v2492, %v3022
    %v3024 = vtanh.pop %v3023
    %v3025 = vsub.f32 1.0, %v3017
    %v3026 = vmul.f32 %v3025, %v3024
    %v3027 = vrot.slane %v2851, 6
    %v3029 = vmul.f32 %v3017, %v3027
    %v3030 = vadd.f32 %v3026, %v3029
    %3031 = vst [vmem:[#allocation2] sm:$0x30] %v3030
    %v3033 = vrot.slane %v3030, 4
    %v3034 = vsel %vm702, %v3033, 0
    %3036 = vmatprep.subr.mxu0 0.0
    %3037 = vmatpush1.msra.mxu0 0.0
    %3038 = vmatprep.subr.mxu0 0.0
    %3039 = vmatpush1.msra.mxu0 0.0
    %3040 = vmatprep.subr.mxu0 0.0
    %3041 = vmatpush1.msra.mxu0 0.0
    %3042 = vmatprep.subr.mxu0 0.0
    %3043 = vmatpush1.msra.mxu0 0.0
    %3044 = vmatprep.subr.mxu0 0.0
    %3045 = vmatpush1.msra.mxu0 0.0
    %3046 = vmatprep.subr.mxu0 0.0
    %3047 = vmatpush1.msra.mxu0 0.0
    %3048 = vmatprep.subr.mxu0 0.0
    %3049 = vmatpush1.msra.mxu0 0.0
    %3050 = vmatprep.subr.mxu0 0.0
    %3051 = vmatpush1.msra.mxu0 0.0
    %3052 = vmatprep.subr.mxu0 0.0
    %3053 = vmatpush1.msra.mxu0 0.0
    %3054 = vmatprep.subr.mxu0 0.0
    %3055 = vmatpush1.msra.mxu0 0.0
    %3056 = vmatprep.subr.mxu0 0.0
    %3057 = vmatpush1.msra.mxu0 0.0
    %3058 = vmatprep.subr.mxu0 0.0
    %3059 = vmatpush1.msra.mxu0 0.0
    %3060 = vmatprep.subr.mxu0 %v2501
    %3061 = vmatpush1.msra.mxu0 %v2497
    %3062 = vmatprep.subr.mxu0 %v2500
    %3063 = vmatpush1.msra.mxu0 %v2496
    %3064 = vmatprep.subr.mxu0 %v2499
    %3065 = vmatpush1.msra.mxu0 %v2495
    %3066 = vmatprep.subr.mxu0 %v2498
    %3067 = vmatpush1.msra.mxu0 %v2494
    %3068 = vmatprep.subr.mxu0 0.0
    %3069 = vmatpush2.msra.mxu0 0.0
    %3070 = vmatprep.subr.mxu0 0.0
    %3071 = vmatpush2.msra.mxu0 0.0
    %3072 = vmatprep.subr.mxu0 0.0
    %3073 = vmatpush2.msra.mxu0 0.0
    %3074 = vmatprep.subr.mxu0 0.0
    %3075 = vmatpush2.msra.mxu0 0.0
    %3076 = vmatprep.subr.mxu0 0.0
    %3077 = vmatpush2.msra.mxu0 0.0
    %3078 = vmatprep.subr.mxu0 0.0
    %3079 = vmatpush2.msra.mxu0 0.0
    %3080 = vmatprep.subr.mxu0 0.0
    %3081 = vmatpush2.msra.mxu0 0.0
    %3082 = vmatprep.subr.mxu0 0.0
    %3083 = vmatpush2.msra.mxu0 0.0
    %3084 = vmatprep.subr.mxu0 0.0
    %3085 = vmatpush2.msra.mxu0 0.0
    %3086 = vmatprep.subr.mxu0 0.0
    %3087 = vmatpush2.msra.mxu0 0.0
    %3088 = vmatprep.subr.mxu0 0.0
    %3089 = vmatpush2.msra.mxu0 0.0
    %3090 = vmatprep.subr.mxu0 0.0
    %3091 = vmatpush2.msra.mxu0 0.0
    %3092 = vmatprep.subr.mxu0 0.0
    %3093 = vmatpush2.msra.mxu0 0.0
    %3094 = vmatprep.subr.mxu0 0.0
    %3095 = vmatpush2.msra.mxu0 0.0
    %3096 = vmatprep.subr.mxu0 0.0
    %3097 = vmatpush2.msra.mxu0 0.0
    %3098 = vmatprep.subr.mxu0 0.0
    %3099 = vmatpush2.msra.mxu0 0.0
    %3100 = vmatprep.mubr.f32.mxu0 0.0
    %3101 = vmatmul.mubr.f32.gmra.mxu0 %v3034
    %v3102 = vpop.f32.mrf.mxu0
    %v3103 = vadd.f32 0.0, %v3102
    %v3104 = vpop.f32.mrf.mxu0
    %v3105 = vadd.f32 0.0, %v3104
    %3106 = vdwg.mxu0
    %3107 = vmatprep.subr.mxu0 0.0
    %3108 = vmatpush1.msra.mxu0 0.0
    %3109 = vmatprep.subr.mxu0 0.0
    %3110 = vmatpush1.msra.mxu0 0.0
    %3111 = vmatprep.subr.mxu0 0.0
    %3112 = vmatpush1.msra.mxu0 0.0
    %3113 = vmatprep.subr.mxu0 0.0
    %3114 = vmatpush1.msra.mxu0 0.0
    %3115 = vmatprep.subr.mxu0 0.0
    %3116 = vmatpush1.msra.mxu0 0.0
    %3117 = vmatprep.subr.mxu0 0.0
    %3118 = vmatpush1.msra.mxu0 0.0
    %3119 = vmatprep.subr.mxu0 0.0
    %3120 = vmatpush1.msra.mxu0 0.0
    %3121 = vmatprep.subr.mxu0 0.0
    %3122 = vmatpush1.msra.mxu0 0.0
    %3123 = vmatprep.subr.mxu0 0.0
    %3124 = vmatpush1.msra.mxu0 0.0
    %3125 = vmatprep.subr.mxu0 0.0
    %3126 = vmatpush1.msra.mxu0 0.0
    %3127 = vmatprep.subr.mxu0 0.0
    %3128 = vmatpush1.msra.mxu0 0.0
    %3129 = vmatprep.subr.mxu0 0.0
    %3130 = vmatpush1.msra.mxu0 0.0
    %3131 = vmatprep.subr.mxu0 0.0
    %3132 = vmatpush1.msra.mxu0 %v2505
    %3133 = vmatprep.subr.mxu0 0.0
    %3134 = vmatpush1.msra.mxu0 %v2504
    %3135 = vmatprep.subr.mxu0 0.0
    %3136 = vmatpush1.msra.mxu0 %v2503
    %3137 = vmatprep.subr.mxu0 0.0
    %3138 = vmatpush1.msra.mxu0 %v2502
    %3139 = vmatprep.subr.mxu0 0.0
    %3140 = vmatpush2.msra.mxu0 0.0
    %3141 = vmatprep.subr.mxu0 0.0
    %3142 = vmatpush2.msra.mxu0 0.0
    %3143 = vmatprep.subr.mxu0 0.0
    %3144 = vmatpush2.msra.mxu0 0.0
    %3145 = vmatprep.subr.mxu0 0.0
    %3146 = vmatpush2.msra.mxu0 0.0
    %3147 = vmatprep.subr.mxu0 0.0
    %3148 = vmatpush2.msra.mxu0 0.0
    %3149 = vmatprep.subr.mxu0 0.0
    %3150 = vmatpush2.msra.mxu0 0.0
    %3151 = vmatprep.subr.mxu0 0.0
    %3152 = vmatpush2.msra.mxu0 0.0
    %3153 = vmatprep.subr.mxu0 0.0
    %3154 = vmatpush2.msra.mxu0 0.0
    %3155 = vmatprep.subr.mxu0 0.0
    %3156 = vmatpush2.msra.mxu0 0.0
    %3157 = vmatprep.subr.mxu0 0.0
    %3158 = vmatpush2.msra.mxu0 0.0
    %3159 = vmatprep.subr.mxu0 0.0
    %3160 = vmatpush2.msra.mxu0 0.0
    %3161 = vmatprep.subr.mxu0 0.0
    %3162 = vmatpush2.msra.mxu0 0.0
    %3163 = vmatprep.subr.mxu0 0.0
    %3164 = vmatpush2.msra.mxu0 0.0
    %3165 = vmatprep.subr.mxu0 0.0
    %3166 = vmatpush2.msra.mxu0 0.0
    %3167 = vmatprep.subr.mxu0 0.0
    %3168 = vmatpush2.msra.mxu0 0.0
    %3169 = vmatprep.subr.mxu0 0.0
    %3170 = vmatpush2.msra.mxu0 0.0
    %3171 = vmatprep.mubr.f32.mxu0 0.0
    %3172 = vmatmul.mubr.f32.gmra.mxu0 %v3034
    %v3173 = vpop.f32.mrf.mxu0
    %v3174 = vadd.f32 0.0, %v3173
    %v3175 = vpop.f32.mrf.mxu0
    %3176 = vdwg.mxu0
    %v3178 = vrot.slane %v3103, 2
    %v3180 = vadd.f32 %v2320, %v3178
    %v3181 = vxor.u32 %v3180, 2147483648
    %v3182 = vmul.f32 %v3181, 1.442695
    %v3183 = vpow.pop %v3182
    %v3184 = vadd.f32 %v3183, 1.0
    %v3185 = vrcp.pop %v3184
    %v3186 = vmul.f32 1.0, %v3185
    %v3188 = vrot.slane %v3105, 2
    %v3190 = vadd.f32 %v2406, %v3188
    %v3191 = vxor.u32 %v3190, 2147483648
    %v3192 = vmul.f32 %v3191, 1.442695
    %v3193 = vpow.pop %v3192
    %v3194 = vadd.f32 %v3193, 1.0
    %v3195 = vrcp.pop %v3194
    %v3196 = vmul.f32 1.0, %v3195
    %v3197 = vadd.f32 %v3174, %v2665
    %v3199 = vrot.slane %v3197, 2
    %v3201 = vmul.f32 %v3186, %v3199
    %v3202 = vadd.f32 %v2492, %v3201
    %v3203 = vtanh.pop %v3202
    %v3204 = vsub.f32 1.0, %v3196
    %v3205 = vmul.f32 %v3204, %v3203
    %v3206 = vrot.slane %v3030, 6
    %v3208 = vmul.f32 %v3196, %v3206
    %v3209 = vadd.f32 %v3205, %v3208
    %3210 = vst [vmem:[#allocation2] sm:$0xc0] %v3209
    %v3212 = vrot.slane %v3209, 6
    %v3213 = vsel %vm702, %v3212, 0
    %3215 = vmatprep.subr.mxu0 0.0
    %3216 = vmatpush1.msra.mxu0 0.0
    %3217 = vmatprep.subr.mxu0 0.0
    %3218 = vmatpush1.msra.mxu0 0.0
    %3219 = vmatprep.subr.mxu0 0.0
    %3220 = vmatpush1.msra.mxu0 0.0
    %3221 = vmatprep.subr.mxu0 0.0
    %3222 = vmatpush1.msra.mxu0 0.0
    %3223 = vmatprep.subr.mxu0 0.0
    %3224 = vmatpush1.msra.mxu0 0.0
    %3225 = vmatprep.subr.mxu0 0.0
    %3226 = vmatpush1.msra.mxu0 0.0
    %3227 = vmatprep.subr.mxu0 0.0
    %3228 = vmatpush1.msra.mxu0 0.0
    %3229 = vmatprep.subr.mxu0 0.0
    %3230 = vmatpush1.msra.mxu0 0.0
    %3231 = vmatprep.subr.mxu0 0.0
    %3232 = vmatpush1.msra.mxu0 0.0
    %3233 = vmatprep.subr.mxu0 0.0
    %3234 = vmatpush1.msra.mxu0 0.0
    %3235 = vmatprep.subr.mxu0 0.0
    %3236 = vmatpush1.msra.mxu0 0.0
    %3237 = vmatprep.subr.mxu0 0.0
    %3238 = vmatpush1.msra.mxu0 0.0
    %3239 = vmatprep.subr.mxu0 %v2501
    %3240 = vmatpush1.msra.mxu0 %v2497
    %3241 = vmatprep.subr.mxu0 %v2500
    %3242 = vmatpush1.msra.mxu0 %v2496
    %3243 = vmatprep.subr.mxu0 %v2499
    %3244 = vmatpush1.msra.mxu0 %v2495
    %3245 = vmatprep.subr.mxu0 %v2498
    %3246 = vmatpush1.msra.mxu0 %v2494
    %3247 = vmatprep.subr.mxu0 0.0
    %3248 = vmatpush2.msra.mxu0 0.0
    %3249 = vmatprep.subr.mxu0 0.0
    %3250 = vmatpush2.msra.mxu0 0.0
    %3251 = vmatprep.subr.mxu0 0.0
    %3252 = vmatpush2.msra.mxu0 0.0
    %3253 = vmatprep.subr.mxu0 0.0
    %3254 = vmatpush2.msra.mxu0 0.0
    %3255 = vmatprep.subr.mxu0 0.0
    %3256 = vmatpush2.msra.mxu0 0.0
    %3257 = vmatprep.subr.mxu0 0.0
    %3258 = vmatpush2.msra.mxu0 0.0
    %3259 = vmatprep.subr.mxu0 0.0
    %3260 = vmatpush2.msra.mxu0 0.0
    %3261 = vmatprep.subr.mxu0 0.0
    %3262 = vmatpush2.msra.mxu0 0.0
    %3263 = vmatprep.subr.mxu0 0.0
    %3264 = vmatpush2.msra.mxu0 0.0
    %3265 = vmatprep.subr.mxu0 0.0
    %3266 = vmatpush2.msra.mxu0 0.0
    %3267 = vmatprep.subr.mxu0 0.0
    %3268 = vmatpush2.msra.mxu0 0.0
    %3269 = vmatprep.subr.mxu0 0.0
    %3270 = vmatpush2.msra.mxu0 0.0
    %3271 = vmatprep.subr.mxu0 0.0
    %3272 = vmatpush2.msra.mxu0 0.0
    %3273 = vmatprep.subr.mxu0 0.0
    %3274 = vmatpush2.msra.mxu0 0.0
    %3275 = vmatprep.subr.mxu0 0.0
    %3276 = vmatpush2.msra.mxu0 0.0
    %3277 = vmatprep.subr.mxu0 0.0
    %3278 = vmatpush2.msra.mxu0 0.0
    %3279 = vmatprep.mubr.f32.mxu0 0.0
    %3280 = vmatmul.mubr.f32.gmra.mxu0 %v3213
    %v3281 = vpop.f32.mrf.mxu0
    %v3282 = vadd.f32 0.0, %v3281
    %v3283 = vpop.f32.mrf.mxu0
    %v3284 = vadd.f32 0.0, %v3283
    %3285 = vdwg.mxu0
    %3286 = vmatprep.subr.mxu0 0.0
    %3287 = vmatpush1.msra.mxu0 0.0
    %3288 = vmatprep.subr.mxu0 0.0
    %3289 = vmatpush1.msra.mxu0 0.0
    %3290 = vmatprep.subr.mxu0 0.0
    %3291 = vmatpush1.msra.mxu0 0.0
    %3292 = vmatprep.subr.mxu0 0.0
    %3293 = vmatpush1.msra.mxu0 0.0
    %3294 = vmatprep.subr.mxu0 0.0
    %3295 = vmatpush1.msra.mxu0 0.0
    %3296 = vmatprep.subr.mxu0 0.0
    %3297 = vmatpush1.msra.mxu0 0.0
    %3298 = vmatprep.subr.mxu0 0.0
    %3299 = vmatpush1.msra.mxu0 0.0
    %3300 = vmatprep.subr.mxu0 0.0
    %3301 = vmatpush1.msra.mxu0 0.0
    %3302 = vmatprep.subr.mxu0 0.0
    %3303 = vmatpush1.msra.mxu0 0.0
    %3304 = vmatprep.subr.mxu0 0.0
    %3305 = vmatpush1.msra.mxu0 0.0
    %3306 = vmatprep.subr.mxu0 0.0
    %3307 = vmatpush1.msra.mxu0 0.0
    %3308 = vmatprep.subr.mxu0 0.0
    %3309 = vmatpush1.msra.mxu0 0.0
    %3310 = vmatprep.subr.mxu0 0.0
    %3311 = vmatpush1.msra.mxu0 %v2505
    %3312 = vmatprep.subr.mxu0 0.0
    %3313 = vmatpush1.msra.mxu0 %v2504
    %3314 = vmatprep.subr.mxu0 0.0
    %3315 = vmatpush1.msra.mxu0 %v2503
    %3316 = vmatprep.subr.mxu0 0.0
    %3317 = vmatpush1.msra.mxu0 %v2502
    %3318 = vmatprep.subr.mxu0 0.0
    %3319 = vmatpush2.msra.mxu0 0.0
    %3320 = vmatprep.subr.mxu0 0.0
    %3321 = vmatpush2.msra.mxu0 0.0
    %3322 = vmatprep.subr.mxu0 0.0
    %3323 = vmatpush2.msra.mxu0 0.0
    %3324 = vmatprep.subr.mxu0 0.0
    %3325 = vmatpush2.msra.mxu0 0.0
    %3326 = vmatprep.subr.mxu0 0.0
    %3327 = vmatpush2.msra.mxu0 0.0
    %3328 = vmatprep.subr.mxu0 0.0
    %3329 = vmatpush2.msra.mxu0 0.0
    %3330 = vmatprep.subr.mxu0 0.0
    %3331 = vmatpush2.msra.mxu0 0.0
    %3332 = vmatprep.subr.mxu0 0.0
    %3333 = vmatpush2.msra.mxu0 0.0
    %3334 = vmatprep.subr.mxu0 0.0
    %3335 = vmatpush2.msra.mxu0 0.0
    %3336 = vmatprep.subr.mxu0 0.0
    %3337 = vmatpush2.msra.mxu0 0.0
    %3338 = vmatprep.subr.mxu0 0.0
    %3339 = vmatpush2.msra.mxu0 0.0
    %3340 = vmatprep.subr.mxu0 0.0
    %3341 = vmatpush2.msra.mxu0 0.0
    %3342 = vmatprep.subr.mxu0 0.0
    %3343 = vmatpush2.msra.mxu0 0.0
    %3344 = vmatprep.subr.mxu0 0.0
    %3345 = vmatpush2.msra.mxu0 0.0
    %3346 = vmatprep.subr.mxu0 0.0
    %3347 = vmatpush2.msra.mxu0 0.0
    %3348 = vmatprep.subr.mxu0 0.0
    %3349 = vmatpush2.msra.mxu0 0.0
    %3350 = vmatprep.mubr.f32.mxu0 0.0
    %3351 = vmatmul.mubr.f32.gmra.mxu0 %v3213
    %v3352 = vpop.f32.mrf.mxu0
    %v3353 = vadd.f32 0.0, %v3352
    %v3354 = vpop.f32.mrf.mxu0
    %3355 = vdwg.mxu0
    %v3356 = vadd.f32 %v2321, %v3282
    %v3357 = vxor.u32 %v3356, 2147483648
    %v3358 = vmul.f32 %v3357, 1.442695
    %v3359 = vpow.pop %v3358
    %v3360 = vadd.f32 %v3359, 1.0
    %v3361 = vrcp.pop %v3360
    %v3362 = vmul.f32 1.0, %v3361
    %v3363 = vadd.f32 %v2407, %v3284
    %v3364 = vxor.u32 %v3363, 2147483648
    %v3365 = vmul.f32 %v3364, 1.442695
    %v3366 = vpow.pop %v3365
    %v3367 = vadd.f32 %v3366, 1.0
    %v3368 = vrcp.pop %v3367
    %v3369 = vmul.f32 1.0, %v3368
    %v3370 = vadd.f32 %v3353, %v2665
    %v3371 = vmul.f32 %v3362, %v3370
    %v3372 = vadd.f32 %v2493, %v3371
    %v3373 = vtanh.pop %v3372
    %v3374 = vsub.f32 1.0, %v3369
    %v3375 = vmul.f32 %v3374, %v3373
    %v3377 = vmul.f32 %v3369, %v3212
    %v3378 = vadd.f32 %v3375, %v3377
    %3379 = vst [vmem:[#allocation2 + $0x8] sm:$0x3] %v3378
    %v3381 = vsel %vm702, %v3378, 0
    %3383 = vmatprep.subr.mxu0 0.0
    %3384 = vmatpush1.msra.mxu0 0.0
    %3385 = vmatprep.subr.mxu0 0.0
    %3386 = vmatpush1.msra.mxu0 0.0
    %3387 = vmatprep.subr.mxu0 0.0
    %3388 = vmatpush1.msra.mxu0 0.0
    %3389 = vmatprep.subr.mxu0 0.0
    %3390 = vmatpush1.msra.mxu0 0.0
    %3391 = vmatprep.subr.mxu0 0.0
    %3392 = vmatpush1.msra.mxu0 0.0
    %3393 = vmatprep.subr.mxu0 0.0
    %3394 = vmatpush1.msra.mxu0 0.0
    %3395 = vmatprep.subr.mxu0 0.0
    %3396 = vmatpush1.msra.mxu0 0.0
    %3397 = vmatprep.subr.mxu0 0.0
    %3398 = vmatpush1.msra.mxu0 0.0
    %3399 = vmatprep.subr.mxu0 0.0
    %3400 = vmatpush1.msra.mxu0 0.0
    %3401 = vmatprep.subr.mxu0 0.0
    %3402 = vmatpush1.msra.mxu0 0.0
    %3403 = vmatprep.subr.mxu0 0.0
    %3404 = vmatpush1.msra.mxu0 0.0
    %3405 = vmatprep.subr.mxu0 0.0
    %3406 = vmatpush1.msra.mxu0 0.0
    %3407 = vmatprep.subr.mxu0 %v2501
    %3408 = vmatpush1.msra.mxu0 %v2497
    %3409 = vmatprep.subr.mxu0 %v2500
    %3410 = vmatpush1.msra.mxu0 %v2496
    %3411 = vmatprep.subr.mxu0 %v2499
    %3412 = vmatpush1.msra.mxu0 %v2495
    %3413 = vmatprep.subr.mxu0 %v2498
    %3414 = vmatpush1.msra.mxu0 %v2494
    %3415 = vmatprep.subr.mxu0 0.0
    %3416 = vmatpush2.msra.mxu0 0.0
    %3417 = vmatprep.subr.mxu0 0.0
    %3418 = vmatpush2.msra.mxu0 0.0
    %3419 = vmatprep.subr.mxu0 0.0
    %3420 = vmatpush2.msra.mxu0 0.0
    %3421 = vmatprep.subr.mxu0 0.0
    %3422 = vmatpush2.msra.mxu0 0.0
    %3423 = vmatprep.subr.mxu0 0.0
    %3424 = vmatpush2.msra.mxu0 0.0
    %3425 = vmatprep.subr.mxu0 0.0
    %3426 = vmatpush2.msra.mxu0 0.0
    %3427 = vmatprep.subr.mxu0 0.0
    %3428 = vmatpush2.msra.mxu0 0.0
    %3429 = vmatprep.subr.mxu0 0.0
    %3430 = vmatpush2.msra.mxu0 0.0
    %3431 = vmatprep.subr.mxu0 0.0
    %3432 = vmatpush2.msra.mxu0 0.0
    %3433 = vmatprep.subr.mxu0 0.0
    %3434 = vmatpush2.msra.mxu0 0.0
    %3435 = vmatprep.subr.mxu0 0.0
    %3436 = vmatpush2.msra.mxu0 0.0
    %3437 = vmatprep.subr.mxu0 0.0
    %3438 = vmatpush2.msra.mxu0 0.0
    %3439 = vmatprep.subr.mxu0 0.0
    %3440 = vmatpush2.msra.mxu0 0.0
    %3441 = vmatprep.subr.mxu0 0.0
    %3442 = vmatpush2.msra.mxu0 0.0
    %3443 = vmatprep.subr.mxu0 0.0
    %3444 = vmatpush2.msra.mxu0 0.0
    %3445 = vmatprep.subr.mxu0 0.0
    %3446 = vmatpush2.msra.mxu0 0.0
    %3447 = vmatprep.mubr.f32.mxu0 0.0
    %3448 = vmatmul.mubr.f32.gmra.mxu0 %v3381
    %v3449 = vpop.f32.mrf.mxu0
    %v3450 = vadd.f32 0.0, %v3449
    %v3451 = vpop.f32.mrf.mxu0
    %v3452 = vadd.f32 0.0, %v3451
    %3453 = vdwg.mxu0
    %3454 = vmatprep.subr.mxu0 0.0
    %3455 = vmatpush1.msra.mxu0 0.0
    %3456 = vmatprep.subr.mxu0 0.0
    %3457 = vmatpush1.msra.mxu0 0.0
    %3458 = vmatprep.subr.mxu0 0.0
    %3459 = vmatpush1.msra.mxu0 0.0
    %3460 = vmatprep.subr.mxu0 0.0
    %3461 = vmatpush1.msra.mxu0 0.0
    %3462 = vmatprep.subr.mxu0 0.0
    %3463 = vmatpush1.msra.mxu0 0.0
    %3464 = vmatprep.subr.mxu0 0.0
    %3465 = vmatpush1.msra.mxu0 0.0
    %3466 = vmatprep.subr.mxu0 0.0
    %3467 = vmatpush1.msra.mxu0 0.0
    %3468 = vmatprep.subr.mxu0 0.0
    %3469 = vmatpush1.msra.mxu0 0.0
    %3470 = vmatprep.subr.mxu0 0.0
    %3471 = vmatpush1.msra.mxu0 0.0
    %3472 = vmatprep.subr.mxu0 0.0
    %3473 = vmatpush1.msra.mxu0 0.0
    %3474 = vmatprep.subr.mxu0 0.0
    %3475 = vmatpush1.msra.mxu0 0.0
    %3476 = vmatprep.subr.mxu0 0.0
    %3477 = vmatpush1.msra.mxu0 0.0
    %3478 = vmatprep.subr.mxu0 0.0
    %3479 = vmatpush1.msra.mxu0 %v2505
    %3480 = vmatprep.subr.mxu0 0.0
    %3481 = vmatpush1.msra.mxu0 %v2504
    %3482 = vmatprep.subr.mxu0 0.0
    %3483 = vmatpush1.msra.mxu0 %v2503
    %3484 = vmatprep.subr.mxu0 0.0
    %3485 = vmatpush1.msra.mxu0 %v2502
    %3486 = vmatprep.subr.mxu0 0.0
    %3487 = vmatpush2.msra.mxu0 0.0
    %3488 = vmatprep.subr.mxu0 0.0
    %3489 = vmatpush2.msra.mxu0 0.0
    %3490 = vmatprep.subr.mxu0 0.0
    %3491 = vmatpush2.msra.mxu0 0.0
    %3492 = vmatprep.subr.mxu0 0.0
    %3493 = vmatpush2.msra.mxu0 0.0
    %3494 = vmatprep.subr.mxu0 0.0
    %3495 = vmatpush2.msra.mxu0 0.0
    %3496 = vmatprep.subr.mxu0 0.0
    %3497 = vmatpush2.msra.mxu0 0.0
    %3498 = vmatprep.subr.mxu0 0.0
    %3499 = vmatpush2.msra.mxu0 0.0
    %3500 = vmatprep.subr.mxu0 0.0
    %3501 = vmatpush2.msra.mxu0 0.0
    %3502 = vmatprep.subr.mxu0 0.0
    %3503 = vmatpush2.msra.mxu0 0.0
    %3504 = vmatprep.subr.mxu0 0.0
    %3505 = vmatpush2.msra.mxu0 0.0
    %3506 = vmatprep.subr.mxu0 0.0
    %3507 = vmatpush2.msra.mxu0 0.0
    %3508 = vmatprep.subr.mxu0 0.0
    %3509 = vmatpush2.msra.mxu0 0.0
    %3510 = vmatprep.subr.mxu0 0.0
    %3511 = vmatpush2.msra.mxu0 0.0
    %3512 = vmatprep.subr.mxu0 0.0
    %3513 = vmatpush2.msra.mxu0 0.0
    %3514 = vmatprep.subr.mxu0 0.0
    %3515 = vmatpush2.msra.mxu0 0.0
    %3516 = vmatprep.subr.mxu0 0.0
    %3517 = vmatpush2.msra.mxu0 0.0
    %3518 = vmatprep.mubr.f32.mxu0 0.0
    %3519 = vmatmul.mubr.f32.gmra.mxu0 %v3381
    %v3520 = vpop.f32.mrf.mxu0
    %v3521 = vadd.f32 0.0, %v3520
    %v3522 = vpop.f32.mrf.mxu0
    %3523 = vdwg.mxu0
    %v3525 = vrot.slane %v3450, 6
    %v3527 = vadd.f32 %v2321, %v3525
    %v3528 = vxor.u32 %v3527, 2147483648
    %v3529 = vmul.f32 %v3528, 1.442695
    %v3530 = vpow.pop %v3529
    %v3531 = vadd.f32 %v3530, 1.0
    %v3532 = vrcp.pop %v3531
    %v3533 = vmul.f32 1.0, %v3532
    %v3535 = vrot.slane %v3452, 6
    %v3537 = vadd.f32 %v2407, %v3535
    %v3538 = vxor.u32 %v3537, 2147483648
    %v3539 = vmul.f32 %v3538, 1.442695
    %v3540 = vpow.pop %v3539
    %v3541 = vadd.f32 %v3540, 1.0
    %v3542 = vrcp.pop %v3541
    %v3543 = vmul.f32 1.0, %v3542
    %v3544 = vadd.f32 %v3521, %v2665
    %v3546 = vrot.slane %v3544, 6
    %v3548 = vmul.f32 %v3533, %v3546
    %v3549 = vadd.f32 %v2493, %v3548
    %v3550 = vtanh.pop %v3549
    %v3551 = vsub.f32 1.0, %v3543
    %v3552 = vmul.f32 %v3551, %v3550
    %v3553 = vrot.slane %v3378, 6
    %v3555 = vmul.f32 %v3543, %v3553
    %v3556 = vadd.f32 %v3552, %v3555
    %3557 = vst [vmem:[#allocation2 + $0x8] sm:$0xc] %v3556
    %v3559 = vrot.slane %v3556, 2
    %v3560 = vsel %vm702, %v3559, 0
    %3562 = vmatprep.subr.mxu0 0.0
    %3563 = vmatpush1.msra.mxu0 0.0
    %3564 = vmatprep.subr.mxu0 0.0
    %3565 = vmatpush1.msra.mxu0 0.0
    %3566 = vmatprep.subr.mxu0 0.0
    %3567 = vmatpush1.msra.mxu0 0.0
    %3568 = vmatprep.subr.mxu0 0.0
    %3569 = vmatpush1.msra.mxu0 0.0
    %3570 = vmatprep.subr.mxu0 0.0
    %3571 = vmatpush1.msra.mxu0 0.0
    %3572 = vmatprep.subr.mxu0 0.0
    %3573 = vmatpush1.msra.mxu0 0.0
    %3574 = vmatprep.subr.mxu0 0.0
    %3575 = vmatpush1.msra.mxu0 0.0
    %3576 = vmatprep.subr.mxu0 0.0
    %3577 = vmatpush1.msra.mxu0 0.0
    %3578 = vmatprep.subr.mxu0 0.0
    %3579 = vmatpush1.msra.mxu0 0.0
    %3580 = vmatprep.subr.mxu0 0.0
    %3581 = vmatpush1.msra.mxu0 0.0
    %3582 = vmatprep.subr.mxu0 0.0
    %3583 = vmatpush1.msra.mxu0 0.0
    %3584 = vmatprep.subr.mxu0 0.0
    %3585 = vmatpush1.msra.mxu0 0.0
    %3586 = vmatprep.subr.mxu0 %v2501
    %3587 = vmatpush1.msra.mxu0 %v2497
    %3588 = vmatprep.subr.mxu0 %v2500
    %3589 = vmatpush1.msra.mxu0 %v2496
    %3590 = vmatprep.subr.mxu0 %v2499
    %3591 = vmatpush1.msra.mxu0 %v2495
    %3592 = vmatprep.subr.mxu0 %v2498
    %3593 = vmatpush1.msra.mxu0 %v2494
    %3594 = vmatprep.subr.mxu0 0.0
    %3595 = vmatpush2.msra.mxu0 0.0
    %3596 = vmatprep.subr.mxu0 0.0
    %3597 = vmatpush2.msra.mxu0 0.0
    %3598 = vmatprep.subr.mxu0 0.0
    %3599 = vmatpush2.msra.mxu0 0.0
    %3600 = vmatprep.subr.mxu0 0.0
    %3601 = vmatpush2.msra.mxu0 0.0
    %3602 = vmatprep.subr.mxu0 0.0
    %3603 = vmatpush2.msra.mxu0 0.0
    %3604 = vmatprep.subr.mxu0 0.0
    %3605 = vmatpush2.msra.mxu0 0.0
    %3606 = vmatprep.subr.mxu0 0.0
    %3607 = vmatpush2.msra.mxu0 0.0
    %3608 = vmatprep.subr.mxu0 0.0
    %3609 = vmatpush2.msra.mxu0 0.0
    %3610 = vmatprep.subr.mxu0 0.0
    %3611 = vmatpush2.msra.mxu0 0.0
    %3612 = vmatprep.subr.mxu0 0.0
    %3613 = vmatpush2.msra.mxu0 0.0
    %3614 = vmatprep.subr.mxu0 0.0
    %3615 = vmatpush2.msra.mxu0 0.0
    %3616 = vmatprep.subr.mxu0 0.0
    %3617 = vmatpush2.msra.mxu0 0.0
    %3618 = vmatprep.subr.mxu0 0.0
    %3619 = vmatpush2.msra.mxu0 0.0
    %3620 = vmatprep.subr.mxu0 0.0
    %3621 = vmatpush2.msra.mxu0 0.0
    %3622 = vmatprep.subr.mxu0 0.0
    %3623 = vmatpush2.msra.mxu0 0.0
    %3624 = vmatprep.subr.mxu0 0.0
    %3625 = vmatpush2.msra.mxu0 0.0
    %3626 = vmatprep.mubr.f32.mxu0 0.0
    %3627 = vmatmul.mubr.f32.gmra.mxu0 %v3560
    %v3628 = vpop.f32.mrf.mxu0
    %v3629 = vadd.f32 0.0, %v3628
    %v3630 = vpop.f32.mrf.mxu0
    %v3631 = vadd.f32 0.0, %v3630
    %3632 = vdwg.mxu0
    %3633 = vmatprep.subr.mxu0 0.0
    %3634 = vmatpush1.msra.mxu0 0.0
    %3635 = vmatprep.subr.mxu0 0.0
    %3636 = vmatpush1.msra.mxu0 0.0
    %3637 = vmatprep.subr.mxu0 0.0
    %3638 = vmatpush1.msra.mxu0 0.0
    %3639 = vmatprep.subr.mxu0 0.0
    %3640 = vmatpush1.msra.mxu0 0.0
    %3641 = vmatprep.subr.mxu0 0.0
    %3642 = vmatpush1.msra.mxu0 0.0
    %3643 = vmatprep.subr.mxu0 0.0
    %3644 = vmatpush1.msra.mxu0 0.0
    %3645 = vmatprep.subr.mxu0 0.0
    %3646 = vmatpush1.msra.mxu0 0.0
    %3647 = vmatprep.subr.mxu0 0.0
    %3648 = vmatpush1.msra.mxu0 0.0
    %3649 = vmatprep.subr.mxu0 0.0
    %3650 = vmatpush1.msra.mxu0 0.0
    %3651 = vmatprep.subr.mxu0 0.0
    %3652 = vmatpush1.msra.mxu0 0.0
    %3653 = vmatprep.subr.mxu0 0.0
    %3654 = vmatpush1.msra.mxu0 0.0
    %3655 = vmatprep.subr.mxu0 0.0
    %3656 = vmatpush1.msra.mxu0 0.0
    %3657 = vmatprep.subr.mxu0 0.0
    %3658 = vmatpush1.msra.mxu0 %v2505
    %3659 = vmatprep.subr.mxu0 0.0
    %3660 = vmatpush1.msra.mxu0 %v2504
    %3661 = vmatprep.subr.mxu0 0.0
    %3662 = vmatpush1.msra.mxu0 %v2503
    %3663 = vmatprep.subr.mxu0 0.0
    %3664 = vmatpush1.msra.mxu0 %v2502
    %3665 = vmatprep.subr.mxu0 0.0
    %3666 = vmatpush2.msra.mxu0 0.0
    %3667 = vmatprep.subr.mxu0 0.0
    %3668 = vmatpush2.msra.mxu0 0.0
    %3669 = vmatprep.subr.mxu0 0.0
    %3670 = vmatpush2.msra.mxu0 0.0
    %3671 = vmatprep.subr.mxu0 0.0
    %3672 = vmatpush2.msra.mxu0 0.0
    %3673 = vmatprep.subr.mxu0 0.0
    %3674 = vmatpush2.msra.mxu0 0.0
    %3675 = vmatprep.subr.mxu0 0.0
    %3676 = vmatpush2.msra.mxu0 0.0
    %3677 = vmatprep.subr.mxu0 0.0
    %3678 = vmatpush2.msra.mxu0 0.0
    %3679 = vmatprep.subr.mxu0 0.0
    %3680 = vmatpush2.msra.mxu0 0.0
    %3681 = vmatprep.subr.mxu0 0.0
    %3682 = vmatpush2.msra.mxu0 0.0
    %3683 = vmatprep.subr.mxu0 0.0
    %3684 = vmatpush2.msra.mxu0 0.0
    %3685 = vmatprep.subr.mxu0 0.0
    %3686 = vmatpush2.msra.mxu0 0.0
    %3687 = vmatprep.subr.mxu0 0.0
    %3688 = vmatpush2.msra.mxu0 0.0
    %3689 = vmatprep.subr.mxu0 0.0
    %3690 = vmatpush2.msra.mxu0 0.0
    %3691 = vmatprep.subr.mxu0 0.0
    %3692 = vmatpush2.msra.mxu0 0.0
    %3693 = vmatprep.subr.mxu0 0.0
    %3694 = vmatpush2.msra.mxu0 0.0
    %3695 = vmatprep.subr.mxu0 0.0
    %3696 = vmatpush2.msra.mxu0 0.0
    %3697 = vmatprep.mubr.f32.mxu0 0.0
    %3698 = vmatmul.mubr.f32.gmra.mxu0 %v3560
    %v3699 = vpop.f32.mrf.mxu0
    %v3700 = vadd.f32 0.0, %v3699
    %v3701 = vpop.f32.mrf.mxu0
    %3702 = vdwg.mxu0
    %v3704 = vrot.slane %v3629, 4
    %v3706 = vadd.f32 %v2321, %v3704
    %v3707 = vxor.u32 %v3706, 2147483648
    %v3708 = vmul.f32 %v3707, 1.442695
    %v3709 = vpow.pop %v3708
    %v3710 = vadd.f32 %v3709, 1.0
    %v3711 = vrcp.pop %v3710
    %v3712 = vmul.f32 1.0, %v3711
    %v3714 = vrot.slane %v3631, 4
    %v3716 = vadd.f32 %v2407, %v3714
    %v3717 = vxor.u32 %v3716, 2147483648
    %v3718 = vmul.f32 %v3717, 1.442695
    %v3719 = vpow.pop %v3718
    %v3720 = vadd.f32 %v3719, 1.0
    %v3721 = vrcp.pop %v3720
    %v3722 = vmul.f32 1.0, %v3721
    %v3723 = vadd.f32 %v3700, %v2665
    %v3725 = vrot.slane %v3723, 4
    %v3727 = vmul.f32 %v3712, %v3725
    %v3728 = vadd.f32 %v2493, %v3727
    %v3729 = vtanh.pop %v3728
    %v3730 = vsub.f32 1.0, %v3722
    %v3731 = vmul.f32 %v3730, %v3729
    %v3732 = vrot.slane %v3556, 6
    %v3734 = vmul.f32 %v3722, %v3732
    %v3735 = vadd.f32 %v3731, %v3734
    %3736 = vst [vmem:[#allocation2 + $0x8] sm:$0x30] %v3735
    %v3738 = vrot.slane %v3735, 4
    %v3739 = vsel %vm702, %v3738, 0
    %3741 = vmatprep.subr.mxu0 0.0
    %3742 = vmatpush1.msra.mxu0 0.0
    %3743 = vmatprep.subr.mxu0 0.0
    %3744 = vmatpush1.msra.mxu0 0.0
    %3745 = vmatprep.subr.mxu0 0.0
    %3746 = vmatpush1.msra.mxu0 0.0
    %3747 = vmatprep.subr.mxu0 0.0
    %3748 = vmatpush1.msra.mxu0 0.0
    %3749 = vmatprep.subr.mxu0 0.0
    %3750 = vmatpush1.msra.mxu0 0.0
    %3751 = vmatprep.subr.mxu0 0.0
    %3752 = vmatpush1.msra.mxu0 0.0
    %3753 = vmatprep.subr.mxu0 0.0
    %3754 = vmatpush1.msra.mxu0 0.0
    %3755 = vmatprep.subr.mxu0 0.0
    %3756 = vmatpush1.msra.mxu0 0.0
    %3757 = vmatprep.subr.mxu0 0.0
    %3758 = vmatpush1.msra.mxu0 0.0
    %3759 = vmatprep.subr.mxu0 0.0
    %3760 = vmatpush1.msra.mxu0 0.0
    %3761 = vmatprep.subr.mxu0 0.0
    %3762 = vmatpush1.msra.mxu0 0.0
    %3763 = vmatprep.subr.mxu0 0.0
    %3764 = vmatpush1.msra.mxu0 0.0
    %3765 = vmatprep.subr.mxu0 %v2501
    %3766 = vmatpush1.msra.mxu0 %v2497
    %3767 = vmatprep.subr.mxu0 %v2500
    %3768 = vmatpush1.msra.mxu0 %v2496
    %3769 = vmatprep.subr.mxu0 %v2499
    %3770 = vmatpush1.msra.mxu0 %v2495
    %3771 = vmatprep.subr.mxu0 %v2498
    %3772 = vmatpush1.msra.mxu0 %v2494
    %3773 = vmatprep.subr.mxu0 0.0
    %3774 = vmatpush2.msra.mxu0 0.0
    %3775 = vmatprep.subr.mxu0 0.0
    %3776 = vmatpush2.msra.mxu0 0.0
    %3777 = vmatprep.subr.mxu0 0.0
    %3778 = vmatpush2.msra.mxu0 0.0
    %3779 = vmatprep.subr.mxu0 0.0
    %3780 = vmatpush2.msra.mxu0 0.0
    %3781 = vmatprep.subr.mxu0 0.0
    %3782 = vmatpush2.msra.mxu0 0.0
    %3783 = vmatprep.subr.mxu0 0.0
    %3784 = vmatpush2.msra.mxu0 0.0
    %3785 = vmatprep.subr.mxu0 0.0
    %3786 = vmatpush2.msra.mxu0 0.0
    %3787 = vmatprep.subr.mxu0 0.0
    %3788 = vmatpush2.msra.mxu0 0.0
    %3789 = vmatprep.subr.mxu0 0.0
    %3790 = vmatpush2.msra.mxu0 0.0
    %3791 = vmatprep.subr.mxu0 0.0
    %3792 = vmatpush2.msra.mxu0 0.0
    %3793 = vmatprep.subr.mxu0 0.0
    %3794 = vmatpush2.msra.mxu0 0.0
    %3795 = vmatprep.subr.mxu0 0.0
    %3796 = vmatpush2.msra.mxu0 0.0
    %3797 = vmatprep.subr.mxu0 0.0
    %3798 = vmatpush2.msra.mxu0 0.0
    %3799 = vmatprep.subr.mxu0 0.0
    %3800 = vmatpush2.msra.mxu0 0.0
    %3801 = vmatprep.subr.mxu0 0.0
    %3802 = vmatpush2.msra.mxu0 0.0
    %3803 = vmatprep.subr.mxu0 0.0
    %3804 = vmatpush2.msra.mxu0 0.0
    %3805 = vmatprep.mubr.f32.mxu0 0.0
    %3806 = vmatmul.mubr.f32.gmra.mxu0 %v3739
    %v3807 = vpop.f32.mrf.mxu0
    %v3808 = vadd.f32 0.0, %v3807
    %v3809 = vpop.f32.mrf.mxu0
    %v3810 = vadd.f32 0.0, %v3809
    %3811 = vdwg.mxu0
    %3812 = vmatprep.subr.mxu0 0.0
    %3813 = vmatpush1.msra.mxu0 0.0
    %3814 = vmatprep.subr.mxu0 0.0
    %3815 = vmatpush1.msra.mxu0 0.0
    %3816 = vmatprep.subr.mxu0 0.0
    %3817 = vmatpush1.msra.mxu0 0.0
    %3818 = vmatprep.subr.mxu0 0.0
    %3819 = vmatpush1.msra.mxu0 0.0
    %3820 = vmatprep.subr.mxu0 0.0
    %3821 = vmatpush1.msra.mxu0 0.0
    %3822 = vmatprep.subr.mxu0 0.0
    %3823 = vmatpush1.msra.mxu0 0.0
    %3824 = vmatprep.subr.mxu0 0.0
    %3825 = vmatpush1.msra.mxu0 0.0
    %3826 = vmatprep.subr.mxu0 0.0
    %3827 = vmatpush1.msra.mxu0 0.0
    %3828 = vmatprep.subr.mxu0 0.0
    %3829 = vmatpush1.msra.mxu0 0.0
    %3830 = vmatprep.subr.mxu0 0.0
    %3831 = vmatpush1.msra.mxu0 0.0
    %3832 = vmatprep.subr.mxu0 0.0
    %3833 = vmatpush1.msra.mxu0 0.0
    %3834 = vmatprep.subr.mxu0 0.0
    %3835 = vmatpush1.msra.mxu0 0.0
    %3836 = vmatprep.subr.mxu0 0.0
    %3837 = vmatpush1.msra.mxu0 %v2505
    %3838 = vmatprep.subr.mxu0 0.0
    %3839 = vmatpush1.msra.mxu0 %v2504
    %3840 = vmatprep.subr.mxu0 0.0
    %3841 = vmatpush1.msra.mxu0 %v2503
    %3842 = vmatprep.subr.mxu0 0.0
    %3843 = vmatpush1.msra.mxu0 %v2502
    %3844 = vmatprep.subr.mxu0 0.0
    %3845 = vmatpush2.msra.mxu0 0.0
    %3846 = vmatprep.subr.mxu0 0.0
    %3847 = vmatpush2.msra.mxu0 0.0
    %3848 = vmatprep.subr.mxu0 0.0
    %3849 = vmatpush2.msra.mxu0 0.0
    %3850 = vmatprep.subr.mxu0 0.0
    %3851 = vmatpush2.msra.mxu0 0.0
    %3852 = vmatprep.subr.mxu0 0.0
    %3853 = vmatpush2.msra.mxu0 0.0
    %3854 = vmatprep.subr.mxu0 0.0
    %3855 = vmatpush2.msra.mxu0 0.0
    %3856 = vmatprep.subr.mxu0 0.0
    %3857 = vmatpush2.msra.mxu0 0.0
    %3858 = vmatprep.subr.mxu0 0.0
    %3859 = vmatpush2.msra.mxu0 0.0
    %3860 = vmatprep.subr.mxu0 0.0
    %3861 = vmatpush2.msra.mxu0 0.0
    %3862 = vmatprep.subr.mxu0 0.0
    %3863 = vmatpush2.msra.mxu0 0.0
    %3864 = vmatprep.subr.mxu0 0.0
    %3865 = vmatpush2.msra.mxu0 0.0
    %3866 = vmatprep.subr.mxu0 0.0
    %3867 = vmatpush2.msra.mxu0 0.0
    %3868 = vmatprep.subr.mxu0 0.0
    %3869 = vmatpush2.msra.mxu0 0.0
    %3870 = vmatprep.subr.mxu0 0.0
    %3871 = vmatpush2.msra.mxu0 0.0
    %3872 = vmatprep.subr.mxu0 0.0
    %3873 = vmatpush2.msra.mxu0 0.0
    %3874 = vmatprep.subr.mxu0 0.0
    %3875 = vmatpush2.msra.mxu0 0.0
    %3876 = vmatprep.mubr.f32.mxu0 0.0
    %3877 = vmatmul.mubr.f32.gmra.mxu0 %v3739
    %v3878 = vpop.f32.mrf.mxu0
    %v3879 = vadd.f32 0.0, %v3878
    %v3880 = vpop.f32.mrf.mxu0
    %3881 = vdwg.mxu0
    %v3883 = vrot.slane %v3808, 2
    %v3885 = vadd.f32 %v2321, %v3883
    %v3886 = vxor.u32 %v3885, 2147483648
    %v3887 = vmul.f32 %v3886, 1.442695
    %v3888 = vpow.pop %v3887
    %v3889 = vadd.f32 %v3888, 1.0
    %v3890 = vrcp.pop %v3889
    %v3891 = vmul.f32 1.0, %v3890
    %v3893 = vrot.slane %v3810, 2
    %v3895 = vadd.f32 %v2407, %v3893
    %v3896 = vxor.u32 %v3895, 2147483648
    %v3897 = vmul.f32 %v3896, 1.442695
    %v3898 = vpow.pop %v3897
    %v3899 = vadd.f32 %v3898, 1.0
    %v3900 = vrcp.pop %v3899
    %v3901 = vmul.f32 1.0, %v3900
    %v3902 = vadd.f32 %v3879, %v2665
    %v3904 = vrot.slane %v3902, 2
    %v3906 = vmul.f32 %v3891, %v3904
    %v3907 = vadd.f32 %v2493, %v3906
    %v3908 = vtanh.pop %v3907
    %v3909 = vsub.f32 1.0, %v3901
    %v3910 = vmul.f32 %v3909, %v3908
    %v3911 = vrot.slane %v3735, 6
    %v3913 = vmul.f32 %v3901, %v3911
    %v3914 = vadd.f32 %v3910, %v3913
    %3915 = vst [vmem:[#allocation2 + $0x8] sm:$0xc0] %v3914
    %v3916 = vld [vmem:[#allocation2] sm:$0xff]
    %v3917 = vld [vmem:[#allocation2 + $0x8] sm:$0xff]
    %v3918 = vld [vmem:[#allocation3 + $0x490] sm:$0xff]
    %v3919 = vld [vmem:[#allocation3 + $0x498] sm:$0xff]
    %v3920 = vld [vmem:[#allocation3 + $0x4a0] sm:$0x1]
    %v3921 = vlaneseq
    %v3922 = vshrl.u32 %v3921, 7
    %v3923 = vsub.s32 0, %v3922
    %v3924 = vrot.slane %v3920, %v3923
    %v3926 = vsel %vm2124, %v412, 0
    %v3929 = vsel %vm2124, %v414, 0
    %3931 = vmatprep.subr.mxu0 0.0
    %3932 = vmatpush1.msra.mxu0 0.0
    %3933 = vmatprep.subr.mxu0 0.0
    %3934 = vmatpush1.msra.mxu0 0.0
    %3935 = vmatprep.subr.mxu0 0.0
    %3936 = vmatpush1.msra.mxu0 0.0
    %3937 = vmatprep.subr.mxu0 0.0
    %3938 = vmatpush1.msra.mxu0 0.0
    %3939 = vmatprep.subr.mxu0 0.0
    %3940 = vmatpush1.msra.mxu0 0.0
    %3941 = vmatprep.subr.mxu0 0.0
    %3942 = vmatpush1.msra.mxu0 0.0
    %3943 = vmatprep.subr.mxu0 0.0
    %3944 = vmatpush1.msra.mxu0 0.0
    %3945 = vmatprep.subr.mxu0 0.0
    %3946 = vmatpush1.msra.mxu0 0.0
    %3947 = vmatprep.subr.mxu0 0.0
    %3948 = vmatpush1.msra.mxu0 0.0
    %3949 = vmatprep.subr.mxu0 0.0
    %3950 = vmatpush1.msra.mxu0 0.0
    %3951 = vmatprep.subr.mxu0 0.0
    %3952 = vmatpush1.msra.mxu0 0.0
    %3953 = vmatprep.subr.mxu0 0.0
    %3954 = vmatpush1.msra.mxu0 0.0
    %3955 = vmatprep.subr.mxu0 0.0
    %3956 = vmatpush1.msra.mxu0 0.0
    %3957 = vmatprep.subr.mxu0 0.0
    %3958 = vmatpush1.msra.mxu0 0.0
    %3959 = vmatprep.subr.mxu0 0.0
    %3960 = vmatpush1.msra.mxu0 %v3919
    %3961 = vmatprep.subr.mxu0 0.0
    %3962 = vmatpush1.msra.mxu0 %v3918
    %3963 = vmatprep.subr.mxu0 0.0
    %3964 = vmatpush2.msra.mxu0 0.0
    %3965 = vmatprep.subr.mxu0 0.0
    %3966 = vmatpush2.msra.mxu0 0.0
    %3967 = vmatprep.subr.mxu0 0.0
    %3968 = vmatpush2.msra.mxu0 0.0
    %3969 = vmatprep.subr.mxu0 0.0
    %3970 = vmatpush2.msra.mxu0 0.0
    %3971 = vmatprep.subr.mxu0 0.0
    %3972 = vmatpush2.msra.mxu0 0.0
    %3973 = vmatprep.subr.mxu0 0.0
    %3974 = vmatpush2.msra.mxu0 0.0
    %3975 = vmatprep.subr.mxu0 0.0
    %3976 = vmatpush2.msra.mxu0 0.0
    %3977 = vmatprep.subr.mxu0 0.0
    %3978 = vmatpush2.msra.mxu0 0.0
    %3979 = vmatprep.subr.mxu0 0.0
    %3980 = vmatpush2.msra.mxu0 0.0
    %3981 = vmatprep.subr.mxu0 0.0
    %3982 = vmatpush2.msra.mxu0 0.0
    %3983 = vmatprep.subr.mxu0 0.0
    %3984 = vmatpush2.msra.mxu0 0.0
    %3985 = vmatprep.subr.mxu0 0.0
    %3986 = vmatpush2.msra.mxu0 0.0
    %3987 = vmatprep.subr.mxu0 0.0
    %3988 = vmatpush2.msra.mxu0 0.0
    %3989 = vmatprep.subr.mxu0 0.0
    %3990 = vmatpush2.msra.mxu0 0.0
    %3991 = vmatprep.subr.mxu0 0.0
    %3992 = vmatpush2.msra.mxu0 0.0
    %3993 = vmatprep.subr.mxu0 0.0
    %3994 = vmatpush2.msra.mxu0 0.0
    %3995 = vmatprep.mubr.f32.mxu0 0.0
    %3996 = vmatmul.mubr.f32.gmra.mxu0 %v3926
    %v3997 = vpop.f32.mrf.mxu0
    %v3998 = vadd.f32 %v3924, %v3997
    %v3999 = vpop.f32.mrf.mxu0
    %4000 = vmatprep.mubr.f32.mxu0 0.0
    %4001 = vmatmul.mubr.f32.gmra.mxu0 %v3929
    %v4002 = vpop.f32.mrf.mxu0
    %v4003 = vadd.f32 %v3924, %v4002
    %v4004 = vpop.f32.mrf.mxu0
    %4005 = vdwg.mxu0
    %v4006 = vxor.u32 %v3998, 2147483648
    %v4007 = vxor.u32 %v4003, 2147483648
    %v4008 = vmul.f32 %v4006, 1.442695
    %v4009 = vpow.pop %v4008
    %v4010 = vmul.f32 %v4007, 1.442695
    %v4011 = vpow.pop %v4010
    %v4012 = vadd.f32 %v4009, 1.0
    %v4013 = vadd.f32 %v4011, 1.0
    %v4014 = vrcp.pop %v4012
    %v4015 = vmul.f32 1.0, %v4014
    %v4016 = vrcp.pop %v4013
    %v4017 = vmul.f32 1.0, %v4016
    %v4018 = vmul.f32 %v4015, %v3916
    %v4019 = vmul.f32 %v4017, %v3917
    %4022 = vrot.lane.b32.xlu0 %v4015, 96
    %v4023 = vpop.permute.xlu0 %4022
    %4024 = vrot.lane.b32.xlu0 %v4017, 96
    %v4025 = vpop.permute.xlu0 %4024
    %v4028 = vadd.f32 %v4018, %v4023
    %v4029 = vadd.f32 %v4019, %v4025
    %v4030 = vld [vmem:[#allocation3 + $0x4d8] sm:$0xff]
    %v4031 = vld [vmem:[#allocation3 + $0x4e0] sm:$0xff]
    %v4032 = vld [vmem:[#allocation3 + $0x4e8] sm:$0xff]
    %v4033 = vld [vmem:[#allocation3 + $0x4f0] sm:$0xff]
    %v4034 = vld [vmem:[#allocation3 + $0x4f8] sm:$0x1]
    %v4035 = vlaneseq
    %v4036 = vshrl.u32 %v4035, 7
    %v4037 = vsub.s32 0, %v4036
    %v4038 = vrot.slane %v4034, %v4037
    %v4040 = vsel %vm702, %v4028, 0
    %v4043 = vsel %vm702, %v4029, 0
    %4045 = vmatprep.subr.mxu0 0.0
    %4046 = vmatpush1.msra.mxu0 0.0
    %4047 = vmatprep.subr.mxu0 0.0
    %4048 = vmatpush1.msra.mxu0 0.0
    %4049 = vmatprep.subr.mxu0 0.0
    %4050 = vmatpush1.msra.mxu0 0.0
    %4051 = vmatprep.subr.mxu0 0.0
    %4052 = vmatpush1.msra.mxu0 0.0
    %4053 = vmatprep.subr.mxu0 0.0
    %4054 = vmatpush1.msra.mxu0 0.0
    %4055 = vmatprep.subr.mxu0 0.0
    %4056 = vmatpush1.msra.mxu0 0.0
    %4057 = vmatprep.subr.mxu0 0.0
    %4058 = vmatpush1.msra.mxu0 0.0
    %4059 = vmatprep.subr.mxu0 0.0
    %4060 = vmatpush1.msra.mxu0 0.0
    %4061 = vmatprep.subr.mxu0 0.0
    %4062 = vmatpush1.msra.mxu0 0.0
    %4063 = vmatprep.subr.mxu0 0.0
    %4064 = vmatpush1.msra.mxu0 0.0
    %4065 = vmatprep.subr.mxu0 0.0
    %4066 = vmatpush1.msra.mxu0 0.0
    %4067 = vmatprep.subr.mxu0 0.0
    %4068 = vmatpush1.msra.mxu0 0.0
    %4069 = vmatprep.subr.mxu0 0.0
    %4070 = vmatpush1.msra.mxu0 %v4033
    %4071 = vmatprep.subr.mxu0 0.0
    %4072 = vmatpush1.msra.mxu0 %v4032
    %4073 = vmatprep.subr.mxu0 0.0
    %4074 = vmatpush1.msra.mxu0 %v4031
    %4075 = vmatprep.subr.mxu0 0.0
    %4076 = vmatpush1.msra.mxu0 %v4030
    %4077 = vmatprep.subr.mxu0 0.0
    %4078 = vmatpush2.msra.mxu0 0.0
    %4079 = vmatprep.subr.mxu0 0.0
    %4080 = vmatpush2.msra.mxu0 0.0
    %4081 = vmatprep.subr.mxu0 0.0
    %4082 = vmatpush2.msra.mxu0 0.0
    %4083 = vmatprep.subr.mxu0 0.0
    %4084 = vmatpush2.msra.mxu0 0.0
    %4085 = vmatprep.subr.mxu0 0.0
    %4086 = vmatpush2.msra.mxu0 0.0
    %4087 = vmatprep.subr.mxu0 0.0
    %4088 = vmatpush2.msra.mxu0 0.0
    %4089 = vmatprep.subr.mxu0 0.0
    %4090 = vmatpush2.msra.mxu0 0.0
    %4091 = vmatprep.subr.mxu0 0.0
    %4092 = vmatpush2.msra.mxu0 0.0
    %4093 = vmatprep.subr.mxu0 0.0
    %4094 = vmatpush2.msra.mxu0 0.0
    %4095 = vmatprep.subr.mxu0 0.0
    %4096 = vmatpush2.msra.mxu0 0.0
    %4097 = vmatprep.subr.mxu0 0.0
    %4098 = vmatpush2.msra.mxu0 0.0
    %4099 = vmatprep.subr.mxu0 0.0
    %4100 = vmatpush2.msra.mxu0 0.0
    %4101 = vmatprep.subr.mxu0 0.0
    %4102 = vmatpush2.msra.mxu0 0.0
    %4103 = vmatprep.subr.mxu0 0.0
    %4104 = vmatpush2.msra.mxu0 0.0
    %4105 = vmatprep.subr.mxu0 0.0
    %4106 = vmatpush2.msra.mxu0 0.0
    %4107 = vmatprep.subr.mxu0 0.0
    %4108 = vmatpush2.msra.mxu0 0.0
    %4109 = vmatprep.mubr.f32.mxu0 0.0
    %4110 = vmatmul.mubr.f32.gmra.mxu0 %v4040
    %v4111 = vpop.f32.mrf.mxu0
    %v4112 = vadd.f32 %v4038, %v4111
    %v4113 = vpop.f32.mrf.mxu0
    %4114 = vmatprep.mubr.f32.mxu0 0.0
    %4115 = vmatmul.mubr.f32.gmra.mxu0 %v4043
    %v4116 = vpop.f32.mrf.mxu0
    %v4117 = vadd.f32 %v4038, %v4116
    %v4118 = vpop.f32.mrf.mxu0
    %4119 = vdwg.mxu0
    %v4120 = vmax.f32 %v4112, 0.0
    %v4121 = vmax.f32 %v4117, 0.0
    %v4122 = vld [vmem:[#allocation3 + $0x500] sm:$0x1]
    %v4123 = vlaneseq
    %v4124 = vshrl.u32 %v4123, 7
    %v4125 = vsub.s32 0, %v4124
    %v4126 = vrot.slane %v4122, %v4125
    %v4127 = vmul.f32 %v4120, %v4126
    %v4128 = vmul.f32 %v4121, %v4126
    %vm4129 = vcmask 64512
    %v4130 = vsel %vm4129, %v4127, 0.0
    %4131 = vadd.xlane.f32.xlu0 %v4130
    %v4132 = vpop.xlane.xlu0 %4131
    %v4133 = vsel %vm4129, %v4128, 0.0
    %4134 = vadd.xlane.f32.xlu0 %v4133
    %v4135 = vpop.xlane.xlu0 %4134
    %v4136 = vld [vmem:[#allocation3 + $0x508] sm:$0x1]
    %v4137 = vlaneseq
    %v4138 = vshrl.u32 %v4137, 7
    %v4139 = vsub.s32 0, %v4138
    %v4140 = vrot.slane %v4136, %v4139
    %v4141 = vadd.f32 %v4132, %v4140
    %v4142 = vadd.f32 %v4135, %v4140
    %v4143 = vxor.u32 %v4141, 2147483648
    %v4144 = vxor.u32 %v4142, 2147483648
    %v4145 = vmul.f32 %v4143, 1.442695
    %v4146 = vpow.pop %v4145
    %v4147 = vmul.f32 %v4144, 1.442695
    %v4148 = vpow.pop %v4147
    %v4149 = vadd.f32 %v4146, 1.0
    %v4150 = vadd.f32 %v4148, 1.0
    %v4151 = vrcp.pop %v4149
    %v4152 = vmul.f32 1.0, %v4151
    %v4153 = vrcp.pop %v4150
    %v4154 = vmul.f32 1.0, %v4153
    %4156 = vset.pattern.permute.xlu0 0
    %4157 = vperm.xlu0 %4156, %v4152
    %v4158 = vpop.permute.xlu0 %4157
    %4161 = vset.pattern.permute.xlu0 0
    %4162 = vperm.xlu0 %4161, %v4154
    %v4163 = vpop.permute.xlu0 %4162
    %v4165 = vmul.f32 %v4028, %v4158
    %v4166 = vmul.f32 %v4029, %v4163
    %v4167 = vld [vmem:[#allocation3 + $0x1d8] sm:$0x1]
    %v4168 = vld [vmem:[#allocation3 + $0x178] sm:$0xff]
    %v4169 = vld [vmem:[#allocation3 + $0x180] sm:$0xff]
    %v4170 = vld [vmem:[#allocation3 + $0x188] sm:$0xff]
    %v4171 = vld [vmem:[#allocation3 + $0x190] sm:$0xff]
    %v4173 = vsel %vm702, %v4165, 0
    %v4176 = vsel %vm702, %v4166, 0
    %4178 = vmatprep.subr.mxu0 0.0
    %4179 = vmatpush1.msra.mxu0 0.0
    %4180 = vmatprep.subr.mxu0 0.0
    %4181 = vmatpush1.msra.mxu0 0.0
    %4182 = vmatprep.subr.mxu0 0.0
    %4183 = vmatpush1.msra.mxu0 0.0
    %4184 = vmatprep.subr.mxu0 0.0
    %4185 = vmatpush1.msra.mxu0 0.0
    %4186 = vmatprep.subr.mxu0 0.0
    %4187 = vmatpush1.msra.mxu0 0.0
    %4188 = vmatprep.subr.mxu0 0.0
    %4189 = vmatpush1.msra.mxu0 0.0
    %4190 = vmatprep.subr.mxu0 0.0
    %4191 = vmatpush1.msra.mxu0 0.0
    %4192 = vmatprep.subr.mxu0 0.0
    %4193 = vmatpush1.msra.mxu0 0.0
    %4194 = vmatprep.subr.mxu0 0.0
    %4195 = vmatpush1.msra.mxu0 0.0
    %4196 = vmatprep.subr.mxu0 0.0
    %4197 = vmatpush1.msra.mxu0 0.0
    %4198 = vmatprep.subr.mxu0 0.0
    %4199 = vmatpush1.msra.mxu0 0.0
    %4200 = vmatprep.subr.mxu0 0.0
    %4201 = vmatpush1.msra.mxu0 0.0
    %4202 = vmatprep.subr.mxu0 0.0
    %4203 = vmatpush1.msra.mxu0 %v4171
    %4204 = vmatprep.subr.mxu0 0.0
    %4205 = vmatpush1.msra.mxu0 %v4170
    %4206 = vmatprep.subr.mxu0 0.0
    %4207 = vmatpush1.msra.mxu0 %v4169
    %4208 = vmatprep.subr.mxu0 0.0
    %4209 = vmatpush1.msra.mxu0 %v4168
    %4210 = vmatprep.subr.mxu0 0.0
    %4211 = vmatpush2.msra.mxu0 0.0
    %4212 = vmatprep.subr.mxu0 0.0
    %4213 = vmatpush2.msra.mxu0 0.0
    %4214 = vmatprep.subr.mxu0 0.0
    %4215 = vmatpush2.msra.mxu0 0.0
    %4216 = vmatprep.subr.mxu0 0.0
    %4217 = vmatpush2.msra.mxu0 0.0
    %4218 = vmatprep.subr.mxu0 0.0
    %4219 = vmatpush2.msra.mxu0 0.0
    %4220 = vmatprep.subr.mxu0 0.0
    %4221 = vmatpush2.msra.mxu0 0.0
    %4222 = vmatprep.subr.mxu0 0.0
    %4223 = vmatpush2.msra.mxu0 0.0
    %4224 = vmatprep.subr.mxu0 0.0
    %4225 = vmatpush2.msra.mxu0 0.0
    %4226 = vmatprep.subr.mxu0 0.0
    %4227 = vmatpush2.msra.mxu0 0.0
    %4228 = vmatprep.subr.mxu0 0.0
    %4229 = vmatpush2.msra.mxu0 0.0
    %4230 = vmatprep.subr.mxu0 0.0
    %4231 = vmatpush2.msra.mxu0 0.0
    %4232 = vmatprep.subr.mxu0 0.0
    %4233 = vmatpush2.msra.mxu0 0.0
    %4234 = vmatprep.subr.mxu0 0.0
    %4235 = vmatpush2.msra.mxu0 0.0
    %4236 = vmatprep.subr.mxu0 0.0
    %4237 = vmatpush2.msra.mxu0 0.0
    %4238 = vmatprep.subr.mxu0 0.0
    %4239 = vmatpush2.msra.mxu0 0.0
    %4240 = vmatprep.subr.mxu0 0.0
    %4241 = vmatpush2.msra.mxu0 0.0
    %4242 = vmatprep.mubr.f32.mxu0 0.0
    %4243 = vmatmul.mubr.f32.gmra.mxu0 %v4173
    %v4244 = vpop.f32.mrf.mxu0
    %v4245 = vadd.f32 0.0, %v4244
    %v4246 = vpop.f32.mrf.mxu0
    %4247 = vmatprep.mubr.f32.mxu0 0.0
    %4248 = vmatmul.mubr.f32.gmra.mxu0 %v4176
    %v4249 = vpop.f32.mrf.mxu0
    %v4250 = vadd.f32 0.0, %v4249
    %v4251 = vpop.f32.mrf.mxu0
    %4252 = vdwg.mxu0
    %v4253 = vlaneseq
    %v4254 = vshrl.u32 %v4253, 7
    %v4255 = vsub.s32 0, %v4254
    %v4256 = vrot.slane %v4167, %v4255
    %v4257 = vadd.f32 %v4256, %v4245
    %v4258 = vadd.f32 %v4256, %v4250
    %v4259 = vld [vmem:[#allocation3 + $0x198] sm:$0xff]
    %v4260 = vld [vmem:[#allocation3 + $0x1a0] sm:$0xff]
    %v4261 = vld [vmem:[#allocation3 + $0x1a8] sm:$0xff]
    %v4262 = vld [vmem:[#allocation3 + $0x1b0] sm:$0xff]
    %4263 = vmatprep.subr.mxu0 0.0
    %4264 = vmatpush1.msra.mxu0 0.0
    %4265 = vmatprep.subr.mxu0 0.0
    %4266 = vmatpush1.msra.mxu0 0.0
    %4267 = vmatprep.subr.mxu0 0.0
    %4268 = vmatpush1.msra.mxu0 0.0
    %4269 = vmatprep.subr.mxu0 0.0
    %4270 = vmatpush1.msra.mxu0 0.0
    %4271 = vmatprep.subr.mxu0 0.0
    %4272 = vmatpush1.msra.mxu0 0.0
    %4273 = vmatprep.subr.mxu0 0.0
    %4274 = vmatpush1.msra.mxu0 0.0
    %4275 = vmatprep.subr.mxu0 0.0
    %4276 = vmatpush1.msra.mxu0 0.0
    %4277 = vmatprep.subr.mxu0 0.0
    %4278 = vmatpush1.msra.mxu0 0.0
    %4279 = vmatprep.subr.mxu0 0.0
    %4280 = vmatpush1.msra.mxu0 0.0
    %4281 = vmatprep.subr.mxu0 0.0
    %4282 = vmatpush1.msra.mxu0 0.0
    %4283 = vmatprep.subr.mxu0 0.0
    %4284 = vmatpush1.msra.mxu0 0.0
    %4285 = vmatprep.subr.mxu0 0.0
    %4286 = vmatpush1.msra.mxu0 0.0
    %4287 = vmatprep.subr.mxu0 0.0
    %4288 = vmatpush1.msra.mxu0 %v4262
    %4289 = vmatprep.subr.mxu0 0.0
    %4290 = vmatpush1.msra.mxu0 %v4261
    %4291 = vmatprep.subr.mxu0 0.0
    %4292 = vmatpush1.msra.mxu0 %v4260
    %4293 = vmatprep.subr.mxu0 0.0
    %4294 = vmatpush1.msra.mxu0 %v4259
    %4295 = vmatprep.subr.mxu0 0.0
    %4296 = vmatpush2.msra.mxu0 0.0
    %4297 = vmatprep.subr.mxu0 0.0
    %4298 = vmatpush2.msra.mxu0 0.0
    %4299 = vmatprep.subr.mxu0 0.0
    %4300 = vmatpush2.msra.mxu0 0.0
    %4301 = vmatprep.subr.mxu0 0.0
    %4302 = vmatpush2.msra.mxu0 0.0
    %4303 = vmatprep.subr.mxu0 0.0
    %4304 = vmatpush2.msra.mxu0 0.0
    %4305 = vmatprep.subr.mxu0 0.0
    %4306 = vmatpush2.msra.mxu0 0.0
    %4307 = vmatprep.subr.mxu0 0.0
    %4308 = vmatpush2.msra.mxu0 0.0
    %4309 = vmatprep.subr.mxu0 0.0
    %4310 = vmatpush2.msra.mxu0 0.0
    %4311 = vmatprep.subr.mxu0 0.0
    %4312 = vmatpush2.msra.mxu0 0.0
    %4313 = vmatprep.subr.mxu0 0.0
    %4314 = vmatpush2.msra.mxu0 0.0
    %4315 = vmatprep.subr.mxu0 0.0
    %4316 = vmatpush2.msra.mxu0 0.0
    %4317 = vmatprep.subr.mxu0 0.0
    %4318 = vmatpush2.msra.mxu0 0.0
    %4319 = vmatprep.subr.mxu0 0.0
    %4320 = vmatpush2.msra.mxu0 0.0
    %4321 = vmatprep.subr.mxu0 0.0
    %4322 = vmatpush2.msra.mxu0 0.0
    %4323 = vmatprep.subr.mxu0 0.0
    %4324 = vmatpush2.msra.mxu0 0.0
    %4325 = vmatprep.subr.mxu0 0.0
    %4326 = vmatpush2.msra.mxu0 0.0
    %4327 = vmatprep.mubr.f32.mxu0 0.0
    %4328 = vmatmul.mubr.f32.gmra.mxu0 %v2236
    %v4329 = vpop.f32.mrf.mxu0
    %v4330 = vadd.f32 0.0, %v4329
    %v4331 = vpop.f32.mrf.mxu0
    %4332 = vmatprep.mubr.f32.mxu0 0.0
    %4333 = vmatmul.mubr.f32.gmra.mxu0 %v2239
    %v4334 = vpop.f32.mrf.mxu0
    %v4335 = vadd.f32 0.0, %v4334
    %v4336 = vpop.f32.mrf.mxu0
    %4337 = vdwg.mxu0
    %v4338 = vadd.f32 %v4257, %v4330
    %v4339 = vadd.f32 %v4258, %v4335
    %v4340 = vld [vmem:[#allocation3 + $0x240] sm:$0x1]
    %v4341 = vld [vmem:[#allocation3 + $0x1e0] sm:$0xff]
    %v4342 = vld [vmem:[#allocation3 + $0x1e8] sm:$0xff]
    %v4343 = vld [vmem:[#allocation3 + $0x1f0] sm:$0xff]
    %v4344 = vld [vmem:[#allocation3 + $0x1f8] sm:$0xff]
    %4345 = vmatprep.subr.mxu0 0.0
    %4346 = vmatpush1.msra.mxu0 0.0
    %4347 = vmatprep.subr.mxu0 0.0
    %4348 = vmatpush1.msra.mxu0 0.0
    %4349 = vmatprep.subr.mxu0 0.0
    %4350 = vmatpush1.msra.mxu0 0.0
    %4351 = vmatprep.subr.mxu0 0.0
    %4352 = vmatpush1.msra.mxu0 0.0
    %4353 = vmatprep.subr.mxu0 0.0
    %4354 = vmatpush1.msra.mxu0 0.0
    %4355 = vmatprep.subr.mxu0 0.0
    %4356 = vmatpush1.msra.mxu0 0.0
    %4357 = vmatprep.subr.mxu0 0.0
    %4358 = vmatpush1.msra.mxu0 0.0
    %4359 = vmatprep.subr.mxu0 0.0
    %4360 = vmatpush1.msra.mxu0 0.0
    %4361 = vmatprep.subr.mxu0 0.0
    %4362 = vmatpush1.msra.mxu0 0.0
    %4363 = vmatprep.subr.mxu0 0.0
    %4364 = vmatpush1.msra.mxu0 0.0
    %4365 = vmatprep.subr.mxu0 0.0
    %4366 = vmatpush1.msra.mxu0 0.0
    %4367 = vmatprep.subr.mxu0 0.0
    %4368 = vmatpush1.msra.mxu0 0.0
    %4369 = vmatprep.subr.mxu0 0.0
    %4370 = vmatpush1.msra.mxu0 %v4344
    %4371 = vmatprep.subr.mxu0 0.0
    %4372 = vmatpush1.msra.mxu0 %v4343
    %4373 = vmatprep.subr.mxu0 0.0
    %4374 = vmatpush1.msra.mxu0 %v4342
    %4375 = vmatprep.subr.mxu0 0.0
    %4376 = vmatpush1.msra.mxu0 %v4341
    %4377 = vmatprep.subr.mxu0 0.0
    %4378 = vmatpush2.msra.mxu0 0.0
    %4379 = vmatprep.subr.mxu0 0.0
    %4380 = vmatpush2.msra.mxu0 0.0
    %4381 = vmatprep.subr.mxu0 0.0
    %4382 = vmatpush2.msra.mxu0 0.0
    %4383 = vmatprep.subr.mxu0 0.0
    %4384 = vmatpush2.msra.mxu0 0.0
    %4385 = vmatprep.subr.mxu0 0.0
    %4386 = vmatpush2.msra.mxu0 0.0
    %4387 = vmatprep.subr.mxu0 0.0
    %4388 = vmatpush2.msra.mxu0 0.0
    %4389 = vmatprep.subr.mxu0 0.0
    %4390 = vmatpush2.msra.mxu0 0.0
    %4391 = vmatprep.subr.mxu0 0.0
    %4392 = vmatpush2.msra.mxu0 0.0
    %4393 = vmatprep.subr.mxu0 0.0
    %4394 = vmatpush2.msra.mxu0 0.0
    %4395 = vmatprep.subr.mxu0 0.0
    %4396 = vmatpush2.msra.mxu0 0.0
    %4397 = vmatprep.subr.mxu0 0.0
    %4398 = vmatpush2.msra.mxu0 0.0
    %4399 = vmatprep.subr.mxu0 0.0
    %4400 = vmatpush2.msra.mxu0 0.0
    %4401 = vmatprep.subr.mxu0 0.0
    %4402 = vmatpush2.msra.mxu0 0.0
    %4403 = vmatprep.subr.mxu0 0.0
    %4404 = vmatpush2.msra.mxu0 0.0
    %4405 = vmatprep.subr.mxu0 0.0
    %4406 = vmatpush2.msra.mxu0 0.0
    %4407 = vmatprep.subr.mxu0 0.0
    %4408 = vmatpush2.msra.mxu0 0.0
    %4409 = vmatprep.mubr.f32.mxu0 0.0
    %4410 = vmatmul.mubr.f32.gmra.mxu0 %v4173
    %v4411 = vpop.f32.mrf.mxu0
    %v4412 = vadd.f32 0.0, %v4411
    %v4413 = vpop.f32.mrf.mxu0
    %4414 = vmatprep.mubr.f32.mxu0 0.0
    %4415 = vmatmul.mubr.f32.gmra.mxu0 %v4176
    %v4416 = vpop.f32.mrf.mxu0
    %v4417 = vadd.f32 0.0, %v4416
    %v4418 = vpop.f32.mrf.mxu0
    %4419 = vdwg.mxu0
    %v4420 = vlaneseq
    %v4421 = vshrl.u32 %v4420, 7
    %v4422 = vsub.s32 0, %v4421
    %v4423 = vrot.slane %v4340, %v4422
    %v4424 = vadd.f32 %v4423, %v4412
    %v4425 = vadd.f32 %v4423, %v4417
    %v4426 = vld [vmem:[#allocation3 + $0x200] sm:$0xff]
    %v4427 = vld [vmem:[#allocation3 + $0x208] sm:$0xff]
    %v4428 = vld [vmem:[#allocation3 + $0x210] sm:$0xff]
    %v4429 = vld [vmem:[#allocation3 + $0x218] sm:$0xff]
    %4430 = vmatprep.subr.mxu0 0.0
    %4431 = vmatpush1.msra.mxu0 0.0
    %4432 = vmatprep.subr.mxu0 0.0
    %4433 = vmatpush1.msra.mxu0 0.0
    %4434 = vmatprep.subr.mxu0 0.0
    %4435 = vmatpush1.msra.mxu0 0.0
    %4436 = vmatprep.subr.mxu0 0.0
    %4437 = vmatpush1.msra.mxu0 0.0
    %4438 = vmatprep.subr.mxu0 0.0
    %4439 = vmatpush1.msra.mxu0 0.0
    %4440 = vmatprep.subr.mxu0 0.0
    %4441 = vmatpush1.msra.mxu0 0.0
    %4442 = vmatprep.subr.mxu0 0.0
    %4443 = vmatpush1.msra.mxu0 0.0
    %4444 = vmatprep.subr.mxu0 0.0
    %4445 = vmatpush1.msra.mxu0 0.0
    %4446 = vmatprep.subr.mxu0 0.0
    %4447 = vmatpush1.msra.mxu0 0.0
    %4448 = vmatprep.subr.mxu0 0.0
    %4449 = vmatpush1.msra.mxu0 0.0
    %4450 = vmatprep.subr.mxu0 0.0
    %4451 = vmatpush1.msra.mxu0 0.0
    %4452 = vmatprep.subr.mxu0 0.0
    %4453 = vmatpush1.msra.mxu0 0.0
    %4454 = vmatprep.subr.mxu0 0.0
    %4455 = vmatpush1.msra.mxu0 %v4429
    %4456 = vmatprep.subr.mxu0 0.0
    %4457 = vmatpush1.msra.mxu0 %v4428
    %4458 = vmatprep.subr.mxu0 0.0
    %4459 = vmatpush1.msra.mxu0 %v4427
    %4460 = vmatprep.subr.mxu0 0.0
    %4461 = vmatpush1.msra.mxu0 %v4426
    %4462 = vmatprep.subr.mxu0 0.0
    %4463 = vmatpush2.msra.mxu0 0.0
    %4464 = vmatprep.subr.mxu0 0.0
    %4465 = vmatpush2.msra.mxu0 0.0
    %4466 = vmatprep.subr.mxu0 0.0
    %4467 = vmatpush2.msra.mxu0 0.0
    %4468 = vmatprep.subr.mxu0 0.0
    %4469 = vmatpush2.msra.mxu0 0.0
    %4470 = vmatprep.subr.mxu0 0.0
    %4471 = vmatpush2.msra.mxu0 0.0
    %4472 = vmatprep.subr.mxu0 0.0
    %4473 = vmatpush2.msra.mxu0 0.0
    %4474 = vmatprep.subr.mxu0 0.0
    %4475 = vmatpush2.msra.mxu0 0.0
    %4476 = vmatprep.subr.mxu0 0.0
    %4477 = vmatpush2.msra.mxu0 0.0
    %4478 = vmatprep.subr.mxu0 0.0
    %4479 = vmatpush2.msra.mxu0 0.0
    %4480 = vmatprep.subr.mxu0 0.0
    %4481 = vmatpush2.msra.mxu0 0.0
    %4482 = vmatprep.subr.mxu0 0.0
    %4483 = vmatpush2.msra.mxu0 0.0
    %4484 = vmatprep.subr.mxu0 0.0
    %4485 = vmatpush2.msra.mxu0 0.0
    %4486 = vmatprep.subr.mxu0 0.0
    %4487 = vmatpush2.msra.mxu0 0.0
    %4488 = vmatprep.subr.mxu0 0.0
    %4489 = vmatpush2.msra.mxu0 0.0
    %4490 = vmatprep.subr.mxu0 0.0
    %4491 = vmatpush2.msra.mxu0 0.0
    %4492 = vmatprep.subr.mxu0 0.0
    %4493 = vmatpush2.msra.mxu0 0.0
    %4494 = vmatprep.mubr.f32.mxu0 0.0
    %4495 = vmatmul.mubr.f32.gmra.mxu0 %v2236
    %v4496 = vpop.f32.mrf.mxu0
    %v4497 = vadd.f32 0.0, %v4496
    %v4498 = vpop.f32.mrf.mxu0
    %4499 = vmatprep.mubr.f32.mxu0 0.0
    %4500 = vmatmul.mubr.f32.gmra.mxu0 %v2239
    %v4501 = vpop.f32.mrf.mxu0
    %v4502 = vadd.f32 0.0, %v4501
    %v4503 = vpop.f32.mrf.mxu0
    %4504 = vdwg.mxu0
    %v4505 = vadd.f32 %v4424, %v4497
    %v4506 = vadd.f32 %v4425, %v4502
    %v4507 = vld [vmem:[#allocation3 + $0x2a8] sm:$0x1]
    %v4508 = vld [vmem:[#allocation3 + $0x248] sm:$0xff]
    %v4509 = vld [vmem:[#allocation3 + $0x250] sm:$0xff]
    %v4510 = vld [vmem:[#allocation3 + $0x258] sm:$0xff]
    %v4511 = vld [vmem:[#allocation3 + $0x260] sm:$0xff]
    %4512 = vmatprep.subr.mxu0 0.0
    %4513 = vmatpush1.msra.mxu0 0.0
    %4514 = vmatprep.subr.mxu0 0.0
    %4515 = vmatpush1.msra.mxu0 0.0
    %4516 = vmatprep.subr.mxu0 0.0
    %4517 = vmatpush1.msra.mxu0 0.0
    %4518 = vmatprep.subr.mxu0 0.0
    %4519 = vmatpush1.msra.mxu0 0.0
    %4520 = vmatprep.subr.mxu0 0.0
    %4521 = vmatpush1.msra.mxu0 0.0
    %4522 = vmatprep.subr.mxu0 0.0
    %4523 = vmatpush1.msra.mxu0 0.0
    %4524 = vmatprep.subr.mxu0 0.0
    %4525 = vmatpush1.msra.mxu0 0.0
    %4526 = vmatprep.subr.mxu0 0.0
    %4527 = vmatpush1.msra.mxu0 0.0
    %4528 = vmatprep.subr.mxu0 0.0
    %4529 = vmatpush1.msra.mxu0 0.0
    %4530 = vmatprep.subr.mxu0 0.0
    %4531 = vmatpush1.msra.mxu0 0.0
    %4532 = vmatprep.subr.mxu0 0.0
    %4533 = vmatpush1.msra.mxu0 0.0
    %4534 = vmatprep.subr.mxu0 0.0
    %4535 = vmatpush1.msra.mxu0 0.0
    %4536 = vmatprep.subr.mxu0 0.0
    %4537 = vmatpush1.msra.mxu0 %v4511
    %4538 = vmatprep.subr.mxu0 0.0
    %4539 = vmatpush1.msra.mxu0 %v4510
    %4540 = vmatprep.subr.mxu0 0.0
    %4541 = vmatpush1.msra.mxu0 %v4509
    %4542 = vmatprep.subr.mxu0 0.0
    %4543 = vmatpush1.msra.mxu0 %v4508
    %4544 = vmatprep.subr.mxu0 0.0
    %4545 = vmatpush2.msra.mxu0 0.0
    %4546 = vmatprep.subr.mxu0 0.0
    %4547 = vmatpush2.msra.mxu0 0.0
    %4548 = vmatprep.subr.mxu0 0.0
    %4549 = vmatpush2.msra.mxu0 0.0
    %4550 = vmatprep.subr.mxu0 0.0
    %4551 = vmatpush2.msra.mxu0 0.0
    %4552 = vmatprep.subr.mxu0 0.0
    %4553 = vmatpush2.msra.mxu0 0.0
    %4554 = vmatprep.subr.mxu0 0.0
    %4555 = vmatpush2.msra.mxu0 0.0
    %4556 = vmatprep.subr.mxu0 0.0
    %4557 = vmatpush2.msra.mxu0 0.0
    %4558 = vmatprep.subr.mxu0 0.0
    %4559 = vmatpush2.msra.mxu0 0.0
    %4560 = vmatprep.subr.mxu0 0.0
    %4561 = vmatpush2.msra.mxu0 0.0
    %4562 = vmatprep.subr.mxu0 0.0
    %4563 = vmatpush2.msra.mxu0 0.0
    %4564 = vmatprep.subr.mxu0 0.0
    %4565 = vmatpush2.msra.mxu0 0.0
    %4566 = vmatprep.subr.mxu0 0.0
    %4567 = vmatpush2.msra.mxu0 0.0
    %4568 = vmatprep.subr.mxu0 0.0
    %4569 = vmatpush2.msra.mxu0 0.0
    %4570 = vmatprep.subr.mxu0 0.0
    %4571 = vmatpush2.msra.mxu0 0.0
    %4572 = vmatprep.subr.mxu0 0.0
    %4573 = vmatpush2.msra.mxu0 0.0
    %4574 = vmatprep.subr.mxu0 0.0
    %4575 = vmatpush2.msra.mxu0 0.0
    %4576 = vmatprep.mubr.f32.mxu0 0.0
    %4577 = vmatmul.mubr.f32.gmra.mxu0 %v4173
    %v4578 = vpop.f32.mrf.mxu0
    %v4579 = vadd.f32 0.0, %v4578
    %v4580 = vpop.f32.mrf.mxu0
    %4581 = vmatprep.mubr.f32.mxu0 0.0
    %4582 = vmatmul.mubr.f32.gmra.mxu0 %v4176
    %v4583 = vpop.f32.mrf.mxu0
    %v4584 = vadd.f32 0.0, %v4583
    %v4585 = vpop.f32.mrf.mxu0
    %4586 = vdwg.mxu0
    %v4587 = vlaneseq
    %v4588 = vshrl.u32 %v4587, 7
    %v4589 = vsub.s32 0, %v4588
    %v4590 = vrot.slane %v4507, %v4589
    %v4591 = vadd.f32 %v4590, %v4579
    %v4592 = vadd.f32 %v4590, %v4584
    %v4593 = vld [vmem:[#allocation3 + $0x268] sm:$0xff]
    %v4594 = vld [vmem:[#allocation3 + $0x270] sm:$0xff]
    %v4595 = vld [vmem:[#allocation3 + $0x278] sm:$0xff]
    %v4596 = vld [vmem:[#allocation3 + $0x280] sm:$0xff]
    %4597 = vmatprep.subr.mxu0 0.0
    %4598 = vmatpush1.msra.mxu0 0.0
    %4599 = vmatprep.subr.mxu0 0.0
    %4600 = vmatpush1.msra.mxu0 0.0
    %4601 = vmatprep.subr.mxu0 0.0
    %4602 = vmatpush1.msra.mxu0 0.0
    %4603 = vmatprep.subr.mxu0 0.0
    %4604 = vmatpush1.msra.mxu0 0.0
    %4605 = vmatprep.subr.mxu0 0.0
    %4606 = vmatpush1.msra.mxu0 0.0
    %4607 = vmatprep.subr.mxu0 0.0
    %4608 = vmatpush1.msra.mxu0 0.0
    %4609 = vmatprep.subr.mxu0 0.0
    %4610 = vmatpush1.msra.mxu0 0.0
    %4611 = vmatprep.subr.mxu0 0.0
    %4612 = vmatpush1.msra.mxu0 0.0
    %4613 = vmatprep.subr.mxu0 0.0
    %4614 = vmatpush1.msra.mxu0 0.0
    %4615 = vmatprep.subr.mxu0 0.0
    %4616 = vmatpush1.msra.mxu0 0.0
    %4617 = vmatprep.subr.mxu0 0.0
    %4618 = vmatpush1.msra.mxu0 0.0
    %4619 = vmatprep.subr.mxu0 0.0
    %4620 = vmatpush1.msra.mxu0 0.0
    %4621 = vmatprep.subr.mxu0 0.0
    %4622 = vmatpush1.msra.mxu0 %v4596
    %4623 = vmatprep.subr.mxu0 0.0
    %4624 = vmatpush1.msra.mxu0 %v4595
    %4625 = vmatprep.subr.mxu0 0.0
    %4626 = vmatpush1.msra.mxu0 %v4594
    %4627 = vmatprep.subr.mxu0 0.0
    %4628 = vmatpush1.msra.mxu0 %v4593
    %4629 = vmatprep.subr.mxu0 0.0
    %4630 = vmatpush2.msra.mxu0 0.0
    %4631 = vmatprep.subr.mxu0 0.0
    %4632 = vmatpush2.msra.mxu0 0.0
    %4633 = vmatprep.subr.mxu0 0.0
    %4634 = vmatpush2.msra.mxu0 0.0
    %4635 = vmatprep.subr.mxu0 0.0
    %4636 = vmatpush2.msra.mxu0 0.0
    %4637 = vmatprep.subr.mxu0 0.0
    %4638 = vmatpush2.msra.mxu0 0.0
    %4639 = vmatprep.subr.mxu0 0.0
    %4640 = vmatpush2.msra.mxu0 0.0
    %4641 = vmatprep.subr.mxu0 0.0
    %4642 = vmatpush2.msra.mxu0 0.0
    %4643 = vmatprep.subr.mxu0 0.0
    %4644 = vmatpush2.msra.mxu0 0.0
    %4645 = vmatprep.subr.mxu0 0.0
    %4646 = vmatpush2.msra.mxu0 0.0
    %4647 = vmatprep.subr.mxu0 0.0
    %4648 = vmatpush2.msra.mxu0 0.0
    %4649 = vmatprep.subr.mxu0 0.0
    %4650 = vmatpush2.msra.mxu0 0.0
    %4651 = vmatprep.subr.mxu0 0.0
    %4652 = vmatpush2.msra.mxu0 0.0
    %4653 = vmatprep.subr.mxu0 0.0
    %4654 = vmatpush2.msra.mxu0 0.0
    %4655 = vmatprep.subr.mxu0 0.0
    %4656 = vmatpush2.msra.mxu0 0.0
    %4657 = vmatprep.subr.mxu0 0.0
    %4658 = vmatpush2.msra.mxu0 0.0
    %4659 = vmatprep.subr.mxu0 0.0
    %4660 = vmatpush2.msra.mxu0 0.0
    %4661 = vmatprep.mubr.f32.mxu0 0.0
    %4662 = vmatmul.mubr.f32.gmra.mxu0 %v2236
    %v4663 = vpop.f32.mrf.mxu0
    %v4664 = vadd.f32 0.0, %v4663
    %v4665 = vpop.f32.mrf.mxu0
    %4666 = vmatprep.mubr.f32.mxu0 0.0
    %4667 = vmatmul.mubr.f32.gmra.mxu0 %v2239
    %v4668 = vpop.f32.mrf.mxu0
    %v4669 = vadd.f32 0.0, %v4668
    %v4670 = vpop.f32.mrf.mxu0
    %4671 = vdwg.mxu0
    %v4672 = vadd.f32 %v4591, %v4664
    %v4673 = vadd.f32 %v4592, %v4669
    %v4674 = vld [vmem:[#allocation3 + $0x1b8] sm:$0xff]
    %v4675 = vld [vmem:[#allocation3 + $0x1c0] sm:$0xff]
    %v4676 = vld [vmem:[#allocation3 + $0x1c8] sm:$0xff]
    %v4677 = vld [vmem:[#allocation3 + $0x1d0] sm:$0xff]
    %v4678 = vld [vmem:[#allocation3 + $0x220] sm:$0xff]
    %v4679 = vld [vmem:[#allocation3 + $0x228] sm:$0xff]
    %v4680 = vld [vmem:[#allocation3 + $0x230] sm:$0xff]
    %v4681 = vld [vmem:[#allocation3 + $0x238] sm:$0xff]
    %v4682 = vld [vmem:[#allocation3 + $0x288] sm:$0xff]
    %v4683 = vld [vmem:[#allocation3 + $0x290] sm:$0xff]
    %v4684 = vld [vmem:[#allocation3 + $0x298] sm:$0xff]
    %v4685 = vld [vmem:[#allocation3 + $0x2a0] sm:$0xff]
    %v4686 = vld [vmem:[#allocation3 + $0x2b0] sm:$0x1]
    %4687 = vmatprep.subr.mxu0 0.0
    %4688 = vmatpush1.msra.mxu0 0.0
    %4689 = vmatprep.subr.mxu0 0.0
    %4690 = vmatpush1.msra.mxu0 0.0
    %4691 = vmatprep.subr.mxu0 0.0
    %4692 = vmatpush1.msra.mxu0 0.0
    %4693 = vmatprep.subr.mxu0 0.0
    %4694 = vmatpush1.msra.mxu0 0.0
    %4695 = vmatprep.subr.mxu0 0.0
    %4696 = vmatpush1.msra.mxu0 0.0
    %4697 = vmatprep.subr.mxu0 0.0
    %4698 = vmatpush1.msra.mxu0 0.0
    %4699 = vmatprep.subr.mxu0 0.0
    %4700 = vmatpush1.msra.mxu0 0.0
    %4701 = vmatprep.subr.mxu0 0.0
    %4702 = vmatpush1.msra.mxu0 0.0
    %4703 = vmatprep.subr.mxu0 0.0
    %4704 = vmatpush1.msra.mxu0 0.0
    %4705 = vmatprep.subr.mxu0 0.0
    %4706 = vmatpush1.msra.mxu0 0.0
    %4707 = vmatprep.subr.mxu0 0.0
    %4708 = vmatpush1.msra.mxu0 0.0
    %4709 = vmatprep.subr.mxu0 0.0
    %4710 = vmatpush1.msra.mxu0 0.0
    %4711 = vmatprep.subr.mxu0 %v4681
    %4712 = vmatpush1.msra.mxu0 %v4677
    %4713 = vmatprep.subr.mxu0 %v4680
    %4714 = vmatpush1.msra.mxu0 %v4676
    %4715 = vmatprep.subr.mxu0 %v4679
    %4716 = vmatpush1.msra.mxu0 %v4675
    %4717 = vmatprep.subr.mxu0 %v4678
    %4718 = vmatpush1.msra.mxu0 %v4674
    %4719 = vmatprep.subr.mxu0 0.0
    %4720 = vmatpush2.msra.mxu0 0.0
    %4721 = vmatprep.subr.mxu0 0.0
    %4722 = vmatpush2.msra.mxu0 0.0
    %4723 = vmatprep.subr.mxu0 0.0
    %4724 = vmatpush2.msra.mxu0 0.0
    %4725 = vmatprep.subr.mxu0 0.0
    %4726 = vmatpush2.msra.mxu0 0.0
    %4727 = vmatprep.subr.mxu0 0.0
    %4728 = vmatpush2.msra.mxu0 0.0
    %4729 = vmatprep.subr.mxu0 0.0
    %4730 = vmatpush2.msra.mxu0 0.0
    %4731 = vmatprep.subr.mxu0 0.0
    %4732 = vmatpush2.msra.mxu0 0.0
    %4733 = vmatprep.subr.mxu0 0.0
    %4734 = vmatpush2.msra.mxu0 0.0
    %4735 = vmatprep.subr.mxu0 0.0
    %4736 = vmatpush2.msra.mxu0 0.0
    %4737 = vmatprep.subr.mxu0 0.0
    %4738 = vmatpush2.msra.mxu0 0.0
    %4739 = vmatprep.subr.mxu0 0.0
    %4740 = vmatpush2.msra.mxu0 0.0
    %4741 = vmatprep.subr.mxu0 0.0
    %4742 = vmatpush2.msra.mxu0 0.0
    %4743 = vmatprep.subr.mxu0 0.0
    %4744 = vmatpush2.msra.mxu0 0.0
    %4745 = vmatprep.subr.mxu0 0.0
    %4746 = vmatpush2.msra.mxu0 0.0
    %4747 = vmatprep.subr.mxu0 0.0
    %4748 = vmatpush2.msra.mxu0 0.0
    %4749 = vmatprep.subr.mxu0 0.0
    %4750 = vmatpush2.msra.mxu0 0.0
    %4751 = vmatprep.mubr.f32.mxu0 0.0
    %4752 = vmatmul.mubr.f32.gmra.mxu0 %v704
    %v4753 = vpop.f32.mrf.mxu0
    %v4754 = vadd.f32 0.0, %v4753
    %v4755 = vpop.f32.mrf.mxu0
    %v4756 = vadd.f32 0.0, %v4755
    %4757 = vdwg.mxu0
    %4758 = vmatprep.subr.mxu0 0.0
    %4759 = vmatpush1.msra.mxu0 0.0
    %4760 = vmatprep.subr.mxu0 0.0
    %4761 = vmatpush1.msra.mxu0 0.0
    %4762 = vmatprep.subr.mxu0 0.0
    %4763 = vmatpush1.msra.mxu0 0.0
    %4764 = vmatprep.subr.mxu0 0.0
    %4765 = vmatpush1.msra.mxu0 0.0
    %4766 = vmatprep.subr.mxu0 0.0
    %4767 = vmatpush1.msra.mxu0 0.0
    %4768 = vmatprep.subr.mxu0 0.0
    %4769 = vmatpush1.msra.mxu0 0.0
    %4770 = vmatprep.subr.mxu0 0.0
    %4771 = vmatpush1.msra.mxu0 0.0
    %4772 = vmatprep.subr.mxu0 0.0
    %4773 = vmatpush1.msra.mxu0 0.0
    %4774 = vmatprep.subr.mxu0 0.0
    %4775 = vmatpush1.msra.mxu0 0.0
    %4776 = vmatprep.subr.mxu0 0.0
    %4777 = vmatpush1.msra.mxu0 0.0
    %4778 = vmatprep.subr.mxu0 0.0
    %4779 = vmatpush1.msra.mxu0 0.0
    %4780 = vmatprep.subr.mxu0 0.0
    %4781 = vmatpush1.msra.mxu0 0.0
    %4782 = vmatprep.subr.mxu0 0.0
    %4783 = vmatpush1.msra.mxu0 %v4685
    %4784 = vmatprep.subr.mxu0 0.0
    %4785 = vmatpush1.msra.mxu0 %v4684
    %4786 = vmatprep.subr.mxu0 0.0
    %4787 = vmatpush1.msra.mxu0 %v4683
    %4788 = vmatprep.subr.mxu0 0.0
    %4789 = vmatpush1.msra.mxu0 %v4682
    %4790 = vmatprep.subr.mxu0 0.0
    %4791 = vmatpush2.msra.mxu0 0.0
    %4792 = vmatprep.subr.mxu0 0.0
    %4793 = vmatpush2.msra.mxu0 0.0
    %4794 = vmatprep.subr.mxu0 0.0
    %4795 = vmatpush2.msra.mxu0 0.0
    %4796 = vmatprep.subr.mxu0 0.0
    %4797 = vmatpush2.msra.mxu0 0.0
    %4798 = vmatprep.subr.mxu0 0.0
    %4799 = vmatpush2.msra.mxu0 0.0
    %4800 = vmatprep.subr.mxu0 0.0
    %4801 = vmatpush2.msra.mxu0 0.0
    %4802 = vmatprep.subr.mxu0 0.0
    %4803 = vmatpush2.msra.mxu0 0.0
    %4804 = vmatprep.subr.mxu0 0.0
    %4805 = vmatpush2.msra.mxu0 0.0
    %4806 = vmatprep.subr.mxu0 0.0
    %4807 = vmatpush2.msra.mxu0 0.0
    %4808 = vmatprep.subr.mxu0 0.0
    %4809 = vmatpush2.msra.mxu0 0.0
    %4810 = vmatprep.subr.mxu0 0.0
    %4811 = vmatpush2.msra.mxu0 0.0
    %4812 = vmatprep.subr.mxu0 0.0
    %4813 = vmatpush2.msra.mxu0 0.0
    %4814 = vmatprep.subr.mxu0 0.0
    %4815 = vmatpush2.msra.mxu0 0.0
    %4816 = vmatprep.subr.mxu0 0.0
    %4817 = vmatpush2.msra.mxu0 0.0
    %4818 = vmatprep.subr.mxu0 0.0
    %4819 = vmatpush2.msra.mxu0 0.0
    %4820 = vmatprep.subr.mxu0 0.0
    %4821 = vmatpush2.msra.mxu0 0.0
    %4822 = vmatprep.mubr.f32.mxu0 0.0
    %4823 = vmatmul.mubr.f32.gmra.mxu0 %v704
    %v4824 = vpop.f32.mrf.mxu0
    %v4825 = vadd.f32 0.0, %v4824
    %v4826 = vpop.f32.mrf.mxu0
    %4827 = vdwg.mxu0
    %v4828 = vadd.f32 %v4338, %v4754
    %v4829 = vxor.u32 %v4828, 2147483648
    %v4830 = vmul.f32 %v4829, 1.442695
    %v4831 = vpow.pop %v4830
    %v4832 = vadd.f32 %v4831, 1.0
    %v4833 = vrcp.pop %v4832
    %v4834 = vmul.f32 1.0, %v4833
    %v4835 = vadd.f32 %v4505, %v4756
    %v4836 = vxor.u32 %v4835, 2147483648
    %v4837 = vmul.f32 %v4836, 1.442695
    %v4838 = vpow.pop %v4837
    %v4839 = vadd.f32 %v4838, 1.0
    %v4840 = vrcp.pop %v4839
    %v4841 = vmul.f32 1.0, %v4840
    %v4842 = vlaneseq
    %v4843 = vshrl.u32 %v4842, 7
    %v4844 = vsub.s32 0, %v4843
    %v4845 = vrot.slane %v4686, %v4844
    %v4846 = vadd.f32 %v4825, %v4845
    %v4847 = vmul.f32 %v4834, %v4846
    %v4848 = vadd.f32 %v4672, %v4847
    %v4849 = vtanh.pop %v4848
    %v4850 = vsub.f32 1.0, %v4841
    %v4851 = vmul.f32 %v4850, %v4849
    %v4852 = vmul.f32 %v4841, 0.0
    %v4853 = vadd.f32 %v4851, %v4852
    %4854 = vst [vmem:[#allocation2] sm:$0x3] %v4853
    %v4856 = vsel %vm702, %v4853, 0
    %4858 = vmatprep.subr.mxu0 0.0
    %4859 = vmatpush1.msra.mxu0 0.0
    %4860 = vmatprep.subr.mxu0 0.0
    %4861 = vmatpush1.msra.mxu0 0.0
    %4862 = vmatprep.subr.mxu0 0.0
    %4863 = vmatpush1.msra.mxu0 0.0
    %4864 = vmatprep.subr.mxu0 0.0
    %4865 = vmatpush1.msra.mxu0 0.0
    %4866 = vmatprep.subr.mxu0 0.0
    %4867 = vmatpush1.msra.mxu0 0.0
    %4868 = vmatprep.subr.mxu0 0.0
    %4869 = vmatpush1.msra.mxu0 0.0
    %4870 = vmatprep.subr.mxu0 0.0
    %4871 = vmatpush1.msra.mxu0 0.0
    %4872 = vmatprep.subr.mxu0 0.0
    %4873 = vmatpush1.msra.mxu0 0.0
    %4874 = vmatprep.subr.mxu0 0.0
    %4875 = vmatpush1.msra.mxu0 0.0
    %4876 = vmatprep.subr.mxu0 0.0
    %4877 = vmatpush1.msra.mxu0 0.0
    %4878 = vmatprep.subr.mxu0 0.0
    %4879 = vmatpush1.msra.mxu0 0.0
    %4880 = vmatprep.subr.mxu0 0.0
    %4881 = vmatpush1.msra.mxu0 0.0
    %4882 = vmatprep.subr.mxu0 %v4681
    %4883 = vmatpush1.msra.mxu0 %v4677
    %4884 = vmatprep.subr.mxu0 %v4680
    %4885 = vmatpush1.msra.mxu0 %v4676
    %4886 = vmatprep.subr.mxu0 %v4679
    %4887 = vmatpush1.msra.mxu0 %v4675
    %4888 = vmatprep.subr.mxu0 %v4678
    %4889 = vmatpush1.msra.mxu0 %v4674
    %4890 = vmatprep.subr.mxu0 0.0
    %4891 = vmatpush2.msra.mxu0 0.0
    %4892 = vmatprep.subr.mxu0 0.0
    %4893 = vmatpush2.msra.mxu0 0.0
    %4894 = vmatprep.subr.mxu0 0.0
    %4895 = vmatpush2.msra.mxu0 0.0
    %4896 = vmatprep.subr.mxu0 0.0
    %4897 = vmatpush2.msra.mxu0 0.0
    %4898 = vmatprep.subr.mxu0 0.0
    %4899 = vmatpush2.msra.mxu0 0.0
    %4900 = vmatprep.subr.mxu0 0.0
    %4901 = vmatpush2.msra.mxu0 0.0
    %4902 = vmatprep.subr.mxu0 0.0
    %4903 = vmatpush2.msra.mxu0 0.0
    %4904 = vmatprep.subr.mxu0 0.0
    %4905 = vmatpush2.msra.mxu0 0.0
    %4906 = vmatprep.subr.mxu0 0.0
    %4907 = vmatpush2.msra.mxu0 0.0
    %4908 = vmatprep.subr.mxu0 0.0
    %4909 = vmatpush2.msra.mxu0 0.0
    %4910 = vmatprep.subr.mxu0 0.0
    %4911 = vmatpush2.msra.mxu0 0.0
    %4912 = vmatprep.subr.mxu0 0.0
    %4913 = vmatpush2.msra.mxu0 0.0
    %4914 = vmatprep.subr.mxu0 0.0
    %4915 = vmatpush2.msra.mxu0 0.0
    %4916 = vmatprep.subr.mxu0 0.0
    %4917 = vmatpush2.msra.mxu0 0.0
    %4918 = vmatprep.subr.mxu0 0.0
    %4919 = vmatpush2.msra.mxu0 0.0
    %4920 = vmatprep.subr.mxu0 0.0
    %4921 = vmatpush2.msra.mxu0 0.0
    %4922 = vmatprep.mubr.f32.mxu0 0.0
    %4923 = vmatmul.mubr.f32.gmra.mxu0 %v4856
    %v4924 = vpop.f32.mrf.mxu0
    %v4925 = vadd.f32 0.0, %v4924
    %v4926 = vpop.f32.mrf.mxu0
    %v4927 = vadd.f32 0.0, %v4926
    %4928 = vdwg.mxu0
    %4929 = vmatprep.subr.mxu0 0.0
    %4930 = vmatpush1.msra.mxu0 0.0
    %4931 = vmatprep.subr.mxu0 0.0
    %4932 = vmatpush1.msra.mxu0 0.0
    %4933 = vmatprep.subr.mxu0 0.0
    %4934 = vmatpush1.msra.mxu0 0.0
    %4935 = vmatprep.subr.mxu0 0.0
    %4936 = vmatpush1.msra.mxu0 0.0
    %4937 = vmatprep.subr.mxu0 0.0
    %4938 = vmatpush1.msra.mxu0 0.0
    %4939 = vmatprep.subr.mxu0 0.0
    %4940 = vmatpush1.msra.mxu0 0.0
    %4941 = vmatprep.subr.mxu0 0.0
    %4942 = vmatpush1.msra.mxu0 0.0
    %4943 = vmatprep.subr.mxu0 0.0
    %4944 = vmatpush1.msra.mxu0 0.0
    %4945 = vmatprep.subr.mxu0 0.0
    %4946 = vmatpush1.msra.mxu0 0.0
    %4947 = vmatprep.subr.mxu0 0.0
    %4948 = vmatpush1.msra.mxu0 0.0
    %4949 = vmatprep.subr.mxu0 0.0
    %4950 = vmatpush1.msra.mxu0 0.0
    %4951 = vmatprep.subr.mxu0 0.0
    %4952 = vmatpush1.msra.mxu0 0.0
    %4953 = vmatprep.subr.mxu0 0.0
    %4954 = vmatpush1.msra.mxu0 %v4685
    %4955 = vmatprep.subr.mxu0 0.0
    %4956 = vmatpush1.msra.mxu0 %v4684
    %4957 = vmatprep.subr.mxu0 0.0
    %4958 = vmatpush1.msra.mxu0 %v4683
    %4959 = vmatprep.subr.mxu0 0.0
    %4960 = vmatpush1.msra.mxu0 %v4682
    %4961 = vmatprep.subr.mxu0 0.0
    %4962 = vmatpush2.msra.mxu0 0.0
    %4963 = vmatprep.subr.mxu0 0.0
    %4964 = vmatpush2.msra.mxu0 0.0
    %4965 = vmatprep.subr.mxu0 0.0
    %4966 = vmatpush2.msra.mxu0 0.0
    %4967 = vmatprep.subr.mxu0 0.0
    %4968 = vmatpush2.msra.mxu0 0.0
    %4969 = vmatprep.subr.mxu0 0.0
    %4970 = vmatpush2.msra.mxu0 0.0
    %4971 = vmatprep.subr.mxu0 0.0
    %4972 = vmatpush2.msra.mxu0 0.0
    %4973 = vmatprep.subr.mxu0 0.0
    %4974 = vmatpush2.msra.mxu0 0.0
    %4975 = vmatprep.subr.mxu0 0.0
    %4976 = vmatpush2.msra.mxu0 0.0
    %4977 = vmatprep.subr.mxu0 0.0
    %4978 = vmatpush2.msra.mxu0 0.0
    %4979 = vmatprep.subr.mxu0 0.0
    %4980 = vmatpush2.msra.mxu0 0.0
    %4981 = vmatprep.subr.mxu0 0.0
    %4982 = vmatpush2.msra.mxu0 0.0
    %4983 = vmatprep.subr.mxu0 0.0
    %4984 = vmatpush2.msra.mxu0 0.0
    %4985 = vmatprep.subr.mxu0 0.0
    %4986 = vmatpush2.msra.mxu0 0.0
    %4987 = vmatprep.subr.mxu0 0.0
    %4988 = vmatpush2.msra.mxu0 0.0
    %4989 = vmatprep.subr.mxu0 0.0
    %4990 = vmatpush2.msra.mxu0 0.0
    %4991 = vmatprep.subr.mxu0 0.0
    %4992 = vmatpush2.msra.mxu0 0.0
    %4993 = vmatprep.mubr.f32.mxu0 0.0
    %4994 = vmatmul.mubr.f32.gmra.mxu0 %v4856
    %v4995 = vpop.f32.mrf.mxu0
    %v4996 = vadd.f32 0.0, %v4995
    %v4997 = vpop.f32.mrf.mxu0
    %4998 = vdwg.mxu0
    %v5000 = vrot.slane %v4925, 6
    %v5002 = vadd.f32 %v4338, %v5000
    %v5003 = vxor.u32 %v5002, 2147483648
    %v5004 = vmul.f32 %v5003, 1.442695
    %v5005 = vpow.pop %v5004
    %v5006 = vadd.f32 %v5005, 1.0
    %v5007 = vrcp.pop %v5006
    %v5008 = vmul.f32 1.0, %v5007
    %v5010 = vrot.slane %v4927, 6
    %v5012 = vadd.f32 %v4505, %v5010
    %v5013 = vxor.u32 %v5012, 2147483648
    %v5014 = vmul.f32 %v5013, 1.442695
    %v5015 = vpow.pop %v5014
    %v5016 = vadd.f32 %v5015, 1.0
    %v5017 = vrcp.pop %v5016
    %v5018 = vmul.f32 1.0, %v5017
    %v5019 = vadd.f32 %v4996, %v4845
    %v5021 = vrot.slane %v5019, 6
    %v5023 = vmul.f32 %v5008, %v5021
    %v5024 = vadd.f32 %v4672, %v5023
    %v5025 = vtanh.pop %v5024
    %v5026 = vsub.f32 1.0, %v5018
    %v5027 = vmul.f32 %v5026, %v5025
    %v5028 = vrot.slane %v4853, 6
    %v5030 = vmul.f32 %v5018, %v5028
    %v5031 = vadd.f32 %v5027, %v5030
    %5032 = vst [vmem:[#allocation2] sm:$0xc] %v5031
    %v5034 = vrot.slane %v5031, 2
    %v5035 = vsel %vm702, %v5034, 0
    %5037 = vmatprep.subr.mxu0 0.0
    %5038 = vmatpush1.msra.mxu0 0.0
    %5039 = vmatprep.subr.mxu0 0.0
    %5040 = vmatpush1.msra.mxu0 0.0
    %5041 = vmatprep.subr.mxu0 0.0
    %5042 = vmatpush1.msra.mxu0 0.0
    %5043 = vmatprep.subr.mxu0 0.0
    %5044 = vmatpush1.msra.mxu0 0.0
    %5045 = vmatprep.subr.mxu0 0.0
    %5046 = vmatpush1.msra.mxu0 0.0
    %5047 = vmatprep.subr.mxu0 0.0
    %5048 = vmatpush1.msra.mxu0 0.0
    %5049 = vmatprep.subr.mxu0 0.0
    %5050 = vmatpush1.msra.mxu0 0.0
    %5051 = vmatprep.subr.mxu0 0.0
    %5052 = vmatpush1.msra.mxu0 0.0
    %5053 = vmatprep.subr.mxu0 0.0
    %5054 = vmatpush1.msra.mxu0 0.0
    %5055 = vmatprep.subr.mxu0 0.0
    %5056 = vmatpush1.msra.mxu0 0.0
    %5057 = vmatprep.subr.mxu0 0.0
    %5058 = vmatpush1.msra.mxu0 0.0
    %5059 = vmatprep.subr.mxu0 0.0
    %5060 = vmatpush1.msra.mxu0 0.0
    %5061 = vmatprep.subr.mxu0 %v4681
    %5062 = vmatpush1.msra.mxu0 %v4677
    %5063 = vmatprep.subr.mxu0 %v4680
    %5064 = vmatpush1.msra.mxu0 %v4676
    %5065 = vmatprep.subr.mxu0 %v4679
    %5066 = vmatpush1.msra.mxu0 %v4675
    %5067 = vmatprep.subr.mxu0 %v4678
    %5068 = vmatpush1.msra.mxu0 %v4674
    %5069 = vmatprep.subr.mxu0 0.0
    %5070 = vmatpush2.msra.mxu0 0.0
    %5071 = vmatprep.subr.mxu0 0.0
    %5072 = vmatpush2.msra.mxu0 0.0
    %5073 = vmatprep.subr.mxu0 0.0
    %5074 = vmatpush2.msra.mxu0 0.0
    %5075 = vmatprep.subr.mxu0 0.0
    %5076 = vmatpush2.msra.mxu0 0.0
    %5077 = vmatprep.subr.mxu0 0.0
    %5078 = vmatpush2.msra.mxu0 0.0
    %5079 = vmatprep.subr.mxu0 0.0
    %5080 = vmatpush2.msra.mxu0 0.0
    %5081 = vmatprep.subr.mxu0 0.0
    %5082 = vmatpush2.msra.mxu0 0.0
    %5083 = vmatprep.subr.mxu0 0.0
    %5084 = vmatpush2.msra.mxu0 0.0
    %5085 = vmatprep.subr.mxu0 0.0
    %5086 = vmatpush2.msra.mxu0 0.0
    %5087 = vmatprep.subr.mxu0 0.0
    %5088 = vmatpush2.msra.mxu0 0.0
    %5089 = vmatprep.subr.mxu0 0.0
    %5090 = vmatpush2.msra.mxu0 0.0
    %5091 = vmatprep.subr.mxu0 0.0
    %5092 = vmatpush2.msra.mxu0 0.0
    %5093 = vmatprep.subr.mxu0 0.0
    %5094 = vmatpush2.msra.mxu0 0.0
    %5095 = vmatprep.subr.mxu0 0.0
    %5096 = vmatpush2.msra.mxu0 0.0
    %5097 = vmatprep.subr.mxu0 0.0
    %5098 = vmatpush2.msra.mxu0 0.0
    %5099 = vmatprep.subr.mxu0 0.0
    %5100 = vmatpush2.msra.mxu0 0.0
    %5101 = vmatprep.mubr.f32.mxu0 0.0
    %5102 = vmatmul.mubr.f32.gmra.mxu0 %v5035
    %v5103 = vpop.f32.mrf.mxu0
    %v5104 = vadd.f32 0.0, %v5103
    %v5105 = vpop.f32.mrf.mxu0
    %v5106 = vadd.f32 0.0, %v5105
    %5107 = vdwg.mxu0
    %5108 = vmatprep.subr.mxu0 0.0
    %5109 = vmatpush1.msra.mxu0 0.0
    %5110 = vmatprep.subr.mxu0 0.0
    %5111 = vmatpush1.msra.mxu0 0.0
    %5112 = vmatprep.subr.mxu0 0.0
    %5113 = vmatpush1.msra.mxu0 0.0
    %5114 = vmatprep.subr.mxu0 0.0
    %5115 = vmatpush1.msra.mxu0 0.0
    %5116 = vmatprep.subr.mxu0 0.0
    %5117 = vmatpush1.msra.mxu0 0.0
    %5118 = vmatprep.subr.mxu0 0.0
    %5119 = vmatpush1.msra.mxu0 0.0
    %5120 = vmatprep.subr.mxu0 0.0
    %5121 = vmatpush1.msra.mxu0 0.0
    %5122 = vmatprep.subr.mxu0 0.0
    %5123 = vmatpush1.msra.mxu0 0.0
    %5124 = vmatprep.subr.mxu0 0.0
    %5125 = vmatpush1.msra.mxu0 0.0
    %5126 = vmatprep.subr.mxu0 0.0
    %5127 = vmatpush1.msra.mxu0 0.0
    %5128 = vmatprep.subr.mxu0 0.0
    %5129 = vmatpush1.msra.mxu0 0.0
    %5130 = vmatprep.subr.mxu0 0.0
    %5131 = vmatpush1.msra.mxu0 0.0
    %5132 = vmatprep.subr.mxu0 0.0
    %5133 = vmatpush1.msra.mxu0 %v4685
    %5134 = vmatprep.subr.mxu0 0.0
    %5135 = vmatpush1.msra.mxu0 %v4684
    %5136 = vmatprep.subr.mxu0 0.0
    %5137 = vmatpush1.msra.mxu0 %v4683
    %5138 = vmatprep.subr.mxu0 0.0
    %5139 = vmatpush1.msra.mxu0 %v4682
    %5140 = vmatprep.subr.mxu0 0.0
    %5141 = vmatpush2.msra.mxu0 0.0
    %5142 = vmatprep.subr.mxu0 0.0
    %5143 = vmatpush2.msra.mxu0 0.0
    %5144 = vmatprep.subr.mxu0 0.0
    %5145 = vmatpush2.msra.mxu0 0.0
    %5146 = vmatprep.subr.mxu0 0.0
    %5147 = vmatpush2.msra.mxu0 0.0
    %5148 = vmatprep.subr.mxu0 0.0
    %5149 = vmatpush2.msra.mxu0 0.0
    %5150 = vmatprep.subr.mxu0 0.0
    %5151 = vmatpush2.msra.mxu0 0.0
    %5152 = vmatprep.subr.mxu0 0.0
    %5153 = vmatpush2.msra.mxu0 0.0
    %5154 = vmatprep.subr.mxu0 0.0
    %5155 = vmatpush2.msra.mxu0 0.0
    %5156 = vmatprep.subr.mxu0 0.0
    %5157 = vmatpush2.msra.mxu0 0.0
    %5158 = vmatprep.subr.mxu0 0.0
    %5159 = vmatpush2.msra.mxu0 0.0
    %5160 = vmatprep.subr.mxu0 0.0
    %5161 = vmatpush2.msra.mxu0 0.0
    %5162 = vmatprep.subr.mxu0 0.0
    %5163 = vmatpush2.msra.mxu0 0.0
    %5164 = vmatprep.subr.mxu0 0.0
    %5165 = vmatpush2.msra.mxu0 0.0
    %5166 = vmatprep.subr.mxu0 0.0
    %5167 = vmatpush2.msra.mxu0 0.0
    %5168 = vmatprep.subr.mxu0 0.0
    %5169 = vmatpush2.msra.mxu0 0.0
    %5170 = vmatprep.subr.mxu0 0.0
    %5171 = vmatpush2.msra.mxu0 0.0
    %5172 = vmatprep.mubr.f32.mxu0 0.0
    %5173 = vmatmul.mubr.f32.gmra.mxu0 %v5035
    %v5174 = vpop.f32.mrf.mxu0
    %v5175 = vadd.f32 0.0, %v5174
    %v5176 = vpop.f32.mrf.mxu0
    %5177 = vdwg.mxu0
    %v5179 = vrot.slane %v5104, 4
    %v5181 = vadd.f32 %v4338, %v5179
    %v5182 = vxor.u32 %v5181, 2147483648
    %v5183 = vmul.f32 %v5182, 1.442695
    %v5184 = vpow.pop %v5183
    %v5185 = vadd.f32 %v5184, 1.0
    %v5186 = vrcp.pop %v5185
    %v5187 = vmul.f32 1.0, %v5186
    %v5189 = vrot.slane %v5106, 4
    %v5191 = vadd.f32 %v4505, %v5189
    %v5192 = vxor.u32 %v5191, 2147483648
    %v5193 = vmul.f32 %v5192, 1.442695
    %v5194 = vpow.pop %v5193
    %v5195 = vadd.f32 %v5194, 1.0
    %v5196 = vrcp.pop %v5195
    %v5197 = vmul.f32 1.0, %v5196
    %v5198 = vadd.f32 %v5175, %v4845
    %v5200 = vrot.slane %v5198, 4
    %v5202 = vmul.f32 %v5187, %v5200
    %v5203 = vadd.f32 %v4672, %v5202
    %v5204 = vtanh.pop %v5203
    %v5205 = vsub.f32 1.0, %v5197
    %v5206 = vmul.f32 %v5205, %v5204
    %v5207 = vrot.slane %v5031, 6
    %v5209 = vmul.f32 %v5197, %v5207
    %v5210 = vadd.f32 %v5206, %v5209
    %5211 = vst [vmem:[#allocation2] sm:$0x30] %v5210
    %v5213 = vrot.slane %v5210, 4
    %v5214 = vsel %vm702, %v5213, 0
    %5216 = vmatprep.subr.mxu0 0.0
    %5217 = vmatpush1.msra.mxu0 0.0
    %5218 = vmatprep.subr.mxu0 0.0
    %5219 = vmatpush1.msra.mxu0 0.0
    %5220 = vmatprep.subr.mxu0 0.0
    %5221 = vmatpush1.msra.mxu0 0.0
    %5222 = vmatprep.subr.mxu0 0.0
    %5223 = vmatpush1.msra.mxu0 0.0
    %5224 = vmatprep.subr.mxu0 0.0
    %5225 = vmatpush1.msra.mxu0 0.0
    %5226 = vmatprep.subr.mxu0 0.0
    %5227 = vmatpush1.msra.mxu0 0.0
    %5228 = vmatprep.subr.mxu0 0.0
    %5229 = vmatpush1.msra.mxu0 0.0
    %5230 = vmatprep.subr.mxu0 0.0
    %5231 = vmatpush1.msra.mxu0 0.0
    %5232 = vmatprep.subr.mxu0 0.0
    %5233 = vmatpush1.msra.mxu0 0.0
    %5234 = vmatprep.subr.mxu0 0.0
    %5235 = vmatpush1.msra.mxu0 0.0
    %5236 = vmatprep.subr.mxu0 0.0
    %5237 = vmatpush1.msra.mxu0 0.0
    %5238 = vmatprep.subr.mxu0 0.0
    %5239 = vmatpush1.msra.mxu0 0.0
    %5240 = vmatprep.subr.mxu0 %v4681
    %5241 = vmatpush1.msra.mxu0 %v4677
    %5242 = vmatprep.subr.mxu0 %v4680
    %5243 = vmatpush1.msra.mxu0 %v4676
    %5244 = vmatprep.subr.mxu0 %v4679
    %5245 = vmatpush1.msra.mxu0 %v4675
    %5246 = vmatprep.subr.mxu0 %v4678
    %5247 = vmatpush1.msra.mxu0 %v4674
    %5248 = vmatprep.subr.mxu0 0.0
    %5249 = vmatpush2.msra.mxu0 0.0
    %5250 = vmatprep.subr.mxu0 0.0
    %5251 = vmatpush2.msra.mxu0 0.0
    %5252 = vmatprep.subr.mxu0 0.0
    %5253 = vmatpush2.msra.mxu0 0.0
    %5254 = vmatprep.subr.mxu0 0.0
    %5255 = vmatpush2.msra.mxu0 0.0
    %5256 = vmatprep.subr.mxu0 0.0
    %5257 = vmatpush2.msra.mxu0 0.0
    %5258 = vmatprep.subr.mxu0 0.0
    %5259 = vmatpush2.msra.mxu0 0.0
    %5260 = vmatprep.subr.mxu0 0.0
    %5261 = vmatpush2.msra.mxu0 0.0
    %5262 = vmatprep.subr.mxu0 0.0
    %5263 = vmatpush2.msra.mxu0 0.0
    %5264 = vmatprep.subr.mxu0 0.0
    %5265 = vmatpush2.msra.mxu0 0.0
    %5266 = vmatprep.subr.mxu0 0.0
    %5267 = vmatpush2.msra.mxu0 0.0
    %5268 = vmatprep.subr.mxu0 0.0
    %5269 = vmatpush2.msra.mxu0 0.0
    %5270 = vmatprep.subr.mxu0 0.0
    %5271 = vmatpush2.msra.mxu0 0.0
    %5272 = vmatprep.subr.mxu0 0.0
    %5273 = vmatpush2.msra.mxu0 0.0
    %5274 = vmatprep.subr.mxu0 0.0
    %5275 = vmatpush2.msra.mxu0 0.0
    %5276 = vmatprep.subr.mxu0 0.0
    %5277 = vmatpush2.msra.mxu0 0.0
    %5278 = vmatprep.subr.mxu0 0.0
    %5279 = vmatpush2.msra.mxu0 0.0
    %5280 = vmatprep.mubr.f32.mxu0 0.0
    %5281 = vmatmul.mubr.f32.gmra.mxu0 %v5214
    %v5282 = vpop.f32.mrf.mxu0
    %v5283 = vadd.f32 0.0, %v5282
    %v5284 = vpop.f32.mrf.mxu0
    %v5285 = vadd.f32 0.0, %v5284
    %5286 = vdwg.mxu0
    %5287 = vmatprep.subr.mxu0 0.0
    %5288 = vmatpush1.msra.mxu0 0.0
    %5289 = vmatprep.subr.mxu0 0.0
    %5290 = vmatpush1.msra.mxu0 0.0
    %5291 = vmatprep.subr.mxu0 0.0
    %5292 = vmatpush1.msra.mxu0 0.0
    %5293 = vmatprep.subr.mxu0 0.0
    %5294 = vmatpush1.msra.mxu0 0.0
    %5295 = vmatprep.subr.mxu0 0.0
    %5296 = vmatpush1.msra.mxu0 0.0
    %5297 = vmatprep.subr.mxu0 0.0
    %5298 = vmatpush1.msra.mxu0 0.0
    %5299 = vmatprep.subr.mxu0 0.0
    %5300 = vmatpush1.msra.mxu0 0.0
    %5301 = vmatprep.subr.mxu0 0.0
    %5302 = vmatpush1.msra.mxu0 0.0
    %5303 = vmatprep.subr.mxu0 0.0
    %5304 = vmatpush1.msra.mxu0 0.0
    %5305 = vmatprep.subr.mxu0 0.0
    %5306 = vmatpush1.msra.mxu0 0.0
    %5307 = vmatprep.subr.mxu0 0.0
    %5308 = vmatpush1.msra.mxu0 0.0
    %5309 = vmatprep.subr.mxu0 0.0
    %5310 = vmatpush1.msra.mxu0 0.0
    %5311 = vmatprep.subr.mxu0 0.0
    %5312 = vmatpush1.msra.mxu0 %v4685
    %5313 = vmatprep.subr.mxu0 0.0
    %5314 = vmatpush1.msra.mxu0 %v4684
    %5315 = vmatprep.subr.mxu0 0.0
    %5316 = vmatpush1.msra.mxu0 %v4683
    %5317 = vmatprep.subr.mxu0 0.0
    %5318 = vmatpush1.msra.mxu0 %v4682
    %5319 = vmatprep.subr.mxu0 0.0
    %5320 = vmatpush2.msra.mxu0 0.0
    %5321 = vmatprep.subr.mxu0 0.0
    %5322 = vmatpush2.msra.mxu0 0.0
    %5323 = vmatprep.subr.mxu0 0.0
    %5324 = vmatpush2.msra.mxu0 0.0
    %5325 = vmatprep.subr.mxu0 0.0
    %5326 = vmatpush2.msra.mxu0 0.0
    %5327 = vmatprep.subr.mxu0 0.0
    %5328 = vmatpush2.msra.mxu0 0.0
    %5329 = vmatprep.subr.mxu0 0.0
    %5330 = vmatpush2.msra.mxu0 0.0
    %5331 = vmatprep.subr.mxu0 0.0
    %5332 = vmatpush2.msra.mxu0 0.0
    %5333 = vmatprep.subr.mxu0 0.0
    %5334 = vmatpush2.msra.mxu0 0.0
    %5335 = vmatprep.subr.mxu0 0.0
    %5336 = vmatpush2.msra.mxu0 0.0
    %5337 = vmatprep.subr.mxu0 0.0
    %5338 = vmatpush2.msra.mxu0 0.0
    %5339 = vmatprep.subr.mxu0 0.0
    %5340 = vmatpush2.msra.mxu0 0.0
    %5341 = vmatprep.subr.mxu0 0.0
    %5342 = vmatpush2.msra.mxu0 0.0
    %5343 = vmatprep.subr.mxu0 0.0
    %5344 = vmatpush2.msra.mxu0 0.0
    %5345 = vmatprep.subr.mxu0 0.0
    %5346 = vmatpush2.msra.mxu0 0.0
    %5347 = vmatprep.subr.mxu0 0.0
    %5348 = vmatpush2.msra.mxu0 0.0
    %5349 = vmatprep.subr.mxu0 0.0
    %5350 = vmatpush2.msra.mxu0 0.0
    %5351 = vmatprep.mubr.f32.mxu0 0.0
    %5352 = vmatmul.mubr.f32.gmra.mxu0 %v5214
    %v5353 = vpop.f32.mrf.mxu0
    %v5354 = vadd.f32 0.0, %v5353
    %v5355 = vpop.f32.mrf.mxu0
    %5356 = vdwg.mxu0
    %v5358 = vrot.slane %v5283, 2
    %v5360 = vadd.f32 %v4338, %v5358
    %v5361 = vxor.u32 %v5360, 2147483648
    %v5362 = vmul.f32 %v5361, 1.442695
    %v5363 = vpow.pop %v5362
    %v5364 = vadd.f32 %v5363, 1.0
    %v5365 = vrcp.pop %v5364
    %v5366 = vmul.f32 1.0, %v5365
    %v5368 = vrot.slane %v5285, 2
    %v5370 = vadd.f32 %v4505, %v5368
    %v5371 = vxor.u32 %v5370, 2147483648
    %v5372 = vmul.f32 %v5371, 1.442695
    %v5373 = vpow.pop %v5372
    %v5374 = vadd.f32 %v5373, 1.0
    %v5375 = vrcp.pop %v5374
    %v5376 = vmul.f32 1.0, %v5375
    %v5377 = vadd.f32 %v5354, %v4845
    %v5379 = vrot.slane %v5377, 2
    %v5381 = vmul.f32 %v5366, %v5379
    %v5382 = vadd.f32 %v4672, %v5381
    %v5383 = vtanh.pop %v5382
    %v5384 = vsub.f32 1.0, %v5376
    %v5385 = vmul.f32 %v5384, %v5383
    %v5386 = vrot.slane %v5210, 6
    %v5388 = vmul.f32 %v5376, %v5386
    %v5389 = vadd.f32 %v5385, %v5388
    %5390 = vst [vmem:[#allocation2] sm:$0xc0] %v5389
    %v5392 = vrot.slane %v5389, 6
    %v5393 = vsel %vm702, %v5392, 0
    %5395 = vmatprep.subr.mxu0 0.0
    %5396 = vmatpush1.msra.mxu0 0.0
    %5397 = vmatprep.subr.mxu0 0.0
    %5398 = vmatpush1.msra.mxu0 0.0
    %5399 = vmatprep.subr.mxu0 0.0
    %5400 = vmatpush1.msra.mxu0 0.0
    %5401 = vmatprep.subr.mxu0 0.0
    %5402 = vmatpush1.msra.mxu0 0.0
    %5403 = vmatprep.subr.mxu0 0.0
    %5404 = vmatpush1.msra.mxu0 0.0
    %5405 = vmatprep.subr.mxu0 0.0
    %5406 = vmatpush1.msra.mxu0 0.0
    %5407 = vmatprep.subr.mxu0 0.0
    %5408 = vmatpush1.msra.mxu0 0.0
    %5409 = vmatprep.subr.mxu0 0.0
    %5410 = vmatpush1.msra.mxu0 0.0
    %5411 = vmatprep.subr.mxu0 0.0
    %5412 = vmatpush1.msra.mxu0 0.0
    %5413 = vmatprep.subr.mxu0 0.0
    %5414 = vmatpush1.msra.mxu0 0.0
    %5415 = vmatprep.subr.mxu0 0.0
    %5416 = vmatpush1.msra.mxu0 0.0
    %5417 = vmatprep.subr.mxu0 0.0
    %5418 = vmatpush1.msra.mxu0 0.0
    %5419 = vmatprep.subr.mxu0 %v4681
    %5420 = vmatpush1.msra.mxu0 %v4677
    %5421 = vmatprep.subr.mxu0 %v4680
    %5422 = vmatpush1.msra.mxu0 %v4676
    %5423 = vmatprep.subr.mxu0 %v4679
    %5424 = vmatpush1.msra.mxu0 %v4675
    %5425 = vmatprep.subr.mxu0 %v4678
    %5426 = vmatpush1.msra.mxu0 %v4674
    %5427 = vmatprep.subr.mxu0 0.0
    %5428 = vmatpush2.msra.mxu0 0.0
    %5429 = vmatprep.subr.mxu0 0.0
    %5430 = vmatpush2.msra.mxu0 0.0
    %5431 = vmatprep.subr.mxu0 0.0
    %5432 = vmatpush2.msra.mxu0 0.0
    %5433 = vmatprep.subr.mxu0 0.0
    %5434 = vmatpush2.msra.mxu0 0.0
    %5435 = vmatprep.subr.mxu0 0.0
    %5436 = vmatpush2.msra.mxu0 0.0
    %5437 = vmatprep.subr.mxu0 0.0
    %5438 = vmatpush2.msra.mxu0 0.0
    %5439 = vmatprep.subr.mxu0 0.0
    %5440 = vmatpush2.msra.mxu0 0.0
    %5441 = vmatprep.subr.mxu0 0.0
    %5442 = vmatpush2.msra.mxu0 0.0
    %5443 = vmatprep.subr.mxu0 0.0
    %5444 = vmatpush2.msra.mxu0 0.0
    %5445 = vmatprep.subr.mxu0 0.0
    %5446 = vmatpush2.msra.mxu0 0.0
    %5447 = vmatprep.subr.mxu0 0.0
    %5448 = vmatpush2.msra.mxu0 0.0
    %5449 = vmatprep.subr.mxu0 0.0
    %5450 = vmatpush2.msra.mxu0 0.0
    %5451 = vmatprep.subr.mxu0 0.0
    %5452 = vmatpush2.msra.mxu0 0.0
    %5453 = vmatprep.subr.mxu0 0.0
    %5454 = vmatpush2.msra.mxu0 0.0
    %5455 = vmatprep.subr.mxu0 0.0
    %5456 = vmatpush2.msra.mxu0 0.0
    %5457 = vmatprep.subr.mxu0 0.0
    %5458 = vmatpush2.msra.mxu0 0.0
    %5459 = vmatprep.mubr.f32.mxu0 0.0
    %5460 = vmatmul.mubr.f32.gmra.mxu0 %v5393
    %v5461 = vpop.f32.mrf.mxu0
    %v5462 = vadd.f32 0.0, %v5461
    %v5463 = vpop.f32.mrf.mxu0
    %v5464 = vadd.f32 0.0, %v5463
    %5465 = vdwg.mxu0
    %5466 = vmatprep.subr.mxu0 0.0
    %5467 = vmatpush1.msra.mxu0 0.0
    %5468 = vmatprep.subr.mxu0 0.0
    %5469 = vmatpush1.msra.mxu0 0.0
    %5470 = vmatprep.subr.mxu0 0.0
    %5471 = vmatpush1.msra.mxu0 0.0
    %5472 = vmatprep.subr.mxu0 0.0
    %5473 = vmatpush1.msra.mxu0 0.0
    %5474 = vmatprep.subr.mxu0 0.0
    %5475 = vmatpush1.msra.mxu0 0.0
    %5476 = vmatprep.subr.mxu0 0.0
    %5477 = vmatpush1.msra.mxu0 0.0
    %5478 = vmatprep.subr.mxu0 0.0
    %5479 = vmatpush1.msra.mxu0 0.0
    %5480 = vmatprep.subr.mxu0 0.0
    %5481 = vmatpush1.msra.mxu0 0.0
    %5482 = vmatprep.subr.mxu0 0.0
    %5483 = vmatpush1.msra.mxu0 0.0
    %5484 = vmatprep.subr.mxu0 0.0
    %5485 = vmatpush1.msra.mxu0 0.0
    %5486 = vmatprep.subr.mxu0 0.0
    %5487 = vmatpush1.msra.mxu0 0.0
    %5488 = vmatprep.subr.mxu0 0.0
    %5489 = vmatpush1.msra.mxu0 0.0
    %5490 = vmatprep.subr.mxu0 0.0
    %5491 = vmatpush1.msra.mxu0 %v4685
    %5492 = vmatprep.subr.mxu0 0.0
    %5493 = vmatpush1.msra.mxu0 %v4684
    %5494 = vmatprep.subr.mxu0 0.0
    %5495 = vmatpush1.msra.mxu0 %v4683
    %5496 = vmatprep.subr.mxu0 0.0
    %5497 = vmatpush1.msra.mxu0 %v4682
    %5498 = vmatprep.subr.mxu0 0.0
    %5499 = vmatpush2.msra.mxu0 0.0
    %5500 = vmatprep.subr.mxu0 0.0
    %5501 = vmatpush2.msra.mxu0 0.0
    %5502 = vmatprep.subr.mxu0 0.0
    %5503 = vmatpush2.msra.mxu0 0.0
    %5504 = vmatprep.subr.mxu0 0.0
    %5505 = vmatpush2.msra.mxu0 0.0
    %5506 = vmatprep.subr.mxu0 0.0
    %5507 = vmatpush2.msra.mxu0 0.0
    %5508 = vmatprep.subr.mxu0 0.0
    %5509 = vmatpush2.msra.mxu0 0.0
    %5510 = vmatprep.subr.mxu0 0.0
    %5511 = vmatpush2.msra.mxu0 0.0
    %5512 = vmatprep.subr.mxu0 0.0
    %5513 = vmatpush2.msra.mxu0 0.0
    %5514 = vmatprep.subr.mxu0 0.0
    %5515 = vmatpush2.msra.mxu0 0.0
    %5516 = vmatprep.subr.mxu0 0.0
    %5517 = vmatpush2.msra.mxu0 0.0
    %5518 = vmatprep.subr.mxu0 0.0
    %5519 = vmatpush2.msra.mxu0 0.0
    %5520 = vmatprep.subr.mxu0 0.0
    %5521 = vmatpush2.msra.mxu0 0.0
    %5522 = vmatprep.subr.mxu0 0.0
    %5523 = vmatpush2.msra.mxu0 0.0
    %5524 = vmatprep.subr.mxu0 0.0
    %5525 = vmatpush2.msra.mxu0 0.0
    %5526 = vmatprep.subr.mxu0 0.0
    %5527 = vmatpush2.msra.mxu0 0.0
    %5528 = vmatprep.subr.mxu0 0.0
    %5529 = vmatpush2.msra.mxu0 0.0
    %5530 = vmatprep.mubr.f32.mxu0 0.0
    %5531 = vmatmul.mubr.f32.gmra.mxu0 %v5393
    %v5532 = vpop.f32.mrf.mxu0
    %v5533 = vadd.f32 0.0, %v5532
    %v5534 = vpop.f32.mrf.mxu0
    %5535 = vdwg.mxu0
    %v5536 = vadd.f32 %v4339, %v5462
    %v5537 = vxor.u32 %v5536, 2147483648
    %v5538 = vmul.f32 %v5537, 1.442695
    %v5539 = vpow.pop %v5538
    %v5540 = vadd.f32 %v5539, 1.0
    %v5541 = vrcp.pop %v5540
    %v5542 = vmul.f32 1.0, %v5541
    %v5543 = vadd.f32 %v4506, %v5464
    %v5544 = vxor.u32 %v5543, 2147483648
    %v5545 = vmul.f32 %v5544, 1.442695
    %v5546 = vpow.pop %v5545
    %v5547 = vadd.f32 %v5546, 1.0
    %v5548 = vrcp.pop %v5547
    %v5549 = vmul.f32 1.0, %v5548
    %v5550 = vadd.f32 %v5533, %v4845
    %v5551 = vmul.f32 %v5542, %v5550
    %v5552 = vadd.f32 %v4673, %v5551
    %v5553 = vtanh.pop %v5552
    %v5554 = vsub.f32 1.0, %v5549
    %v5555 = vmul.f32 %v5554, %v5553
    %v5557 = vmul.f32 %v5549, %v5392
    %v5558 = vadd.f32 %v5555, %v5557
    %5559 = vst [vmem:[#allocation2 + $0x8] sm:$0x3] %v5558
    %v5561 = vsel %vm702, %v5558, 0
    %5563 = vmatprep.subr.mxu0 0.0
    %5564 = vmatpush1.msra.mxu0 0.0
    %5565 = vmatprep.subr.mxu0 0.0
    %5566 = vmatpush1.msra.mxu0 0.0
    %5567 = vmatprep.subr.mxu0 0.0
    %5568 = vmatpush1.msra.mxu0 0.0
    %5569 = vmatprep.subr.mxu0 0.0
    %5570 = vmatpush1.msra.mxu0 0.0
    %5571 = vmatprep.subr.mxu0 0.0
    %5572 = vmatpush1.msra.mxu0 0.0
    %5573 = vmatprep.subr.mxu0 0.0
    %5574 = vmatpush1.msra.mxu0 0.0
    %5575 = vmatprep.subr.mxu0 0.0
    %5576 = vmatpush1.msra.mxu0 0.0
    %5577 = vmatprep.subr.mxu0 0.0
    %5578 = vmatpush1.msra.mxu0 0.0
    %5579 = vmatprep.subr.mxu0 0.0
    %5580 = vmatpush1.msra.mxu0 0.0
    %5581 = vmatprep.subr.mxu0 0.0
    %5582 = vmatpush1.msra.mxu0 0.0
    %5583 = vmatprep.subr.mxu0 0.0
    %5584 = vmatpush1.msra.mxu0 0.0
    %5585 = vmatprep.subr.mxu0 0.0
    %5586 = vmatpush1.msra.mxu0 0.0
    %5587 = vmatprep.subr.mxu0 %v4681
    %5588 = vmatpush1.msra.mxu0 %v4677
    %5589 = vmatprep.subr.mxu0 %v4680
    %5590 = vmatpush1.msra.mxu0 %v4676
    %5591 = vmatprep.subr.mxu0 %v4679
    %5592 = vmatpush1.msra.mxu0 %v4675
    %5593 = vmatprep.subr.mxu0 %v4678
    %5594 = vmatpush1.msra.mxu0 %v4674
    %5595 = vmatprep.subr.mxu0 0.0
    %5596 = vmatpush2.msra.mxu0 0.0
    %5597 = vmatprep.subr.mxu0 0.0
    %5598 = vmatpush2.msra.mxu0 0.0
    %5599 = vmatprep.subr.mxu0 0.0
    %5600 = vmatpush2.msra.mxu0 0.0
    %5601 = vmatprep.subr.mxu0 0.0
    %5602 = vmatpush2.msra.mxu0 0.0
    %5603 = vmatprep.subr.mxu0 0.0
    %5604 = vmatpush2.msra.mxu0 0.0
    %5605 = vmatprep.subr.mxu0 0.0
    %5606 = vmatpush2.msra.mxu0 0.0
    %5607 = vmatprep.subr.mxu0 0.0
    %5608 = vmatpush2.msra.mxu0 0.0
    %5609 = vmatprep.subr.mxu0 0.0
    %5610 = vmatpush2.msra.mxu0 0.0
    %5611 = vmatprep.subr.mxu0 0.0
    %5612 = vmatpush2.msra.mxu0 0.0
    %5613 = vmatprep.subr.mxu0 0.0
    %5614 = vmatpush2.msra.mxu0 0.0
    %5615 = vmatprep.subr.mxu0 0.0
    %5616 = vmatpush2.msra.mxu0 0.0
    %5617 = vmatprep.subr.mxu0 0.0
    %5618 = vmatpush2.msra.mxu0 0.0
    %5619 = vmatprep.subr.mxu0 0.0
    %5620 = vmatpush2.msra.mxu0 0.0
    %5621 = vmatprep.subr.mxu0 0.0
    %5622 = vmatpush2.msra.mxu0 0.0
    %5623 = vmatprep.subr.mxu0 0.0
    %5624 = vmatpush2.msra.mxu0 0.0
    %5625 = vmatprep.subr.mxu0 0.0
    %5626 = vmatpush2.msra.mxu0 0.0
    %5627 = vmatprep.mubr.f32.mxu0 0.0
    %5628 = vmatmul.mubr.f32.gmra.mxu0 %v5561
    %v5629 = vpop.f32.mrf.mxu0
    %v5630 = vadd.f32 0.0, %v5629
    %v5631 = vpop.f32.mrf.mxu0
    %v5632 = vadd.f32 0.0, %v5631
    %5633 = vdwg.mxu0
    %5634 = vmatprep.subr.mxu0 0.0
    %5635 = vmatpush1.msra.mxu0 0.0
    %5636 = vmatprep.subr.mxu0 0.0
    %5637 = vmatpush1.msra.mxu0 0.0
    %5638 = vmatprep.subr.mxu0 0.0
    %5639 = vmatpush1.msra.mxu0 0.0
    %5640 = vmatprep.subr.mxu0 0.0
    %5641 = vmatpush1.msra.mxu0 0.0
    %5642 = vmatprep.subr.mxu0 0.0
    %5643 = vmatpush1.msra.mxu0 0.0
    %5644 = vmatprep.subr.mxu0 0.0
    %5645 = vmatpush1.msra.mxu0 0.0
    %5646 = vmatprep.subr.mxu0 0.0
    %5647 = vmatpush1.msra.mxu0 0.0
    %5648 = vmatprep.subr.mxu0 0.0
    %5649 = vmatpush1.msra.mxu0 0.0
    %5650 = vmatprep.subr.mxu0 0.0
    %5651 = vmatpush1.msra.mxu0 0.0
    %5652 = vmatprep.subr.mxu0 0.0
    %5653 = vmatpush1.msra.mxu0 0.0
    %5654 = vmatprep.subr.mxu0 0.0
    %5655 = vmatpush1.msra.mxu0 0.0
    %5656 = vmatprep.subr.mxu0 0.0
    %5657 = vmatpush1.msra.mxu0 0.0
    %5658 = vmatprep.subr.mxu0 0.0
    %5659 = vmatpush1.msra.mxu0 %v4685
    %5660 = vmatprep.subr.mxu0 0.0
    %5661 = vmatpush1.msra.mxu0 %v4684
    %5662 = vmatprep.subr.mxu0 0.0
    %5663 = vmatpush1.msra.mxu0 %v4683
    %5664 = vmatprep.subr.mxu0 0.0
    %5665 = vmatpush1.msra.mxu0 %v4682
    %5666 = vmatprep.subr.mxu0 0.0
    %5667 = vmatpush2.msra.mxu0 0.0
    %5668 = vmatprep.subr.mxu0 0.0
    %5669 = vmatpush2.msra.mxu0 0.0
    %5670 = vmatprep.subr.mxu0 0.0
    %5671 = vmatpush2.msra.mxu0 0.0
    %5672 = vmatprep.subr.mxu0 0.0
    %5673 = vmatpush2.msra.mxu0 0.0
    %5674 = vmatprep.subr.mxu0 0.0
    %5675 = vmatpush2.msra.mxu0 0.0
    %5676 = vmatprep.subr.mxu0 0.0
    %5677 = vmatpush2.msra.mxu0 0.0
    %5678 = vmatprep.subr.mxu0 0.0
    %5679 = vmatpush2.msra.mxu0 0.0
    %5680 = vmatprep.subr.mxu0 0.0
    %5681 = vmatpush2.msra.mxu0 0.0
    %5682 = vmatprep.subr.mxu0 0.0
    %5683 = vmatpush2.msra.mxu0 0.0
    %5684 = vmatprep.subr.mxu0 0.0
    %5685 = vmatpush2.msra.mxu0 0.0
    %5686 = vmatprep.subr.mxu0 0.0
    %5687 = vmatpush2.msra.mxu0 0.0
    %5688 = vmatprep.subr.mxu0 0.0
    %5689 = vmatpush2.msra.mxu0 0.0
    %5690 = vmatprep.subr.mxu0 0.0
    %5691 = vmatpush2.msra.mxu0 0.0
    %5692 = vmatprep.subr.mxu0 0.0
    %5693 = vmatpush2.msra.mxu0 0.0
    %5694 = vmatprep.subr.mxu0 0.0
    %5695 = vmatpush2.msra.mxu0 0.0
    %5696 = vmatprep.subr.mxu0 0.0
    %5697 = vmatpush2.msra.mxu0 0.0
    %5698 = vmatprep.mubr.f32.mxu0 0.0
    %5699 = vmatmul.mubr.f32.gmra.mxu0 %v5561
    %v5700 = vpop.f32.mrf.mxu0
    %v5701 = vadd.f32 0.0, %v5700
    %v5702 = vpop.f32.mrf.mxu0
    %5703 = vdwg.mxu0
    %v5705 = vrot.slane %v5630, 6
    %v5707 = vadd.f32 %v4339, %v5705
    %v5708 = vxor.u32 %v5707, 2147483648
    %v5709 = vmul.f32 %v5708, 1.442695
    %v5710 = vpow.pop %v5709
    %v5711 = vadd.f32 %v5710, 1.0
    %v5712 = vrcp.pop %v5711
    %v5713 = vmul.f32 1.0, %v5712
    %v5715 = vrot.slane %v5632, 6
    %v5717 = vadd.f32 %v4506, %v5715
    %v5718 = vxor.u32 %v5717, 2147483648
    %v5719 = vmul.f32 %v5718, 1.442695
    %v5720 = vpow.pop %v5719
    %v5721 = vadd.f32 %v5720, 1.0
    %v5722 = vrcp.pop %v5721
    %v5723 = vmul.f32 1.0, %v5722
    %v5724 = vadd.f32 %v5701, %v4845
    %v5726 = vrot.slane %v5724, 6
    %v5728 = vmul.f32 %v5713, %v5726
    %v5729 = vadd.f32 %v4673, %v5728
    %v5730 = vtanh.pop %v5729
    %v5731 = vsub.f32 1.0, %v5723
    %v5732 = vmul.f32 %v5731, %v5730
    %v5733 = vrot.slane %v5558, 6
    %v5735 = vmul.f32 %v5723, %v5733
    %v5736 = vadd.f32 %v5732, %v5735
    %5737 = vst [vmem:[#allocation2 + $0x8] sm:$0xc] %v5736
    %v5739 = vrot.slane %v5736, 2
    %v5740 = vsel %vm702, %v5739, 0
    %5742 = vmatprep.subr.mxu0 0.0
    %5743 = vmatpush1.msra.mxu0 0.0
    %5744 = vmatprep.subr.mxu0 0.0
    %5745 = vmatpush1.msra.mxu0 0.0
    %5746 = vmatprep.subr.mxu0 0.0
    %5747 = vmatpush1.msra.mxu0 0.0
    %5748 = vmatprep.subr.mxu0 0.0
    %5749 = vmatpush1.msra.mxu0 0.0
    %5750 = vmatprep.subr.mxu0 0.0
    %5751 = vmatpush1.msra.mxu0 0.0
    %5752 = vmatprep.subr.mxu0 0.0
    %5753 = vmatpush1.msra.mxu0 0.0
    %5754 = vmatprep.subr.mxu0 0.0
    %5755 = vmatpush1.msra.mxu0 0.0
    %5756 = vmatprep.subr.mxu0 0.0
    %5757 = vmatpush1.msra.mxu0 0.0
    %5758 = vmatprep.subr.mxu0 0.0
    %5759 = vmatpush1.msra.mxu0 0.0
    %5760 = vmatprep.subr.mxu0 0.0
    %5761 = vmatpush1.msra.mxu0 0.0
    %5762 = vmatprep.subr.mxu0 0.0
    %5763 = vmatpush1.msra.mxu0 0.0
    %5764 = vmatprep.subr.mxu0 0.0
    %5765 = vmatpush1.msra.mxu0 0.0
    %5766 = vmatprep.subr.mxu0 %v4681
    %5767 = vmatpush1.msra.mxu0 %v4677
    %5768 = vmatprep.subr.mxu0 %v4680
    %5769 = vmatpush1.msra.mxu0 %v4676
    %5770 = vmatprep.subr.mxu0 %v4679
    %5771 = vmatpush1.msra.mxu0 %v4675
    %5772 = vmatprep.subr.mxu0 %v4678
    %5773 = vmatpush1.msra.mxu0 %v4674
    %5774 = vmatprep.subr.mxu0 0.0
    %5775 = vmatpush2.msra.mxu0 0.0
    %5776 = vmatprep.subr.mxu0 0.0
    %5777 = vmatpush2.msra.mxu0 0.0
    %5778 = vmatprep.subr.mxu0 0.0
    %5779 = vmatpush2.msra.mxu0 0.0
    %5780 = vmatprep.subr.mxu0 0.0
    %5781 = vmatpush2.msra.mxu0 0.0
    %5782 = vmatprep.subr.mxu0 0.0
    %5783 = vmatpush2.msra.mxu0 0.0
    %5784 = vmatprep.subr.mxu0 0.0
    %5785 = vmatpush2.msra.mxu0 0.0
    %5786 = vmatprep.subr.mxu0 0.0
    %5787 = vmatpush2.msra.mxu0 0.0
    %5788 = vmatprep.subr.mxu0 0.0
    %5789 = vmatpush2.msra.mxu0 0.0
    %5790 = vmatprep.subr.mxu0 0.0
    %5791 = vmatpush2.msra.mxu0 0.0
    %5792 = vmatprep.subr.mxu0 0.0
    %5793 = vmatpush2.msra.mxu0 0.0
    %5794 = vmatprep.subr.mxu0 0.0
    %5795 = vmatpush2.msra.mxu0 0.0
    %5796 = vmatprep.subr.mxu0 0.0
    %5797 = vmatpush2.msra.mxu0 0.0
    %5798 = vmatprep.subr.mxu0 0.0
    %5799 = vmatpush2.msra.mxu0 0.0
    %5800 = vmatprep.subr.mxu0 0.0
    %5801 = vmatpush2.msra.mxu0 0.0
    %5802 = vmatprep.subr.mxu0 0.0
    %5803 = vmatpush2.msra.mxu0 0.0
    %5804 = vmatprep.subr.mxu0 0.0
    %5805 = vmatpush2.msra.mxu0 0.0
    %5806 = vmatprep.mubr.f32.mxu0 0.0
    %5807 = vmatmul.mubr.f32.gmra.mxu0 %v5740
    %v5808 = vpop.f32.mrf.mxu0
    %v5809 = vadd.f32 0.0, %v5808
    %v5810 = vpop.f32.mrf.mxu0
    %v5811 = vadd.f32 0.0, %v5810
    %5812 = vdwg.mxu0
    %5813 = vmatprep.subr.mxu0 0.0
    %5814 = vmatpush1.msra.mxu0 0.0
    %5815 = vmatprep.subr.mxu0 0.0
    %5816 = vmatpush1.msra.mxu0 0.0
    %5817 = vmatprep.subr.mxu0 0.0
    %5818 = vmatpush1.msra.mxu0 0.0
    %5819 = vmatprep.subr.mxu0 0.0
    %5820 = vmatpush1.msra.mxu0 0.0
    %5821 = vmatprep.subr.mxu0 0.0
    %5822 = vmatpush1.msra.mxu0 0.0
    %5823 = vmatprep.subr.mxu0 0.0
    %5824 = vmatpush1.msra.mxu0 0.0
    %5825 = vmatprep.subr.mxu0 0.0
    %5826 = vmatpush1.msra.mxu0 0.0
    %5827 = vmatprep.subr.mxu0 0.0
    %5828 = vmatpush1.msra.mxu0 0.0
    %5829 = vmatprep.subr.mxu0 0.0
    %5830 = vmatpush1.msra.mxu0 0.0
    %5831 = vmatprep.subr.mxu0 0.0
    %5832 = vmatpush1.msra.mxu0 0.0
    %5833 = vmatprep.subr.mxu0 0.0
    %5834 = vmatpush1.msra.mxu0 0.0
    %5835 = vmatprep.subr.mxu0 0.0
    %5836 = vmatpush1.msra.mxu0 0.0
    %5837 = vmatprep.subr.mxu0 0.0
    %5838 = vmatpush1.msra.mxu0 %v4685
    %5839 = vmatprep.subr.mxu0 0.0
    %5840 = vmatpush1.msra.mxu0 %v4684
    %5841 = vmatprep.subr.mxu0 0.0
    %5842 = vmatpush1.msra.mxu0 %v4683
    %5843 = vmatprep.subr.mxu0 0.0
    %5844 = vmatpush1.msra.mxu0 %v4682
    %5845 = vmatprep.subr.mxu0 0.0
    %5846 = vmatpush2.msra.mxu0 0.0
    %5847 = vmatprep.subr.mxu0 0.0
    %5848 = vmatpush2.msra.mxu0 0.0
    %5849 = vmatprep.subr.mxu0 0.0
    %5850 = vmatpush2.msra.mxu0 0.0
    %5851 = vmatprep.subr.mxu0 0.0
    %5852 = vmatpush2.msra.mxu0 0.0
    %5853 = vmatprep.subr.mxu0 0.0
    %5854 = vmatpush2.msra.mxu0 0.0
    %5855 = vmatprep.subr.mxu0 0.0
    %5856 = vmatpush2.msra.mxu0 0.0
    %5857 = vmatprep.subr.mxu0 0.0
    %5858 = vmatpush2.msra.mxu0 0.0
    %5859 = vmatprep.subr.mxu0 0.0
    %5860 = vmatpush2.msra.mxu0 0.0
    %5861 = vmatprep.subr.mxu0 0.0
    %5862 = vmatpush2.msra.mxu0 0.0
    %5863 = vmatprep.subr.mxu0 0.0
    %5864 = vmatpush2.msra.mxu0 0.0
    %5865 = vmatprep.subr.mxu0 0.0
    %5866 = vmatpush2.msra.mxu0 0.0
    %5867 = vmatprep.subr.mxu0 0.0
    %5868 = vmatpush2.msra.mxu0 0.0
    %5869 = vmatprep.subr.mxu0 0.0
    %5870 = vmatpush2.msra.mxu0 0.0
    %5871 = vmatprep.subr.mxu0 0.0
    %5872 = vmatpush2.msra.mxu0 0.0
    %5873 = vmatprep.subr.mxu0 0.0
    %5874 = vmatpush2.msra.mxu0 0.0
    %5875 = vmatprep.subr.mxu0 0.0
    %5876 = vmatpush2.msra.mxu0 0.0
    %5877 = vmatprep.mubr.f32.mxu0 0.0
    %5878 = vmatmul.mubr.f32.gmra.mxu0 %v5740
    %v5879 = vpop.f32.mrf.mxu0
    %v5880 = vadd.f32 0.0, %v5879
    %v5881 = vpop.f32.mrf.mxu0
    %5882 = vdwg.mxu0
    %v5884 = vrot.slane %v5809, 4
    %v5886 = vadd.f32 %v4339, %v5884
    %v5887 = vxor.u32 %v5886, 2147483648
    %v5888 = vmul.f32 %v5887, 1.442695
    %v5889 = vpow.pop %v5888
    %v5890 = vadd.f32 %v5889, 1.0
    %v5891 = vrcp.pop %v5890
    %v5892 = vmul.f32 1.0, %v5891
    %v5894 = vrot.slane %v5811, 4
    %v5896 = vadd.f32 %v4506, %v5894
    %v5897 = vxor.u32 %v5896, 2147483648
    %v5898 = vmul.f32 %v5897, 1.442695
    %v5899 = vpow.pop %v5898
    %v5900 = vadd.f32 %v5899, 1.0
    %v5901 = vrcp.pop %v5900
    %v5902 = vmul.f32 1.0, %v5901
    %v5903 = vadd.f32 %v5880, %v4845
    %v5905 = vrot.slane %v5903, 4
    %v5907 = vmul.f32 %v5892, %v5905
    %v5908 = vadd.f32 %v4673, %v5907
    %v5909 = vtanh.pop %v5908
    %v5910 = vsub.f32 1.0, %v5902
    %v5911 = vmul.f32 %v5910, %v5909
    %v5912 = vrot.slane %v5736, 6
    %v5914 = vmul.f32 %v5902, %v5912
    %v5915 = vadd.f32 %v5911, %v5914
    %5916 = vst [vmem:[#allocation2 + $0x8] sm:$0x30] %v5915
    %v5918 = vrot.slane %v5915, 4
    %v5919 = vsel %vm702, %v5918, 0
    %5921 = vmatprep.subr.mxu0 0.0
    %5922 = vmatpush1.msra.mxu0 0.0
    %5923 = vmatprep.subr.mxu0 0.0
    %5924 = vmatpush1.msra.mxu0 0.0
    %5925 = vmatprep.subr.mxu0 0.0
    %5926 = vmatpush1.msra.mxu0 0.0
    %5927 = vmatprep.subr.mxu0 0.0
    %5928 = vmatpush1.msra.mxu0 0.0
    %5929 = vmatprep.subr.mxu0 0.0
    %5930 = vmatpush1.msra.mxu0 0.0
    %5931 = vmatprep.subr.mxu0 0.0
    %5932 = vmatpush1.msra.mxu0 0.0
    %5933 = vmatprep.subr.mxu0 0.0
    %5934 = vmatpush1.msra.mxu0 0.0
    %5935 = vmatprep.subr.mxu0 0.0
    %5936 = vmatpush1.msra.mxu0 0.0
    %5937 = vmatprep.subr.mxu0 0.0
    %5938 = vmatpush1.msra.mxu0 0.0
    %5939 = vmatprep.subr.mxu0 0.0
    %5940 = vmatpush1.msra.mxu0 0.0
    %5941 = vmatprep.subr.mxu0 0.0
    %5942 = vmatpush1.msra.mxu0 0.0
    %5943 = vmatprep.subr.mxu0 0.0
    %5944 = vmatpush1.msra.mxu0 0.0
    %5945 = vmatprep.subr.mxu0 %v4681
    %5946 = vmatpush1.msra.mxu0 %v4677
    %5947 = vmatprep.subr.mxu0 %v4680
    %5948 = vmatpush1.msra.mxu0 %v4676
    %5949 = vmatprep.subr.mxu0 %v4679
    %5950 = vmatpush1.msra.mxu0 %v4675
    %5951 = vmatprep.subr.mxu0 %v4678
    %5952 = vmatpush1.msra.mxu0 %v4674
    %5953 = vmatprep.subr.mxu0 0.0
    %5954 = vmatpush2.msra.mxu0 0.0
    %5955 = vmatprep.subr.mxu0 0.0
    %5956 = vmatpush2.msra.mxu0 0.0
    %5957 = vmatprep.subr.mxu0 0.0
    %5958 = vmatpush2.msra.mxu0 0.0
    %5959 = vmatprep.subr.mxu0 0.0
    %5960 = vmatpush2.msra.mxu0 0.0
    %5961 = vmatprep.subr.mxu0 0.0
    %5962 = vmatpush2.msra.mxu0 0.0
    %5963 = vmatprep.subr.mxu0 0.0
    %5964 = vmatpush2.msra.mxu0 0.0
    %5965 = vmatprep.subr.mxu0 0.0
    %5966 = vmatpush2.msra.mxu0 0.0
    %5967 = vmatprep.subr.mxu0 0.0
    %5968 = vmatpush2.msra.mxu0 0.0
    %5969 = vmatprep.subr.mxu0 0.0
    %5970 = vmatpush2.msra.mxu0 0.0
    %5971 = vmatprep.subr.mxu0 0.0
    %5972 = vmatpush2.msra.mxu0 0.0
    %5973 = vmatprep.subr.mxu0 0.0
    %5974 = vmatpush2.msra.mxu0 0.0
    %5975 = vmatprep.subr.mxu0 0.0
    %5976 = vmatpush2.msra.mxu0 0.0
    %5977 = vmatprep.subr.mxu0 0.0
    %5978 = vmatpush2.msra.mxu0 0.0
    %5979 = vmatprep.subr.mxu0 0.0
    %5980 = vmatpush2.msra.mxu0 0.0
    %5981 = vmatprep.subr.mxu0 0.0
    %5982 = vmatpush2.msra.mxu0 0.0
    %5983 = vmatprep.subr.mxu0 0.0
    %5984 = vmatpush2.msra.mxu0 0.0
    %5985 = vmatprep.mubr.f32.mxu0 0.0
    %5986 = vmatmul.mubr.f32.gmra.mxu0 %v5919
    %v5987 = vpop.f32.mrf.mxu0
    %v5988 = vadd.f32 0.0, %v5987
    %v5989 = vpop.f32.mrf.mxu0
    %v5990 = vadd.f32 0.0, %v5989
    %5991 = vdwg.mxu0
    %5992 = vmatprep.subr.mxu0 0.0
    %5993 = vmatpush1.msra.mxu0 0.0
    %5994 = vmatprep.subr.mxu0 0.0
    %5995 = vmatpush1.msra.mxu0 0.0
    %5996 = vmatprep.subr.mxu0 0.0
    %5997 = vmatpush1.msra.mxu0 0.0
    %5998 = vmatprep.subr.mxu0 0.0
    %5999 = vmatpush1.msra.mxu0 0.0
    %6000 = vmatprep.subr.mxu0 0.0
    %6001 = vmatpush1.msra.mxu0 0.0
    %6002 = vmatprep.subr.mxu0 0.0
    %6003 = vmatpush1.msra.mxu0 0.0
    %6004 = vmatprep.subr.mxu0 0.0
    %6005 = vmatpush1.msra.mxu0 0.0
    %6006 = vmatprep.subr.mxu0 0.0
    %6007 = vmatpush1.msra.mxu0 0.0
    %6008 = vmatprep.subr.mxu0 0.0
    %6009 = vmatpush1.msra.mxu0 0.0
    %6010 = vmatprep.subr.mxu0 0.0
    %6011 = vmatpush1.msra.mxu0 0.0
    %6012 = vmatprep.subr.mxu0 0.0
    %6013 = vmatpush1.msra.mxu0 0.0
    %6014 = vmatprep.subr.mxu0 0.0
    %6015 = vmatpush1.msra.mxu0 0.0
    %6016 = vmatprep.subr.mxu0 0.0
    %6017 = vmatpush1.msra.mxu0 %v4685
    %6018 = vmatprep.subr.mxu0 0.0
    %6019 = vmatpush1.msra.mxu0 %v4684
    %6020 = vmatprep.subr.mxu0 0.0
    %6021 = vmatpush1.msra.mxu0 %v4683
    %6022 = vmatprep.subr.mxu0 0.0
    %6023 = vmatpush1.msra.mxu0 %v4682
    %6024 = vmatprep.subr.mxu0 0.0
    %6025 = vmatpush2.msra.mxu0 0.0
    %6026 = vmatprep.subr.mxu0 0.0
    %6027 = vmatpush2.msra.mxu0 0.0
    %6028 = vmatprep.subr.mxu0 0.0
    %6029 = vmatpush2.msra.mxu0 0.0
    %6030 = vmatprep.subr.mxu0 0.0
    %6031 = vmatpush2.msra.mxu0 0.0
    %6032 = vmatprep.subr.mxu0 0.0
    %6033 = vmatpush2.msra.mxu0 0.0
    %6034 = vmatprep.subr.mxu0 0.0
    %6035 = vmatpush2.msra.mxu0 0.0
    %6036 = vmatprep.subr.mxu0 0.0
    %6037 = vmatpush2.msra.mxu0 0.0
    %6038 = vmatprep.subr.mxu0 0.0
    %6039 = vmatpush2.msra.mxu0 0.0
    %6040 = vmatprep.subr.mxu0 0.0
    %6041 = vmatpush2.msra.mxu0 0.0
    %6042 = vmatprep.subr.mxu0 0.0
    %6043 = vmatpush2.msra.mxu0 0.0
    %6044 = vmatprep.subr.mxu0 0.0
    %6045 = vmatpush2.msra.mxu0 0.0
    %6046 = vmatprep.subr.mxu0 0.0
    %6047 = vmatpush2.msra.mxu0 0.0
    %6048 = vmatprep.subr.mxu0 0.0
    %6049 = vmatpush2.msra.mxu0 0.0
    %6050 = vmatprep.subr.mxu0 0.0
    %6051 = vmatpush2.msra.mxu0 0.0
    %6052 = vmatprep.subr.mxu0 0.0
    %6053 = vmatpush2.msra.mxu0 0.0
    %6054 = vmatprep.subr.mxu0 0.0
    %6055 = vmatpush2.msra.mxu0 0.0
    %6056 = vmatprep.mubr.f32.mxu0 0.0
    %6057 = vmatmul.mubr.f32.gmra.mxu0 %v5919
    %v6058 = vpop.f32.mrf.mxu0
    %v6059 = vadd.f32 0.0, %v6058
    %v6060 = vpop.f32.mrf.mxu0
    %6061 = vdwg.mxu0
    %v6063 = vrot.slane %v5988, 2
    %v6065 = vadd.f32 %v4339, %v6063
    %v6066 = vxor.u32 %v6065, 2147483648
    %v6067 = vmul.f32 %v6066, 1.442695
    %v6068 = vpow.pop %v6067
    %v6069 = vadd.f32 %v6068, 1.0
    %v6070 = vrcp.pop %v6069
    %v6071 = vmul.f32 1.0, %v6070
    %v6073 = vrot.slane %v5990, 2
    %v6075 = vadd.f32 %v4506, %v6073
    %v6076 = vxor.u32 %v6075, 2147483648
    %v6077 = vmul.f32 %v6076, 1.442695
    %v6078 = vpow.pop %v6077
    %v6079 = vadd.f32 %v6078, 1.0
    %v6080 = vrcp.pop %v6079
    %v6081 = vmul.f32 1.0, %v6080
    %v6082 = vadd.f32 %v6059, %v4845
    %v6084 = vrot.slane %v6082, 2
    %v6086 = vmul.f32 %v6071, %v6084
    %v6087 = vadd.f32 %v4673, %v6086
    %v6088 = vtanh.pop %v6087
    %v6089 = vsub.f32 1.0, %v6081
    %v6090 = vmul.f32 %v6089, %v6088
    %v6091 = vrot.slane %v5915, 6
    %v6093 = vmul.f32 %v6081, %v6091
    %v6094 = vadd.f32 %v6090, %v6093
    %6095 = vst [vmem:[#allocation2 + $0x8] sm:$0xc0] %v6094
    %v6096 = vld [vmem:[#allocation2] sm:$0xff]
    %v6097 = vld [vmem:[#allocation2 + $0x8] sm:$0xff]
    %v6098 = vld [vmem:[#allocation3 + $0x4a8] sm:$0xff]
    %v6099 = vld [vmem:[#allocation3 + $0x4b0] sm:$0xff]
    %v6100 = vld [vmem:[#allocation3 + $0x4b8] sm:$0x1]
    %v6101 = vlaneseq
    %v6102 = vshrl.u32 %v6101, 7
    %v6103 = vsub.s32 0, %v6102
    %v6104 = vrot.slane %v6100, %v6103
    %v6106 = vsel %vm2124, %v416, 0
    %v6109 = vsel %vm2124, %v418, 0
    %6111 = vmatprep.subr.mxu0 0.0
    %6112 = vmatpush1.msra.mxu0 0.0
    %6113 = vmatprep.subr.mxu0 0.0
    %6114 = vmatpush1.msra.mxu0 0.0
    %6115 = vmatprep.subr.mxu0 0.0
    %6116 = vmatpush1.msra.mxu0 0.0
    %6117 = vmatprep.subr.mxu0 0.0
    %6118 = vmatpush1.msra.mxu0 0.0
    %6119 = vmatprep.subr.mxu0 0.0
    %6120 = vmatpush1.msra.mxu0 0.0
    %6121 = vmatprep.subr.mxu0 0.0
    %6122 = vmatpush1.msra.mxu0 0.0
    %6123 = vmatprep.subr.mxu0 0.0
    %6124 = vmatpush1.msra.mxu0 0.0
    %6125 = vmatprep.subr.mxu0 0.0
    %6126 = vmatpush1.msra.mxu0 0.0
    %6127 = vmatprep.subr.mxu0 0.0
    %6128 = vmatpush1.msra.mxu0 0.0
    %6129 = vmatprep.subr.mxu0 0.0
    %6130 = vmatpush1.msra.mxu0 0.0
    %6131 = vmatprep.subr.mxu0 0.0
    %6132 = vmatpush1.msra.mxu0 0.0
    %6133 = vmatprep.subr.mxu0 0.0
    %6134 = vmatpush1.msra.mxu0 0.0
    %6135 = vmatprep.subr.mxu0 0.0
    %6136 = vmatpush1.msra.mxu0 0.0
    %6137 = vmatprep.subr.mxu0 0.0
    %6138 = vmatpush1.msra.mxu0 0.0
    %6139 = vmatprep.subr.mxu0 0.0
    %6140 = vmatpush1.msra.mxu0 %v6099
    %6141 = vmatprep.subr.mxu0 0.0
    %6142 = vmatpush1.msra.mxu0 %v6098
    %6143 = vmatprep.subr.mxu0 0.0
    %6144 = vmatpush2.msra.mxu0 0.0
    %6145 = vmatprep.subr.mxu0 0.0
    %6146 = vmatpush2.msra.mxu0 0.0
    %6147 = vmatprep.subr.mxu0 0.0
    %6148 = vmatpush2.msra.mxu0 0.0
    %6149 = vmatprep.subr.mxu0 0.0
    %6150 = vmatpush2.msra.mxu0 0.0
    %6151 = vmatprep.subr.mxu0 0.0
    %6152 = vmatpush2.msra.mxu0 0.0
    %6153 = vmatprep.subr.mxu0 0.0
    %6154 = vmatpush2.msra.mxu0 0.0
    %6155 = vmatprep.subr.mxu0 0.0
    %6156 = vmatpush2.msra.mxu0 0.0
    %6157 = vmatprep.subr.mxu0 0.0
    %6158 = vmatpush2.msra.mxu0 0.0
    %6159 = vmatprep.subr.mxu0 0.0
    %6160 = vmatpush2.msra.mxu0 0.0
    %6161 = vmatprep.subr.mxu0 0.0
    %6162 = vmatpush2.msra.mxu0 0.0
    %6163 = vmatprep.subr.mxu0 0.0
    %6164 = vmatpush2.msra.mxu0 0.0
    %6165 = vmatprep.subr.mxu0 0.0
    %6166 = vmatpush2.msra.mxu0 0.0
    %6167 = vmatprep.subr.mxu0 0.0
    %6168 = vmatpush2.msra.mxu0 0.0
    %6169 = vmatprep.subr.mxu0 0.0
    %6170 = vmatpush2.msra.mxu0 0.0
    %6171 = vmatprep.subr.mxu0 0.0
    %6172 = vmatpush2.msra.mxu0 0.0
    %6173 = vmatprep.subr.mxu0 0.0
    %6174 = vmatpush2.msra.mxu0 0.0
    %6175 = vmatprep.mubr.f32.mxu0 0.0
    %6176 = vmatmul.mubr.f32.gmra.mxu0 %v6106
    %v6177 = vpop.f32.mrf.mxu0
    %v6178 = vadd.f32 %v6104, %v6177
    %v6179 = vpop.f32.mrf.mxu0
    %6180 = vmatprep.mubr.f32.mxu0 0.0
    %6181 = vmatmul.mubr.f32.gmra.mxu0 %v6109
    %v6182 = vpop.f32.mrf.mxu0
    %v6183 = vadd.f32 %v6104, %v6182
    %v6184 = vpop.f32.mrf.mxu0
    %6185 = vdwg.mxu0
    %v6186 = vxor.u32 %v6178, 2147483648
    %v6187 = vxor.u32 %v6183, 2147483648
    %v6188 = vmul.f32 %v6186, 1.442695
    %v6189 = vpow.pop %v6188
    %v6190 = vmul.f32 %v6187, 1.442695
    %v6191 = vpow.pop %v6190
    %v6192 = vadd.f32 %v6189, 1.0
    %v6193 = vadd.f32 %v6191, 1.0
    %v6194 = vrcp.pop %v6192
    %v6195 = vmul.f32 1.0, %v6194
    %v6196 = vrcp.pop %v6193
    %v6197 = vmul.f32 1.0, %v6196
    %v6198 = vmul.f32 %v6195, %v6096
    %v6199 = vmul.f32 %v6197, %v6097
    %6202 = vrot.lane.b32.xlu0 %v6195, 96
    %v6203 = vpop.permute.xlu0 %6202
    %6204 = vrot.lane.b32.xlu0 %v6197, 96
    %v6205 = vpop.permute.xlu0 %6204
    %v6208 = vadd.f32 %v6198, %v6203
    %v6209 = vadd.f32 %v6199, %v6205
    %v6210 = vld [vmem:[#allocation3 + $0x300] sm:$0x1]
    %v6211 = vld [vmem:[#allocation3 + $0x2b8] sm:$0xff]
    %v6212 = vld [vmem:[#allocation3 + $0x2c0] sm:$0xff]
    %v6213 = vld [vmem:[#allocation3 + $0x2c8] sm:$0xff]
    %v6214 = vld [vmem:[#allocation3 + $0x2d0] sm:$0xff]
    %v6216 = vsel %vm702, %v6208, 0
    %v6219 = vsel %vm702, %v6209, 0
    %6221 = vmatprep.subr.mxu0 0.0
    %6222 = vmatpush1.msra.mxu0 0.0
    %6223 = vmatprep.subr.mxu0 0.0
    %6224 = vmatpush1.msra.mxu0 0.0
    %6225 = vmatprep.subr.mxu0 0.0
    %6226 = vmatpush1.msra.mxu0 0.0
    %6227 = vmatprep.subr.mxu0 0.0
    %6228 = vmatpush1.msra.mxu0 0.0
    %6229 = vmatprep.subr.mxu0 0.0
    %6230 = vmatpush1.msra.mxu0 0.0
    %6231 = vmatprep.subr.mxu0 0.0
    %6232 = vmatpush1.msra.mxu0 0.0
    %6233 = vmatprep.subr.mxu0 0.0
    %6234 = vmatpush1.msra.mxu0 0.0
    %6235 = vmatprep.subr.mxu0 0.0
    %6236 = vmatpush1.msra.mxu0 0.0
    %6237 = vmatprep.subr.mxu0 0.0
    %6238 = vmatpush1.msra.mxu0 0.0
    %6239 = vmatprep.subr.mxu0 0.0
    %6240 = vmatpush1.msra.mxu0 0.0
    %6241 = vmatprep.subr.mxu0 0.0
    %6242 = vmatpush1.msra.mxu0 0.0
    %6243 = vmatprep.subr.mxu0 0.0
    %6244 = vmatpush1.msra.mxu0 0.0
    %6245 = vmatprep.subr.mxu0 0.0
    %6246 = vmatpush1.msra.mxu0 %v6214
    %6247 = vmatprep.subr.mxu0 0.0
    %6248 = vmatpush1.msra.mxu0 %v6213
    %6249 = vmatprep.subr.mxu0 0.0
    %6250 = vmatpush1.msra.mxu0 %v6212
    %6251 = vmatprep.subr.mxu0 0.0
    %6252 = vmatpush1.msra.mxu0 %v6211
    %6253 = vmatprep.subr.mxu0 0.0
    %6254 = vmatpush2.msra.mxu0 0.0
    %6255 = vmatprep.subr.mxu0 0.0
    %6256 = vmatpush2.msra.mxu0 0.0
    %6257 = vmatprep.subr.mxu0 0.0
    %6258 = vmatpush2.msra.mxu0 0.0
    %6259 = vmatprep.subr.mxu0 0.0
    %6260 = vmatpush2.msra.mxu0 0.0
    %6261 = vmatprep.subr.mxu0 0.0
    %6262 = vmatpush2.msra.mxu0 0.0
    %6263 = vmatprep.subr.mxu0 0.0
    %6264 = vmatpush2.msra.mxu0 0.0
    %6265 = vmatprep.subr.mxu0 0.0
    %6266 = vmatpush2.msra.mxu0 0.0
    %6267 = vmatprep.subr.mxu0 0.0
    %6268 = vmatpush2.msra.mxu0 0.0
    %6269 = vmatprep.subr.mxu0 0.0
    %6270 = vmatpush2.msra.mxu0 0.0
    %6271 = vmatprep.subr.mxu0 0.0
    %6272 = vmatpush2.msra.mxu0 0.0
    %6273 = vmatprep.subr.mxu0 0.0
    %6274 = vmatpush2.msra.mxu0 0.0
    %6275 = vmatprep.subr.mxu0 0.0
    %6276 = vmatpush2.msra.mxu0 0.0
    %6277 = vmatprep.subr.mxu0 0.0
    %6278 = vmatpush2.msra.mxu0 0.0
    %6279 = vmatprep.subr.mxu0 0.0
    %6280 = vmatpush2.msra.mxu0 0.0
    %6281 = vmatprep.subr.mxu0 0.0
    %6282 = vmatpush2.msra.mxu0 0.0
    %6283 = vmatprep.subr.mxu0 0.0
    %6284 = vmatpush2.msra.mxu0 0.0
    %6285 = vmatprep.mubr.f32.mxu0 0.0
    %6286 = vmatmul.mubr.f32.gmra.mxu0 %v6216
    %v6287 = vpop.f32.mrf.mxu0
    %v6288 = vadd.f32 0.0, %v6287
    %v6289 = vpop.f32.mrf.mxu0
    %6290 = vmatprep.mubr.f32.mxu0 0.0
    %6291 = vmatmul.mubr.f32.gmra.mxu0 %v6219
    %v6292 = vpop.f32.mrf.mxu0
    %v6293 = vadd.f32 0.0, %v6292
    %v6294 = vpop.f32.mrf.mxu0
    %6295 = vdwg.mxu0
    %v6296 = vlaneseq
    %v6297 = vshrl.u32 %v6296, 7
    %v6298 = vsub.s32 0, %v6297
    %v6299 = vrot.slane %v6210, %v6298
    %v6300 = vadd.f32 %v6299, %v6288
    %v6301 = vadd.f32 %v6299, %v6293
    %v6302 = vld [vmem:[#allocation3 + $0x2d8] sm:$0xf]
    %v6304 = vsel %vm432, %v6302, 0
    %6306 = vmatprep.subr.mxu0 0.0
    %6307 = vmatpush1.msra.mxu0 0.0
    %6308 = vmatprep.subr.mxu0 0.0
    %6309 = vmatpush1.msra.mxu0 0.0
    %6310 = vmatprep.subr.mxu0 0.0
    %6311 = vmatpush1.msra.mxu0 0.0
    %6312 = vmatprep.subr.mxu0 0.0
    %6313 = vmatpush1.msra.mxu0 0.0
    %6314 = vmatprep.subr.mxu0 0.0
    %6315 = vmatpush1.msra.mxu0 0.0
    %6316 = vmatprep.subr.mxu0 0.0
    %6317 = vmatpush1.msra.mxu0 0.0
    %6318 = vmatprep.subr.mxu0 0.0
    %6319 = vmatpush1.msra.mxu0 0.0
    %6320 = vmatprep.subr.mxu0 0.0
    %6321 = vmatpush1.msra.mxu0 0.0
    %6322 = vmatprep.subr.mxu0 0.0
    %6323 = vmatpush1.msra.mxu0 0.0
    %6324 = vmatprep.subr.mxu0 0.0
    %6325 = vmatpush1.msra.mxu0 0.0
    %6326 = vmatprep.subr.mxu0 0.0
    %6327 = vmatpush1.msra.mxu0 0.0
    %6328 = vmatprep.subr.mxu0 0.0
    %6329 = vmatpush1.msra.mxu0 0.0
    %6330 = vmatprep.subr.mxu0 0.0
    %6331 = vmatpush1.msra.mxu0 0.0
    %6332 = vmatprep.subr.mxu0 0.0
    %6333 = vmatpush1.msra.mxu0 0.0
    %6334 = vmatprep.subr.mxu0 0.0
    %6335 = vmatpush1.msra.mxu0 0.0
    %6336 = vmatprep.subr.mxu0 0.0
    %6337 = vmatpush1.msra.mxu0 %v6304
    %6338 = vmatprep.subr.mxu0 0.0
    %6339 = vmatpush2.msra.mxu0 0.0
    %6340 = vmatprep.subr.mxu0 0.0
    %6341 = vmatpush2.msra.mxu0 0.0
    %6342 = vmatprep.subr.mxu0 0.0
    %6343 = vmatpush2.msra.mxu0 0.0
    %6344 = vmatprep.subr.mxu0 0.0
    %6345 = vmatpush2.msra.mxu0 0.0
    %6346 = vmatprep.subr.mxu0 0.0
    %6347 = vmatpush2.msra.mxu0 0.0
    %6348 = vmatprep.subr.mxu0 0.0
    %6349 = vmatpush2.msra.mxu0 0.0
    %6350 = vmatprep.subr.mxu0 0.0
    %6351 = vmatpush2.msra.mxu0 0.0
    %6352 = vmatprep.subr.mxu0 0.0
    %6353 = vmatpush2.msra.mxu0 0.0
    %6354 = vmatprep.subr.mxu0 0.0
    %6355 = vmatpush2.msra.mxu0 0.0
    %6356 = vmatprep.subr.mxu0 0.0
    %6357 = vmatpush2.msra.mxu0 0.0
    %6358 = vmatprep.subr.mxu0 0.0
    %6359 = vmatpush2.msra.mxu0 0.0
    %6360 = vmatprep.subr.mxu0 0.0
    %6361 = vmatpush2.msra.mxu0 0.0
    %6362 = vmatprep.subr.mxu0 0.0
    %6363 = vmatpush2.msra.mxu0 0.0
    %6364 = vmatprep.subr.mxu0 0.0
    %6365 = vmatpush2.msra.mxu0 0.0
    %6366 = vmatprep.subr.mxu0 0.0
    %6367 = vmatpush2.msra.mxu0 0.0
    %6368 = vmatprep.subr.mxu0 0.0
    %6369 = vmatpush2.msra.mxu0 0.0
    %6370 = vmatprep.mubr.f32.mxu0 0.0
    %6371 = vmatmul.mubr.f32.gmra.mxu0 %v427
    %v6372 = vpop.f32.mrf.mxu0
    %v6373 = vadd.f32 0.0, %v6372
    %v6374 = vpop.f32.mrf.mxu0
    %6375 = vmatprep.mubr.f32.mxu0 0.0
    %6376 = vmatmul.mubr.f32.gmra.mxu0 %v430
    %v6377 = vpop.f32.mrf.mxu0
    %v6378 = vadd.f32 0.0, %v6377
    %v6379 = vpop.f32.mrf.mxu0
    %6380 = vdwg.mxu0
    %v6381 = vadd.f32 %v6300, %v6373
    %v6382 = vadd.f32 %v6301, %v6378
    %v6383 = vld [vmem:[#allocation3 + $0x350] sm:$0x1]
    %v6384 = vld [vmem:[#allocation3 + $0x308] sm:$0xff]
    %v6385 = vld [vmem:[#allocation3 + $0x310] sm:$0xff]
    %v6386 = vld [vmem:[#allocation3 + $0x318] sm:$0xff]
    %v6387 = vld [vmem:[#allocation3 + $0x320] sm:$0xff]
    %6388 = vmatprep.subr.mxu0 0.0
    %6389 = vmatpush1.msra.mxu0 0.0
    %6390 = vmatprep.subr.mxu0 0.0
    %6391 = vmatpush1.msra.mxu0 0.0
    %6392 = vmatprep.subr.mxu0 0.0
    %6393 = vmatpush1.msra.mxu0 0.0
    %6394 = vmatprep.subr.mxu0 0.0
    %6395 = vmatpush1.msra.mxu0 0.0
    %6396 = vmatprep.subr.mxu0 0.0
    %6397 = vmatpush1.msra.mxu0 0.0
    %6398 = vmatprep.subr.mxu0 0.0
    %6399 = vmatpush1.msra.mxu0 0.0
    %6400 = vmatprep.subr.mxu0 0.0
    %6401 = vmatpush1.msra.mxu0 0.0
    %6402 = vmatprep.subr.mxu0 0.0
    %6403 = vmatpush1.msra.mxu0 0.0
    %6404 = vmatprep.subr.mxu0 0.0
    %6405 = vmatpush1.msra.mxu0 0.0
    %6406 = vmatprep.subr.mxu0 0.0
    %6407 = vmatpush1.msra.mxu0 0.0
    %6408 = vmatprep.subr.mxu0 0.0
    %6409 = vmatpush1.msra.mxu0 0.0
    %6410 = vmatprep.subr.mxu0 0.0
    %6411 = vmatpush1.msra.mxu0 0.0
    %6412 = vmatprep.subr.mxu0 0.0
    %6413 = vmatpush1.msra.mxu0 %v6387
    %6414 = vmatprep.subr.mxu0 0.0
    %6415 = vmatpush1.msra.mxu0 %v6386
    %6416 = vmatprep.subr.mxu0 0.0
    %6417 = vmatpush1.msra.mxu0 %v6385
    %6418 = vmatprep.subr.mxu0 0.0
    %6419 = vmatpush1.msra.mxu0 %v6384
    %6420 = vmatprep.subr.mxu0 0.0
    %6421 = vmatpush2.msra.mxu0 0.0
    %6422 = vmatprep.subr.mxu0 0.0
    %6423 = vmatpush2.msra.mxu0 0.0
    %6424 = vmatprep.subr.mxu0 0.0
    %6425 = vmatpush2.msra.mxu0 0.0
    %6426 = vmatprep.subr.mxu0 0.0
    %6427 = vmatpush2.msra.mxu0 0.0
    %6428 = vmatprep.subr.mxu0 0.0
    %6429 = vmatpush2.msra.mxu0 0.0
    %6430 = vmatprep.subr.mxu0 0.0
    %6431 = vmatpush2.msra.mxu0 0.0
    %6432 = vmatprep.subr.mxu0 0.0
    %6433 = vmatpush2.msra.mxu0 0.0
    %6434 = vmatprep.subr.mxu0 0.0
    %6435 = vmatpush2.msra.mxu0 0.0
    %6436 = vmatprep.subr.mxu0 0.0
    %6437 = vmatpush2.msra.mxu0 0.0
    %6438 = vmatprep.subr.mxu0 0.0
    %6439 = vmatpush2.msra.mxu0 0.0
    %6440 = vmatprep.subr.mxu0 0.0
    %6441 = vmatpush2.msra.mxu0 0.0
    %6442 = vmatprep.subr.mxu0 0.0
    %6443 = vmatpush2.msra.mxu0 0.0
    %6444 = vmatprep.subr.mxu0 0.0
    %6445 = vmatpush2.msra.mxu0 0.0
    %6446 = vmatprep.subr.mxu0 0.0
    %6447 = vmatpush2.msra.mxu0 0.0
    %6448 = vmatprep.subr.mxu0 0.0
    %6449 = vmatpush2.msra.mxu0 0.0
    %6450 = vmatprep.subr.mxu0 0.0
    %6451 = vmatpush2.msra.mxu0 0.0
    %6452 = vmatprep.mubr.f32.mxu0 0.0
    %6453 = vmatmul.mubr.f32.gmra.mxu0 %v6216
    %v6454 = vpop.f32.mrf.mxu0
    %v6455 = vadd.f32 0.0, %v6454
    %v6456 = vpop.f32.mrf.mxu0
    %6457 = vmatprep.mubr.f32.mxu0 0.0
    %6458 = vmatmul.mubr.f32.gmra.mxu0 %v6219
    %v6459 = vpop.f32.mrf.mxu0
    %v6460 = vadd.f32 0.0, %v6459
    %v6461 = vpop.f32.mrf.mxu0
    %6462 = vdwg.mxu0
    %v6463 = vlaneseq
    %v6464 = vshrl.u32 %v6463, 7
    %v6465 = vsub.s32 0, %v6464
    %v6466 = vrot.slane %v6383, %v6465
    %v6467 = vadd.f32 %v6466, %v6455
    %v6468 = vadd.f32 %v6466, %v6460
    %v6469 = vld [vmem:[#allocation3 + $0x328] sm:$0xf]
    %v6471 = vsel %vm432, %v6469, 0
    %6473 = vmatprep.subr.mxu0 0.0
    %6474 = vmatpush1.msra.mxu0 0.0
    %6475 = vmatprep.subr.mxu0 0.0
    %6476 = vmatpush1.msra.mxu0 0.0
    %6477 = vmatprep.subr.mxu0 0.0
    %6478 = vmatpush1.msra.mxu0 0.0
    %6479 = vmatprep.subr.mxu0 0.0
    %6480 = vmatpush1.msra.mxu0 0.0
    %6481 = vmatprep.subr.mxu0 0.0
    %6482 = vmatpush1.msra.mxu0 0.0
    %6483 = vmatprep.subr.mxu0 0.0
    %6484 = vmatpush1.msra.mxu0 0.0
    %6485 = vmatprep.subr.mxu0 0.0
    %6486 = vmatpush1.msra.mxu0 0.0
    %6487 = vmatprep.subr.mxu0 0.0
    %6488 = vmatpush1.msra.mxu0 0.0
    %6489 = vmatprep.subr.mxu0 0.0
    %6490 = vmatpush1.msra.mxu0 0.0
    %6491 = vmatprep.subr.mxu0 0.0
    %6492 = vmatpush1.msra.mxu0 0.0
    %6493 = vmatprep.subr.mxu0 0.0
    %6494 = vmatpush1.msra.mxu0 0.0
    %6495 = vmatprep.subr.mxu0 0.0
    %6496 = vmatpush1.msra.mxu0 0.0
    %6497 = vmatprep.subr.mxu0 0.0
    %6498 = vmatpush1.msra.mxu0 0.0
    %6499 = vmatprep.subr.mxu0 0.0
    %6500 = vmatpush1.msra.mxu0 0.0
    %6501 = vmatprep.subr.mxu0 0.0
    %6502 = vmatpush1.msra.mxu0 0.0
    %6503 = vmatprep.subr.mxu0 0.0
    %6504 = vmatpush1.msra.mxu0 %v6471
    %6505 = vmatprep.subr.mxu0 0.0
    %6506 = vmatpush2.msra.mxu0 0.0
    %6507 = vmatprep.subr.mxu0 0.0
    %6508 = vmatpush2.msra.mxu0 0.0
    %6509 = vmatprep.subr.mxu0 0.0
    %6510 = vmatpush2.msra.mxu0 0.0
    %6511 = vmatprep.subr.mxu0 0.0
    %6512 = vmatpush2.msra.mxu0 0.0
    %6513 = vmatprep.subr.mxu0 0.0
    %6514 = vmatpush2.msra.mxu0 0.0
    %6515 = vmatprep.subr.mxu0 0.0
    %6516 = vmatpush2.msra.mxu0 0.0
    %6517 = vmatprep.subr.mxu0 0.0
    %6518 = vmatpush2.msra.mxu0 0.0
    %6519 = vmatprep.subr.mxu0 0.0
    %6520 = vmatpush2.msra.mxu0 0.0
    %6521 = vmatprep.subr.mxu0 0.0
    %6522 = vmatpush2.msra.mxu0 0.0
    %6523 = vmatprep.subr.mxu0 0.0
    %6524 = vmatpush2.msra.mxu0 0.0
    %6525 = vmatprep.subr.mxu0 0.0
    %6526 = vmatpush2.msra.mxu0 0.0
    %6527 = vmatprep.subr.mxu0 0.0
    %6528 = vmatpush2.msra.mxu0 0.0
    %6529 = vmatprep.subr.mxu0 0.0
    %6530 = vmatpush2.msra.mxu0 0.0
    %6531 = vmatprep.subr.mxu0 0.0
    %6532 = vmatpush2.msra.mxu0 0.0
    %6533 = vmatprep.subr.mxu0 0.0
    %6534 = vmatpush2.msra.mxu0 0.0
    %6535 = vmatprep.subr.mxu0 0.0
    %6536 = vmatpush2.msra.mxu0 0.0
    %6537 = vmatprep.mubr.f32.mxu0 0.0
    %6538 = vmatmul.mubr.f32.gmra.mxu0 %v427
    %v6539 = vpop.f32.mrf.mxu0
    %v6540 = vadd.f32 0.0, %v6539
    %v6541 = vpop.f32.mrf.mxu0
    %6542 = vmatprep.mubr.f32.mxu0 0.0
    %6543 = vmatmul.mubr.f32.gmra.mxu0 %v430
    %v6544 = vpop.f32.mrf.mxu0
    %v6545 = vadd.f32 0.0, %v6544
    %v6546 = vpop.f32.mrf.mxu0
    %6547 = vdwg.mxu0
    %v6548 = vadd.f32 %v6467, %v6540
    %v6549 = vadd.f32 %v6468, %v6545
    %v6550 = vld [vmem:[#allocation3 + $0x3a0] sm:$0x1]
    %v6551 = vld [vmem:[#allocation3 + $0x358] sm:$0xff]
    %v6552 = vld [vmem:[#allocation3 + $0x360] sm:$0xff]
    %v6553 = vld [vmem:[#allocation3 + $0x368] sm:$0xff]
    %v6554 = vld [vmem:[#allocation3 + $0x370] sm:$0xff]
    %6555 = vmatprep.subr.mxu0 0.0
    %6556 = vmatpush1.msra.mxu0 0.0
    %6557 = vmatprep.subr.mxu0 0.0
    %6558 = vmatpush1.msra.mxu0 0.0
    %6559 = vmatprep.subr.mxu0 0.0
    %6560 = vmatpush1.msra.mxu0 0.0
    %6561 = vmatprep.subr.mxu0 0.0
    %6562 = vmatpush1.msra.mxu0 0.0
    %6563 = vmatprep.subr.mxu0 0.0
    %6564 = vmatpush1.msra.mxu0 0.0
    %6565 = vmatprep.subr.mxu0 0.0
    %6566 = vmatpush1.msra.mxu0 0.0
    %6567 = vmatprep.subr.mxu0 0.0
    %6568 = vmatpush1.msra.mxu0 0.0
    %6569 = vmatprep.subr.mxu0 0.0
    %6570 = vmatpush1.msra.mxu0 0.0
    %6571 = vmatprep.subr.mxu0 0.0
    %6572 = vmatpush1.msra.mxu0 0.0
    %6573 = vmatprep.subr.mxu0 0.0
    %6574 = vmatpush1.msra.mxu0 0.0
    %6575 = vmatprep.subr.mxu0 0.0
    %6576 = vmatpush1.msra.mxu0 0.0
    %6577 = vmatprep.subr.mxu0 0.0
    %6578 = vmatpush1.msra.mxu0 0.0
    %6579 = vmatprep.subr.mxu0 0.0
    %6580 = vmatpush1.msra.mxu0 %v6554
    %6581 = vmatprep.subr.mxu0 0.0
    %6582 = vmatpush1.msra.mxu0 %v6553
    %6583 = vmatprep.subr.mxu0 0.0
    %6584 = vmatpush1.msra.mxu0 %v6552
    %6585 = vmatprep.subr.mxu0 0.0
    %6586 = vmatpush1.msra.mxu0 %v6551
    %6587 = vmatprep.subr.mxu0 0.0
    %6588 = vmatpush2.msra.mxu0 0.0
    %6589 = vmatprep.subr.mxu0 0.0
    %6590 = vmatpush2.msra.mxu0 0.0
    %6591 = vmatprep.subr.mxu0 0.0
    %6592 = vmatpush2.msra.mxu0 0.0
    %6593 = vmatprep.subr.mxu0 0.0
    %6594 = vmatpush2.msra.mxu0 0.0
    %6595 = vmatprep.subr.mxu0 0.0
    %6596 = vmatpush2.msra.mxu0 0.0
    %6597 = vmatprep.subr.mxu0 0.0
    %6598 = vmatpush2.msra.mxu0 0.0
    %6599 = vmatprep.subr.mxu0 0.0
    %6600 = vmatpush2.msra.mxu0 0.0
    %6601 = vmatprep.subr.mxu0 0.0
    %6602 = vmatpush2.msra.mxu0 0.0
    %6603 = vmatprep.subr.mxu0 0.0
    %6604 = vmatpush2.msra.mxu0 0.0
    %6605 = vmatprep.subr.mxu0 0.0
    %6606 = vmatpush2.msra.mxu0 0.0
    %6607 = vmatprep.subr.mxu0 0.0
    %6608 = vmatpush2.msra.mxu0 0.0
    %6609 = vmatprep.subr.mxu0 0.0
    %6610 = vmatpush2.msra.mxu0 0.0
    %6611 = vmatprep.subr.mxu0 0.0
    %6612 = vmatpush2.msra.mxu0 0.0
    %6613 = vmatprep.subr.mxu0 0.0
    %6614 = vmatpush2.msra.mxu0 0.0
    %6615 = vmatprep.subr.mxu0 0.0
    %6616 = vmatpush2.msra.mxu0 0.0
    %6617 = vmatprep.subr.mxu0 0.0
    %6618 = vmatpush2.msra.mxu0 0.0
    %6619 = vmatprep.mubr.f32.mxu0 0.0
    %6620 = vmatmul.mubr.f32.gmra.mxu0 %v6216
    %v6621 = vpop.f32.mrf.mxu0
    %v6622 = vadd.f32 0.0, %v6621
    %v6623 = vpop.f32.mrf.mxu0
    %6624 = vmatprep.mubr.f32.mxu0 0.0
    %6625 = vmatmul.mubr.f32.gmra.mxu0 %v6219
    %v6626 = vpop.f32.mrf.mxu0
    %v6627 = vadd.f32 0.0, %v6626
    %v6628 = vpop.f32.mrf.mxu0
    %6629 = vdwg.mxu0
    %v6630 = vlaneseq
    %v6631 = vshrl.u32 %v6630, 7
    %v6632 = vsub.s32 0, %v6631
    %v6633 = vrot.slane %v6550, %v6632
    %v6634 = vadd.f32 %v6633, %v6622
    %v6635 = vadd.f32 %v6633, %v6627
    %v6636 = vld [vmem:[#allocation3 + $0x378] sm:$0xf]
    %v6638 = vsel %vm432, %v6636, 0
    %6640 = vmatprep.subr.mxu0 0.0
    %6641 = vmatpush1.msra.mxu0 0.0
    %6642 = vmatprep.subr.mxu0 0.0
    %6643 = vmatpush1.msra.mxu0 0.0
    %6644 = vmatprep.subr.mxu0 0.0
    %6645 = vmatpush1.msra.mxu0 0.0
    %6646 = vmatprep.subr.mxu0 0.0
    %6647 = vmatpush1.msra.mxu0 0.0
    %6648 = vmatprep.subr.mxu0 0.0
    %6649 = vmatpush1.msra.mxu0 0.0
    %6650 = vmatprep.subr.mxu0 0.0
    %6651 = vmatpush1.msra.mxu0 0.0
    %6652 = vmatprep.subr.mxu0 0.0
    %6653 = vmatpush1.msra.mxu0 0.0
    %6654 = vmatprep.subr.mxu0 0.0
    %6655 = vmatpush1.msra.mxu0 0.0
    %6656 = vmatprep.subr.mxu0 0.0
    %6657 = vmatpush1.msra.mxu0 0.0
    %6658 = vmatprep.subr.mxu0 0.0
    %6659 = vmatpush1.msra.mxu0 0.0
    %6660 = vmatprep.subr.mxu0 0.0
    %6661 = vmatpush1.msra.mxu0 0.0
    %6662 = vmatprep.subr.mxu0 0.0
    %6663 = vmatpush1.msra.mxu0 0.0
    %6664 = vmatprep.subr.mxu0 0.0
    %6665 = vmatpush1.msra.mxu0 0.0
    %6666 = vmatprep.subr.mxu0 0.0
    %6667 = vmatpush1.msra.mxu0 0.0
    %6668 = vmatprep.subr.mxu0 0.0
    %6669 = vmatpush1.msra.mxu0 0.0
    %6670 = vmatprep.subr.mxu0 0.0
    %6671 = vmatpush1.msra.mxu0 %v6638
    %6672 = vmatprep.subr.mxu0 0.0
    %6673 = vmatpush2.msra.mxu0 0.0
    %6674 = vmatprep.subr.mxu0 0.0
    %6675 = vmatpush2.msra.mxu0 0.0
    %6676 = vmatprep.subr.mxu0 0.0
    %6677 = vmatpush2.msra.mxu0 0.0
    %6678 = vmatprep.subr.mxu0 0.0
    %6679 = vmatpush2.msra.mxu0 0.0
    %6680 = vmatprep.subr.mxu0 0.0
    %6681 = vmatpush2.msra.mxu0 0.0
    %6682 = vmatprep.subr.mxu0 0.0
    %6683 = vmatpush2.msra.mxu0 0.0
    %6684 = vmatprep.subr.mxu0 0.0
    %6685 = vmatpush2.msra.mxu0 0.0
    %6686 = vmatprep.subr.mxu0 0.0
    %6687 = vmatpush2.msra.mxu0 0.0
    %6688 = vmatprep.subr.mxu0 0.0
    %6689 = vmatpush2.msra.mxu0 0.0
    %6690 = vmatprep.subr.mxu0 0.0
    %6691 = vmatpush2.msra.mxu0 0.0
    %6692 = vmatprep.subr.mxu0 0.0
    %6693 = vmatpush2.msra.mxu0 0.0
    %6694 = vmatprep.subr.mxu0 0.0
    %6695 = vmatpush2.msra.mxu0 0.0
    %6696 = vmatprep.subr.mxu0 0.0
    %6697 = vmatpush2.msra.mxu0 0.0
    %6698 = vmatprep.subr.mxu0 0.0
    %6699 = vmatpush2.msra.mxu0 0.0
    %6700 = vmatprep.subr.mxu0 0.0
    %6701 = vmatpush2.msra.mxu0 0.0
    %6702 = vmatprep.subr.mxu0 0.0
    %6703 = vmatpush2.msra.mxu0 0.0
    %6704 = vmatprep.mubr.f32.mxu0 0.0
    %6705 = vmatmul.mubr.f32.gmra.mxu0 %v427
    %v6706 = vpop.f32.mrf.mxu0
    %v6707 = vadd.f32 0.0, %v6706
    %v6708 = vpop.f32.mrf.mxu0
    %6709 = vmatprep.mubr.f32.mxu0 0.0
    %6710 = vmatmul.mubr.f32.gmra.mxu0 %v430
    %v6711 = vpop.f32.mrf.mxu0
    %v6712 = vadd.f32 0.0, %v6711
    %v6713 = vpop.f32.mrf.mxu0
    %6714 = vdwg.mxu0
    %v6715 = vadd.f32 %v6634, %v6707
    %v6716 = vadd.f32 %v6635, %v6712
    %v6717 = vld [vmem:[#allocation3 + $0x2e0] sm:$0xff]
    %v6718 = vld [vmem:[#allocation3 + $0x2e8] sm:$0xff]
    %v6719 = vld [vmem:[#allocation3 + $0x2f0] sm:$0xff]
    %v6720 = vld [vmem:[#allocation3 + $0x2f8] sm:$0xff]
    %v6721 = vld [vmem:[#allocation3 + $0x330] sm:$0xff]
    %v6722 = vld [vmem:[#allocation3 + $0x338] sm:$0xff]
    %v6723 = vld [vmem:[#allocation3 + $0x340] sm:$0xff]
    %v6724 = vld [vmem:[#allocation3 + $0x348] sm:$0xff]
    %v6725 = vld [vmem:[#allocation3 + $0x380] sm:$0xff]
    %v6726 = vld [vmem:[#allocation3 + $0x388] sm:$0xff]
    %v6727 = vld [vmem:[#allocation3 + $0x390] sm:$0xff]
    %v6728 = vld [vmem:[#allocation3 + $0x398] sm:$0xff]
    %v6729 = vld [vmem:[#allocation3 + $0x3a8] sm:$0x1]
    %6730 = vmatprep.subr.mxu0 0.0
    %6731 = vmatpush1.msra.mxu0 0.0
    %6732 = vmatprep.subr.mxu0 0.0
    %6733 = vmatpush1.msra.mxu0 0.0
    %6734 = vmatprep.subr.mxu0 0.0
    %6735 = vmatpush1.msra.mxu0 0.0
    %6736 = vmatprep.subr.mxu0 0.0
    %6737 = vmatpush1.msra.mxu0 0.0
    %6738 = vmatprep.subr.mxu0 0.0
    %6739 = vmatpush1.msra.mxu0 0.0
    %6740 = vmatprep.subr.mxu0 0.0
    %6741 = vmatpush1.msra.mxu0 0.0
    %6742 = vmatprep.subr.mxu0 0.0
    %6743 = vmatpush1.msra.mxu0 0.0
    %6744 = vmatprep.subr.mxu0 0.0
    %6745 = vmatpush1.msra.mxu0 0.0
    %6746 = vmatprep.subr.mxu0 0.0
    %6747 = vmatpush1.msra.mxu0 0.0
    %6748 = vmatprep.subr.mxu0 0.0
    %6749 = vmatpush1.msra.mxu0 0.0
    %6750 = vmatprep.subr.mxu0 0.0
    %6751 = vmatpush1.msra.mxu0 0.0
    %6752 = vmatprep.subr.mxu0 0.0
    %6753 = vmatpush1.msra.mxu0 0.0
    %6754 = vmatprep.subr.mxu0 %v6724
    %6755 = vmatpush1.msra.mxu0 %v6720
    %6756 = vmatprep.subr.mxu0 %v6723
    %6757 = vmatpush1.msra.mxu0 %v6719
    %6758 = vmatprep.subr.mxu0 %v6722
    %6759 = vmatpush1.msra.mxu0 %v6718
    %6760 = vmatprep.subr.mxu0 %v6721
    %6761 = vmatpush1.msra.mxu0 %v6717
    %6762 = vmatprep.subr.mxu0 0.0
    %6763 = vmatpush2.msra.mxu0 0.0
    %6764 = vmatprep.subr.mxu0 0.0
    %6765 = vmatpush2.msra.mxu0 0.0
    %6766 = vmatprep.subr.mxu0 0.0
    %6767 = vmatpush2.msra.mxu0 0.0
    %6768 = vmatprep.subr.mxu0 0.0
    %6769 = vmatpush2.msra.mxu0 0.0
    %6770 = vmatprep.subr.mxu0 0.0
    %6771 = vmatpush2.msra.mxu0 0.0
    %6772 = vmatprep.subr.mxu0 0.0
    %6773 = vmatpush2.msra.mxu0 0.0
    %6774 = vmatprep.subr.mxu0 0.0
    %6775 = vmatpush2.msra.mxu0 0.0
    %6776 = vmatprep.subr.mxu0 0.0
    %6777 = vmatpush2.msra.mxu0 0.0
    %6778 = vmatprep.subr.mxu0 0.0
    %6779 = vmatpush2.msra.mxu0 0.0
    %6780 = vmatprep.subr.mxu0 0.0
    %6781 = vmatpush2.msra.mxu0 0.0
    %6782 = vmatprep.subr.mxu0 0.0
    %6783 = vmatpush2.msra.mxu0 0.0
    %6784 = vmatprep.subr.mxu0 0.0
    %6785 = vmatpush2.msra.mxu0 0.0
    %6786 = vmatprep.subr.mxu0 0.0
    %6787 = vmatpush2.msra.mxu0 0.0
    %6788 = vmatprep.subr.mxu0 0.0
    %6789 = vmatpush2.msra.mxu0 0.0
    %6790 = vmatprep.subr.mxu0 0.0
    %6791 = vmatpush2.msra.mxu0 0.0
    %6792 = vmatprep.subr.mxu0 0.0
    %6793 = vmatpush2.msra.mxu0 0.0
    %6794 = vmatprep.mubr.f32.mxu0 0.0
    %6795 = vmatmul.mubr.f32.gmra.mxu0 %v704
    %v6796 = vpop.f32.mrf.mxu0
    %v6797 = vadd.f32 0.0, %v6796
    %v6798 = vpop.f32.mrf.mxu0
    %v6799 = vadd.f32 0.0, %v6798
    %6800 = vdwg.mxu0
    %6801 = vmatprep.subr.mxu0 0.0
    %6802 = vmatpush1.msra.mxu0 0.0
    %6803 = vmatprep.subr.mxu0 0.0
    %6804 = vmatpush1.msra.mxu0 0.0
    %6805 = vmatprep.subr.mxu0 0.0
    %6806 = vmatpush1.msra.mxu0 0.0
    %6807 = vmatprep.subr.mxu0 0.0
    %6808 = vmatpush1.msra.mxu0 0.0
    %6809 = vmatprep.subr.mxu0 0.0
    %6810 = vmatpush1.msra.mxu0 0.0
    %6811 = vmatprep.subr.mxu0 0.0
    %6812 = vmatpush1.msra.mxu0 0.0
    %6813 = vmatprep.subr.mxu0 0.0
    %6814 = vmatpush1.msra.mxu0 0.0
    %6815 = vmatprep.subr.mxu0 0.0
    %6816 = vmatpush1.msra.mxu0 0.0
    %6817 = vmatprep.subr.mxu0 0.0
    %6818 = vmatpush1.msra.mxu0 0.0
    %6819 = vmatprep.subr.mxu0 0.0
    %6820 = vmatpush1.msra.mxu0 0.0
    %6821 = vmatprep.subr.mxu0 0.0
    %6822 = vmatpush1.msra.mxu0 0.0
    %6823 = vmatprep.subr.mxu0 0.0
    %6824 = vmatpush1.msra.mxu0 0.0
    %6825 = vmatprep.subr.mxu0 0.0
    %6826 = vmatpush1.msra.mxu0 %v6728
    %6827 = vmatprep.subr.mxu0 0.0
    %6828 = vmatpush1.msra.mxu0 %v6727
    %6829 = vmatprep.subr.mxu0 0.0
    %6830 = vmatpush1.msra.mxu0 %v6726
    %6831 = vmatprep.subr.mxu0 0.0
    %6832 = vmatpush1.msra.mxu0 %v6725
    %6833 = vmatprep.subr.mxu0 0.0
    %6834 = vmatpush2.msra.mxu0 0.0
    %6835 = vmatprep.subr.mxu0 0.0
    %6836 = vmatpush2.msra.mxu0 0.0
    %6837 = vmatprep.subr.mxu0 0.0
    %6838 = vmatpush2.msra.mxu0 0.0
    %6839 = vmatprep.subr.mxu0 0.0
    %6840 = vmatpush2.msra.mxu0 0.0
    %6841 = vmatprep.subr.mxu0 0.0
    %6842 = vmatpush2.msra.mxu0 0.0
    %6843 = vmatprep.subr.mxu0 0.0
    %6844 = vmatpush2.msra.mxu0 0.0
    %6845 = vmatprep.subr.mxu0 0.0
    %6846 = vmatpush2.msra.mxu0 0.0
    %6847 = vmatprep.subr.mxu0 0.0
    %6848 = vmatpush2.msra.mxu0 0.0
    %6849 = vmatprep.subr.mxu0 0.0
    %6850 = vmatpush2.msra.mxu0 0.0
    %6851 = vmatprep.subr.mxu0 0.0
    %6852 = vmatpush2.msra.mxu0 0.0
    %6853 = vmatprep.subr.mxu0 0.0
    %6854 = vmatpush2.msra.mxu0 0.0
    %6855 = vmatprep.subr.mxu0 0.0
    %6856 = vmatpush2.msra.mxu0 0.0
    %6857 = vmatprep.subr.mxu0 0.0
    %6858 = vmatpush2.msra.mxu0 0.0
    %6859 = vmatprep.subr.mxu0 0.0
    %6860 = vmatpush2.msra.mxu0 0.0
    %6861 = vmatprep.subr.mxu0 0.0
    %6862 = vmatpush2.msra.mxu0 0.0
    %6863 = vmatprep.subr.mxu0 0.0
    %6864 = vmatpush2.msra.mxu0 0.0
    %6865 = vmatprep.mubr.f32.mxu0 0.0
    %6866 = vmatmul.mubr.f32.gmra.mxu0 %v704
    %v6867 = vpop.f32.mrf.mxu0
    %v6868 = vadd.f32 0.0, %v6867
    %v6869 = vpop.f32.mrf.mxu0
    %6870 = vdwg.mxu0
    %v6871 = vadd.f32 %v6381, %v6797
    %v6872 = vxor.u32 %v6871, 2147483648
    %v6873 = vmul.f32 %v6872, 1.442695
    %v6874 = vpow.pop %v6873
    %v6875 = vadd.f32 %v6874, 1.0
    %v6876 = vrcp.pop %v6875
    %v6877 = vmul.f32 1.0, %v6876
    %v6878 = vadd.f32 %v6548, %v6799
    %v6879 = vxor.u32 %v6878, 2147483648
    %v6880 = vmul.f32 %v6879, 1.442695
    %v6881 = vpow.pop %v6880
    %v6882 = vadd.f32 %v6881, 1.0
    %v6883 = vrcp.pop %v6882
    %v6884 = vmul.f32 1.0, %v6883
    %v6885 = vlaneseq
    %v6886 = vshrl.u32 %v6885, 7
    %v6887 = vsub.s32 0, %v6886
    %v6888 = vrot.slane %v6729, %v6887
    %v6889 = vadd.f32 %v6868, %v6888
    %v6890 = vmul.f32 %v6877, %v6889
    %v6891 = vadd.f32 %v6715, %v6890
    %v6892 = vtanh.pop %v6891
    %v6893 = vsub.f32 1.0, %v6884
    %v6894 = vmul.f32 %v6893, %v6892
    %v6895 = vmul.f32 %v6884, 0.0
    %v6896 = vadd.f32 %v6894, %v6895
    %6897 = vst [vmem:[#allocation2] sm:$0x3] %v6896
    %v6899 = vsel %vm702, %v6896, 0
    %6901 = vmatprep.subr.mxu0 0.0
    %6902 = vmatpush1.msra.mxu0 0.0
    %6903 = vmatprep.subr.mxu0 0.0
    %6904 = vmatpush1.msra.mxu0 0.0
    %6905 = vmatprep.subr.mxu0 0.0
    %6906 = vmatpush1.msra.mxu0 0.0
    %6907 = vmatprep.subr.mxu0 0.0
    %6908 = vmatpush1.msra.mxu0 0.0
    %6909 = vmatprep.subr.mxu0 0.0
    %6910 = vmatpush1.msra.mxu0 0.0
    %6911 = vmatprep.subr.mxu0 0.0
    %6912 = vmatpush1.msra.mxu0 0.0
    %6913 = vmatprep.subr.mxu0 0.0
    %6914 = vmatpush1.msra.mxu0 0.0
    %6915 = vmatprep.subr.mxu0 0.0
    %6916 = vmatpush1.msra.mxu0 0.0
    %6917 = vmatprep.subr.mxu0 0.0
    %6918 = vmatpush1.msra.mxu0 0.0
    %6919 = vmatprep.subr.mxu0 0.0
    %6920 = vmatpush1.msra.mxu0 0.0
    %6921 = vmatprep.subr.mxu0 0.0
    %6922 = vmatpush1.msra.mxu0 0.0
    %6923 = vmatprep.subr.mxu0 0.0
    %6924 = vmatpush1.msra.mxu0 0.0
    %6925 = vmatprep.subr.mxu0 %v6724
    %6926 = vmatpush1.msra.mxu0 %v6720
    %6927 = vmatprep.subr.mxu0 %v6723
    %6928 = vmatpush1.msra.mxu0 %v6719
    %6929 = vmatprep.subr.mxu0 %v6722
    %6930 = vmatpush1.msra.mxu0 %v6718
    %6931 = vmatprep.subr.mxu0 %v6721
    %6932 = vmatpush1.msra.mxu0 %v6717
    %6933 = vmatprep.subr.mxu0 0.0
    %6934 = vmatpush2.msra.mxu0 0.0
    %6935 = vmatprep.subr.mxu0 0.0
    %6936 = vmatpush2.msra.mxu0 0.0
    %6937 = vmatprep.subr.mxu0 0.0
    %6938 = vmatpush2.msra.mxu0 0.0
    %6939 = vmatprep.subr.mxu0 0.0
    %6940 = vmatpush2.msra.mxu0 0.0
    %6941 = vmatprep.subr.mxu0 0.0
    %6942 = vmatpush2.msra.mxu0 0.0
    %6943 = vmatprep.subr.mxu0 0.0
    %6944 = vmatpush2.msra.mxu0 0.0
    %6945 = vmatprep.subr.mxu0 0.0
    %6946 = vmatpush2.msra.mxu0 0.0
    %6947 = vmatprep.subr.mxu0 0.0
    %6948 = vmatpush2.msra.mxu0 0.0
    %6949 = vmatprep.subr.mxu0 0.0
    %6950 = vmatpush2.msra.mxu0 0.0
    %6951 = vmatprep.subr.mxu0 0.0
    %6952 = vmatpush2.msra.mxu0 0.0
    %6953 = vmatprep.subr.mxu0 0.0
    %6954 = vmatpush2.msra.mxu0 0.0
    %6955 = vmatprep.subr.mxu0 0.0
    %6956 = vmatpush2.msra.mxu0 0.0
    %6957 = vmatprep.subr.mxu0 0.0
    %6958 = vmatpush2.msra.mxu0 0.0
    %6959 = vmatprep.subr.mxu0 0.0
    %6960 = vmatpush2.msra.mxu0 0.0
    %6961 = vmatprep.subr.mxu0 0.0
    %6962 = vmatpush2.msra.mxu0 0.0
    %6963 = vmatprep.subr.mxu0 0.0
    %6964 = vmatpush2.msra.mxu0 0.0
    %6965 = vmatprep.mubr.f32.mxu0 0.0
    %6966 = vmatmul.mubr.f32.gmra.mxu0 %v6899
    %v6967 = vpop.f32.mrf.mxu0
    %v6968 = vadd.f32 0.0, %v6967
    %v6969 = vpop.f32.mrf.mxu0
    %v6970 = vadd.f32 0.0, %v6969
    %6971 = vdwg.mxu0
    %6972 = vmatprep.subr.mxu0 0.0
    %6973 = vmatpush1.msra.mxu0 0.0
    %6974 = vmatprep.subr.mxu0 0.0
    %6975 = vmatpush1.msra.mxu0 0.0
    %6976 = vmatprep.subr.mxu0 0.0
    %6977 = vmatpush1.msra.mxu0 0.0
    %6978 = vmatprep.subr.mxu0 0.0
    %6979 = vmatpush1.msra.mxu0 0.0
    %6980 = vmatprep.subr.mxu0 0.0
    %6981 = vmatpush1.msra.mxu0 0.0
    %6982 = vmatprep.subr.mxu0 0.0
    %6983 = vmatpush1.msra.mxu0 0.0
    %6984 = vmatprep.subr.mxu0 0.0
    %6985 = vmatpush1.msra.mxu0 0.0
    %6986 = vmatprep.subr.mxu0 0.0
    %6987 = vmatpush1.msra.mxu0 0.0
    %6988 = vmatprep.subr.mxu0 0.0
    %6989 = vmatpush1.msra.mxu0 0.0
    %6990 = vmatprep.subr.mxu0 0.0
    %6991 = vmatpush1.msra.mxu0 0.0
    %6992 = vmatprep.subr.mxu0 0.0
    %6993 = vmatpush1.msra.mxu0 0.0
    %6994 = vmatprep.subr.mxu0 0.0
    %6995 = vmatpush1.msra.mxu0 0.0
    %6996 = vmatprep.subr.mxu0 0.0
    %6997 = vmatpush1.msra.mxu0 %v6728
    %6998 = vmatprep.subr.mxu0 0.0
    %6999 = vmatpush1.msra.mxu0 %v6727
    %7000 = vmatprep.subr.mxu0 0.0
    %7001 = vmatpush1.msra.mxu0 %v6726
    %7002 = vmatprep.subr.mxu0 0.0
    %7003 = vmatpush1.msra.mxu0 %v6725
    %7004 = vmatprep.subr.mxu0 0.0
    %7005 = vmatpush2.msra.mxu0 0.0
    %7006 = vmatprep.subr.mxu0 0.0
    %7007 = vmatpush2.msra.mxu0 0.0
    %7008 = vmatprep.subr.mxu0 0.0
    %7009 = vmatpush2.msra.mxu0 0.0
    %7010 = vmatprep.subr.mxu0 0.0
    %7011 = vmatpush2.msra.mxu0 0.0
    %7012 = vmatprep.subr.mxu0 0.0
    %7013 = vmatpush2.msra.mxu0 0.0
    %7014 = vmatprep.subr.mxu0 0.0
    %7015 = vmatpush2.msra.mxu0 0.0
    %7016 = vmatprep.subr.mxu0 0.0
    %7017 = vmatpush2.msra.mxu0 0.0
    %7018 = vmatprep.subr.mxu0 0.0
    %7019 = vmatpush2.msra.mxu0 0.0
    %7020 = vmatprep.subr.mxu0 0.0
    %7021 = vmatpush2.msra.mxu0 0.0
    %7022 = vmatprep.subr.mxu0 0.0
    %7023 = vmatpush2.msra.mxu0 0.0
    %7024 = vmatprep.subr.mxu0 0.0
    %7025 = vmatpush2.msra.mxu0 0.0
    %7026 = vmatprep.subr.mxu0 0.0
    %7027 = vmatpush2.msra.mxu0 0.0
    %7028 = vmatprep.subr.mxu0 0.0
    %7029 = vmatpush2.msra.mxu0 0.0
    %7030 = vmatprep.subr.mxu0 0.0
    %7031 = vmatpush2.msra.mxu0 0.0
    %7032 = vmatprep.subr.mxu0 0.0
    %7033 = vmatpush2.msra.mxu0 0.0
    %7034 = vmatprep.subr.mxu0 0.0
    %7035 = vmatpush2.msra.mxu0 0.0
    %7036 = vmatprep.mubr.f32.mxu0 0.0
    %7037 = vmatmul.mubr.f32.gmra.mxu0 %v6899
    %v7038 = vpop.f32.mrf.mxu0
    %v7039 = vadd.f32 0.0, %v7038
    %v7040 = vpop.f32.mrf.mxu0
    %7041 = vdwg.mxu0
    %v7043 = vrot.slane %v6968, 6
    %v7045 = vadd.f32 %v6381, %v7043
    %v7046 = vxor.u32 %v7045, 2147483648
    %v7047 = vmul.f32 %v7046, 1.442695
    %v7048 = vpow.pop %v7047
    %v7049 = vadd.f32 %v7048, 1.0
    %v7050 = vrcp.pop %v7049
    %v7051 = vmul.f32 1.0, %v7050
    %v7053 = vrot.slane %v6970, 6
    %v7055 = vadd.f32 %v6548, %v7053
    %v7056 = vxor.u32 %v7055, 2147483648
    %v7057 = vmul.f32 %v7056, 1.442695
    %v7058 = vpow.pop %v7057
    %v7059 = vadd.f32 %v7058, 1.0
    %v7060 = vrcp.pop %v7059
    %v7061 = vmul.f32 1.0, %v7060
    %v7062 = vadd.f32 %v7039, %v6888
    %v7064 = vrot.slane %v7062, 6
    %v7066 = vmul.f32 %v7051, %v7064
    %v7067 = vadd.f32 %v6715, %v7066
    %v7068 = vtanh.pop %v7067
    %v7069 = vsub.f32 1.0, %v7061
    %v7070 = vmul.f32 %v7069, %v7068
    %v7071 = vrot.slane %v6896, 6
    %v7073 = vmul.f32 %v7061, %v7071
    %v7074 = vadd.f32 %v7070, %v7073
    %7075 = vst [vmem:[#allocation2] sm:$0xc] %v7074
    %v7077 = vrot.slane %v7074, 2
    %v7078 = vsel %vm702, %v7077, 0
    %7080 = vmatprep.subr.mxu0 0.0
    %7081 = vmatpush1.msra.mxu0 0.0
    %7082 = vmatprep.subr.mxu0 0.0
    %7083 = vmatpush1.msra.mxu0 0.0
    %7084 = vmatprep.subr.mxu0 0.0
    %7085 = vmatpush1.msra.mxu0 0.0
    %7086 = vmatprep.subr.mxu0 0.0
    %7087 = vmatpush1.msra.mxu0 0.0
    %7088 = vmatprep.subr.mxu0 0.0
    %7089 = vmatpush1.msra.mxu0 0.0
    %7090 = vmatprep.subr.mxu0 0.0
    %7091 = vmatpush1.msra.mxu0 0.0
    %7092 = vmatprep.subr.mxu0 0.0
    %7093 = vmatpush1.msra.mxu0 0.0
    %7094 = vmatprep.subr.mxu0 0.0
    %7095 = vmatpush1.msra.mxu0 0.0
    %7096 = vmatprep.subr.mxu0 0.0
    %7097 = vmatpush1.msra.mxu0 0.0
    %7098 = vmatprep.subr.mxu0 0.0
    %7099 = vmatpush1.msra.mxu0 0.0
    %7100 = vmatprep.subr.mxu0 0.0
    %7101 = vmatpush1.msra.mxu0 0.0
    %7102 = vmatprep.subr.mxu0 0.0
    %7103 = vmatpush1.msra.mxu0 0.0
    %7104 = vmatprep.subr.mxu0 %v6724
    %7105 = vmatpush1.msra.mxu0 %v6720
    %7106 = vmatprep.subr.mxu0 %v6723
    %7107 = vmatpush1.msra.mxu0 %v6719
    %7108 = vmatprep.subr.mxu0 %v6722
    %7109 = vmatpush1.msra.mxu0 %v6718
    %7110 = vmatprep.subr.mxu0 %v6721
    %7111 = vmatpush1.msra.mxu0 %v6717
    %7112 = vmatprep.subr.mxu0 0.0
    %7113 = vmatpush2.msra.mxu0 0.0
    %7114 = vmatprep.subr.mxu0 0.0
    %7115 = vmatpush2.msra.mxu0 0.0
    %7116 = vmatprep.subr.mxu0 0.0
    %7117 = vmatpush2.msra.mxu0 0.0
    %7118 = vmatprep.subr.mxu0 0.0
    %7119 = vmatpush2.msra.mxu0 0.0
    %7120 = vmatprep.subr.mxu0 0.0
    %7121 = vmatpush2.msra.mxu0 0.0
    %7122 = vmatprep.subr.mxu0 0.0
    %7123 = vmatpush2.msra.mxu0 0.0
    %7124 = vmatprep.subr.mxu0 0.0
    %7125 = vmatpush2.msra.mxu0 0.0
    %7126 = vmatprep.subr.mxu0 0.0
    %7127 = vmatpush2.msra.mxu0 0.0
    %7128 = vmatprep.subr.mxu0 0.0
    %7129 = vmatpush2.msra.mxu0 0.0
    %7130 = vmatprep.subr.mxu0 0.0
    %7131 = vmatpush2.msra.mxu0 0.0
    %7132 = vmatprep.subr.mxu0 0.0
    %7133 = vmatpush2.msra.mxu0 0.0
    %7134 = vmatprep.subr.mxu0 0.0
    %7135 = vmatpush2.msra.mxu0 0.0
    %7136 = vmatprep.subr.mxu0 0.0
    %7137 = vmatpush2.msra.mxu0 0.0
    %7138 = vmatprep.subr.mxu0 0.0
    %7139 = vmatpush2.msra.mxu0 0.0
    %7140 = vmatprep.subr.mxu0 0.0
    %7141 = vmatpush2.msra.mxu0 0.0
    %7142 = vmatprep.subr.mxu0 0.0
    %7143 = vmatpush2.msra.mxu0 0.0
    %7144 = vmatprep.mubr.f32.mxu0 0.0
    %7145 = vmatmul.mubr.f32.gmra.mxu0 %v7078
    %v7146 = vpop.f32.mrf.mxu0
    %v7147 = vadd.f32 0.0, %v7146
    %v7148 = vpop.f32.mrf.mxu0
    %v7149 = vadd.f32 0.0, %v7148
    %7150 = vdwg.mxu0
    %7151 = vmatprep.subr.mxu0 0.0
    %7152 = vmatpush1.msra.mxu0 0.0
    %7153 = vmatprep.subr.mxu0 0.0
    %7154 = vmatpush1.msra.mxu0 0.0
    %7155 = vmatprep.subr.mxu0 0.0
    %7156 = vmatpush1.msra.mxu0 0.0
    %7157 = vmatprep.subr.mxu0 0.0
    %7158 = vmatpush1.msra.mxu0 0.0
    %7159 = vmatprep.subr.mxu0 0.0
    %7160 = vmatpush1.msra.mxu0 0.0
    %7161 = vmatprep.subr.mxu0 0.0
    %7162 = vmatpush1.msra.mxu0 0.0
    %7163 = vmatprep.subr.mxu0 0.0
    %7164 = vmatpush1.msra.mxu0 0.0
    %7165 = vmatprep.subr.mxu0 0.0
    %7166 = vmatpush1.msra.mxu0 0.0
    %7167 = vmatprep.subr.mxu0 0.0
    %7168 = vmatpush1.msra.mxu0 0.0
    %7169 = vmatprep.subr.mxu0 0.0
    %7170 = vmatpush1.msra.mxu0 0.0
    %7171 = vmatprep.subr.mxu0 0.0
    %7172 = vmatpush1.msra.mxu0 0.0
    %7173 = vmatprep.subr.mxu0 0.0
    %7174 = vmatpush1.msra.mxu0 0.0
    %7175 = vmatprep.subr.mxu0 0.0
    %7176 = vmatpush1.msra.mxu0 %v6728
    %7177 = vmatprep.subr.mxu0 0.0
    %7178 = vmatpush1.msra.mxu0 %v6727
    %7179 = vmatprep.subr.mxu0 0.0
    %7180 = vmatpush1.msra.mxu0 %v6726
    %7181 = vmatprep.subr.mxu0 0.0
    %7182 = vmatpush1.msra.mxu0 %v6725
    %7183 = vmatprep.subr.mxu0 0.0
    %7184 = vmatpush2.msra.mxu0 0.0
    %7185 = vmatprep.subr.mxu0 0.0
    %7186 = vmatpush2.msra.mxu0 0.0
    %7187 = vmatprep.subr.mxu0 0.0
    %7188 = vmatpush2.msra.mxu0 0.0
    %7189 = vmatprep.subr.mxu0 0.0
    %7190 = vmatpush2.msra.mxu0 0.0
    %7191 = vmatprep.subr.mxu0 0.0
    %7192 = vmatpush2.msra.mxu0 0.0
    %7193 = vmatprep.subr.mxu0 0.0
    %7194 = vmatpush2.msra.mxu0 0.0
    %7195 = vmatprep.subr.mxu0 0.0
    %7196 = vmatpush2.msra.mxu0 0.0
    %7197 = vmatprep.subr.mxu0 0.0
    %7198 = vmatpush2.msra.mxu0 0.0
    %7199 = vmatprep.subr.mxu0 0.0
    %7200 = vmatpush2.msra.mxu0 0.0
    %7201 = vmatprep.subr.mxu0 0.0
    %7202 = vmatpush2.msra.mxu0 0.0
    %7203 = vmatprep.subr.mxu0 0.0
    %7204 = vmatpush2.msra.mxu0 0.0
    %7205 = vmatprep.subr.mxu0 0.0
    %7206 = vmatpush2.msra.mxu0 0.0
    %7207 = vmatprep.subr.mxu0 0.0
    %7208 = vmatpush2.msra.mxu0 0.0
    %7209 = vmatprep.subr.mxu0 0.0
    %7210 = vmatpush2.msra.mxu0 0.0
    %7211 = vmatprep.subr.mxu0 0.0
    %7212 = vmatpush2.msra.mxu0 0.0
    %7213 = vmatprep.subr.mxu0 0.0
    %7214 = vmatpush2.msra.mxu0 0.0
    %7215 = vmatprep.mubr.f32.mxu0 0.0
    %7216 = vmatmul.mubr.f32.gmra.mxu0 %v7078
    %v7217 = vpop.f32.mrf.mxu0
    %v7218 = vadd.f32 0.0, %v7217
    %v7219 = vpop.f32.mrf.mxu0
    %7220 = vdwg.mxu0
    %v7222 = vrot.slane %v7147, 4
    %v7224 = vadd.f32 %v6381, %v7222
    %v7225 = vxor.u32 %v7224, 2147483648
    %v7226 = vmul.f32 %v7225, 1.442695
    %v7227 = vpow.pop %v7226
    %v7228 = vadd.f32 %v7227, 1.0
    %v7229 = vrcp.pop %v7228
    %v7230 = vmul.f32 1.0, %v7229
    %v7232 = vrot.slane %v7149, 4
    %v7234 = vadd.f32 %v6548, %v7232
    %v7235 = vxor.u32 %v7234, 2147483648
    %v7236 = vmul.f32 %v7235, 1.442695
    %v7237 = vpow.pop %v7236
    %v7238 = vadd.f32 %v7237, 1.0
    %v7239 = vrcp.pop %v7238
    %v7240 = vmul.f32 1.0, %v7239
    %v7241 = vadd.f32 %v7218, %v6888
    %v7243 = vrot.slane %v7241, 4
    %v7245 = vmul.f32 %v7230, %v7243
    %v7246 = vadd.f32 %v6715, %v7245
    %v7247 = vtanh.pop %v7246
    %v7248 = vsub.f32 1.0, %v7240
    %v7249 = vmul.f32 %v7248, %v7247
    %v7250 = vrot.slane %v7074, 6
    %v7252 = vmul.f32 %v7240, %v7250
    %v7253 = vadd.f32 %v7249, %v7252
    %7254 = vst [vmem:[#allocation2] sm:$0x30] %v7253
    %v7256 = vrot.slane %v7253, 4
    %v7257 = vsel %vm702, %v7256, 0
    %7259 = vmatprep.subr.mxu0 0.0
    %7260 = vmatpush1.msra.mxu0 0.0
    %7261 = vmatprep.subr.mxu0 0.0
    %7262 = vmatpush1.msra.mxu0 0.0
    %7263 = vmatprep.subr.mxu0 0.0
    %7264 = vmatpush1.msra.mxu0 0.0
    %7265 = vmatprep.subr.mxu0 0.0
    %7266 = vmatpush1.msra.mxu0 0.0
    %7267 = vmatprep.subr.mxu0 0.0
    %7268 = vmatpush1.msra.mxu0 0.0
    %7269 = vmatprep.subr.mxu0 0.0
    %7270 = vmatpush1.msra.mxu0 0.0
    %7271 = vmatprep.subr.mxu0 0.0
    %7272 = vmatpush1.msra.mxu0 0.0
    %7273 = vmatprep.subr.mxu0 0.0
    %7274 = vmatpush1.msra.mxu0 0.0
    %7275 = vmatprep.subr.mxu0 0.0
    %7276 = vmatpush1.msra.mxu0 0.0
    %7277 = vmatprep.subr.mxu0 0.0
    %7278 = vmatpush1.msra.mxu0 0.0
    %7279 = vmatprep.subr.mxu0 0.0
    %7280 = vmatpush1.msra.mxu0 0.0
    %7281 = vmatprep.subr.mxu0 0.0
    %7282 = vmatpush1.msra.mxu0 0.0
    %7283 = vmatprep.subr.mxu0 %v6724
    %7284 = vmatpush1.msra.mxu0 %v6720
    %7285 = vmatprep.subr.mxu0 %v6723
    %7286 = vmatpush1.msra.mxu0 %v6719
    %7287 = vmatprep.subr.mxu0 %v6722
    %7288 = vmatpush1.msra.mxu0 %v6718
    %7289 = vmatprep.subr.mxu0 %v6721
    %7290 = vmatpush1.msra.mxu0 %v6717
    %7291 = vmatprep.subr.mxu0 0.0
    %7292 = vmatpush2.msra.mxu0 0.0
    %7293 = vmatprep.subr.mxu0 0.0
    %7294 = vmatpush2.msra.mxu0 0.0
    %7295 = vmatprep.subr.mxu0 0.0
    %7296 = vmatpush2.msra.mxu0 0.0
    %7297 = vmatprep.subr.mxu0 0.0
    %7298 = vmatpush2.msra.mxu0 0.0
    %7299 = vmatprep.subr.mxu0 0.0
    %7300 = vmatpush2.msra.mxu0 0.0
    %7301 = vmatprep.subr.mxu0 0.0
    %7302 = vmatpush2.msra.mxu0 0.0
    %7303 = vmatprep.subr.mxu0 0.0
    %7304 = vmatpush2.msra.mxu0 0.0
    %7305 = vmatprep.subr.mxu0 0.0
    %7306 = vmatpush2.msra.mxu0 0.0
    %7307 = vmatprep.subr.mxu0 0.0
    %7308 = vmatpush2.msra.mxu0 0.0
    %7309 = vmatprep.subr.mxu0 0.0
    %7310 = vmatpush2.msra.mxu0 0.0
    %7311 = vmatprep.subr.mxu0 0.0
    %7312 = vmatpush2.msra.mxu0 0.0
    %7313 = vmatprep.subr.mxu0 0.0
    %7314 = vmatpush2.msra.mxu0 0.0
    %7315 = vmatprep.subr.mxu0 0.0
    %7316 = vmatpush2.msra.mxu0 0.0
    %7317 = vmatprep.subr.mxu0 0.0
    %7318 = vmatpush2.msra.mxu0 0.0
    %7319 = vmatprep.subr.mxu0 0.0
    %7320 = vmatpush2.msra.mxu0 0.0
    %7321 = vmatprep.subr.mxu0 0.0
    %7322 = vmatpush2.msra.mxu0 0.0
    %7323 = vmatprep.mubr.f32.mxu0 0.0
    %7324 = vmatmul.mubr.f32.gmra.mxu0 %v7257
    %v7325 = vpop.f32.mrf.mxu0
    %v7326 = vadd.f32 0.0, %v7325
    %v7327 = vpop.f32.mrf.mxu0
    %v7328 = vadd.f32 0.0, %v7327
    %7329 = vdwg.mxu0
    %7330 = vmatprep.subr.mxu0 0.0
    %7331 = vmatpush1.msra.mxu0 0.0
    %7332 = vmatprep.subr.mxu0 0.0
    %7333 = vmatpush1.msra.mxu0 0.0
    %7334 = vmatprep.subr.mxu0 0.0
    %7335 = vmatpush1.msra.mxu0 0.0
    %7336 = vmatprep.subr.mxu0 0.0
    %7337 = vmatpush1.msra.mxu0 0.0
    %7338 = vmatprep.subr.mxu0 0.0
    %7339 = vmatpush1.msra.mxu0 0.0
    %7340 = vmatprep.subr.mxu0 0.0
    %7341 = vmatpush1.msra.mxu0 0.0
    %7342 = vmatprep.subr.mxu0 0.0
    %7343 = vmatpush1.msra.mxu0 0.0
    %7344 = vmatprep.subr.mxu0 0.0
    %7345 = vmatpush1.msra.mxu0 0.0
    %7346 = vmatprep.subr.mxu0 0.0
    %7347 = vmatpush1.msra.mxu0 0.0
    %7348 = vmatprep.subr.mxu0 0.0
    %7349 = vmatpush1.msra.mxu0 0.0
    %7350 = vmatprep.subr.mxu0 0.0
    %7351 = vmatpush1.msra.mxu0 0.0
    %7352 = vmatprep.subr.mxu0 0.0
    %7353 = vmatpush1.msra.mxu0 0.0
    %7354 = vmatprep.subr.mxu0 0.0
    %7355 = vmatpush1.msra.mxu0 %v6728
    %7356 = vmatprep.subr.mxu0 0.0
    %7357 = vmatpush1.msra.mxu0 %v6727
    %7358 = vmatprep.subr.mxu0 0.0
    %7359 = vmatpush1.msra.mxu0 %v6726
    %7360 = vmatprep.subr.mxu0 0.0
    %7361 = vmatpush1.msra.mxu0 %v6725
    %7362 = vmatprep.subr.mxu0 0.0
    %7363 = vmatpush2.msra.mxu0 0.0
    %7364 = vmatprep.subr.mxu0 0.0
    %7365 = vmatpush2.msra.mxu0 0.0
    %7366 = vmatprep.subr.mxu0 0.0
    %7367 = vmatpush2.msra.mxu0 0.0
    %7368 = vmatprep.subr.mxu0 0.0
    %7369 = vmatpush2.msra.mxu0 0.0
    %7370 = vmatprep.subr.mxu0 0.0
    %7371 = vmatpush2.msra.mxu0 0.0
    %7372 = vmatprep.subr.mxu0 0.0
    %7373 = vmatpush2.msra.mxu0 0.0
    %7374 = vmatprep.subr.mxu0 0.0
    %7375 = vmatpush2.msra.mxu0 0.0
    %7376 = vmatprep.subr.mxu0 0.0
    %7377 = vmatpush2.msra.mxu0 0.0
    %7378 = vmatprep.subr.mxu0 0.0
    %7379 = vmatpush2.msra.mxu0 0.0
    %7380 = vmatprep.subr.mxu0 0.0
    %7381 = vmatpush2.msra.mxu0 0.0
    %7382 = vmatprep.subr.mxu0 0.0
    %7383 = vmatpush2.msra.mxu0 0.0
    %7384 = vmatprep.subr.mxu0 0.0
    %7385 = vmatpush2.msra.mxu0 0.0
    %7386 = vmatprep.subr.mxu0 0.0
    %7387 = vmatpush2.msra.mxu0 0.0
    %7388 = vmatprep.subr.mxu0 0.0
    %7389 = vmatpush2.msra.mxu0 0.0
    %7390 = vmatprep.subr.mxu0 0.0
    %7391 = vmatpush2.msra.mxu0 0.0
    %7392 = vmatprep.subr.mxu0 0.0
    %7393 = vmatpush2.msra.mxu0 0.0
    %7394 = vmatprep.mubr.f32.mxu0 0.0
    %7395 = vmatmul.mubr.f32.gmra.mxu0 %v7257
    %v7396 = vpop.f32.mrf.mxu0
    %v7397 = vadd.f32 0.0, %v7396
    %v7398 = vpop.f32.mrf.mxu0
    %7399 = vdwg.mxu0
    %v7401 = vrot.slane %v7326, 2
    %v7403 = vadd.f32 %v6381, %v7401
    %v7404 = vxor.u32 %v7403, 2147483648
    %v7405 = vmul.f32 %v7404, 1.442695
    %v7406 = vpow.pop %v7405
    %v7407 = vadd.f32 %v7406, 1.0
    %v7408 = vrcp.pop %v7407
    %v7409 = vmul.f32 1.0, %v7408
    %v7411 = vrot.slane %v7328, 2
    %v7413 = vadd.f32 %v6548, %v7411
    %v7414 = vxor.u32 %v7413, 2147483648
    %v7415 = vmul.f32 %v7414, 1.442695
    %v7416 = vpow.pop %v7415
    %v7417 = vadd.f32 %v7416, 1.0
    %v7418 = vrcp.pop %v7417
    %v7419 = vmul.f32 1.0, %v7418
    %v7420 = vadd.f32 %v7397, %v6888
    %v7422 = vrot.slane %v7420, 2
    %v7424 = vmul.f32 %v7409, %v7422
    %v7425 = vadd.f32 %v6715, %v7424
    %v7426 = vtanh.pop %v7425
    %v7427 = vsub.f32 1.0, %v7419
    %v7428 = vmul.f32 %v7427, %v7426
    %v7429 = vrot.slane %v7253, 6
    %v7431 = vmul.f32 %v7419, %v7429
    %v7432 = vadd.f32 %v7428, %v7431
    %7433 = vst [vmem:[#allocation2] sm:$0xc0] %v7432
    %v7435 = vrot.slane %v7432, 6
    %v7436 = vsel %vm702, %v7435, 0
    %7438 = vmatprep.subr.mxu0 0.0
    %7439 = vmatpush1.msra.mxu0 0.0
    %7440 = vmatprep.subr.mxu0 0.0
    %7441 = vmatpush1.msra.mxu0 0.0
    %7442 = vmatprep.subr.mxu0 0.0
    %7443 = vmatpush1.msra.mxu0 0.0
    %7444 = vmatprep.subr.mxu0 0.0
    %7445 = vmatpush1.msra.mxu0 0.0
    %7446 = vmatprep.subr.mxu0 0.0
    %7447 = vmatpush1.msra.mxu0 0.0
    %7448 = vmatprep.subr.mxu0 0.0
    %7449 = vmatpush1.msra.mxu0 0.0
    %7450 = vmatprep.subr.mxu0 0.0
    %7451 = vmatpush1.msra.mxu0 0.0
    %7452 = vmatprep.subr.mxu0 0.0
    %7453 = vmatpush1.msra.mxu0 0.0
    %7454 = vmatprep.subr.mxu0 0.0
    %7455 = vmatpush1.msra.mxu0 0.0
    %7456 = vmatprep.subr.mxu0 0.0
    %7457 = vmatpush1.msra.mxu0 0.0
    %7458 = vmatprep.subr.mxu0 0.0
    %7459 = vmatpush1.msra.mxu0 0.0
    %7460 = vmatprep.subr.mxu0 0.0
    %7461 = vmatpush1.msra.mxu0 0.0
    %7462 = vmatprep.subr.mxu0 %v6724
    %7463 = vmatpush1.msra.mxu0 %v6720
    %7464 = vmatprep.subr.mxu0 %v6723
    %7465 = vmatpush1.msra.mxu0 %v6719
    %7466 = vmatprep.subr.mxu0 %v6722
    %7467 = vmatpush1.msra.mxu0 %v6718
    %7468 = vmatprep.subr.mxu0 %v6721
    %7469 = vmatpush1.msra.mxu0 %v6717
    %7470 = vmatprep.subr.mxu0 0.0
    %7471 = vmatpush2.msra.mxu0 0.0
    %7472 = vmatprep.subr.mxu0 0.0
    %7473 = vmatpush2.msra.mxu0 0.0
    %7474 = vmatprep.subr.mxu0 0.0
    %7475 = vmatpush2.msra.mxu0 0.0
    %7476 = vmatprep.subr.mxu0 0.0
    %7477 = vmatpush2.msra.mxu0 0.0
    %7478 = vmatprep.subr.mxu0 0.0
    %7479 = vmatpush2.msra.mxu0 0.0
    %7480 = vmatprep.subr.mxu0 0.0
    %7481 = vmatpush2.msra.mxu0 0.0
    %7482 = vmatprep.subr.mxu0 0.0
    %7483 = vmatpush2.msra.mxu0 0.0
    %7484 = vmatprep.subr.mxu0 0.0
    %7485 = vmatpush2.msra.mxu0 0.0
    %7486 = vmatprep.subr.mxu0 0.0
    %7487 = vmatpush2.msra.mxu0 0.0
    %7488 = vmatprep.subr.mxu0 0.0
    %7489 = vmatpush2.msra.mxu0 0.0
    %7490 = vmatprep.subr.mxu0 0.0
    %7491 = vmatpush2.msra.mxu0 0.0
    %7492 = vmatprep.subr.mxu0 0.0
    %7493 = vmatpush2.msra.mxu0 0.0
    %7494 = vmatprep.subr.mxu0 0.0
    %7495 = vmatpush2.msra.mxu0 0.0
    %7496 = vmatprep.subr.mxu0 0.0
    %7497 = vmatpush2.msra.mxu0 0.0
    %7498 = vmatprep.subr.mxu0 0.0
    %7499 = vmatpush2.msra.mxu0 0.0
    %7500 = vmatprep.subr.mxu0 0.0
    %7501 = vmatpush2.msra.mxu0 0.0
    %7502 = vmatprep.mubr.f32.mxu0 0.0
    %7503 = vmatmul.mubr.f32.gmra.mxu0 %v7436
    %v7504 = vpop.f32.mrf.mxu0
    %v7505 = vadd.f32 0.0, %v7504
    %v7506 = vpop.f32.mrf.mxu0
    %v7507 = vadd.f32 0.0, %v7506
    %7508 = vdwg.mxu0
    %7509 = vmatprep.subr.mxu0 0.0
    %7510 = vmatpush1.msra.mxu0 0.0
    %7511 = vmatprep.subr.mxu0 0.0
    %7512 = vmatpush1.msra.mxu0 0.0
    %7513 = vmatprep.subr.mxu0 0.0
    %7514 = vmatpush1.msra.mxu0 0.0
    %7515 = vmatprep.subr.mxu0 0.0
    %7516 = vmatpush1.msra.mxu0 0.0
    %7517 = vmatprep.subr.mxu0 0.0
    %7518 = vmatpush1.msra.mxu0 0.0
    %7519 = vmatprep.subr.mxu0 0.0
    %7520 = vmatpush1.msra.mxu0 0.0
    %7521 = vmatprep.subr.mxu0 0.0
    %7522 = vmatpush1.msra.mxu0 0.0
    %7523 = vmatprep.subr.mxu0 0.0
    %7524 = vmatpush1.msra.mxu0 0.0
    %7525 = vmatprep.subr.mxu0 0.0
    %7526 = vmatpush1.msra.mxu0 0.0
    %7527 = vmatprep.subr.mxu0 0.0
    %7528 = vmatpush1.msra.mxu0 0.0
    %7529 = vmatprep.subr.mxu0 0.0
    %7530 = vmatpush1.msra.mxu0 0.0
    %7531 = vmatprep.subr.mxu0 0.0
    %7532 = vmatpush1.msra.mxu0 0.0
    %7533 = vmatprep.subr.mxu0 0.0
    %7534 = vmatpush1.msra.mxu0 %v6728
    %7535 = vmatprep.subr.mxu0 0.0
    %7536 = vmatpush1.msra.mxu0 %v6727
    %7537 = vmatprep.subr.mxu0 0.0
    %7538 = vmatpush1.msra.mxu0 %v6726
    %7539 = vmatprep.subr.mxu0 0.0
    %7540 = vmatpush1.msra.mxu0 %v6725
    %7541 = vmatprep.subr.mxu0 0.0
    %7542 = vmatpush2.msra.mxu0 0.0
    %7543 = vmatprep.subr.mxu0 0.0
    %7544 = vmatpush2.msra.mxu0 0.0
    %7545 = vmatprep.subr.mxu0 0.0
    %7546 = vmatpush2.msra.mxu0 0.0
    %7547 = vmatprep.subr.mxu0 0.0
    %7548 = vmatpush2.msra.mxu0 0.0
    %7549 = vmatprep.subr.mxu0 0.0
    %7550 = vmatpush2.msra.mxu0 0.0
    %7551 = vmatprep.subr.mxu0 0.0
    %7552 = vmatpush2.msra.mxu0 0.0
    %7553 = vmatprep.subr.mxu0 0.0
    %7554 = vmatpush2.msra.mxu0 0.0
    %7555 = vmatprep.subr.mxu0 0.0
    %7556 = vmatpush2.msra.mxu0 0.0
    %7557 = vmatprep.subr.mxu0 0.0
    %7558 = vmatpush2.msra.mxu0 0.0
    %7559 = vmatprep.subr.mxu0 0.0
    %7560 = vmatpush2.msra.mxu0 0.0
    %7561 = vmatprep.subr.mxu0 0.0
    %7562 = vmatpush2.msra.mxu0 0.0
    %7563 = vmatprep.subr.mxu0 0.0
    %7564 = vmatpush2.msra.mxu0 0.0
    %7565 = vmatprep.subr.mxu0 0.0
    %7566 = vmatpush2.msra.mxu0 0.0
    %7567 = vmatprep.subr.mxu0 0.0
    %7568 = vmatpush2.msra.mxu0 0.0
    %7569 = vmatprep.subr.mxu0 0.0
    %7570 = vmatpush2.msra.mxu0 0.0
    %7571 = vmatprep.subr.mxu0 0.0
    %7572 = vmatpush2.msra.mxu0 0.0
    %7573 = vmatprep.mubr.f32.mxu0 0.0
    %7574 = vmatmul.mubr.f32.gmra.mxu0 %v7436
    %v7575 = vpop.f32.mrf.mxu0
    %v7576 = vadd.f32 0.0, %v7575
    %v7577 = vpop.f32.mrf.mxu0
    %7578 = vdwg.mxu0
    %v7579 = vadd.f32 %v6382, %v7505
    %v7580 = vxor.u32 %v7579, 2147483648
    %v7581 = vmul.f32 %v7580, 1.442695
    %v7582 = vpow.pop %v7581
    %v7583 = vadd.f32 %v7582, 1.0
    %v7584 = vrcp.pop %v7583
    %v7585 = vmul.f32 1.0, %v7584
    %v7586 = vadd.f32 %v6549, %v7507
    %v7587 = vxor.u32 %v7586, 2147483648
    %v7588 = vmul.f32 %v7587, 1.442695
    %v7589 = vpow.pop %v7588
    %v7590 = vadd.f32 %v7589, 1.0
    %v7591 = vrcp.pop %v7590
    %v7592 = vmul.f32 1.0, %v7591
    %v7593 = vadd.f32 %v7576, %v6888
    %v7594 = vmul.f32 %v7585, %v7593
    %v7595 = vadd.f32 %v6716, %v7594
    %v7596 = vtanh.pop %v7595
    %v7597 = vsub.f32 1.0, %v7592
    %v7598 = vmul.f32 %v7597, %v7596
    %v7600 = vmul.f32 %v7592, %v7435
    %v7601 = vadd.f32 %v7598, %v7600
    %7602 = vst [vmem:[#allocation2 + $0x8] sm:$0x3] %v7601
    %v7604 = vsel %vm702, %v7601, 0
    %7606 = vmatprep.subr.mxu0 0.0
    %7607 = vmatpush1.msra.mxu0 0.0
    %7608 = vmatprep.subr.mxu0 0.0
    %7609 = vmatpush1.msra.mxu0 0.0
    %7610 = vmatprep.subr.mxu0 0.0
    %7611 = vmatpush1.msra.mxu0 0.0
    %7612 = vmatprep.subr.mxu0 0.0
    %7613 = vmatpush1.msra.mxu0 0.0
    %7614 = vmatprep.subr.mxu0 0.0
    %7615 = vmatpush1.msra.mxu0 0.0
    %7616 = vmatprep.subr.mxu0 0.0
    %7617 = vmatpush1.msra.mxu0 0.0
    %7618 = vmatprep.subr.mxu0 0.0
    %7619 = vmatpush1.msra.mxu0 0.0
    %7620 = vmatprep.subr.mxu0 0.0
    %7621 = vmatpush1.msra.mxu0 0.0
    %7622 = vmatprep.subr.mxu0 0.0
    %7623 = vmatpush1.msra.mxu0 0.0
    %7624 = vmatprep.subr.mxu0 0.0
    %7625 = vmatpush1.msra.mxu0 0.0
    %7626 = vmatprep.subr.mxu0 0.0
    %7627 = vmatpush1.msra.mxu0 0.0
    %7628 = vmatprep.subr.mxu0 0.0
    %7629 = vmatpush1.msra.mxu0 0.0
    %7630 = vmatprep.subr.mxu0 %v6724
    %7631 = vmatpush1.msra.mxu0 %v6720
    %7632 = vmatprep.subr.mxu0 %v6723
    %7633 = vmatpush1.msra.mxu0 %v6719
    %7634 = vmatprep.subr.mxu0 %v6722
    %7635 = vmatpush1.msra.mxu0 %v6718
    %7636 = vmatprep.subr.mxu0 %v6721
    %7637 = vmatpush1.msra.mxu0 %v6717
    %7638 = vmatprep.subr.mxu0 0.0
    %7639 = vmatpush2.msra.mxu0 0.0
    %7640 = vmatprep.subr.mxu0 0.0
    %7641 = vmatpush2.msra.mxu0 0.0
    %7642 = vmatprep.subr.mxu0 0.0
    %7643 = vmatpush2.msra.mxu0 0.0
    %7644 = vmatprep.subr.mxu0 0.0
    %7645 = vmatpush2.msra.mxu0 0.0
    %7646 = vmatprep.subr.mxu0 0.0
    %7647 = vmatpush2.msra.mxu0 0.0
    %7648 = vmatprep.subr.mxu0 0.0
    %7649 = vmatpush2.msra.mxu0 0.0
    %7650 = vmatprep.subr.mxu0 0.0
    %7651 = vmatpush2.msra.mxu0 0.0
    %7652 = vmatprep.subr.mxu0 0.0
    %7653 = vmatpush2.msra.mxu0 0.0
    %7654 = vmatprep.subr.mxu0 0.0
    %7655 = vmatpush2.msra.mxu0 0.0
    %7656 = vmatprep.subr.mxu0 0.0
    %7657 = vmatpush2.msra.mxu0 0.0
    %7658 = vmatprep.subr.mxu0 0.0
    %7659 = vmatpush2.msra.mxu0 0.0
    %7660 = vmatprep.subr.mxu0 0.0
    %7661 = vmatpush2.msra.mxu0 0.0
    %7662 = vmatprep.subr.mxu0 0.0
    %7663 = vmatpush2.msra.mxu0 0.0
    %7664 = vmatprep.subr.mxu0 0.0
    %7665 = vmatpush2.msra.mxu0 0.0
    %7666 = vmatprep.subr.mxu0 0.0
    %7667 = vmatpush2.msra.mxu0 0.0
    %7668 = vmatprep.subr.mxu0 0.0
    %7669 = vmatpush2.msra.mxu0 0.0
    %7670 = vmatprep.mubr.f32.mxu0 0.0
    %7671 = vmatmul.mubr.f32.gmra.mxu0 %v7604
    %v7672 = vpop.f32.mrf.mxu0
    %v7673 = vadd.f32 0.0, %v7672
    %v7674 = vpop.f32.mrf.mxu0
    %v7675 = vadd.f32 0.0, %v7674
    %7676 = vdwg.mxu0
    %7677 = vmatprep.subr.mxu0 0.0
    %7678 = vmatpush1.msra.mxu0 0.0
    %7679 = vmatprep.subr.mxu0 0.0
    %7680 = vmatpush1.msra.mxu0 0.0
    %7681 = vmatprep.subr.mxu0 0.0
    %7682 = vmatpush1.msra.mxu0 0.0
    %7683 = vmatprep.subr.mxu0 0.0
    %7684 = vmatpush1.msra.mxu0 0.0
    %7685 = vmatprep.subr.mxu0 0.0
    %7686 = vmatpush1.msra.mxu0 0.0
    %7687 = vmatprep.subr.mxu0 0.0
    %7688 = vmatpush1.msra.mxu0 0.0
    %7689 = vmatprep.subr.mxu0 0.0
    %7690 = vmatpush1.msra.mxu0 0.0
    %7691 = vmatprep.subr.mxu0 0.0
    %7692 = vmatpush1.msra.mxu0 0.0
    %7693 = vmatprep.subr.mxu0 0.0
    %7694 = vmatpush1.msra.mxu0 0.0
    %7695 = vmatprep.subr.mxu0 0.0
    %7696 = vmatpush1.msra.mxu0 0.0
    %7697 = vmatprep.subr.mxu0 0.0
    %7698 = vmatpush1.msra.mxu0 0.0
    %7699 = vmatprep.subr.mxu0 0.0
    %7700 = vmatpush1.msra.mxu0 0.0
    %7701 = vmatprep.subr.mxu0 0.0
    %7702 = vmatpush1.msra.mxu0 %v6728
    %7703 = vmatprep.subr.mxu0 0.0
    %7704 = vmatpush1.msra.mxu0 %v6727
    %7705 = vmatprep.subr.mxu0 0.0
    %7706 = vmatpush1.msra.mxu0 %v6726
    %7707 = vmatprep.subr.mxu0 0.0
    %7708 = vmatpush1.msra.mxu0 %v6725
    %7709 = vmatprep.subr.mxu0 0.0
    %7710 = vmatpush2.msra.mxu0 0.0
    %7711 = vmatprep.subr.mxu0 0.0
    %7712 = vmatpush2.msra.mxu0 0.0
    %7713 = vmatprep.subr.mxu0 0.0
    %7714 = vmatpush2.msra.mxu0 0.0
    %7715 = vmatprep.subr.mxu0 0.0
    %7716 = vmatpush2.msra.mxu0 0.0
    %7717 = vmatprep.subr.mxu0 0.0
    %7718 = vmatpush2.msra.mxu0 0.0
    %7719 = vmatprep.subr.mxu0 0.0
    %7720 = vmatpush2.msra.mxu0 0.0
    %7721 = vmatprep.subr.mxu0 0.0
    %7722 = vmatpush2.msra.mxu0 0.0
    %7723 = vmatprep.subr.mxu0 0.0
    %7724 = vmatpush2.msra.mxu0 0.0
    %7725 = vmatprep.subr.mxu0 0.0
    %7726 = vmatpush2.msra.mxu0 0.0
    %7727 = vmatprep.subr.mxu0 0.0
    %7728 = vmatpush2.msra.mxu0 0.0
    %7729 = vmatprep.subr.mxu0 0.0
    %7730 = vmatpush2.msra.mxu0 0.0
    %7731 = vmatprep.subr.mxu0 0.0
    %7732 = vmatpush2.msra.mxu0 0.0
    %7733 = vmatprep.subr.mxu0 0.0
    %7734 = vmatpush2.msra.mxu0 0.0
    %7735 = vmatprep.subr.mxu0 0.0
    %7736 = vmatpush2.msra.mxu0 0.0
    %7737 = vmatprep.subr.mxu0 0.0
    %7738 = vmatpush2.msra.mxu0 0.0
    %7739 = vmatprep.subr.mxu0 0.0
    %7740 = vmatpush2.msra.mxu0 0.0
    %7741 = vmatprep.mubr.f32.mxu0 0.0
    %7742 = vmatmul.mubr.f32.gmra.mxu0 %v7604
    %v7743 = vpop.f32.mrf.mxu0
    %v7744 = vadd.f32 0.0, %v7743
    %v7745 = vpop.f32.mrf.mxu0
    %7746 = vdwg.mxu0
    %v7748 = vrot.slane %v7673, 6
    %v7750 = vadd.f32 %v6382, %v7748
    %v7751 = vxor.u32 %v7750, 2147483648
    %v7752 = vmul.f32 %v7751, 1.442695
    %v7753 = vpow.pop %v7752
    %v7754 = vadd.f32 %v7753, 1.0
    %v7755 = vrcp.pop %v7754
    %v7756 = vmul.f32 1.0, %v7755
    %v7758 = vrot.slane %v7675, 6
    %v7760 = vadd.f32 %v6549, %v7758
    %v7761 = vxor.u32 %v7760, 2147483648
    %v7762 = vmul.f32 %v7761, 1.442695
    %v7763 = vpow.pop %v7762
    %v7764 = vadd.f32 %v7763, 1.0
    %v7765 = vrcp.pop %v7764
    %v7766 = vmul.f32 1.0, %v7765
    %v7767 = vadd.f32 %v7744, %v6888
    %v7769 = vrot.slane %v7767, 6
    %v7771 = vmul.f32 %v7756, %v7769
    %v7772 = vadd.f32 %v6716, %v7771
    %v7773 = vtanh.pop %v7772
    %v7774 = vsub.f32 1.0, %v7766
    %v7775 = vmul.f32 %v7774, %v7773
    %v7776 = vrot.slane %v7601, 6
    %v7778 = vmul.f32 %v7766, %v7776
    %v7779 = vadd.f32 %v7775, %v7778
    %7780 = vst [vmem:[#allocation2 + $0x8] sm:$0xc] %v7779
    %v7782 = vrot.slane %v7779, 2
    %v7783 = vsel %vm702, %v7782, 0
    %7785 = vmatprep.subr.mxu0 0.0
    %7786 = vmatpush1.msra.mxu0 0.0
    %7787 = vmatprep.subr.mxu0 0.0
    %7788 = vmatpush1.msra.mxu0 0.0
    %7789 = vmatprep.subr.mxu0 0.0
    %7790 = vmatpush1.msra.mxu0 0.0
    %7791 = vmatprep.subr.mxu0 0.0
    %7792 = vmatpush1.msra.mxu0 0.0
    %7793 = vmatprep.subr.mxu0 0.0
    %7794 = vmatpush1.msra.mxu0 0.0
    %7795 = vmatprep.subr.mxu0 0.0
    %7796 = vmatpush1.msra.mxu0 0.0
    %7797 = vmatprep.subr.mxu0 0.0
    %7798 = vmatpush1.msra.mxu0 0.0
    %7799 = vmatprep.subr.mxu0 0.0
    %7800 = vmatpush1.msra.mxu0 0.0
    %7801 = vmatprep.subr.mxu0 0.0
    %7802 = vmatpush1.msra.mxu0 0.0
    %7803 = vmatprep.subr.mxu0 0.0
    %7804 = vmatpush1.msra.mxu0 0.0
    %7805 = vmatprep.subr.mxu0 0.0
    %7806 = vmatpush1.msra.mxu0 0.0
    %7807 = vmatprep.subr.mxu0 0.0
    %7808 = vmatpush1.msra.mxu0 0.0
    %7809 = vmatprep.subr.mxu0 %v6724
    %7810 = vmatpush1.msra.mxu0 %v6720
    %7811 = vmatprep.subr.mxu0 %v6723
    %7812 = vmatpush1.msra.mxu0 %v6719
    %7813 = vmatprep.subr.mxu0 %v6722
    %7814 = vmatpush1.msra.mxu0 %v6718
    %7815 = vmatprep.subr.mxu0 %v6721
    %7816 = vmatpush1.msra.mxu0 %v6717
    %7817 = vmatprep.subr.mxu0 0.0
    %7818 = vmatpush2.msra.mxu0 0.0
    %7819 = vmatprep.subr.mxu0 0.0
    %7820 = vmatpush2.msra.mxu0 0.0
    %7821 = vmatprep.subr.mxu0 0.0
    %7822 = vmatpush2.msra.mxu0 0.0
    %7823 = vmatprep.subr.mxu0 0.0
    %7824 = vmatpush2.msra.mxu0 0.0
    %7825 = vmatprep.subr.mxu0 0.0
    %7826 = vmatpush2.msra.mxu0 0.0
    %7827 = vmatprep.subr.mxu0 0.0
    %7828 = vmatpush2.msra.mxu0 0.0
    %7829 = vmatprep.subr.mxu0 0.0
    %7830 = vmatpush2.msra.mxu0 0.0
    %7831 = vmatprep.subr.mxu0 0.0
    %7832 = vmatpush2.msra.mxu0 0.0
    %7833 = vmatprep.subr.mxu0 0.0
    %7834 = vmatpush2.msra.mxu0 0.0
    %7835 = vmatprep.subr.mxu0 0.0
    %7836 = vmatpush2.msra.mxu0 0.0
    %7837 = vmatprep.subr.mxu0 0.0
    %7838 = vmatpush2.msra.mxu0 0.0
    %7839 = vmatprep.subr.mxu0 0.0
    %7840 = vmatpush2.msra.mxu0 0.0
    %7841 = vmatprep.subr.mxu0 0.0
    %7842 = vmatpush2.msra.mxu0 0.0
    %7843 = vmatprep.subr.mxu0 0.0
    %7844 = vmatpush2.msra.mxu0 0.0
    %7845 = vmatprep.subr.mxu0 0.0
    %7846 = vmatpush2.msra.mxu0 0.0
    %7847 = vmatprep.subr.mxu0 0.0
    %7848 = vmatpush2.msra.mxu0 0.0
    %7849 = vmatprep.mubr.f32.mxu0 0.0
    %7850 = vmatmul.mubr.f32.gmra.mxu0 %v7783
    %v7851 = vpop.f32.mrf.mxu0
    %v7852 = vadd.f32 0.0, %v7851
    %v7853 = vpop.f32.mrf.mxu0
    %v7854 = vadd.f32 0.0, %v7853
    %7855 = vdwg.mxu0
    %7856 = vmatprep.subr.mxu0 0.0
    %7857 = vmatpush1.msra.mxu0 0.0
    %7858 = vmatprep.subr.mxu0 0.0
    %7859 = vmatpush1.msra.mxu0 0.0
    %7860 = vmatprep.subr.mxu0 0.0
    %7861 = vmatpush1.msra.mxu0 0.0
    %7862 = vmatprep.subr.mxu0 0.0
    %7863 = vmatpush1.msra.mxu0 0.0
    %7864 = vmatprep.subr.mxu0 0.0
    %7865 = vmatpush1.msra.mxu0 0.0
    %7866 = vmatprep.subr.mxu0 0.0
    %7867 = vmatpush1.msra.mxu0 0.0
    %7868 = vmatprep.subr.mxu0 0.0
    %7869 = vmatpush1.msra.mxu0 0.0
    %7870 = vmatprep.subr.mxu0 0.0
    %7871 = vmatpush1.msra.mxu0 0.0
    %7872 = vmatprep.subr.mxu0 0.0
    %7873 = vmatpush1.msra.mxu0 0.0
    %7874 = vmatprep.subr.mxu0 0.0
    %7875 = vmatpush1.msra.mxu0 0.0
    %7876 = vmatprep.subr.mxu0 0.0
    %7877 = vmatpush1.msra.mxu0 0.0
    %7878 = vmatprep.subr.mxu0 0.0
    %7879 = vmatpush1.msra.mxu0 0.0
    %7880 = vmatprep.subr.mxu0 0.0
    %7881 = vmatpush1.msra.mxu0 %v6728
    %7882 = vmatprep.subr.mxu0 0.0
    %7883 = vmatpush1.msra.mxu0 %v6727
    %7884 = vmatprep.subr.mxu0 0.0
    %7885 = vmatpush1.msra.mxu0 %v6726
    %7886 = vmatprep.subr.mxu0 0.0
    %7887 = vmatpush1.msra.mxu0 %v6725
    %7888 = vmatprep.subr.mxu0 0.0
    %7889 = vmatpush2.msra.mxu0 0.0
    %7890 = vmatprep.subr.mxu0 0.0
    %7891 = vmatpush2.msra.mxu0 0.0
    %7892 = vmatprep.subr.mxu0 0.0
    %7893 = vmatpush2.msra.mxu0 0.0
    %7894 = vmatprep.subr.mxu0 0.0
    %7895 = vmatpush2.msra.mxu0 0.0
    %7896 = vmatprep.subr.mxu0 0.0
    %7897 = vmatpush2.msra.mxu0 0.0
    %7898 = vmatprep.subr.mxu0 0.0
    %7899 = vmatpush2.msra.mxu0 0.0
    %7900 = vmatprep.subr.mxu0 0.0
    %7901 = vmatpush2.msra.mxu0 0.0
    %7902 = vmatprep.subr.mxu0 0.0
    %7903 = vmatpush2.msra.mxu0 0.0
    %7904 = vmatprep.subr.mxu0 0.0
    %7905 = vmatpush2.msra.mxu0 0.0
    %7906 = vmatprep.subr.mxu0 0.0
    %7907 = vmatpush2.msra.mxu0 0.0
    %7908 = vmatprep.subr.mxu0 0.0
    %7909 = vmatpush2.msra.mxu0 0.0
    %7910 = vmatprep.subr.mxu0 0.0
    %7911 = vmatpush2.msra.mxu0 0.0
    %7912 = vmatprep.subr.mxu0 0.0
    %7913 = vmatpush2.msra.mxu0 0.0
    %7914 = vmatprep.subr.mxu0 0.0
    %7915 = vmatpush2.msra.mxu0 0.0
    %7916 = vmatprep.subr.mxu0 0.0
    %7917 = vmatpush2.msra.mxu0 0.0
    %7918 = vmatprep.subr.mxu0 0.0
    %7919 = vmatpush2.msra.mxu0 0.0
    %7920 = vmatprep.mubr.f32.mxu0 0.0
    %7921 = vmatmul.mubr.f32.gmra.mxu0 %v7783
    %v7922 = vpop.f32.mrf.mxu0
    %v7923 = vadd.f32 0.0, %v7922
    %v7924 = vpop.f32.mrf.mxu0
    %7925 = vdwg.mxu0
    %v7927 = vrot.slane %v7852, 4
    %v7929 = vadd.f32 %v6382, %v7927
    %v7930 = vxor.u32 %v7929, 2147483648
    %v7931 = vmul.f32 %v7930, 1.442695
    %v7932 = vpow.pop %v7931
    %v7933 = vadd.f32 %v7932, 1.0
    %v7934 = vrcp.pop %v7933
    %v7935 = vmul.f32 1.0, %v7934
    %v7937 = vrot.slane %v7854, 4
    %v7939 = vadd.f32 %v6549, %v7937
    %v7940 = vxor.u32 %v7939, 2147483648
    %v7941 = vmul.f32 %v7940, 1.442695
    %v7942 = vpow.pop %v7941
    %v7943 = vadd.f32 %v7942, 1.0
    %v7944 = vrcp.pop %v7943
    %v7945 = vmul.f32 1.0, %v7944
    %v7946 = vadd.f32 %v7923, %v6888
    %v7948 = vrot.slane %v7946, 4
    %v7950 = vmul.f32 %v7935, %v7948
    %v7951 = vadd.f32 %v6716, %v7950
    %v7952 = vtanh.pop %v7951
    %v7953 = vsub.f32 1.0, %v7945
    %v7954 = vmul.f32 %v7953, %v7952
    %v7955 = vrot.slane %v7779, 6
    %v7957 = vmul.f32 %v7945, %v7955
    %v7958 = vadd.f32 %v7954, %v7957
    %7959 = vst [vmem:[#allocation2 + $0x8] sm:$0x30] %v7958
    %v7961 = vrot.slane %v7958, 4
    %v7962 = vsel %vm702, %v7961, 0
    %7964 = vmatprep.subr.mxu0 0.0
    %7965 = vmatpush1.msra.mxu0 0.0
    %7966 = vmatprep.subr.mxu0 0.0
    %7967 = vmatpush1.msra.mxu0 0.0
    %7968 = vmatprep.subr.mxu0 0.0
    %7969 = vmatpush1.msra.mxu0 0.0
    %7970 = vmatprep.subr.mxu0 0.0
    %7971 = vmatpush1.msra.mxu0 0.0
    %7972 = vmatprep.subr.mxu0 0.0
    %7973 = vmatpush1.msra.mxu0 0.0
    %7974 = vmatprep.subr.mxu0 0.0
    %7975 = vmatpush1.msra.mxu0 0.0
    %7976 = vmatprep.subr.mxu0 0.0
    %7977 = vmatpush1.msra.mxu0 0.0
    %7978 = vmatprep.subr.mxu0 0.0
    %7979 = vmatpush1.msra.mxu0 0.0
    %7980 = vmatprep.subr.mxu0 0.0
    %7981 = vmatpush1.msra.mxu0 0.0
    %7982 = vmatprep.subr.mxu0 0.0
    %7983 = vmatpush1.msra.mxu0 0.0
    %7984 = vmatprep.subr.mxu0 0.0
    %7985 = vmatpush1.msra.mxu0 0.0
    %7986 = vmatprep.subr.mxu0 0.0
    %7987 = vmatpush1.msra.mxu0 0.0
    %7988 = vmatprep.subr.mxu0 %v6724
    %7989 = vmatpush1.msra.mxu0 %v6720
    %7990 = vmatprep.subr.mxu0 %v6723
    %7991 = vmatpush1.msra.mxu0 %v6719
    %7992 = vmatprep.subr.mxu0 %v6722
    %7993 = vmatpush1.msra.mxu0 %v6718
    %7994 = vmatprep.subr.mxu0 %v6721
    %7995 = vmatpush1.msra.mxu0 %v6717
    %7996 = vmatprep.subr.mxu0 0.0
    %7997 = vmatpush2.msra.mxu0 0.0
    %7998 = vmatprep.subr.mxu0 0.0
    %7999 = vmatpush2.msra.mxu0 0.0
    %8000 = vmatprep.subr.mxu0 0.0
    %8001 = vmatpush2.msra.mxu0 0.0
    %8002 = vmatprep.subr.mxu0 0.0
    %8003 = vmatpush2.msra.mxu0 0.0
    %8004 = vmatprep.subr.mxu0 0.0
    %8005 = vmatpush2.msra.mxu0 0.0
    %8006 = vmatprep.subr.mxu0 0.0
    %8007 = vmatpush2.msra.mxu0 0.0
    %8008 = vmatprep.subr.mxu0 0.0
    %8009 = vmatpush2.msra.mxu0 0.0
    %8010 = vmatprep.subr.mxu0 0.0
    %8011 = vmatpush2.msra.mxu0 0.0
    %8012 = vmatprep.subr.mxu0 0.0
    %8013 = vmatpush2.msra.mxu0 0.0
    %8014 = vmatprep.subr.mxu0 0.0
    %8015 = vmatpush2.msra.mxu0 0.0
    %8016 = vmatprep.subr.mxu0 0.0
    %8017 = vmatpush2.msra.mxu0 0.0
    %8018 = vmatprep.subr.mxu0 0.0
    %8019 = vmatpush2.msra.mxu0 0.0
    %8020 = vmatprep.subr.mxu0 0.0
    %8021 = vmatpush2.msra.mxu0 0.0
    %8022 = vmatprep.subr.mxu0 0.0
    %8023 = vmatpush2.msra.mxu0 0.0
    %8024 = vmatprep.subr.mxu0 0.0
    %8025 = vmatpush2.msra.mxu0 0.0
    %8026 = vmatprep.subr.mxu0 0.0
    %8027 = vmatpush2.msra.mxu0 0.0
    %8028 = vmatprep.mubr.f32.mxu0 0.0
    %8029 = vmatmul.mubr.f32.gmra.mxu0 %v7962
    %v8030 = vpop.f32.mrf.mxu0
    %v8031 = vadd.f32 0.0, %v8030
    %v8032 = vpop.f32.mrf.mxu0
    %v8033 = vadd.f32 0.0, %v8032
    %8034 = vdwg.mxu0
    %8035 = vmatprep.subr.mxu0 0.0
    %8036 = vmatpush1.msra.mxu0 0.0
    %8037 = vmatprep.subr.mxu0 0.0
    %8038 = vmatpush1.msra.mxu0 0.0
    %8039 = vmatprep.subr.mxu0 0.0
    %8040 = vmatpush1.msra.mxu0 0.0
    %8041 = vmatprep.subr.mxu0 0.0
    %8042 = vmatpush1.msra.mxu0 0.0
    %8043 = vmatprep.subr.mxu0 0.0
    %8044 = vmatpush1.msra.mxu0 0.0
    %8045 = vmatprep.subr.mxu0 0.0
    %8046 = vmatpush1.msra.mxu0 0.0
    %8047 = vmatprep.subr.mxu0 0.0
    %8048 = vmatpush1.msra.mxu0 0.0
    %8049 = vmatprep.subr.mxu0 0.0
    %8050 = vmatpush1.msra.mxu0 0.0
    %8051 = vmatprep.subr.mxu0 0.0
    %8052 = vmatpush1.msra.mxu0 0.0
    %8053 = vmatprep.subr.mxu0 0.0
    %8054 = vmatpush1.msra.mxu0 0.0
    %8055 = vmatprep.subr.mxu0 0.0
    %8056 = vmatpush1.msra.mxu0 0.0
    %8057 = vmatprep.subr.mxu0 0.0
    %8058 = vmatpush1.msra.mxu0 0.0
    %8059 = vmatprep.subr.mxu0 0.0
    %8060 = vmatpush1.msra.mxu0 %v6728
    %8061 = vmatprep.subr.mxu0 0.0
    %8062 = vmatpush1.msra.mxu0 %v6727
    %8063 = vmatprep.subr.mxu0 0.0
    %8064 = vmatpush1.msra.mxu0 %v6726
    %8065 = vmatprep.subr.mxu0 0.0
    %8066 = vmatpush1.msra.mxu0 %v6725
    %8067 = vmatprep.subr.mxu0 0.0
    %8068 = vmatpush2.msra.mxu0 0.0
    %8069 = vmatprep.subr.mxu0 0.0
    %8070 = vmatpush2.msra.mxu0 0.0
    %8071 = vmatprep.subr.mxu0 0.0
    %8072 = vmatpush2.msra.mxu0 0.0
    %8073 = vmatprep.subr.mxu0 0.0
    %8074 = vmatpush2.msra.mxu0 0.0
    %8075 = vmatprep.subr.mxu0 0.0
    %8076 = vmatpush2.msra.mxu0 0.0
    %8077 = vmatprep.subr.mxu0 0.0
    %8078 = vmatpush2.msra.mxu0 0.0
    %8079 = vmatprep.subr.mxu0 0.0
    %8080 = vmatpush2.msra.mxu0 0.0
    %8081 = vmatprep.subr.mxu0 0.0
    %8082 = vmatpush2.msra.mxu0 0.0
    %8083 = vmatprep.subr.mxu0 0.0
    %8084 = vmatpush2.msra.mxu0 0.0
    %8085 = vmatprep.subr.mxu0 0.0
    %8086 = vmatpush2.msra.mxu0 0.0
    %8087 = vmatprep.subr.mxu0 0.0
    %8088 = vmatpush2.msra.mxu0 0.0
    %8089 = vmatprep.subr.mxu0 0.0
    %8090 = vmatpush2.msra.mxu0 0.0
    %8091 = vmatprep.subr.mxu0 0.0
    %8092 = vmatpush2.msra.mxu0 0.0
    %8093 = vmatprep.subr.mxu0 0.0
    %8094 = vmatpush2.msra.mxu0 0.0
    %8095 = vmatprep.subr.mxu0 0.0
    %8096 = vmatpush2.msra.mxu0 0.0
    %8097 = vmatprep.subr.mxu0 0.0
    %8098 = vmatpush2.msra.mxu0 0.0
    %8099 = vmatprep.mubr.f32.mxu0 0.0
    %8100 = vmatmul.mubr.f32.gmra.mxu0 %v7962
    %v8101 = vpop.f32.mrf.mxu0
    %v8102 = vadd.f32 0.0, %v8101
    %v8103 = vpop.f32.mrf.mxu0
    %8104 = vdwg.mxu0
    %v8106 = vrot.slane %v8031, 2
    %v8108 = vadd.f32 %v6382, %v8106
    %v8109 = vxor.u32 %v8108, 2147483648
    %v8110 = vmul.f32 %v8109, 1.442695
    %v8111 = vpow.pop %v8110
    %v8112 = vadd.f32 %v8111, 1.0
    %v8113 = vrcp.pop %v8112
    %v8114 = vmul.f32 1.0, %v8113
    %v8116 = vrot.slane %v8033, 2
    %v8118 = vadd.f32 %v6549, %v8116
    %v8119 = vxor.u32 %v8118, 2147483648
    %v8120 = vmul.f32 %v8119, 1.442695
    %v8121 = vpow.pop %v8120
    %v8122 = vadd.f32 %v8121, 1.0
    %v8123 = vrcp.pop %v8122
    %v8124 = vmul.f32 1.0, %v8123
    %v8125 = vadd.f32 %v8102, %v6888
    %v8127 = vrot.slane %v8125, 2
    %v8129 = vmul.f32 %v8114, %v8127
    %v8130 = vadd.f32 %v6716, %v8129
    %v8131 = vtanh.pop %v8130
    %v8132 = vsub.f32 1.0, %v8124
    %v8133 = vmul.f32 %v8132, %v8131
    %v8134 = vrot.slane %v7958, 6
    %v8136 = vmul.f32 %v8124, %v8134
    %v8137 = vadd.f32 %v8133, %v8136
    %8138 = vst [vmem:[#allocation2 + $0x8] sm:$0xc0] %v8137
    %v8139 = vld [vmem:[#allocation2] sm:$0xff]
    %v8140 = vld [vmem:[#allocation2 + $0x8] sm:$0xff]
    %v8141 = vld [vmem:[#allocation3 + $0x4c0] sm:$0xff]
    %v8142 = vld [vmem:[#allocation3 + $0x4c8] sm:$0xff]
    %v8143 = vld [vmem:[#allocation3 + $0x4d0] sm:$0x1]
    %v8144 = vlaneseq
    %v8145 = vshrl.u32 %v8144, 7
    %v8146 = vsub.s32 0, %v8145
    %v8147 = vrot.slane %v8143, %v8146
    %v8149 = vsel %vm2124, %v420, 0
    %v8152 = vsel %vm2124, %v422, 0
    %8154 = vmatprep.subr.mxu0 0.0
    %8155 = vmatpush1.msra.mxu0 0.0
    %8156 = vmatprep.subr.mxu0 0.0
    %8157 = vmatpush1.msra.mxu0 0.0
    %8158 = vmatprep.subr.mxu0 0.0
    %8159 = vmatpush1.msra.mxu0 0.0
    %8160 = vmatprep.subr.mxu0 0.0
    %8161 = vmatpush1.msra.mxu0 0.0
    %8162 = vmatprep.subr.mxu0 0.0
    %8163 = vmatpush1.msra.mxu0 0.0
    %8164 = vmatprep.subr.mxu0 0.0
    %8165 = vmatpush1.msra.mxu0 0.0
    %8166 = vmatprep.subr.mxu0 0.0
    %8167 = vmatpush1.msra.mxu0 0.0
    %8168 = vmatprep.subr.mxu0 0.0
    %8169 = vmatpush1.msra.mxu0 0.0
    %8170 = vmatprep.subr.mxu0 0.0
    %8171 = vmatpush1.msra.mxu0 0.0
    %8172 = vmatprep.subr.mxu0 0.0
    %8173 = vmatpush1.msra.mxu0 0.0
    %8174 = vmatprep.subr.mxu0 0.0
    %8175 = vmatpush1.msra.mxu0 0.0
    %8176 = vmatprep.subr.mxu0 0.0
    %8177 = vmatpush1.msra.mxu0 0.0
    %8178 = vmatprep.subr.mxu0 0.0
    %8179 = vmatpush1.msra.mxu0 0.0
    %8180 = vmatprep.subr.mxu0 0.0
    %8181 = vmatpush1.msra.mxu0 0.0
    %8182 = vmatprep.subr.mxu0 0.0
    %8183 = vmatpush1.msra.mxu0 %v8142
    %8184 = vmatprep.subr.mxu0 0.0
    %8185 = vmatpush1.msra.mxu0 %v8141
    %8186 = vmatprep.subr.mxu0 0.0
    %8187 = vmatpush2.msra.mxu0 0.0
    %8188 = vmatprep.subr.mxu0 0.0
    %8189 = vmatpush2.msra.mxu0 0.0
    %8190 = vmatprep.subr.mxu0 0.0
    %8191 = vmatpush2.msra.mxu0 0.0
    %8192 = vmatprep.subr.mxu0 0.0
    %8193 = vmatpush2.msra.mxu0 0.0
    %8194 = vmatprep.subr.mxu0 0.0
    %8195 = vmatpush2.msra.mxu0 0.0
    %8196 = vmatprep.subr.mxu0 0.0
    %8197 = vmatpush2.msra.mxu0 0.0
    %8198 = vmatprep.subr.mxu0 0.0
    %8199 = vmatpush2.msra.mxu0 0.0
    %8200 = vmatprep.subr.mxu0 0.0
    %8201 = vmatpush2.msra.mxu0 0.0
    %8202 = vmatprep.subr.mxu0 0.0
    %8203 = vmatpush2.msra.mxu0 0.0
    %8204 = vmatprep.subr.mxu0 0.0
    %8205 = vmatpush2.msra.mxu0 0.0
    %8206 = vmatprep.subr.mxu0 0.0
    %8207 = vmatpush2.msra.mxu0 0.0
    %8208 = vmatprep.subr.mxu0 0.0
    %8209 = vmatpush2.msra.mxu0 0.0
    %8210 = vmatprep.subr.mxu0 0.0
    %8211 = vmatpush2.msra.mxu0 0.0
    %8212 = vmatprep.subr.mxu0 0.0
    %8213 = vmatpush2.msra.mxu0 0.0
    %8214 = vmatprep.subr.mxu0 0.0
    %8215 = vmatpush2.msra.mxu0 0.0
    %8216 = vmatprep.subr.mxu0 0.0
    %8217 = vmatpush2.msra.mxu0 0.0
    %8218 = vmatprep.mubr.f32.mxu0 0.0
    %8219 = vmatmul.mubr.f32.gmra.mxu0 %v8149
    %v8220 = vpop.f32.mrf.mxu0
    %v8221 = vadd.f32 %v8147, %v8220
    %v8222 = vpop.f32.mrf.mxu0
    %8223 = vmatprep.mubr.f32.mxu0 0.0
    %8224 = vmatmul.mubr.f32.gmra.mxu0 %v8152
    %v8225 = vpop.f32.mrf.mxu0
    %v8226 = vadd.f32 %v8147, %v8225
    %v8227 = vpop.f32.mrf.mxu0
    %8228 = vdwg.mxu0
    %v8229 = vxor.u32 %v8221, 2147483648
    %v8230 = vxor.u32 %v8226, 2147483648
    %v8231 = vmul.f32 %v8229, 1.442695
    %v8232 = vpow.pop %v8231
    %v8233 = vmul.f32 %v8230, 1.442695
    %v8234 = vpow.pop %v8233
    %v8235 = vadd.f32 %v8232, 1.0
    %v8236 = vadd.f32 %v8234, 1.0
    %v8237 = vrcp.pop %v8235
    %v8238 = vmul.f32 1.0, %v8237
    %v8239 = vrcp.pop %v8236
    %v8240 = vmul.f32 1.0, %v8239
    %v8241 = vmul.f32 %v8238, %v8139
    %v8242 = vmul.f32 %v8240, %v8140
    %8245 = vrot.lane.b32.xlu0 %v8238, 96
    %v8246 = vpop.permute.xlu0 %8245
    %8247 = vrot.lane.b32.xlu0 %v8240, 96
    %v8248 = vpop.permute.xlu0 %8247
    %v8251 = vadd.f32 %v8241, %v8246
    %v8252 = vadd.f32 %v8242, %v8248
    %v8253 = vld [vmem:[#allocation3 + $0x510] sm:$0xff]
    %v8254 = vld [vmem:[#allocation3 + $0x518] sm:$0xff]
    %v8255 = vld [vmem:[#allocation3 + $0x520] sm:$0xff]
    %v8256 = vld [vmem:[#allocation3 + $0x528] sm:$0xff]
    %v8257 = vld [vmem:[#allocation3 + $0x530] sm:$0x1]
    %v8258 = vlaneseq
    %v8259 = vshrl.u32 %v8258, 7
    %v8260 = vsub.s32 0, %v8259
    %v8261 = vrot.slane %v8257, %v8260
    %v8263 = vsel %vm702, %v8251, 0
    %v8266 = vsel %vm702, %v8252, 0
    %8268 = vmatprep.subr.mxu0 0.0
    %8269 = vmatpush1.msra.mxu0 0.0
    %8270 = vmatprep.subr.mxu0 0.0
    %8271 = vmatpush1.msra.mxu0 0.0
    %8272 = vmatprep.subr.mxu0 0.0
    %8273 = vmatpush1.msra.mxu0 0.0
    %8274 = vmatprep.subr.mxu0 0.0
    %8275 = vmatpush1.msra.mxu0 0.0
    %8276 = vmatprep.subr.mxu0 0.0
    %8277 = vmatpush1.msra.mxu0 0.0
    %8278 = vmatprep.subr.mxu0 0.0
    %8279 = vmatpush1.msra.mxu0 0.0
    %8280 = vmatprep.subr.mxu0 0.0
    %8281 = vmatpush1.msra.mxu0 0.0
    %8282 = vmatprep.subr.mxu0 0.0
    %8283 = vmatpush1.msra.mxu0 0.0
    %8284 = vmatprep.subr.mxu0 0.0
    %8285 = vmatpush1.msra.mxu0 0.0
    %8286 = vmatprep.subr.mxu0 0.0
    %8287 = vmatpush1.msra.mxu0 0.0
    %8288 = vmatprep.subr.mxu0 0.0
    %8289 = vmatpush1.msra.mxu0 0.0
    %8290 = vmatprep.subr.mxu0 0.0
    %8291 = vmatpush1.msra.mxu0 0.0
    %8292 = vmatprep.subr.mxu0 0.0
    %8293 = vmatpush1.msra.mxu0 %v8256
    %8294 = vmatprep.subr.mxu0 0.0
    %8295 = vmatpush1.msra.mxu0 %v8255
    %8296 = vmatprep.subr.mxu0 0.0
    %8297 = vmatpush1.msra.mxu0 %v8254
    %8298 = vmatprep.subr.mxu0 0.0
    %8299 = vmatpush1.msra.mxu0 %v8253
    %8300 = vmatprep.subr.mxu0 0.0
    %8301 = vmatpush2.msra.mxu0 0.0
    %8302 = vmatprep.subr.mxu0 0.0
    %8303 = vmatpush2.msra.mxu0 0.0
    %8304 = vmatprep.subr.mxu0 0.0
    %8305 = vmatpush2.msra.mxu0 0.0
    %8306 = vmatprep.subr.mxu0 0.0
    %8307 = vmatpush2.msra.mxu0 0.0
    %8308 = vmatprep.subr.mxu0 0.0
    %8309 = vmatpush2.msra.mxu0 0.0
    %8310 = vmatprep.subr.mxu0 0.0
    %8311 = vmatpush2.msra.mxu0 0.0
    %8312 = vmatprep.subr.mxu0 0.0
    %8313 = vmatpush2.msra.mxu0 0.0
    %8314 = vmatprep.subr.mxu0 0.0
    %8315 = vmatpush2.msra.mxu0 0.0
    %8316 = vmatprep.subr.mxu0 0.0
    %8317 = vmatpush2.msra.mxu0 0.0
    %8318 = vmatprep.subr.mxu0 0.0
    %8319 = vmatpush2.msra.mxu0 0.0
    %8320 = vmatprep.subr.mxu0 0.0
    %8321 = vmatpush2.msra.mxu0 0.0
    %8322 = vmatprep.subr.mxu0 0.0
    %8323 = vmatpush2.msra.mxu0 0.0
    %8324 = vmatprep.subr.mxu0 0.0
    %8325 = vmatpush2.msra.mxu0 0.0
    %8326 = vmatprep.subr.mxu0 0.0
    %8327 = vmatpush2.msra.mxu0 0.0
    %8328 = vmatprep.subr.mxu0 0.0
    %8329 = vmatpush2.msra.mxu0 0.0
    %8330 = vmatprep.subr.mxu0 0.0
    %8331 = vmatpush2.msra.mxu0 0.0
    %8332 = vmatprep.mubr.f32.mxu0 0.0
    %8333 = vmatmul.mubr.f32.gmra.mxu0 %v8263
    %v8334 = vpop.f32.mrf.mxu0
    %v8335 = vadd.f32 %v8261, %v8334
    %v8336 = vpop.f32.mrf.mxu0
    %8337 = vmatprep.mubr.f32.mxu0 0.0
    %8338 = vmatmul.mubr.f32.gmra.mxu0 %v8266
    %v8339 = vpop.f32.mrf.mxu0
    %v8340 = vadd.f32 %v8261, %v8339
    %v8341 = vpop.f32.mrf.mxu0
    %8342 = vdwg.mxu0
    %8343 = vst [vmem:[%s3] sm:$0xff] %v8335
    %8344 = vst [vmem:[%s3 + $0x8] sm:$0xff] %v8340
    // Predicated region
    $region18: #{unet_gru_forward.1} parent=1 // pred_check
      _
    $region19: #{unet_gru_forward.1} parent=1 // pred_check_branch
      %8346 = sbr.rel (0) target = $region21
    $region20: #{unet_gru_forward.1} parent=1 // pred_region
      _
    $region21: #{unet_gru_forward.1} parent=1 // pred_fallthru
      _
    // Predicated region
    $region22: #{unet_gru_forward.1} parent=1 // pred_check
      _
    $region23: #{unet_gru_forward.1} parent=1 // pred_check_branch
      %8348 = sbr.rel (0) target = $region25
    $region24: #{unet_gru_forward.1} parent=1 // pred_region
      _
    $region25: #{unet_gru_forward.1} parent=1 // pred_fallthru
      _
    %8349 = vsyncpa [#allocation4], 1

</llo_original>
